<compile_context>
chip_gen: v6e
topology: v6e:2x2x1
jax: 0.10.0
libtpu: 0.0.40
codegen_flags: <defaults>
</compile_context>

<pallas_src>
import jax
import jax.numpy as jnp
from jax.experimental import pallas as pl
from jax.experimental.pallas import tpu as pltpu


N_FEATURES = 128
HIDDEN = (256, 512, 1024)
N_OUT = 28 * 28          # 784
N_OUT_PAD = 896          # 7 * 128 -> lane-dense final store


def _generator_kernel(x_ref,
                      w0_ref, b0_ref,
                      w1_ref, b1_ref,
                      w2_ref, b2_ref,
                      w3_ref, b3_ref,
                      out_ref):
    # One batch tile per grid step.  Weights (bf16) are re-used across the
    # whole grid; matmuls run on the MXU with f32 accumulation, the
    # elementwise epilogue (bias, ReLU, tanh) stays in f32 on the VPU/EUP.
    h = x_ref[...].astype(jnp.bfloat16)

    h = jnp.dot(h, w0_ref[...], preferred_element_type=jnp.float32) + b0_ref[...]
    h = jnp.maximum(h, 0.0).astype(jnp.bfloat16)

    h = jnp.dot(h, w1_ref[...], preferred_element_type=jnp.float32) + b1_ref[...]
    h = jnp.maximum(h, 0.0).astype(jnp.bfloat16)

    h = jnp.dot(h, w2_ref[...], preferred_element_type=jnp.float32) + b2_ref[...]
    h = jnp.maximum(h, 0.0).astype(jnp.bfloat16)

    h = jnp.dot(h, w3_ref[...], preferred_element_type=jnp.float32) + b3_ref[...]
    out_ref[...] = jnp.tanh(h)


def generator_forward(x, params):
    """x: (B, 128) f32.  params: w{i}: (in, out) f32, b{i}: (1, out) f32.
    Returns (B, 1, 28, 28) f32 (NCHW), matching the PyTorch module."""
    B = x.shape[0]

    # Batch tile: 128 fills the MXU M dimension; 256 for v6e/v7x-sized batches.
    TB = 256 if B >= 256 else 128
    B_pad = ((B + TB - 1) // TB) * TB
    if B_pad != B:
        x = jnp.pad(x, ((0, B_pad - B), (0, 0)))

    # bf16 weights (halves dominant HBM weight traffic); last layer padded to
    # a lane-dense 896-wide output.  Biases stay f32.
    ws, bs = [], []
    for i in range(4):
        w = params[f"w{i}"]
        b = params[f"b{i}"]
        if i == 3:
            w = jnp.pad(w, ((0, 0), (0, N_OUT_PAD - N_OUT)))
            b = jnp.pad(b, ((0, 0), (0, N_OUT_PAD - N_OUT)))
        ws.append(w.astype(jnp.bfloat16))
        bs.append(b.astype(jnp.float32))

    args = (x, ws[0], bs[0], ws[1], bs[1], ws[2], bs[2], ws[3], bs[3])

    # x / out are tiled over the batch grid; every weight/bias block is the
    # full array with a constant index_map (stays resident across the grid).
    in_specs = [pl.BlockSpec((TB, N_FEATURES), lambda i: (i, 0))]
    for w, b in zip(ws, bs):
        in_specs.append(pl.BlockSpec(w.shape, lambda i: (0, 0)))
        in_specs.append(pl.BlockSpec(b.shape, lambda i: (0, 0)))
    out_spec = pl.BlockSpec((TB, N_OUT_PAD), lambda i: (i, 0))

    flops = 2 * B_pad * (128 * 256 + 256 * 512 + 512 * 1024 + 1024 * N_OUT_PAD)
    bytes_accessed = (x.size * 4
                      + sum(w.size * 2 for w in ws)
                      + sum(b.size * 4 for b in bs)
                      + B_pad * N_OUT_PAD * 4)
    cost = pl.CostEstimate(flops=flops,
                           transcendentals=B_pad * N_OUT_PAD,
                           bytes_accessed=bytes_accessed)

    flat = pl.pallas_call(
        _generator_kernel,
        out_shape=jax.ShapeDtypeStruct((B_pad, N_OUT_PAD), jnp.float32),
        grid=(B_pad // TB,),
        in_specs=in_specs,
        out_specs=out_spec,
        compiler_params=pltpu.CompilerParams(
            dimension_semantics=("parallel",),    # megacore split on v7x
            vmem_limit_bytes=24 << 20),           # footprint ~9 MB << 24 MiB
        cost_estimate=cost,
    )(*args)

    # Drop batch / lane padding, then view(-1, 1, 28, 28) — pure reshape glue.
    return flat[:B, :N_OUT].reshape(B, 1, 28, 28)


def init_params(key):
    """Deterministic synthetic parameters with the same shapes as the PyTorch
    module.  Stored pre-transposed as (in, out); bias as (1, out)."""
    dims = (N_FEATURES,) + HIDDEN + (N_OUT,)
    params = {}
    keys = jax.random.split(key, len(dims) - 1)
    for i, (d_in, d_out) in enumerate(zip(dims[:-1], dims[1:])):
        kw, kb = jax.random.split(keys[i])
        bound = 1.0 / (d_in ** 0.5)  # matches nn.Linear default init range
        params[f"w{i}"] = jax.random.uniform(
            kw, (d_in, d_out), jnp.float32, -bound, bound)
        params[f"b{i}"] = jax.random.uniform(
            kb, (1, d_out), jnp.float32, -bound, bound)
    return params


def _reference_forward(x, params):
    """Pure-JAX reference emulating the kernel's numerics (bf16 matmul inputs,
    f32 accumulation / bias / activations)."""
    h = x
    for i in range(4):
        w = params[f"w{i}"].astype(jnp.bfloat16)
        h = jnp.dot(h.astype(jnp.bfloat16), w,
                    preferred_element_type=jnp.float32) + params[f"b{i}"]
        if i < 3:
            h = jnp.maximum(h, 0.0)
    return jnp.tanh(h).reshape(-1, 1, 28, 28)


if __name__ == "__main__":
    key = jax.random.PRNGKey(0)
    k_param, k_x = jax.random.split(key)

    params = init_params(k_param)
    batch = 8
    x = jax.random.normal(k_x, (batch, N_FEATURES), jnp.float32)

    fwd = jax.jit(generator_forward)
    out = jax.block_until_ready(fwd(x, params))

    assert out.shape == (batch, 1, 28, 28), out.shape
    ref = _reference_forward(x, params)
    max_err = float(jnp.max(jnp.abs(out - ref)))
    assert jnp.allclose(out, ref, atol=1e-3, rtol=1e-3), max_err

    print("KERNEL_OK")
</pallas_src>

<mosaic_0001>
module attributes {stable_mosaic.version = 11 : i64} {
  func.func @_generator_kernel(%arg0: i32, %arg1: memref<128x128xf32, #tpu.memory_space<vmem>>, %arg2: memref<128x256xbf16, #tpu.memory_space<vmem>>, %arg3: memref<1x256xf32, #tpu.memory_space<vmem>>, %arg4: memref<256x512xbf16, #tpu.memory_space<vmem>>, %arg5: memref<1x512xf32, #tpu.memory_space<vmem>>, %arg6: memref<512x1024xbf16, #tpu.memory_space<vmem>>, %arg7: memref<1x1024xf32, #tpu.memory_space<vmem>>, %arg8: memref<1024x896xbf16, #tpu.memory_space<vmem>>, %arg9: memref<1x896xf32, #tpu.memory_space<vmem>>, %arg10: memref<128x896xf32, #tpu.memory_space<vmem>>) attributes {dimension_semantics = [#tpu.dimension_semantics<parallel>], iteration_bounds = array<i64: 1>, scalar_prefetch = 0 : i64, scratch_operands = 0 : i64, tpu.core_type = #tpu.core_type<tc>, window_params = [{transform_indices = @transform_0, window_bounds = array<i64: 128, 128>}, {pipeline_mode = #tpu.pipeline_mode<synchronous>, transform_indices = @transform_1, window_bounds = array<i64: 128, 256>}, {pipeline_mode = #tpu.pipeline_mode<synchronous>, transform_indices = @transform_2, window_bounds = array<i64: 1, 256>}, {pipeline_mode = #tpu.pipeline_mode<synchronous>, transform_indices = @transform_3, window_bounds = array<i64: 256, 512>}, {pipeline_mode = #tpu.pipeline_mode<synchronous>, transform_indices = @transform_4, window_bounds = array<i64: 1, 512>}, {pipeline_mode = #tpu.pipeline_mode<synchronous>, transform_indices = @transform_5, window_bounds = array<i64: 512, 1024>}, {pipeline_mode = #tpu.pipeline_mode<synchronous>, transform_indices = @transform_6, window_bounds = array<i64: 1, 1024>}, {pipeline_mode = #tpu.pipeline_mode<synchronous>, transform_indices = @transform_7, window_bounds = array<i64: 1024, 896>}, {pipeline_mode = #tpu.pipeline_mode<synchronous>, transform_indices = @transform_8, window_bounds = array<i64: 1, 896>}, {transform_indices = @transform_9, window_bounds = array<i64: 128, 896>}]} {
    %c0 = arith.constant 0 : index
    %c0_0 = arith.constant 0 : index
    %0 = vector.load %arg1[%c0, %c0_0] : memref<128x128xf32, #tpu.memory_space<vmem>>, vector<128x128xf32>
    %1 = arith.truncf %0 : vector<128x128xf32> to vector<128x128xbf16>
    %c0_1 = arith.constant 0 : index
    %c0_2 = arith.constant 0 : index
    %2 = vector.load %arg2[%c0_1, %c0_2] : memref<128x256xbf16, #tpu.memory_space<vmem>>, vector<128x256xbf16>
    %cst = arith.constant dense<0.000000e+00> : vector<128x256xf32>
    %3 = tpu.matmul %1, %2, %cst {dimension_numbers = #tpu.dot_dimension_numbers<[1], [0], [0], [1], [0, 0, 1, 1], [], []>} : vector<128x128xbf16>, vector<128x256xbf16>, vector<128x256xf32> -> vector<128x256xf32>
    %c0_3 = arith.constant 0 : index
    %c0_4 = arith.constant 0 : index
    %4 = vector.load %arg3[%c0_3, %c0_4] : memref<1x256xf32, #tpu.memory_space<vmem>>, vector<1x256xf32>
    %5 = vector.broadcast %4 : vector<1x256xf32> to vector<128x256xf32>
    %6 = arith.addf %3, %5 : vector<128x256xf32>
    %cst_5 = arith.constant 0.000000e+00 : f32
    %7 = vector.broadcast %cst_5 : f32 to vector<128x256xf32>
    %8 = arith.maximumf %6, %7 : vector<128x256xf32>
    %9 = arith.truncf %8 : vector<128x256xf32> to vector<128x256xbf16>
    %c0_6 = arith.constant 0 : index
    %c0_7 = arith.constant 0 : index
    %10 = vector.load %arg4[%c0_6, %c0_7] : memref<256x512xbf16, #tpu.memory_space<vmem>>, vector<256x512xbf16>
    %cst_8 = arith.constant dense<0.000000e+00> : vector<128x512xf32>
    %11 = tpu.matmul %9, %10, %cst_8 {dimension_numbers = #tpu.dot_dimension_numbers<[1], [0], [0], [1], [0, 0, 1, 1], [], []>} : vector<128x256xbf16>, vector<256x512xbf16>, vector<128x512xf32> -> vector<128x512xf32>
    %c0_9 = arith.constant 0 : index
    %c0_10 = arith.constant 0 : index
    %12 = vector.load %arg5[%c0_9, %c0_10] : memref<1x512xf32, #tpu.memory_space<vmem>>, vector<1x512xf32>
    %13 = vector.broadcast %12 : vector<1x512xf32> to vector<128x512xf32>
    %14 = arith.addf %11, %13 : vector<128x512xf32>
    %cst_11 = arith.constant 0.000000e+00 : f32
    %15 = vector.broadcast %cst_11 : f32 to vector<128x512xf32>
    %16 = arith.maximumf %14, %15 : vector<128x512xf32>
    %17 = arith.truncf %16 : vector<128x512xf32> to vector<128x512xbf16>
    %c0_12 = arith.constant 0 : index
    %c0_13 = arith.constant 0 : index
    %18 = vector.load %arg6[%c0_12, %c0_13] : memref<512x1024xbf16, #tpu.memory_space<vmem>>, vector<512x1024xbf16>
    %cst_14 = arith.constant dense<0.000000e+00> : vector<128x1024xf32>
    %19 = tpu.matmul %17, %18, %cst_14 {dimension_numbers = #tpu.dot_dimension_numbers<[1], [0], [0], [1], [0, 0, 1, 1], [], []>} : vector<128x512xbf16>, vector<512x1024xbf16>, vector<128x1024xf32> -> vector<128x1024xf32>
    %c0_15 = arith.constant 0 : index
    %c0_16 = arith.constant 0 : index
    %20 = vector.load %arg7[%c0_15, %c0_16] : memref<1x1024xf32, #tpu.memory_space<vmem>>, vector<1x1024xf32>
    %21 = vector.broadcast %20 : vector<1x1024xf32> to vector<128x1024xf32>
    %22 = arith.addf %19, %21 : vector<128x1024xf32>
    %cst_17 = arith.constant 0.000000e+00 : f32
    %23 = vector.broadcast %cst_17 : f32 to vector<128x1024xf32>
    %24 = arith.maximumf %22, %23 : vector<128x1024xf32>
    %25 = arith.truncf %24 : vector<128x1024xf32> to vector<128x1024xbf16>
    %c0_18 = arith.constant 0 : index
    %c0_19 = arith.constant 0 : index
    %26 = vector.load %arg8[%c0_18, %c0_19] : memref<1024x896xbf16, #tpu.memory_space<vmem>>, vector<1024x896xbf16>
    %cst_20 = arith.constant dense<0.000000e+00> : vector<128x896xf32>
    %27 = tpu.matmul %25, %26, %cst_20 {dimension_numbers = #tpu.dot_dimension_numbers<[1], [0], [0], [1], [0, 0, 1, 1], [], []>} : vector<128x1024xbf16>, vector<1024x896xbf16>, vector<128x896xf32> -> vector<128x896xf32>
    %c0_21 = arith.constant 0 : index
    %c0_22 = arith.constant 0 : index
    %28 = vector.load %arg9[%c0_21, %c0_22] : memref<1x896xf32, #tpu.memory_space<vmem>>, vector<1x896xf32>
    %29 = vector.broadcast %28 : vector<1x896xf32> to vector<128x896xf32>
    %30 = arith.addf %27, %29 : vector<128x896xf32>
    %31 = math.tanh %30 : vector<128x896xf32>
    %c0_23 = arith.constant 0 : index
    %c0_24 = arith.constant 0 : index
    %32 = vector.load %arg10[%c0_23, %c0_24] : memref<128x896xf32, #tpu.memory_space<vmem>>, vector<128x896xf32>
    tpu.vector_store %arg10[%c0_23, %c0_24], %31 {strides = array<i32>} : memref<128x896xf32, #tpu.memory_space<vmem>>, vector<128x896xf32>,
    return
  }
  func.func @transform_0(%arg0: i32) -> (i32, i32) {
    %c0_i32 = arith.constant 0 : i32
    %c0_i32_0 = arith.constant 0 : i32
    return %arg0, %c0_i32 : i32, i32
  }
  func.func @transform_1(%arg0: i32) -> (i32, i32) {
    %c0_i32 = arith.constant 0 : i32
    %c0_i32_0 = arith.constant 0 : i32
    %c0_i32_1 = arith.constant 0 : i32
    return %c0_i32, %c0_i32_0 : i32, i32
  }
  func.func @transform_2(%arg0: i32) -> (i32, i32) {
    %c0_i32 = arith.constant 0 : i32
    %c0_i32_0 = arith.constant 0 : i32
    %c0_i32_1 = arith.constant 0 : i32
    return %c0_i32, %c0_i32_0 : i32, i32
  }
  func.func @transform_3(%arg0: i32) -> (i32, i32) {
    %c0_i32 = arith.constant 0 : i32
    %c0_i32_0 = arith.constant 0 : i32
    %c0_i32_1 = arith.constant 0 : i32
    return %c0_i32, %c0_i32_0 : i32, i32
  }
  func.func @transform_4(%arg0: i32) -> (i32, i32) {
    %c0_i32 = arith.constant 0 : i32
    %c0_i32_0 = arith.constant 0 : i32
    %c0_i32_1 = arith.constant 0 : i32
    return %c0_i32, %c0_i32_0 : i32, i32
  }
  func.func @transform_5(%arg0: i32) -> (i32, i32) {
    %c0_i32 = arith.constant 0 : i32
    %c0_i32_0 = arith.constant 0 : i32
    %c0_i32_1 = arith.constant 0 : i32
    return %c0_i32, %c0_i32_0 : i32, i32
  }
  func.func @transform_6(%arg0: i32) -> (i32, i32) {
    %c0_i32 = arith.constant 0 : i32
    %c0_i32_0 = arith.constant 0 : i32
    %c0_i32_1 = arith.constant 0 : i32
    return %c0_i32, %c0_i32_0 : i32, i32
  }
  func.func @transform_7(%arg0: i32) -> (i32, i32) {
    %c0_i32 = arith.constant 0 : i32
    %c0_i32_0 = arith.constant 0 : i32
    %c0_i32_1 = arith.constant 0 : i32
    return %c0_i32, %c0_i32_0 : i32, i32
  }
  func.func @transform_8(%arg0: i32) -> (i32, i32) {
    %c0_i32 = arith.constant 0 : i32
    %c0_i32_0 = arith.constant 0 : i32
    %c0_i32_1 = arith.constant 0 : i32
    return %c0_i32, %c0_i32_0 : i32, i32
  }
  func.func @transform_9(%arg0: i32) -> (i32, i32) {
    %c0_i32 = arith.constant 0 : i32
    %c0_i32_0 = arith.constant 0 : i32
    return %arg0, %c0_i32 : i32, i32
  }
}

</mosaic_0001>

<llo_original>
// kernel: generator_forward.1
$region0: #{generator_forward.1}
  #allocation0 [shape = 'u32[]', space=smem, size = 0x4, offset = 0x4, fixed_abs, tag = 'smem constant byte address 0x4 - core index']
  #allocation1 [shape = 'u32[144,128]{1,0:T(1,128)}', space=vmem, size = 0x12000, scoped, tag = 'internal scratch']
  %s0 = inlined_call_operand.vmem [shape: f32[128,128], index: 0, kind: input, shape index: {}]
  %s1 = inlined_call_operand.vmem [shape: bf16[128,256], index: 1, kind: input, shape index: {}]
  %s2 = inlined_call_operand.vmem [shape: f32[1,256], index: 2, kind: input, shape index: {}]
  %s3 = inlined_call_operand.vmem [shape: bf16[256,512], index: 3, kind: input, shape index: {}]
  %s4 = inlined_call_operand.vmem [shape: f32[1,512], index: 4, kind: input, shape index: {}]
  %s5 = inlined_call_operand.vmem [shape: bf16[512,1024], index: 5, kind: input, shape index: {}]
  %s6 = inlined_call_operand.vmem [shape: f32[1,1024], index: 6, kind: input, shape index: {}]
  %s7 = inlined_call_operand.vmem [shape: bf16[1024,896], index: 7, kind: input, shape index: {}]
  %s8 = inlined_call_operand.vmem [shape: f32[1,896], index: 8, kind: input, shape index: {}]
  %s9 = inlined_call_operand.vmem [shape: f32[128,896], index: 9, kind: output, shape index: {}]
  %s10 = sld [smem:[#allocation0]]
  $region46: #{generator_forward.1} parent=0
    _
  %s12 = ssub.s32 1, %s10
  %s13 = scalar_select 0, %s12, %s10
  // Predicated region
  $region2: #{generator_forward.1} parent=0 // pred_check
    _
  $region3: #{generator_forward.1} parent=0 // pred_check_branch
    %15 = sbr.rel (0) target = $region5
  $region4: #{generator_forward.1} parent=0 // pred_region
    _
  $region5: #{generator_forward.1} parent=0 // pred_fallthru
    _
  // Predicated region
  $region6: #{generator_forward.1} parent=0 // pred_check
    _
  $region7: #{generator_forward.1} parent=0 // pred_check_branch
    %17 = sbr.rel (0) target = $region9
  $region8: #{generator_forward.1} parent=0 // pred_region
    _
  $region9: #{generator_forward.1} parent=0 // pred_fallthru
    _
  // Predicated region
  $region10: #{generator_forward.1} parent=0 // pred_check
    _
  $region11: #{generator_forward.1} parent=0 // pred_check_branch
    %19 = sbr.rel (0) target = $region13
  $region12: #{generator_forward.1} parent=0 // pred_region
    _
  $region13: #{generator_forward.1} parent=0 // pred_fallthru
    _
  // Predicated region
  $region14: #{generator_forward.1} parent=0 // pred_check
    _
  $region15: #{generator_forward.1} parent=0 // pred_check_branch
    %21 = sbr.rel (0) target = $region17
  $region16: #{generator_forward.1} parent=0 // pred_region
    _
  $region17: #{generator_forward.1} parent=0 // pred_fallthru
    _
  // Predicated region
  $region18: #{generator_forward.1} parent=0 // pred_check
    _
  $region19: #{generator_forward.1} parent=0 // pred_check_branch
    %23 = sbr.rel (0) target = $region21
  $region20: #{generator_forward.1} parent=0 // pred_region
    _
  $region21: #{generator_forward.1} parent=0 // pred_fallthru
    _
  // Predicated region
  $region22: #{generator_forward.1} parent=0 // pred_check
    _
  $region23: #{generator_forward.1} parent=0 // pred_check_branch
    %25 = sbr.rel (0) target = $region25
  $region24: #{generator_forward.1} parent=0 // pred_region
    _
  $region25: #{generator_forward.1} parent=0 // pred_fallthru
    _
  // Predicated region
  $region26: #{generator_forward.1} parent=0 // pred_check
    _
  $region27: #{generator_forward.1} parent=0 // pred_check_branch
    %27 = sbr.rel (0) target = $region29
  $region28: #{generator_forward.1} parent=0 // pred_region
    _
  $region29: #{generator_forward.1} parent=0 // pred_fallthru
    _
  // Predicated region
  $region30: #{generator_forward.1} parent=0 // pred_check
    _
  $region31: #{generator_forward.1} parent=0 // pred_check_branch
    %29 = sbr.rel (0) target = $region33
  $region32: #{generator_forward.1} parent=0 // pred_region
    _
  $region33: #{generator_forward.1} parent=0 // pred_fallthru
    _
  // Predicated region
  $region34: #{generator_forward.1} parent=0 // pred_check
    _
  $region35: #{generator_forward.1} parent=0 // pred_check_branch
    %31 = sbr.rel (0) target = $region37
  $region36: #{generator_forward.1} parent=0 // pred_region
    _
  $region37: #{generator_forward.1} parent=0 // pred_fallthru
    _
  %v33 = vld [vmem:[%s0] sm:$0xff]
  %v34 = vld [vmem:[%s0 + $0x8] sm:$0xff]
  %v35 = vld [vmem:[%s0 + $0x10] sm:$0xff]
  %v36 = vld [vmem:[%s0 + $0x18] sm:$0xff]
  %v37 = vld [vmem:[%s0 + $0x20] sm:$0xff]
  %v38 = vld [vmem:[%s0 + $0x28] sm:$0xff]
  %v39 = vld [vmem:[%s0 + $0x30] sm:$0xff]
  %v40 = vld [vmem:[%s0 + $0x38] sm:$0xff]
  %v41 = vld [vmem:[%s0 + $0x40] sm:$0xff]
  %v42 = vld [vmem:[%s0 + $0x48] sm:$0xff]
  %v43 = vld [vmem:[%s0 + $0x50] sm:$0xff]
  %v44 = vld [vmem:[%s0 + $0x58] sm:$0xff]
  %v45 = vld [vmem:[%s0 + $0x60] sm:$0xff]
  %v46 = vld [vmem:[%s0 + $0x68] sm:$0xff]
  %v47 = vld [vmem:[%s0 + $0x70] sm:$0xff]
  %v48 = vld [vmem:[%s0 + $0x78] sm:$0xff]
  %v49 = vpack.c.bf16 %v34, %v33
  %v50 = vpack.c.bf16 %v36, %v35
  %v51 = vpack.c.bf16 %v38, %v37
  %v52 = vpack.c.bf16 %v40, %v39
  %v53 = vpack.c.bf16 %v42, %v41
  %v54 = vpack.c.bf16 %v44, %v43
  %v55 = vpack.c.bf16 %v46, %v45
  %v56 = vpack.c.bf16 %v48, %v47
  %v57 = vld [vmem:[%s1] sm:$0xff]
  %v58 = vld [vmem:[%s1 + $0x8] sm:$0xff]
  %v59 = vld [vmem:[%s1 + $0x10] sm:$0xff]
  %v60 = vld [vmem:[%s1 + $0x18] sm:$0xff]
  %v61 = vld [vmem:[%s1 + $0x20] sm:$0xff]
  %v62 = vld [vmem:[%s1 + $0x28] sm:$0xff]
  %v63 = vld [vmem:[%s1 + $0x30] sm:$0xff]
  %v64 = vld [vmem:[%s1 + $0x38] sm:$0xff]
  %v65 = vld [vmem:[%s1 + $0x40] sm:$0xff]
  %v66 = vld [vmem:[%s1 + $0x48] sm:$0xff]
  %v67 = vld [vmem:[%s1 + $0x50] sm:$0xff]
  %v68 = vld [vmem:[%s1 + $0x58] sm:$0xff]
  %v69 = vld [vmem:[%s1 + $0x60] sm:$0xff]
  %v70 = vld [vmem:[%s1 + $0x68] sm:$0xff]
  %v71 = vld [vmem:[%s1 + $0x70] sm:$0xff]
  %v72 = vld [vmem:[%s1 + $0x78] sm:$0xff]
  %v73 = vld [vmem:[%s2] sm:$0x3]
  %v75 = vlaneseq
  %v76 = vshrl.u32 %v75, 7
  %v77 = vsub.s32 0, %v76
  %v78 = vrot.slane %v73, %v77
  %v79 = vlaneseq
  %v80 = vshrl.u32 %v79, 7
  %v81 = vsub.s32 1, %v80
  %v82 = vrot.slane %v73, %v81
  %v101 = vunpack.c.l.b16 %v57
  %v102 = vunpack.c.h.b16 %v57
  %v103 = vunpack.c.l.b16 %v58
  %v104 = vunpack.c.h.b16 %v58
  %v105 = vunpack.c.l.b16 %v59
  %v106 = vunpack.c.h.b16 %v59
  %v107 = vunpack.c.l.b16 %v60
  %v108 = vunpack.c.h.b16 %v60
  %v109 = vunpack.c.l.b16 %v61
  %v110 = vunpack.c.h.b16 %v61
  %v111 = vunpack.c.l.b16 %v62
  %v112 = vunpack.c.h.b16 %v62
  %v113 = vunpack.c.l.b16 %v63
  %v114 = vunpack.c.h.b16 %v63
  %v115 = vunpack.c.l.b16 %v64
  %v116 = vunpack.c.h.b16 %v64
  %v117 = vunpack.c.l.b16 %v65
  %v118 = vunpack.c.h.b16 %v65
  %v119 = vunpack.c.l.b16 %v66
  %v120 = vunpack.c.h.b16 %v66
  %v121 = vunpack.c.l.b16 %v67
  %v122 = vunpack.c.h.b16 %v67
  %v123 = vunpack.c.l.b16 %v68
  %v124 = vunpack.c.h.b16 %v68
  %v125 = vunpack.c.l.b16 %v69
  %v126 = vunpack.c.h.b16 %v69
  %v127 = vunpack.c.l.b16 %v70
  %v128 = vunpack.c.h.b16 %v70
  %v129 = vunpack.c.l.b16 %v71
  %v130 = vunpack.c.h.b16 %v71
  %v131 = vunpack.c.l.b16 %v72
  %v132 = vunpack.c.h.b16 %v72
  %v133 = vpack.c.b16 %v103, %v101
  %v134 = vpack.c.b16 %v104, %v102
  %v135 = vpack.c.b16 %v107, %v105
  %v136 = vpack.c.b16 %v108, %v106
  %v137 = vpack.c.b16 %v111, %v109
  %v138 = vpack.c.b16 %v112, %v110
  %v139 = vpack.c.b16 %v115, %v113
  %v140 = vpack.c.b16 %v116, %v114
  %v141 = vpack.c.b16 %v119, %v117
  %v142 = vpack.c.b16 %v120, %v118
  %v143 = vpack.c.b16 %v123, %v121
  %v144 = vpack.c.b16 %v124, %v122
  %v145 = vpack.c.b16 %v127, %v125
  %v146 = vpack.c.b16 %v128, %v126
  %v147 = vpack.c.b16 %v131, %v129
  %v148 = vpack.c.b16 %v132, %v130
  %165 = vmatprep.subr.bf16.mxu0 %v148
  %166 = vmatpush1.bf16.msra.mxu0 %v147
  %167 = vmatprep.subr.bf16.mxu0 %v146
  %168 = vmatpush1.bf16.msra.mxu0 %v145
  %169 = vmatprep.subr.bf16.mxu0 %v144
  %170 = vmatpush1.bf16.msra.mxu0 %v143
  %171 = vmatprep.subr.bf16.mxu0 %v142
  %172 = vmatpush1.bf16.msra.mxu0 %v141
  %173 = vmatprep.subr.bf16.mxu0 %v140
  %174 = vmatpush1.bf16.msra.mxu0 %v139
  %175 = vmatprep.subr.bf16.mxu0 %v138
  %176 = vmatpush1.bf16.msra.mxu0 %v137
  %177 = vmatprep.subr.bf16.mxu0 %v136
  %178 = vmatpush1.bf16.msra.mxu0 %v135
  %179 = vmatprep.subr.bf16.mxu0 %v134
  %180 = vmatpush1.bf16.msra.mxu0 %v133
  %181 = vmatprep.subr.bf16.mxu0 0
  %182 = vmatpush2.bf16.msra.mxu0 0
  %183 = vmatprep.subr.bf16.mxu0 0
  %184 = vmatpush2.bf16.msra.mxu0 0
  %185 = vmatprep.subr.bf16.mxu0 0
  %186 = vmatpush2.bf16.msra.mxu0 0
  %187 = vmatprep.subr.bf16.mxu0 0
  %188 = vmatpush2.bf16.msra.mxu0 0
  %189 = vmatprep.subr.bf16.mxu0 0
  %190 = vmatpush2.bf16.msra.mxu0 0
  %191 = vmatprep.subr.bf16.mxu0 0
  %192 = vmatpush2.bf16.msra.mxu0 0
  %193 = vmatprep.subr.bf16.mxu0 0
  %194 = vmatpush2.bf16.msra.mxu0 0
  %195 = vmatprep.subr.bf16.mxu0 0
  %196 = vmatpush2.bf16.msra.mxu0 0
  %197 = vmatprep.mubr.bf16.mxu0 0
  %198 = vmatmul.mubr.bf16.gmra.mxu0 %v49
  %v199 = vpop.f32.mrf.mxu0
  %v200 = vadd.f32 %v78, %v199
  %v201 = vpop.f32.mrf.mxu0
  %v202 = vadd.f32 %v82, %v201
  %v203 = vpop.f32.mrf.mxu0
  %v204 = vadd.f32 %v78, %v203
  %v205 = vpop.f32.mrf.mxu0
  %v206 = vadd.f32 %v82, %v205
  %207 = vmatprep.mubr.bf16.mxu0 0
  %208 = vmatmul.mubr.bf16.gmra.mxu0 %v50
  %v209 = vpop.f32.mrf.mxu0
  %v210 = vadd.f32 %v78, %v209
  %v211 = vpop.f32.mrf.mxu0
  %v212 = vadd.f32 %v82, %v211
  %v213 = vpop.f32.mrf.mxu0
  %v214 = vadd.f32 %v78, %v213
  %v215 = vpop.f32.mrf.mxu0
  %v216 = vadd.f32 %v82, %v215
  %217 = vmatprep.mubr.bf16.mxu0 0
  %218 = vmatmul.mubr.bf16.gmra.mxu0 %v51
  %v219 = vpop.f32.mrf.mxu0
  %v220 = vadd.f32 %v78, %v219
  %v221 = vpop.f32.mrf.mxu0
  %v222 = vadd.f32 %v82, %v221
  %v223 = vpop.f32.mrf.mxu0
  %v224 = vadd.f32 %v78, %v223
  %v225 = vpop.f32.mrf.mxu0
  %v226 = vadd.f32 %v82, %v225
  %227 = vmatprep.mubr.bf16.mxu0 0
  %228 = vmatmul.mubr.bf16.gmra.mxu0 %v52
  %v229 = vpop.f32.mrf.mxu0
  %v230 = vadd.f32 %v78, %v229
  %v231 = vpop.f32.mrf.mxu0
  %v232 = vadd.f32 %v82, %v231
  %v233 = vpop.f32.mrf.mxu0
  %v234 = vadd.f32 %v78, %v233
  %v235 = vpop.f32.mrf.mxu0
  %v236 = vadd.f32 %v82, %v235
  %237 = vmatprep.mubr.bf16.mxu0 0
  %238 = vmatmul.mubr.bf16.gmra.mxu0 %v53
  %v239 = vpop.f32.mrf.mxu0
  %v240 = vadd.f32 %v78, %v239
  %v241 = vpop.f32.mrf.mxu0
  %v242 = vadd.f32 %v82, %v241
  %v243 = vpop.f32.mrf.mxu0
  %v244 = vadd.f32 %v78, %v243
  %v245 = vpop.f32.mrf.mxu0
  %v246 = vadd.f32 %v82, %v245
  %247 = vmatprep.mubr.bf16.mxu0 0
  %248 = vmatmul.mubr.bf16.gmra.mxu0 %v54
  %v249 = vpop.f32.mrf.mxu0
  %v250 = vadd.f32 %v78, %v249
  %v251 = vpop.f32.mrf.mxu0
  %v252 = vadd.f32 %v82, %v251
  %v253 = vpop.f32.mrf.mxu0
  %v254 = vadd.f32 %v78, %v253
  %v255 = vpop.f32.mrf.mxu0
  %v256 = vadd.f32 %v82, %v255
  %257 = vmatprep.mubr.bf16.mxu0 0
  %258 = vmatmul.mubr.bf16.gmra.mxu0 %v55
  %v259 = vpop.f32.mrf.mxu0
  %v260 = vadd.f32 %v78, %v259
  %v261 = vpop.f32.mrf.mxu0
  %v262 = vadd.f32 %v82, %v261
  %v263 = vpop.f32.mrf.mxu0
  %v264 = vadd.f32 %v78, %v263
  %v265 = vpop.f32.mrf.mxu0
  %v266 = vadd.f32 %v82, %v265
  %267 = vmatprep.mubr.bf16.mxu0 0
  %268 = vmatmul.mubr.bf16.gmra.mxu0 %v56
  %v269 = vpop.f32.mrf.mxu0
  %v270 = vadd.f32 %v78, %v269
  %v271 = vpop.f32.mrf.mxu0
  %v272 = vadd.f32 %v82, %v271
  %v273 = vpop.f32.mrf.mxu0
  %v274 = vadd.f32 %v78, %v273
  %v275 = vpop.f32.mrf.mxu0
  %v276 = vadd.f32 %v82, %v275
  %277 = vdwg.mxu0
  %v278 = vmax.f32 %v200, 0.0
  %v279 = vmax.f32 %v202, 0.0
  %v280 = vmax.f32 %v204, 0.0
  %v281 = vmax.f32 %v206, 0.0
  %v282 = vmax.f32 %v210, 0.0
  %v283 = vmax.f32 %v212, 0.0
  %v284 = vmax.f32 %v214, 0.0
  %v285 = vmax.f32 %v216, 0.0
  %v286 = vmax.f32 %v220, 0.0
  %v287 = vmax.f32 %v222, 0.0
  %v288 = vmax.f32 %v224, 0.0
  %v289 = vmax.f32 %v226, 0.0
  %v290 = vmax.f32 %v230, 0.0
  %v291 = vmax.f32 %v232, 0.0
  %v292 = vmax.f32 %v234, 0.0
  %v293 = vmax.f32 %v236, 0.0
  %v294 = vmax.f32 %v240, 0.0
  %v295 = vmax.f32 %v242, 0.0
  %v296 = vmax.f32 %v244, 0.0
  %v297 = vmax.f32 %v246, 0.0
  %v298 = vmax.f32 %v250, 0.0
  %v299 = vmax.f32 %v252, 0.0
  %v300 = vmax.f32 %v254, 0.0
  %v301 = vmax.f32 %v256, 0.0
  %v302 = vmax.f32 %v260, 0.0
  %v303 = vmax.f32 %v262, 0.0
  %v304 = vmax.f32 %v264, 0.0
  %v305 = vmax.f32 %v266, 0.0
  %v306 = vmax.f32 %v270, 0.0
  %v307 = vmax.f32 %v272, 0.0
  %v308 = vmax.f32 %v274, 0.0
  %v309 = vmax.f32 %v276, 0.0
  %v310 = vpack.c.bf16 %v280, %v278
  %v311 = vpack.c.bf16 %v281, %v279
  %v312 = vpack.c.bf16 %v284, %v282
  %v313 = vpack.c.bf16 %v285, %v283
  %v314 = vpack.c.bf16 %v288, %v286
  %v315 = vpack.c.bf16 %v289, %v287
  %v316 = vpack.c.bf16 %v292, %v290
  %v317 = vpack.c.bf16 %v293, %v291
  %v318 = vpack.c.bf16 %v296, %v294
  %v319 = vpack.c.bf16 %v297, %v295
  %v320 = vpack.c.bf16 %v300, %v298
  %v321 = vpack.c.bf16 %v301, %v299
  %v322 = vpack.c.bf16 %v304, %v302
  %v323 = vpack.c.bf16 %v305, %v303
  %v324 = vpack.c.bf16 %v308, %v306
  %v325 = vpack.c.bf16 %v309, %v307
  %v326 = vld [vmem:[%s3] sm:$0xff]
  %v327 = vld [vmem:[%s3 + $0x8] sm:$0xff]
  %v328 = vld [vmem:[%s3 + $0x10] sm:$0xff]
  %v329 = vld [vmem:[%s3 + $0x18] sm:$0xff]
  %v330 = vld [vmem:[%s3 + $0x20] sm:$0xff]
  %v331 = vld [vmem:[%s3 + $0x28] sm:$0xff]
  %v332 = vld [vmem:[%s3 + $0x30] sm:$0xff]
  %v333 = vld [vmem:[%s3 + $0x38] sm:$0xff]
  %v334 = vld [vmem:[%s3 + $0x40] sm:$0xff]
  %v335 = vld [vmem:[%s3 + $0x48] sm:$0xff]
  %v336 = vld [vmem:[%s3 + $0x50] sm:$0xff]
  %v337 = vld [vmem:[%s3 + $0x58] sm:$0xff]
  %v338 = vld [vmem:[%s3 + $0x60] sm:$0xff]
  %v339 = vld [vmem:[%s3 + $0x68] sm:$0xff]
  %v340 = vld [vmem:[%s3 + $0x70] sm:$0xff]
  %v341 = vld [vmem:[%s3 + $0x78] sm:$0xff]
  %v342 = vld [vmem:[%s3 + $0x80] sm:$0xff]
  %v343 = vld [vmem:[%s3 + $0x88] sm:$0xff]
  %v344 = vld [vmem:[%s3 + $0x90] sm:$0xff]
  %v345 = vld [vmem:[%s3 + $0x98] sm:$0xff]
  %v346 = vld [vmem:[%s3 + $0xa0] sm:$0xff]
  %v347 = vld [vmem:[%s3 + $0xa8] sm:$0xff]
  %v348 = vld [vmem:[%s3 + $0xb0] sm:$0xff]
  %v349 = vld [vmem:[%s3 + $0xb8] sm:$0xff]
  %v350 = vld [vmem:[%s3 + $0xc0] sm:$0xff]
  %v351 = vld [vmem:[%s3 + $0xc8] sm:$0xff]
  %v352 = vld [vmem:[%s3 + $0xd0] sm:$0xff]
  %v353 = vld [vmem:[%s3 + $0xd8] sm:$0xff]
  %v354 = vld [vmem:[%s3 + $0xe0] sm:$0xff]
  %v355 = vld [vmem:[%s3 + $0xe8] sm:$0xff]
  %v356 = vld [vmem:[%s3 + $0xf0] sm:$0xff]
  %v357 = vld [vmem:[%s3 + $0xf8] sm:$0xff]
  %v358 = vld [vmem:[%s3 + $0x100] sm:$0xff]
  %v359 = vld [vmem:[%s3 + $0x108] sm:$0xff]
  %v360 = vld [vmem:[%s3 + $0x110] sm:$0xff]
  %v361 = vld [vmem:[%s3 + $0x118] sm:$0xff]
  %v362 = vld [vmem:[%s3 + $0x120] sm:$0xff]
  %v363 = vld [vmem:[%s3 + $0x128] sm:$0xff]
  %v364 = vld [vmem:[%s3 + $0x130] sm:$0xff]
  %v365 = vld [vmem:[%s3 + $0x138] sm:$0xff]
  %v366 = vld [vmem:[%s3 + $0x140] sm:$0xff]
  %v367 = vld [vmem:[%s3 + $0x148] sm:$0xff]
  %v368 = vld [vmem:[%s3 + $0x150] sm:$0xff]
  %v369 = vld [vmem:[%s3 + $0x158] sm:$0xff]
  %v370 = vld [vmem:[%s3 + $0x160] sm:$0xff]
  %v371 = vld [vmem:[%s3 + $0x168] sm:$0xff]
  %v372 = vld [vmem:[%s3 + $0x170] sm:$0xff]
  %v373 = vld [vmem:[%s3 + $0x178] sm:$0xff]
  %v374 = vld [vmem:[%s3 + $0x180] sm:$0xff]
  %v375 = vld [vmem:[%s3 + $0x188] sm:$0xff]
  %v376 = vld [vmem:[%s3 + $0x190] sm:$0xff]
  %v377 = vld [vmem:[%s3 + $0x198] sm:$0xff]
  %v378 = vld [vmem:[%s3 + $0x1a0] sm:$0xff]
  %v379 = vld [vmem:[%s3 + $0x1a8] sm:$0xff]
  %v380 = vld [vmem:[%s3 + $0x1b0] sm:$0xff]
  %v381 = vld [vmem:[%s3 + $0x1b8] sm:$0xff]
  %v382 = vld [vmem:[%s3 + $0x1c0] sm:$0xff]
  %v383 = vld [vmem:[%s3 + $0x1c8] sm:$0xff]
  %v384 = vld [vmem:[%s3 + $0x1d0] sm:$0xff]
  %v385 = vld [vmem:[%s3 + $0x1d8] sm:$0xff]
  %v386 = vld [vmem:[%s3 + $0x1e0] sm:$0xff]
  %v387 = vld [vmem:[%s3 + $0x1e8] sm:$0xff]
  %v388 = vld [vmem:[%s3 + $0x1f0] sm:$0xff]
  %v389 = vld [vmem:[%s3 + $0x1f8] sm:$0xff]
  %v390 = vld [vmem:[%s4] sm:$0xf]
  %v392 = vlaneseq
  %v393 = vshrl.u32 %v392, 7
  %v394 = vsub.s32 0, %v393
  %v395 = vrot.slane %v390, %v394
  %v396 = vlaneseq
  %v397 = vshrl.u32 %v396, 7
  %v398 = vsub.s32 1, %v397
  %v399 = vrot.slane %v390, %v398
  %v400 = vlaneseq
  %v401 = vshrl.u32 %v400, 7
  %v402 = vsub.s32 2, %v401
  %v403 = vrot.slane %v390, %v402
  %v404 = vlaneseq
  %v405 = vshrl.u32 %v404, 7
  %v406 = vsub.s32 3, %v405
  %v407 = vrot.slane %v390, %v406
  %v476 = vunpack.c.l.b16 %v326
  %v477 = vunpack.c.h.b16 %v326
  %v478 = vunpack.c.l.b16 %v327
  %v479 = vunpack.c.h.b16 %v327
  %v480 = vunpack.c.l.b16 %v328
  %v481 = vunpack.c.h.b16 %v328
  %v482 = vunpack.c.l.b16 %v329
  %v483 = vunpack.c.h.b16 %v329
  %v484 = vunpack.c.l.b16 %v330
  %v485 = vunpack.c.h.b16 %v330
  %v486 = vunpack.c.l.b16 %v331
  %v487 = vunpack.c.h.b16 %v331
  %v488 = vunpack.c.l.b16 %v332
  %v489 = vunpack.c.h.b16 %v332
  %v490 = vunpack.c.l.b16 %v333
  %v491 = vunpack.c.h.b16 %v333
  %v492 = vunpack.c.l.b16 %v334
  %v493 = vunpack.c.h.b16 %v334
  %v494 = vunpack.c.l.b16 %v335
  %v495 = vunpack.c.h.b16 %v335
  %v496 = vunpack.c.l.b16 %v336
  %v497 = vunpack.c.h.b16 %v336
  %v498 = vunpack.c.l.b16 %v337
  %v499 = vunpack.c.h.b16 %v337
  %v500 = vunpack.c.l.b16 %v338
  %v501 = vunpack.c.h.b16 %v338
  %v502 = vunpack.c.l.b16 %v339
  %v503 = vunpack.c.h.b16 %v339
  %v504 = vunpack.c.l.b16 %v340
  %v505 = vunpack.c.h.b16 %v340
  %v506 = vunpack.c.l.b16 %v341
  %v507 = vunpack.c.h.b16 %v341
  %v508 = vunpack.c.l.b16 %v342
  %v509 = vunpack.c.h.b16 %v342
  %v510 = vunpack.c.l.b16 %v343
  %v511 = vunpack.c.h.b16 %v343
  %v512 = vunpack.c.l.b16 %v344
  %v513 = vunpack.c.h.b16 %v344
  %v514 = vunpack.c.l.b16 %v345
  %v515 = vunpack.c.h.b16 %v345
  %v516 = vunpack.c.l.b16 %v346
  %v517 = vunpack.c.h.b16 %v346
  %v518 = vunpack.c.l.b16 %v347
  %v519 = vunpack.c.h.b16 %v347
  %v520 = vunpack.c.l.b16 %v348
  %v521 = vunpack.c.h.b16 %v348
  %v522 = vunpack.c.l.b16 %v349
  %v523 = vunpack.c.h.b16 %v349
  %v524 = vunpack.c.l.b16 %v350
  %v525 = vunpack.c.h.b16 %v350
  %v526 = vunpack.c.l.b16 %v351
  %v527 = vunpack.c.h.b16 %v351
  %v528 = vunpack.c.l.b16 %v352
  %v529 = vunpack.c.h.b16 %v352
  %v530 = vunpack.c.l.b16 %v353
  %v531 = vunpack.c.h.b16 %v353
  %v532 = vunpack.c.l.b16 %v354
  %v533 = vunpack.c.h.b16 %v354
  %v534 = vunpack.c.l.b16 %v355
  %v535 = vunpack.c.h.b16 %v355
  %v536 = vunpack.c.l.b16 %v356
  %v537 = vunpack.c.h.b16 %v356
  %v538 = vunpack.c.l.b16 %v357
  %v539 = vunpack.c.h.b16 %v357
  %v540 = vunpack.c.l.b16 %v358
  %v541 = vunpack.c.h.b16 %v358
  %v542 = vunpack.c.l.b16 %v359
  %v543 = vunpack.c.h.b16 %v359
  %v544 = vunpack.c.l.b16 %v360
  %v545 = vunpack.c.h.b16 %v360
  %v546 = vunpack.c.l.b16 %v361
  %v547 = vunpack.c.h.b16 %v361
  %v548 = vunpack.c.l.b16 %v362
  %v549 = vunpack.c.h.b16 %v362
  %v550 = vunpack.c.l.b16 %v363
  %v551 = vunpack.c.h.b16 %v363
  %v552 = vunpack.c.l.b16 %v364
  %v553 = vunpack.c.h.b16 %v364
  %v554 = vunpack.c.l.b16 %v365
  %v555 = vunpack.c.h.b16 %v365
  %v556 = vunpack.c.l.b16 %v366
  %v557 = vunpack.c.h.b16 %v366
  %v558 = vunpack.c.l.b16 %v367
  %v559 = vunpack.c.h.b16 %v367
  %v560 = vunpack.c.l.b16 %v368
  %v561 = vunpack.c.h.b16 %v368
  %v562 = vunpack.c.l.b16 %v369
  %v563 = vunpack.c.h.b16 %v369
  %v564 = vunpack.c.l.b16 %v370
  %v565 = vunpack.c.h.b16 %v370
  %v566 = vunpack.c.l.b16 %v371
  %v567 = vunpack.c.h.b16 %v371
  %v568 = vunpack.c.l.b16 %v372
  %v569 = vunpack.c.h.b16 %v372
  %v570 = vunpack.c.l.b16 %v373
  %v571 = vunpack.c.h.b16 %v373
  %v572 = vunpack.c.l.b16 %v374
  %v573 = vunpack.c.h.b16 %v374
  %v574 = vunpack.c.l.b16 %v375
  %v575 = vunpack.c.h.b16 %v375
  %v576 = vunpack.c.l.b16 %v376
  %v577 = vunpack.c.h.b16 %v376
  %v578 = vunpack.c.l.b16 %v377
  %v579 = vunpack.c.h.b16 %v377
  %v580 = vunpack.c.l.b16 %v378
  %v581 = vunpack.c.h.b16 %v378
  %v582 = vunpack.c.l.b16 %v379
  %v583 = vunpack.c.h.b16 %v379
  %v584 = vunpack.c.l.b16 %v380
  %v585 = vunpack.c.h.b16 %v380
  %v586 = vunpack.c.l.b16 %v381
  %v587 = vunpack.c.h.b16 %v381
  %v588 = vunpack.c.l.b16 %v382
  %v589 = vunpack.c.h.b16 %v382
  %v590 = vunpack.c.l.b16 %v383
  %v591 = vunpack.c.h.b16 %v383
  %v592 = vunpack.c.l.b16 %v384
  %v593 = vunpack.c.h.b16 %v384
  %v594 = vunpack.c.l.b16 %v385
  %v595 = vunpack.c.h.b16 %v385
  %v596 = vunpack.c.l.b16 %v386
  %v597 = vunpack.c.h.b16 %v386
  %v598 = vunpack.c.l.b16 %v387
  %v599 = vunpack.c.h.b16 %v387
  %v600 = vunpack.c.l.b16 %v388
  %v601 = vunpack.c.h.b16 %v388
  %v602 = vunpack.c.l.b16 %v389
  %v603 = vunpack.c.h.b16 %v389
  %v604 = vpack.c.b16 %v480, %v476
  %v605 = vpack.c.b16 %v481, %v477
  %v606 = vpack.c.b16 %v482, %v478
  %v607 = vpack.c.b16 %v483, %v479
  %v608 = vpack.c.b16 %v488, %v484
  %v609 = vpack.c.b16 %v489, %v485
  %v610 = vpack.c.b16 %v490, %v486
  %v611 = vpack.c.b16 %v491, %v487
  %v612 = vpack.c.b16 %v496, %v492
  %v613 = vpack.c.b16 %v497, %v493
  %v614 = vpack.c.b16 %v498, %v494
  %v615 = vpack.c.b16 %v499, %v495
  %v616 = vpack.c.b16 %v504, %v500
  %v617 = vpack.c.b16 %v505, %v501
  %v618 = vpack.c.b16 %v506, %v502
  %v619 = vpack.c.b16 %v507, %v503
  %v620 = vpack.c.b16 %v512, %v508
  %v621 = vpack.c.b16 %v513, %v509
  %v622 = vpack.c.b16 %v514, %v510
  %v623 = vpack.c.b16 %v515, %v511
  %v624 = vpack.c.b16 %v520, %v516
  %v625 = vpack.c.b16 %v521, %v517
  %v626 = vpack.c.b16 %v522, %v518
  %v627 = vpack.c.b16 %v523, %v519
  %v628 = vpack.c.b16 %v528, %v524
  %v629 = vpack.c.b16 %v529, %v525
  %v630 = vpack.c.b16 %v530, %v526
  %v631 = vpack.c.b16 %v531, %v527
  %v632 = vpack.c.b16 %v536, %v532
  %v633 = vpack.c.b16 %v537, %v533
  %v634 = vpack.c.b16 %v538, %v534
  %v635 = vpack.c.b16 %v539, %v535
  %v636 = vpack.c.b16 %v544, %v540
  %v637 = vpack.c.b16 %v545, %v541
  %v638 = vpack.c.b16 %v546, %v542
  %v639 = vpack.c.b16 %v547, %v543
  %v640 = vpack.c.b16 %v552, %v548
  %v641 = vpack.c.b16 %v553, %v549
  %v642 = vpack.c.b16 %v554, %v550
  %v643 = vpack.c.b16 %v555, %v551
  %v644 = vpack.c.b16 %v560, %v556
  %v645 = vpack.c.b16 %v561, %v557
  %v646 = vpack.c.b16 %v562, %v558
  %v647 = vpack.c.b16 %v563, %v559
  %v648 = vpack.c.b16 %v568, %v564
  %v649 = vpack.c.b16 %v569, %v565
  %v650 = vpack.c.b16 %v570, %v566
  %v651 = vpack.c.b16 %v571, %v567
  %v652 = vpack.c.b16 %v576, %v572
  %v653 = vpack.c.b16 %v577, %v573
  %v654 = vpack.c.b16 %v578, %v574
  %v655 = vpack.c.b16 %v579, %v575
  %v656 = vpack.c.b16 %v584, %v580
  %v657 = vpack.c.b16 %v585, %v581
  %v658 = vpack.c.b16 %v586, %v582
  %v659 = vpack.c.b16 %v587, %v583
  %v660 = vpack.c.b16 %v592, %v588
  %v661 = vpack.c.b16 %v593, %v589
  %v662 = vpack.c.b16 %v594, %v590
  %v663 = vpack.c.b16 %v595, %v591
  %v664 = vpack.c.b16 %v600, %v596
  %v665 = vpack.c.b16 %v601, %v597
  %v666 = vpack.c.b16 %v602, %v598
  %v667 = vpack.c.b16 %v603, %v599
  %732 = vmatprep.subr.bf16.mxu0 %v633
  %733 = vmatpush1.bf16.msra.mxu0 %v632
  %734 = vmatprep.subr.bf16.mxu0 %v629
  %735 = vmatpush1.bf16.msra.mxu0 %v628
  %736 = vmatprep.subr.bf16.mxu0 %v625
  %737 = vmatpush1.bf16.msra.mxu0 %v624
  %738 = vmatprep.subr.bf16.mxu0 %v621
  %739 = vmatpush1.bf16.msra.mxu0 %v620
  %740 = vmatprep.subr.bf16.mxu0 %v617
  %741 = vmatpush1.bf16.msra.mxu0 %v616
  %742 = vmatprep.subr.bf16.mxu0 %v613
  %743 = vmatpush1.bf16.msra.mxu0 %v612
  %744 = vmatprep.subr.bf16.mxu0 %v609
  %745 = vmatpush1.bf16.msra.mxu0 %v608
  %746 = vmatprep.subr.bf16.mxu0 %v605
  %747 = vmatpush1.bf16.msra.mxu0 %v604
  %748 = vmatprep.subr.bf16.mxu0 %v665
  %749 = vmatpush2.bf16.msra.mxu0 %v664
  %750 = vmatprep.subr.bf16.mxu0 %v661
  %751 = vmatpush2.bf16.msra.mxu0 %v660
  %752 = vmatprep.subr.bf16.mxu0 %v657
  %753 = vmatpush2.bf16.msra.mxu0 %v656
  %754 = vmatprep.subr.bf16.mxu0 %v653
  %755 = vmatpush2.bf16.msra.mxu0 %v652
  %756 = vmatprep.subr.bf16.mxu0 %v649
  %757 = vmatpush2.bf16.msra.mxu0 %v648
  %758 = vmatprep.subr.bf16.mxu0 %v645
  %759 = vmatpush2.bf16.msra.mxu0 %v644
  %760 = vmatprep.subr.bf16.mxu0 %v641
  %761 = vmatpush2.bf16.msra.mxu0 %v640
  %762 = vmatprep.subr.bf16.mxu0 %v637
  %763 = vmatpush2.bf16.msra.mxu0 %v636
  %764 = vmatprep.mubr.bf16.mxu0 %v311
  %765 = vmatmul.mubr.bf16.gmra.mxu0 %v310
  %v766 = vpop.f32.mrf.mxu0
  %v767 = vadd.f32 %v395, %v766
  %v768 = vpop.f32.mrf.mxu0
  %v769 = vadd.f32 %v399, %v768
  %v770 = vpop.f32.mrf.mxu0
  %v771 = vadd.f32 %v395, %v770
  %v772 = vpop.f32.mrf.mxu0
  %v773 = vadd.f32 %v399, %v772
  %774 = vmatprep.mubr.bf16.mxu0 %v313
  %775 = vmatmul.mubr.bf16.gmra.mxu0 %v312
  %v776 = vpop.f32.mrf.mxu0
  %v777 = vadd.f32 %v395, %v776
  %v778 = vpop.f32.mrf.mxu0
  %v779 = vadd.f32 %v399, %v778
  %v780 = vpop.f32.mrf.mxu0
  %v781 = vadd.f32 %v395, %v780
  %v782 = vpop.f32.mrf.mxu0
  %v783 = vadd.f32 %v399, %v782
  %784 = vmatprep.mubr.bf16.mxu0 %v315
  %785 = vmatmul.mubr.bf16.gmra.mxu0 %v314
  %v786 = vpop.f32.mrf.mxu0
  %v787 = vadd.f32 %v395, %v786
  %v788 = vpop.f32.mrf.mxu0
  %v789 = vadd.f32 %v399, %v788
  %v790 = vpop.f32.mrf.mxu0
  %v791 = vadd.f32 %v395, %v790
  %v792 = vpop.f32.mrf.mxu0
  %v793 = vadd.f32 %v399, %v792
  %794 = vmatprep.mubr.bf16.mxu0 %v317
  %795 = vmatmul.mubr.bf16.gmra.mxu0 %v316
  %v796 = vpop.f32.mrf.mxu0
  %v797 = vadd.f32 %v395, %v796
  %v798 = vpop.f32.mrf.mxu0
  %v799 = vadd.f32 %v399, %v798
  %v800 = vpop.f32.mrf.mxu0
  %v801 = vadd.f32 %v395, %v800
  %v802 = vpop.f32.mrf.mxu0
  %v803 = vadd.f32 %v399, %v802
  %804 = vmatprep.mubr.bf16.mxu0 %v319
  %805 = vmatmul.mubr.bf16.gmra.mxu0 %v318
  %v806 = vpop.f32.mrf.mxu0
  %v807 = vadd.f32 %v395, %v806
  %v808 = vpop.f32.mrf.mxu0
  %v809 = vadd.f32 %v399, %v808
  %v810 = vpop.f32.mrf.mxu0
  %v811 = vadd.f32 %v395, %v810
  %v812 = vpop.f32.mrf.mxu0
  %v813 = vadd.f32 %v399, %v812
  %814 = vmatprep.mubr.bf16.mxu0 %v321
  %815 = vmatmul.mubr.bf16.gmra.mxu0 %v320
  %v816 = vpop.f32.mrf.mxu0
  %v817 = vadd.f32 %v395, %v816
  %v818 = vpop.f32.mrf.mxu0
  %v819 = vadd.f32 %v399, %v818
  %v820 = vpop.f32.mrf.mxu0
  %v821 = vadd.f32 %v395, %v820
  %v822 = vpop.f32.mrf.mxu0
  %v823 = vadd.f32 %v399, %v822
  %824 = vmatprep.mubr.bf16.mxu0 %v323
  %825 = vmatmul.mubr.bf16.gmra.mxu0 %v322
  %v826 = vpop.f32.mrf.mxu0
  %v827 = vadd.f32 %v395, %v826
  %v828 = vpop.f32.mrf.mxu0
  %v829 = vadd.f32 %v399, %v828
  %v830 = vpop.f32.mrf.mxu0
  %v831 = vadd.f32 %v395, %v830
  %v832 = vpop.f32.mrf.mxu0
  %v833 = vadd.f32 %v399, %v832
  %834 = vmatprep.mubr.bf16.mxu0 %v325
  %835 = vmatmul.mubr.bf16.gmra.mxu0 %v324
  %v836 = vpop.f32.mrf.mxu0
  %v837 = vadd.f32 %v395, %v836
  %v838 = vpop.f32.mrf.mxu0
  %v839 = vadd.f32 %v399, %v838
  %v840 = vpop.f32.mrf.mxu0
  %v841 = vadd.f32 %v395, %v840
  %v842 = vpop.f32.mrf.mxu0
  %v843 = vadd.f32 %v399, %v842
  %844 = vdwg.mxu0
  %845 = vmatprep.subr.bf16.mxu0 %v635
  %846 = vmatpush1.bf16.msra.mxu0 %v634
  %847 = vmatprep.subr.bf16.mxu0 %v631
  %848 = vmatpush1.bf16.msra.mxu0 %v630
  %849 = vmatprep.subr.bf16.mxu0 %v627
  %850 = vmatpush1.bf16.msra.mxu0 %v626
  %851 = vmatprep.subr.bf16.mxu0 %v623
  %852 = vmatpush1.bf16.msra.mxu0 %v622
  %853 = vmatprep.subr.bf16.mxu0 %v619
  %854 = vmatpush1.bf16.msra.mxu0 %v618
  %855 = vmatprep.subr.bf16.mxu0 %v615
  %856 = vmatpush1.bf16.msra.mxu0 %v614
  %857 = vmatprep.subr.bf16.mxu0 %v611
  %858 = vmatpush1.bf16.msra.mxu0 %v610
  %859 = vmatprep.subr.bf16.mxu0 %v607
  %860 = vmatpush1.bf16.msra.mxu0 %v606
  %861 = vmatprep.subr.bf16.mxu0 %v667
  %862 = vmatpush2.bf16.msra.mxu0 %v666
  %863 = vmatprep.subr.bf16.mxu0 %v663
  %864 = vmatpush2.bf16.msra.mxu0 %v662
  %865 = vmatprep.subr.bf16.mxu0 %v659
  %866 = vmatpush2.bf16.msra.mxu0 %v658
  %867 = vmatprep.subr.bf16.mxu0 %v655
  %868 = vmatpush2.bf16.msra.mxu0 %v654
  %869 = vmatprep.subr.bf16.mxu0 %v651
  %870 = vmatpush2.bf16.msra.mxu0 %v650
  %871 = vmatprep.subr.bf16.mxu0 %v647
  %872 = vmatpush2.bf16.msra.mxu0 %v646
  %873 = vmatprep.subr.bf16.mxu0 %v643
  %874 = vmatpush2.bf16.msra.mxu0 %v642
  %875 = vmatprep.subr.bf16.mxu0 %v639
  %876 = vmatpush2.bf16.msra.mxu0 %v638
  %877 = vmatprep.mubr.bf16.mxu0 %v311
  %878 = vmatmul.mubr.bf16.gmra.mxu0 %v310
  %v879 = vpop.f32.mrf.mxu0
  %v880 = vadd.f32 %v403, %v879
  %v881 = vpop.f32.mrf.mxu0
  %v882 = vadd.f32 %v407, %v881
  %v883 = vpop.f32.mrf.mxu0
  %v884 = vadd.f32 %v403, %v883
  %v885 = vpop.f32.mrf.mxu0
  %v886 = vadd.f32 %v407, %v885
  %887 = vmatprep.mubr.bf16.mxu0 %v313
  %888 = vmatmul.mubr.bf16.gmra.mxu0 %v312
  %v889 = vpop.f32.mrf.mxu0
  %v890 = vadd.f32 %v403, %v889
  %v891 = vpop.f32.mrf.mxu0
  %v892 = vadd.f32 %v407, %v891
  %v893 = vpop.f32.mrf.mxu0
  %v894 = vadd.f32 %v403, %v893
  %v895 = vpop.f32.mrf.mxu0
  %v896 = vadd.f32 %v407, %v895
  %897 = vmatprep.mubr.bf16.mxu0 %v315
  %898 = vmatmul.mubr.bf16.gmra.mxu0 %v314
  %v899 = vpop.f32.mrf.mxu0
  %v900 = vadd.f32 %v403, %v899
  %v901 = vpop.f32.mrf.mxu0
  %v902 = vadd.f32 %v407, %v901
  %v903 = vpop.f32.mrf.mxu0
  %v904 = vadd.f32 %v403, %v903
  %v905 = vpop.f32.mrf.mxu0
  %v906 = vadd.f32 %v407, %v905
  %907 = vmatprep.mubr.bf16.mxu0 %v317
  %908 = vmatmul.mubr.bf16.gmra.mxu0 %v316
  %v909 = vpop.f32.mrf.mxu0
  %v910 = vadd.f32 %v403, %v909
  %v911 = vpop.f32.mrf.mxu0
  %v912 = vadd.f32 %v407, %v911
  %v913 = vpop.f32.mrf.mxu0
  %v914 = vadd.f32 %v403, %v913
  %v915 = vpop.f32.mrf.mxu0
  %v916 = vadd.f32 %v407, %v915
  %917 = vmatprep.mubr.bf16.mxu0 %v319
  %918 = vmatmul.mubr.bf16.gmra.mxu0 %v318
  %v919 = vpop.f32.mrf.mxu0
  %v920 = vadd.f32 %v403, %v919
  %v921 = vpop.f32.mrf.mxu0
  %v922 = vadd.f32 %v407, %v921
  %v923 = vpop.f32.mrf.mxu0
  %v924 = vadd.f32 %v403, %v923
  %v925 = vpop.f32.mrf.mxu0
  %v926 = vadd.f32 %v407, %v925
  %927 = vmatprep.mubr.bf16.mxu0 %v321
  %928 = vmatmul.mubr.bf16.gmra.mxu0 %v320
  %v929 = vpop.f32.mrf.mxu0
  %v930 = vadd.f32 %v403, %v929
  %v931 = vpop.f32.mrf.mxu0
  %v932 = vadd.f32 %v407, %v931
  %v933 = vpop.f32.mrf.mxu0
  %v934 = vadd.f32 %v403, %v933
  %v935 = vpop.f32.mrf.mxu0
  %v936 = vadd.f32 %v407, %v935
  %937 = vmatprep.mubr.bf16.mxu0 %v323
  %938 = vmatmul.mubr.bf16.gmra.mxu0 %v322
  %v939 = vpop.f32.mrf.mxu0
  %v940 = vadd.f32 %v403, %v939
  %v941 = vpop.f32.mrf.mxu0
  %v942 = vadd.f32 %v407, %v941
  %v943 = vpop.f32.mrf.mxu0
  %v944 = vadd.f32 %v403, %v943
  %v945 = vpop.f32.mrf.mxu0
  %v946 = vadd.f32 %v407, %v945
  %947 = vmatprep.mubr.bf16.mxu0 %v325
  %948 = vmatmul.mubr.bf16.gmra.mxu0 %v324
  %v949 = vpop.f32.mrf.mxu0
  %v950 = vadd.f32 %v403, %v949
  %v951 = vpop.f32.mrf.mxu0
  %v952 = vadd.f32 %v407, %v951
  %v953 = vpop.f32.mrf.mxu0
  %v954 = vadd.f32 %v403, %v953
  %v955 = vpop.f32.mrf.mxu0
  %v956 = vadd.f32 %v407, %v955
  %957 = vdwg.mxu0
  %v958 = vmax.f32 %v767, 0.0
  %v959 = vmax.f32 %v769, 0.0
  %v960 = vmax.f32 %v880, 0.0
  %v961 = vmax.f32 %v882, 0.0
  %v962 = vmax.f32 %v771, 0.0
  %v963 = vmax.f32 %v773, 0.0
  %v964 = vmax.f32 %v884, 0.0
  %v965 = vmax.f32 %v886, 0.0
  %v966 = vmax.f32 %v777, 0.0
  %v967 = vmax.f32 %v779, 0.0
  %v968 = vmax.f32 %v890, 0.0
  %v969 = vmax.f32 %v892, 0.0
  %v970 = vmax.f32 %v781, 0.0
  %v971 = vmax.f32 %v783, 0.0
  %v972 = vmax.f32 %v894, 0.0
  %v973 = vmax.f32 %v896, 0.0
  %v974 = vmax.f32 %v787, 0.0
  %v975 = vmax.f32 %v789, 0.0
  %v976 = vmax.f32 %v900, 0.0
  %v977 = vmax.f32 %v902, 0.0
  %v978 = vmax.f32 %v791, 0.0
  %v979 = vmax.f32 %v793, 0.0
  %v980 = vmax.f32 %v904, 0.0
  %v981 = vmax.f32 %v906, 0.0
  %v982 = vmax.f32 %v797, 0.0
  %v983 = vmax.f32 %v799, 0.0
  %v984 = vmax.f32 %v910, 0.0
  %v985 = vmax.f32 %v912, 0.0
  %v986 = vmax.f32 %v801, 0.0
  %v987 = vmax.f32 %v803, 0.0
  %v988 = vmax.f32 %v914, 0.0
  %v989 = vmax.f32 %v916, 0.0
  %v990 = vmax.f32 %v807, 0.0
  %v991 = vmax.f32 %v809, 0.0
  %v992 = vmax.f32 %v920, 0.0
  %v993 = vmax.f32 %v922, 0.0
  %v994 = vmax.f32 %v811, 0.0
  %v995 = vmax.f32 %v813, 0.0
  %v996 = vmax.f32 %v924, 0.0
  %v997 = vmax.f32 %v926, 0.0
  %v998 = vmax.f32 %v817, 0.0
  %v999 = vmax.f32 %v819, 0.0
  %v1000 = vmax.f32 %v930, 0.0
  %v1001 = vmax.f32 %v932, 0.0
  %v1002 = vmax.f32 %v821, 0.0
  %v1003 = vmax.f32 %v823, 0.0
  %v1004 = vmax.f32 %v934, 0.0
  %v1005 = vmax.f32 %v936, 0.0
  %v1006 = vmax.f32 %v827, 0.0
  %v1007 = vmax.f32 %v829, 0.0
  %v1008 = vmax.f32 %v940, 0.0
  %v1009 = vmax.f32 %v942, 0.0
  %v1010 = vmax.f32 %v831, 0.0
  %v1011 = vmax.f32 %v833, 0.0
  %v1012 = vmax.f32 %v944, 0.0
  %v1013 = vmax.f32 %v946, 0.0
  %v1014 = vmax.f32 %v837, 0.0
  %v1015 = vmax.f32 %v839, 0.0
  %v1016 = vmax.f32 %v950, 0.0
  %v1017 = vmax.f32 %v952, 0.0
  %v1018 = vmax.f32 %v841, 0.0
  %v1019 = vmax.f32 %v843, 0.0
  %v1020 = vmax.f32 %v954, 0.0
  %v1021 = vmax.f32 %v956, 0.0
  %v1022 = vpack.c.bf16 %v962, %v958
  %v1023 = vpack.c.bf16 %v963, %v959
  %v1024 = vpack.c.bf16 %v964, %v960
  %v1025 = vpack.c.bf16 %v965, %v961
  %v1026 = vpack.c.bf16 %v970, %v966
  %v1027 = vpack.c.bf16 %v971, %v967
  %v1028 = vpack.c.bf16 %v972, %v968
  %v1029 = vpack.c.bf16 %v973, %v969
  %v1030 = vpack.c.bf16 %v978, %v974
  %v1031 = vpack.c.bf16 %v979, %v975
  %v1032 = vpack.c.bf16 %v980, %v976
  %v1033 = vpack.c.bf16 %v981, %v977
  %v1034 = vpack.c.bf16 %v986, %v982
  %v1035 = vpack.c.bf16 %v987, %v983
  %v1036 = vpack.c.bf16 %v988, %v984
  %v1037 = vpack.c.bf16 %v989, %v985
  %v1038 = vpack.c.bf16 %v994, %v990
  %v1039 = vpack.c.bf16 %v995, %v991
  %v1040 = vpack.c.bf16 %v996, %v992
  %v1041 = vpack.c.bf16 %v997, %v993
  %v1042 = vpack.c.bf16 %v1002, %v998
  %v1043 = vpack.c.bf16 %v1003, %v999
  %v1044 = vpack.c.bf16 %v1004, %v1000
  %v1045 = vpack.c.bf16 %v1005, %v1001
  %v1046 = vpack.c.bf16 %v1010, %v1006
  %v1047 = vpack.c.bf16 %v1011, %v1007
  %v1048 = vpack.c.bf16 %v1012, %v1008
  %v1049 = vpack.c.bf16 %v1013, %v1009
  %v1050 = vpack.c.bf16 %v1018, %v1014
  %v1051 = vpack.c.bf16 %v1019, %v1015
  %v1052 = vpack.c.bf16 %v1020, %v1016
  %v1053 = vpack.c.bf16 %v1021, %v1017
  %v1054 = vld [vmem:[%s5] sm:$0xff]
  %v1055 = vld [vmem:[%s5 + $0x8] sm:$0xff]
  %v1056 = vld [vmem:[%s5 + $0x10] sm:$0xff]
  %v1057 = vld [vmem:[%s5 + $0x18] sm:$0xff]
  %v1058 = vld [vmem:[%s5 + $0x20] sm:$0xff]
  %v1059 = vld [vmem:[%s5 + $0x28] sm:$0xff]
  %v1060 = vld [vmem:[%s5 + $0x30] sm:$0xff]
  %v1061 = vld [vmem:[%s5 + $0x38] sm:$0xff]
  %v1062 = vld [vmem:[%s5 + $0x40] sm:$0xff]
  %v1063 = vld [vmem:[%s5 + $0x48] sm:$0xff]
  %v1064 = vld [vmem:[%s5 + $0x50] sm:$0xff]
  %v1065 = vld [vmem:[%s5 + $0x58] sm:$0xff]
  %v1066 = vld [vmem:[%s5 + $0x60] sm:$0xff]
  %v1067 = vld [vmem:[%s5 + $0x68] sm:$0xff]
  %v1068 = vld [vmem:[%s5 + $0x70] sm:$0xff]
  %v1069 = vld [vmem:[%s5 + $0x78] sm:$0xff]
  %v1070 = vld [vmem:[%s5 + $0x80] sm:$0xff]
  %v1071 = vld [vmem:[%s5 + $0x88] sm:$0xff]
  %v1072 = vld [vmem:[%s5 + $0x90] sm:$0xff]
  %v1073 = vld [vmem:[%s5 + $0x98] sm:$0xff]
  %v1074 = vld [vmem:[%s5 + $0xa0] sm:$0xff]
  %v1075 = vld [vmem:[%s5 + $0xa8] sm:$0xff]
  %v1076 = vld [vmem:[%s5 + $0xb0] sm:$0xff]
  %v1077 = vld [vmem:[%s5 + $0xb8] sm:$0xff]
  %v1078 = vld [vmem:[%s5 + $0xc0] sm:$0xff]
  %v1079 = vld [vmem:[%s5 + $0xc8] sm:$0xff]
  %v1080 = vld [vmem:[%s5 + $0xd0] sm:$0xff]
  %v1081 = vld [vmem:[%s5 + $0xd8] sm:$0xff]
  %v1082 = vld [vmem:[%s5 + $0xe0] sm:$0xff]
  %v1083 = vld [vmem:[%s5 + $0xe8] sm:$0xff]
  %v1084 = vld [vmem:[%s5 + $0xf0] sm:$0xff]
  %v1085 = vld [vmem:[%s5 + $0xf8] sm:$0xff]
  %v1086 = vld [vmem:[%s5 + $0x100] sm:$0xff]
  %v1087 = vld [vmem:[%s5 + $0x108] sm:$0xff]
  %v1088 = vld [vmem:[%s5 + $0x110] sm:$0xff]
  %v1089 = vld [vmem:[%s5 + $0x118] sm:$0xff]
  %v1090 = vld [vmem:[%s5 + $0x120] sm:$0xff]
  %v1091 = vld [vmem:[%s5 + $0x128] sm:$0xff]
  %v1092 = vld [vmem:[%s5 + $0x130] sm:$0xff]
  %v1093 = vld [vmem:[%s5 + $0x138] sm:$0xff]
  %v1094 = vld [vmem:[%s5 + $0x140] sm:$0xff]
  %v1095 = vld [vmem:[%s5 + $0x148] sm:$0xff]
  %v1096 = vld [vmem:[%s5 + $0x150] sm:$0xff]
  %v1097 = vld [vmem:[%s5 + $0x158] sm:$0xff]
  %v1098 = vld [vmem:[%s5 + $0x160] sm:$0xff]
  %v1099 = vld [vmem:[%s5 + $0x168] sm:$0xff]
  %v1100 = vld [vmem:[%s5 + $0x170] sm:$0xff]
  %v1101 = vld [vmem:[%s5 + $0x178] sm:$0xff]
  %v1102 = vld [vmem:[%s5 + $0x180] sm:$0xff]
  %v1103 = vld [vmem:[%s5 + $0x188] sm:$0xff]
  %v1104 = vld [vmem:[%s5 + $0x190] sm:$0xff]
  %v1105 = vld [vmem:[%s5 + $0x198] sm:$0xff]
  %v1106 = vld [vmem:[%s5 + $0x1a0] sm:$0xff]
  %v1107 = vld [vmem:[%s5 + $0x1a8] sm:$0xff]
  %v1108 = vld [vmem:[%s5 + $0x1b0] sm:$0xff]
  %v1109 = vld [vmem:[%s5 + $0x1b8] sm:$0xff]
  %v1110 = vld [vmem:[%s5 + $0x1c0] sm:$0xff]
  %v1111 = vld [vmem:[%s5 + $0x1c8] sm:$0xff]
  %v1112 = vld [vmem:[%s5 + $0x1d0] sm:$0xff]
  %v1113 = vld [vmem:[%s5 + $0x1d8] sm:$0xff]
  %v1114 = vld [vmem:[%s5 + $0x1e0] sm:$0xff]
  %v1115 = vld [vmem:[%s5 + $0x1e8] sm:$0xff]
  %v1116 = vld [vmem:[%s5 + $0x1f0] sm:$0xff]
  %v1117 = vld [vmem:[%s5 + $0x1f8] sm:$0xff]
  %v1118 = vld [vmem:[%s5 + $0x200] sm:$0xff]
  %v1119 = vld [vmem:[%s5 + $0x208] sm:$0xff]
  %v1120 = vld [vmem:[%s5 + $0x210] sm:$0xff]
  %v1121 = vld [vmem:[%s5 + $0x218] sm:$0xff]
  %v1122 = vld [vmem:[%s5 + $0x220] sm:$0xff]
  %v1123 = vld [vmem:[%s5 + $0x228] sm:$0xff]
  %v1124 = vld [vmem:[%s5 + $0x230] sm:$0xff]
  %v1125 = vld [vmem:[%s5 + $0x238] sm:$0xff]
  %v1126 = vld [vmem:[%s5 + $0x240] sm:$0xff]
  %v1127 = vld [vmem:[%s5 + $0x248] sm:$0xff]
  %v1128 = vld [vmem:[%s5 + $0x250] sm:$0xff]
  %v1129 = vld [vmem:[%s5 + $0x258] sm:$0xff]
  %v1130 = vld [vmem:[%s5 + $0x260] sm:$0xff]
  %v1131 = vld [vmem:[%s5 + $0x268] sm:$0xff]
  %v1132 = vld [vmem:[%s5 + $0x270] sm:$0xff]
  %v1133 = vld [vmem:[%s5 + $0x278] sm:$0xff]
  %v1134 = vld [vmem:[%s5 + $0x280] sm:$0xff]
  %v1135 = vld [vmem:[%s5 + $0x288] sm:$0xff]
  %v1136 = vld [vmem:[%s5 + $0x290] sm:$0xff]
  %v1137 = vld [vmem:[%s5 + $0x298] sm:$0xff]
  %v1138 = vld [vmem:[%s5 + $0x2a0] sm:$0xff]
  %v1139 = vld [vmem:[%s5 + $0x2a8] sm:$0xff]
  %v1140 = vld [vmem:[%s5 + $0x2b0] sm:$0xff]
  %v1141 = vld [vmem:[%s5 + $0x2b8] sm:$0xff]
  %v1142 = vld [vmem:[%s5 + $0x2c0] sm:$0xff]
  %v1143 = vld [vmem:[%s5 + $0x2c8] sm:$0xff]
  %v1144 = vld [vmem:[%s5 + $0x2d0] sm:$0xff]
  %v1145 = vld [vmem:[%s5 + $0x2d8] sm:$0xff]
  %v1146 = vld [vmem:[%s5 + $0x2e0] sm:$0xff]
  %v1147 = vld [vmem:[%s5 + $0x2e8] sm:$0xff]
  %v1148 = vld [vmem:[%s5 + $0x2f0] sm:$0xff]
  %v1149 = vld [vmem:[%s5 + $0x2f8] sm:$0xff]
  %v1150 = vld [vmem:[%s5 + $0x300] sm:$0xff]
  %v1151 = vld [vmem:[%s5 + $0x308] sm:$0xff]
  %v1152 = vld [vmem:[%s5 + $0x310] sm:$0xff]
  %v1153 = vld [vmem:[%s5 + $0x318] sm:$0xff]
  %v1154 = vld [vmem:[%s5 + $0x320] sm:$0xff]
  %v1155 = vld [vmem:[%s5 + $0x328] sm:$0xff]
  %v1156 = vld [vmem:[%s5 + $0x330] sm:$0xff]
  %v1157 = vld [vmem:[%s5 + $0x338] sm:$0xff]
  %v1158 = vld [vmem:[%s5 + $0x340] sm:$0xff]
  %v1159 = vld [vmem:[%s5 + $0x348] sm:$0xff]
  %v1160 = vld [vmem:[%s5 + $0x350] sm:$0xff]
  %v1161 = vld [vmem:[%s5 + $0x358] sm:$0xff]
  %v1162 = vld [vmem:[%s5 + $0x360] sm:$0xff]
  %v1163 = vld [vmem:[%s5 + $0x368] sm:$0xff]
  %v1164 = vld [vmem:[%s5 + $0x370] sm:$0xff]
  %v1165 = vld [vmem:[%s5 + $0x378] sm:$0xff]
  %v1166 = vld [vmem:[%s5 + $0x380] sm:$0xff]
  %v1167 = vld [vmem:[%s5 + $0x388] sm:$0xff]
  %v1168 = vld [vmem:[%s5 + $0x390] sm:$0xff]
  %v1169 = vld [vmem:[%s5 + $0x398] sm:$0xff]
  %v1170 = vld [vmem:[%s5 + $0x3a0] sm:$0xff]
  %v1171 = vld [vmem:[%s5 + $0x3a8] sm:$0xff]
  %v1172 = vld [vmem:[%s5 + $0x3b0] sm:$0xff]
  %v1173 = vld [vmem:[%s5 + $0x3b8] sm:$0xff]
  %v1174 = vld [vmem:[%s5 + $0x3c0] sm:$0xff]
  %v1175 = vld [vmem:[%s5 + $0x3c8] sm:$0xff]
  %v1176 = vld [vmem:[%s5 + $0x3d0] sm:$0xff]
  %v1177 = vld [vmem:[%s5 + $0x3d8] sm:$0xff]
  %v1178 = vld [vmem:[%s5 + $0x3e0] sm:$0xff]
  %v1179 = vld [vmem:[%s5 + $0x3e8] sm:$0xff]
  %v1180 = vld [vmem:[%s5 + $0x3f0] sm:$0xff]
  %v1181 = vld [vmem:[%s5 + $0x3f8] sm:$0xff]
  %v1182 = vld [vmem:[%s5 + $0x400] sm:$0xff]
  %v1183 = vld [vmem:[%s5 + $0x408] sm:$0xff]
  %v1184 = vld [vmem:[%s5 + $0x410] sm:$0xff]
  %v1185 = vld [vmem:[%s5 + $0x418] sm:$0xff]
  %v1186 = vld [vmem:[%s5 + $0x420] sm:$0xff]
  %v1187 = vld [vmem:[%s5 + $0x428] sm:$0xff]
  %v1188 = vld [vmem:[%s5 + $0x430] sm:$0xff]
  %v1189 = vld [vmem:[%s5 + $0x438] sm:$0xff]
  %v1190 = vld [vmem:[%s5 + $0x440] sm:$0xff]
  %v1191 = vld [vmem:[%s5 + $0x448] sm:$0xff]
  %v1192 = vld [vmem:[%s5 + $0x450] sm:$0xff]
  %v1193 = vld [vmem:[%s5 + $0x458] sm:$0xff]
  %v1194 = vld [vmem:[%s5 + $0x460] sm:$0xff]
  %v1195 = vld [vmem:[%s5 + $0x468] sm:$0xff]
  %v1196 = vld [vmem:[%s5 + $0x470] sm:$0xff]
  %v1197 = vld [vmem:[%s5 + $0x478] sm:$0xff]
  %v1198 = vld [vmem:[%s5 + $0x480] sm:$0xff]
  %v1199 = vld [vmem:[%s5 + $0x488] sm:$0xff]
  %v1200 = vld [vmem:[%s5 + $0x490] sm:$0xff]
  %v1201 = vld [vmem:[%s5 + $0x498] sm:$0xff]
  %v1202 = vld [vmem:[%s5 + $0x4a0] sm:$0xff]
  %v1203 = vld [vmem:[%s5 + $0x4a8] sm:$0xff]
  %v1204 = vld [vmem:[%s5 + $0x4b0] sm:$0xff]
  %v1205 = vld [vmem:[%s5 + $0x4b8] sm:$0xff]
  %v1206 = vld [vmem:[%s5 + $0x4c0] sm:$0xff]
  %v1207 = vld [vmem:[%s5 + $0x4c8] sm:$0xff]
  %v1208 = vld [vmem:[%s5 + $0x4d0] sm:$0xff]
  %v1209 = vld [vmem:[%s5 + $0x4d8] sm:$0xff]
  %v1210 = vld [vmem:[%s5 + $0x4e0] sm:$0xff]
  %v1211 = vld [vmem:[%s5 + $0x4e8] sm:$0xff]
  %v1212 = vld [vmem:[%s5 + $0x4f0] sm:$0xff]
  %v1213 = vld [vmem:[%s5 + $0x4f8] sm:$0xff]
  %v1214 = vld [vmem:[%s5 + $0x500] sm:$0xff]
  %v1215 = vld [vmem:[%s5 + $0x508] sm:$0xff]
  %v1216 = vld [vmem:[%s5 + $0x510] sm:$0xff]
  %v1217 = vld [vmem:[%s5 + $0x518] sm:$0xff]
  %v1218 = vld [vmem:[%s5 + $0x520] sm:$0xff]
  %v1219 = vld [vmem:[%s5 + $0x528] sm:$0xff]
  %v1220 = vld [vmem:[%s5 + $0x530] sm:$0xff]
  %v1221 = vld [vmem:[%s5 + $0x538] sm:$0xff]
  %v1222 = vld [vmem:[%s5 + $0x540] sm:$0xff]
  %v1223 = vld [vmem:[%s5 + $0x548] sm:$0xff]
  %v1224 = vld [vmem:[%s5 + $0x550] sm:$0xff]
  %v1225 = vld [vmem:[%s5 + $0x558] sm:$0xff]
  %v1226 = vld [vmem:[%s5 + $0x560] sm:$0xff]
  %v1227 = vld [vmem:[%s5 + $0x568] sm:$0xff]
  %v1228 = vld [vmem:[%s5 + $0x570] sm:$0xff]
  %v1229 = vld [vmem:[%s5 + $0x578] sm:$0xff]
  %v1230 = vld [vmem:[%s5 + $0x580] sm:$0xff]
  %v1231 = vld [vmem:[%s5 + $0x588] sm:$0xff]
  %v1232 = vld [vmem:[%s5 + $0x590] sm:$0xff]
  %v1233 = vld [vmem:[%s5 + $0x598] sm:$0xff]
  %v1234 = vld [vmem:[%s5 + $0x5a0] sm:$0xff]
  %v1235 = vld [vmem:[%s5 + $0x5a8] sm:$0xff]
  %v1236 = vld [vmem:[%s5 + $0x5b0] sm:$0xff]
  %v1237 = vld [vmem:[%s5 + $0x5b8] sm:$0xff]
  %v1238 = vld [vmem:[%s5 + $0x5c0] sm:$0xff]
  %v1239 = vld [vmem:[%s5 + $0x5c8] sm:$0xff]
  %v1240 = vld [vmem:[%s5 + $0x5d0] sm:$0xff]
  %v1241 = vld [vmem:[%s5 + $0x5d8] sm:$0xff]
  %v1242 = vld [vmem:[%s5 + $0x5e0] sm:$0xff]
  %v1243 = vld [vmem:[%s5 + $0x5e8] sm:$0xff]
  %v1244 = vld [vmem:[%s5 + $0x5f0] sm:$0xff]
  %v1245 = vld [vmem:[%s5 + $0x5f8] sm:$0xff]
  %v1246 = vld [vmem:[%s5 + $0x600] sm:$0xff]
  %v1247 = vld [vmem:[%s5 + $0x608] sm:$0xff]
  %v1248 = vld [vmem:[%s5 + $0x610] sm:$0xff]
  %v1249 = vld [vmem:[%s5 + $0x618] sm:$0xff]
  %v1250 = vld [vmem:[%s5 + $0x620] sm:$0xff]
  %v1251 = vld [vmem:[%s5 + $0x628] sm:$0xff]
  %v1252 = vld [vmem:[%s5 + $0x630] sm:$0xff]
  %v1253 = vld [vmem:[%s5 + $0x638] sm:$0xff]
  %v1254 = vld [vmem:[%s5 + $0x640] sm:$0xff]
  %v1255 = vld [vmem:[%s5 + $0x648] sm:$0xff]
  %v1256 = vld [vmem:[%s5 + $0x650] sm:$0xff]
  %v1257 = vld [vmem:[%s5 + $0x658] sm:$0xff]
  %v1258 = vld [vmem:[%s5 + $0x660] sm:$0xff]
  %v1259 = vld [vmem:[%s5 + $0x668] sm:$0xff]
  %v1260 = vld [vmem:[%s5 + $0x670] sm:$0xff]
  %v1261 = vld [vmem:[%s5 + $0x678] sm:$0xff]
  %v1262 = vld [vmem:[%s5 + $0x680] sm:$0xff]
  %v1263 = vld [vmem:[%s5 + $0x688] sm:$0xff]
  %v1264 = vld [vmem:[%s5 + $0x690] sm:$0xff]
  %v1265 = vld [vmem:[%s5 + $0x698] sm:$0xff]
  %v1266 = vld [vmem:[%s5 + $0x6a0] sm:$0xff]
  %v1267 = vld [vmem:[%s5 + $0x6a8] sm:$0xff]
  %v1268 = vld [vmem:[%s5 + $0x6b0] sm:$0xff]
  %v1269 = vld [vmem:[%s5 + $0x6b8] sm:$0xff]
  %v1270 = vld [vmem:[%s5 + $0x6c0] sm:$0xff]
  %v1271 = vld [vmem:[%s5 + $0x6c8] sm:$0xff]
  %v1272 = vld [vmem:[%s5 + $0x6d0] sm:$0xff]
  %v1273 = vld [vmem:[%s5 + $0x6d8] sm:$0xff]
  %v1274 = vld [vmem:[%s5 + $0x6e0] sm:$0xff]
  %v1275 = vld [vmem:[%s5 + $0x6e8] sm:$0xff]
  %v1276 = vld [vmem:[%s5 + $0x6f0] sm:$0xff]
  %v1277 = vld [vmem:[%s5 + $0x6f8] sm:$0xff]
  %v1278 = vld [vmem:[%s5 + $0x700] sm:$0xff]
  %v1279 = vld [vmem:[%s5 + $0x708] sm:$0xff]
  %v1280 = vld [vmem:[%s5 + $0x710] sm:$0xff]
  %v1281 = vld [vmem:[%s5 + $0x718] sm:$0xff]
  %v1282 = vld [vmem:[%s5 + $0x720] sm:$0xff]
  %v1283 = vld [vmem:[%s5 + $0x728] sm:$0xff]
  %v1284 = vld [vmem:[%s5 + $0x730] sm:$0xff]
  %v1285 = vld [vmem:[%s5 + $0x738] sm:$0xff]
  %v1286 = vld [vmem:[%s5 + $0x740] sm:$0xff]
  %v1287 = vld [vmem:[%s5 + $0x748] sm:$0xff]
  %v1288 = vld [vmem:[%s5 + $0x750] sm:$0xff]
  %v1289 = vld [vmem:[%s5 + $0x758] sm:$0xff]
  %v1290 = vld [vmem:[%s5 + $0x760] sm:$0xff]
  %v1291 = vld [vmem:[%s5 + $0x768] sm:$0xff]
  %v1292 = vld [vmem:[%s5 + $0x770] sm:$0xff]
  %v1293 = vld [vmem:[%s5 + $0x778] sm:$0xff]
  %v1294 = vld [vmem:[%s5 + $0x780] sm:$0xff]
  %v1295 = vld [vmem:[%s5 + $0x788] sm:$0xff]
  %v1296 = vld [vmem:[%s5 + $0x790] sm:$0xff]
  %v1297 = vld [vmem:[%s5 + $0x798] sm:$0xff]
  %v1298 = vld [vmem:[%s5 + $0x7a0] sm:$0xff]
  %v1299 = vld [vmem:[%s5 + $0x7a8] sm:$0xff]
  %v1300 = vld [vmem:[%s5 + $0x7b0] sm:$0xff]
  %v1301 = vld [vmem:[%s5 + $0x7b8] sm:$0xff]
  %v1302 = vld [vmem:[%s5 + $0x7c0] sm:$0xff]
  %v1303 = vld [vmem:[%s5 + $0x7c8] sm:$0xff]
  %v1304 = vld [vmem:[%s5 + $0x7d0] sm:$0xff]
  %v1305 = vld [vmem:[%s5 + $0x7d8] sm:$0xff]
  %v1306 = vld [vmem:[%s5 + $0x7e0] sm:$0xff]
  %v1307 = vld [vmem:[%s5 + $0x7e8] sm:$0xff]
  %v1308 = vld [vmem:[%s5 + $0x7f0] sm:$0xff]
  %v1309 = vld [vmem:[%s5 + $0x7f8] sm:$0xff]
  %v1310 = vld [vmem:[%s6] sm:$0xff]
  %v1312 = vlaneseq
  %v1313 = vshrl.u32 %v1312, 7
  %v1314 = vsub.s32 0, %v1313
  %v1315 = vrot.slane %v1310, %v1314
  %v1316 = vlaneseq
  %v1317 = vshrl.u32 %v1316, 7
  %v1318 = vsub.s32 1, %v1317
  %v1319 = vrot.slane %v1310, %v1318
  %v1320 = vlaneseq
  %v1321 = vshrl.u32 %v1320, 7
  %v1322 = vsub.s32 2, %v1321
  %v1323 = vrot.slane %v1310, %v1322
  %v1324 = vlaneseq
  %v1325 = vshrl.u32 %v1324, 7
  %v1326 = vsub.s32 3, %v1325
  %v1327 = vrot.slane %v1310, %v1326
  %v1328 = vlaneseq
  %v1329 = vshrl.u32 %v1328, 7
  %v1330 = vsub.s32 4, %v1329
  %v1331 = vrot.slane %v1310, %v1330
  %v1332 = vlaneseq
  %v1333 = vshrl.u32 %v1332, 7
  %v1334 = vsub.s32 5, %v1333
  %v1335 = vrot.slane %v1310, %v1334
  %v1336 = vlaneseq
  %v1337 = vshrl.u32 %v1336, 7
  %v1338 = vsub.s32 6, %v1337
  %v1339 = vrot.slane %v1310, %v1338
  %v1340 = vlaneseq
  %v1341 = vshrl.u32 %v1340, 7
  %v1342 = vsub.s32 7, %v1341
  %v1343 = vrot.slane %v1310, %v1342
  %v1608 = vunpack.c.l.b16 %v1054
  %v1609 = vunpack.c.h.b16 %v1054
  %v1610 = vunpack.c.l.b16 %v1055
  %v1611 = vunpack.c.h.b16 %v1055
  %v1612 = vunpack.c.l.b16 %v1056
  %v1613 = vunpack.c.h.b16 %v1056
  %v1614 = vunpack.c.l.b16 %v1057
  %v1615 = vunpack.c.h.b16 %v1057
  %v1616 = vunpack.c.l.b16 %v1058
  %v1617 = vunpack.c.h.b16 %v1058
  %v1618 = vunpack.c.l.b16 %v1059
  %v1619 = vunpack.c.h.b16 %v1059
  %v1620 = vunpack.c.l.b16 %v1060
  %v1621 = vunpack.c.h.b16 %v1060
  %v1622 = vunpack.c.l.b16 %v1061
  %v1623 = vunpack.c.h.b16 %v1061
  %v1624 = vunpack.c.l.b16 %v1062
  %v1625 = vunpack.c.h.b16 %v1062
  %v1626 = vunpack.c.l.b16 %v1063
  %v1627 = vunpack.c.h.b16 %v1063
  %v1628 = vunpack.c.l.b16 %v1064
  %v1629 = vunpack.c.h.b16 %v1064
  %v1630 = vunpack.c.l.b16 %v1065
  %v1631 = vunpack.c.h.b16 %v1065
  %v1632 = vunpack.c.l.b16 %v1066
  %v1633 = vunpack.c.h.b16 %v1066
  %v1634 = vunpack.c.l.b16 %v1067
  %v1635 = vunpack.c.h.b16 %v1067
  %v1636 = vunpack.c.l.b16 %v1068
  %v1637 = vunpack.c.h.b16 %v1068
  %v1638 = vunpack.c.l.b16 %v1069
  %v1639 = vunpack.c.h.b16 %v1069
  %v1640 = vunpack.c.l.b16 %v1070
  %v1641 = vunpack.c.h.b16 %v1070
  %v1642 = vunpack.c.l.b16 %v1071
  %v1643 = vunpack.c.h.b16 %v1071
  %v1644 = vunpack.c.l.b16 %v1072
  %v1645 = vunpack.c.h.b16 %v1072
  %v1646 = vunpack.c.l.b16 %v1073
  %v1647 = vunpack.c.h.b16 %v1073
  %v1648 = vunpack.c.l.b16 %v1074
  %v1649 = vunpack.c.h.b16 %v1074
  %v1650 = vunpack.c.l.b16 %v1075
  %v1651 = vunpack.c.h.b16 %v1075
  %v1652 = vunpack.c.l.b16 %v1076
  %v1653 = vunpack.c.h.b16 %v1076
  %v1654 = vunpack.c.l.b16 %v1077
  %v1655 = vunpack.c.h.b16 %v1077
  %v1656 = vunpack.c.l.b16 %v1078
  %v1657 = vunpack.c.h.b16 %v1078
  %v1658 = vunpack.c.l.b16 %v1079
  %v1659 = vunpack.c.h.b16 %v1079
  %v1660 = vunpack.c.l.b16 %v1080
  %v1661 = vunpack.c.h.b16 %v1080
  %v1662 = vunpack.c.l.b16 %v1081
  %v1663 = vunpack.c.h.b16 %v1081
  %v1664 = vunpack.c.l.b16 %v1082
  %v1665 = vunpack.c.h.b16 %v1082
  %v1666 = vunpack.c.l.b16 %v1083
  %v1667 = vunpack.c.h.b16 %v1083
  %v1668 = vunpack.c.l.b16 %v1084
  %v1669 = vunpack.c.h.b16 %v1084
  %v1670 = vunpack.c.l.b16 %v1085
  %v1671 = vunpack.c.h.b16 %v1085
  %v1672 = vunpack.c.l.b16 %v1086
  %v1673 = vunpack.c.h.b16 %v1086
  %v1674 = vunpack.c.l.b16 %v1087
  %v1675 = vunpack.c.h.b16 %v1087
  %v1676 = vunpack.c.l.b16 %v1088
  %v1677 = vunpack.c.h.b16 %v1088
  %v1678 = vunpack.c.l.b16 %v1089
  %v1679 = vunpack.c.h.b16 %v1089
  %v1680 = vunpack.c.l.b16 %v1090
  %v1681 = vunpack.c.h.b16 %v1090
  %v1682 = vunpack.c.l.b16 %v1091
  %v1683 = vunpack.c.h.b16 %v1091
  %v1684 = vunpack.c.l.b16 %v1092
  %v1685 = vunpack.c.h.b16 %v1092
  %v1686 = vunpack.c.l.b16 %v1093
  %v1687 = vunpack.c.h.b16 %v1093
  %v1688 = vunpack.c.l.b16 %v1094
  %v1689 = vunpack.c.h.b16 %v1094
  %v1690 = vunpack.c.l.b16 %v1095
  %v1691 = vunpack.c.h.b16 %v1095
  %v1692 = vunpack.c.l.b16 %v1096
  %v1693 = vunpack.c.h.b16 %v1096
  %v1694 = vunpack.c.l.b16 %v1097
  %v1695 = vunpack.c.h.b16 %v1097
  %v1696 = vunpack.c.l.b16 %v1098
  %v1697 = vunpack.c.h.b16 %v1098
  %v1698 = vunpack.c.l.b16 %v1099
  %v1699 = vunpack.c.h.b16 %v1099
  %v1700 = vunpack.c.l.b16 %v1100
  %v1701 = vunpack.c.h.b16 %v1100
  %v1702 = vunpack.c.l.b16 %v1101
  %v1703 = vunpack.c.h.b16 %v1101
  %v1704 = vunpack.c.l.b16 %v1102
  %v1705 = vunpack.c.h.b16 %v1102
  %v1706 = vunpack.c.l.b16 %v1103
  %v1707 = vunpack.c.h.b16 %v1103
  %v1708 = vunpack.c.l.b16 %v1104
  %v1709 = vunpack.c.h.b16 %v1104
  %v1710 = vunpack.c.l.b16 %v1105
  %v1711 = vunpack.c.h.b16 %v1105
  %v1712 = vunpack.c.l.b16 %v1106
  %v1713 = vunpack.c.h.b16 %v1106
  %v1714 = vunpack.c.l.b16 %v1107
  %v1715 = vunpack.c.h.b16 %v1107
  %v1716 = vunpack.c.l.b16 %v1108
  %v1717 = vunpack.c.h.b16 %v1108
  %v1718 = vunpack.c.l.b16 %v1109
  %v1719 = vunpack.c.h.b16 %v1109
  %v1720 = vunpack.c.l.b16 %v1110
  %v1721 = vunpack.c.h.b16 %v1110
  %v1722 = vunpack.c.l.b16 %v1111
  %v1723 = vunpack.c.h.b16 %v1111
  %v1724 = vunpack.c.l.b16 %v1112
  %v1725 = vunpack.c.h.b16 %v1112
  %v1726 = vunpack.c.l.b16 %v1113
  %v1727 = vunpack.c.h.b16 %v1113
  %v1728 = vunpack.c.l.b16 %v1114
  %v1729 = vunpack.c.h.b16 %v1114
  %v1730 = vunpack.c.l.b16 %v1115
  %v1731 = vunpack.c.h.b16 %v1115
  %v1732 = vunpack.c.l.b16 %v1116
  %v1733 = vunpack.c.h.b16 %v1116
  %v1734 = vunpack.c.l.b16 %v1117
  %v1735 = vunpack.c.h.b16 %v1117
  %v1736 = vunpack.c.l.b16 %v1118
  %v1737 = vunpack.c.h.b16 %v1118
  %v1738 = vunpack.c.l.b16 %v1119
  %v1739 = vunpack.c.h.b16 %v1119
  %v1740 = vunpack.c.l.b16 %v1120
  %v1741 = vunpack.c.h.b16 %v1120
  %v1742 = vunpack.c.l.b16 %v1121
  %v1743 = vunpack.c.h.b16 %v1121
  %v1744 = vunpack.c.l.b16 %v1122
  %v1745 = vunpack.c.h.b16 %v1122
  %v1746 = vunpack.c.l.b16 %v1123
  %v1747 = vunpack.c.h.b16 %v1123
  %v1748 = vunpack.c.l.b16 %v1124
  %v1749 = vunpack.c.h.b16 %v1124
  %v1750 = vunpack.c.l.b16 %v1125
  %v1751 = vunpack.c.h.b16 %v1125
  %v1752 = vunpack.c.l.b16 %v1126
  %v1753 = vunpack.c.h.b16 %v1126
  %v1754 = vunpack.c.l.b16 %v1127
  %v1755 = vunpack.c.h.b16 %v1127
  %v1756 = vunpack.c.l.b16 %v1128
  %v1757 = vunpack.c.h.b16 %v1128
  %v1758 = vunpack.c.l.b16 %v1129
  %v1759 = vunpack.c.h.b16 %v1129
  %v1760 = vunpack.c.l.b16 %v1130
  %v1761 = vunpack.c.h.b16 %v1130
  %v1762 = vunpack.c.l.b16 %v1131
  %v1763 = vunpack.c.h.b16 %v1131
  %v1764 = vunpack.c.l.b16 %v1132
  %v1765 = vunpack.c.h.b16 %v1132
  %v1766 = vunpack.c.l.b16 %v1133
  %v1767 = vunpack.c.h.b16 %v1133
  %v1768 = vunpack.c.l.b16 %v1134
  %v1769 = vunpack.c.h.b16 %v1134
  %v1770 = vunpack.c.l.b16 %v1135
  %v1771 = vunpack.c.h.b16 %v1135
  %v1772 = vunpack.c.l.b16 %v1136
  %v1773 = vunpack.c.h.b16 %v1136
  %v1774 = vunpack.c.l.b16 %v1137
  %v1775 = vunpack.c.h.b16 %v1137
  %v1776 = vunpack.c.l.b16 %v1138
  %v1777 = vunpack.c.h.b16 %v1138
  %v1778 = vunpack.c.l.b16 %v1139
  %v1779 = vunpack.c.h.b16 %v1139
  %v1780 = vunpack.c.l.b16 %v1140
  %v1781 = vunpack.c.h.b16 %v1140
  %v1782 = vunpack.c.l.b16 %v1141
  %v1783 = vunpack.c.h.b16 %v1141
  %v1784 = vunpack.c.l.b16 %v1142
  %v1785 = vunpack.c.h.b16 %v1142
  %v1786 = vunpack.c.l.b16 %v1143
  %v1787 = vunpack.c.h.b16 %v1143
  %v1788 = vunpack.c.l.b16 %v1144
  %v1789 = vunpack.c.h.b16 %v1144
  %v1790 = vunpack.c.l.b16 %v1145
  %v1791 = vunpack.c.h.b16 %v1145
  %v1792 = vunpack.c.l.b16 %v1146
  %v1793 = vunpack.c.h.b16 %v1146
  %v1794 = vunpack.c.l.b16 %v1147
  %v1795 = vunpack.c.h.b16 %v1147
  %v1796 = vunpack.c.l.b16 %v1148
  %v1797 = vunpack.c.h.b16 %v1148
  %v1798 = vunpack.c.l.b16 %v1149
  %v1799 = vunpack.c.h.b16 %v1149
  %v1800 = vunpack.c.l.b16 %v1150
  %v1801 = vunpack.c.h.b16 %v1150
  %v1802 = vunpack.c.l.b16 %v1151
  %v1803 = vunpack.c.h.b16 %v1151
  %v1804 = vunpack.c.l.b16 %v1152
  %v1805 = vunpack.c.h.b16 %v1152
  %v1806 = vunpack.c.l.b16 %v1153
  %v1807 = vunpack.c.h.b16 %v1153
  %v1808 = vunpack.c.l.b16 %v1154
  %v1809 = vunpack.c.h.b16 %v1154
  %v1810 = vunpack.c.l.b16 %v1155
  %v1811 = vunpack.c.h.b16 %v1155
  %v1812 = vunpack.c.l.b16 %v1156
  %v1813 = vunpack.c.h.b16 %v1156
  %v1814 = vunpack.c.l.b16 %v1157
  %v1815 = vunpack.c.h.b16 %v1157
  %v1816 = vunpack.c.l.b16 %v1158
  %v1817 = vunpack.c.h.b16 %v1158
  %v1818 = vunpack.c.l.b16 %v1159
  %v1819 = vunpack.c.h.b16 %v1159
  %v1820 = vunpack.c.l.b16 %v1160
  %v1821 = vunpack.c.h.b16 %v1160
  %v1822 = vunpack.c.l.b16 %v1161
  %v1823 = vunpack.c.h.b16 %v1161
  %v1824 = vunpack.c.l.b16 %v1162
  %v1825 = vunpack.c.h.b16 %v1162
  %v1826 = vunpack.c.l.b16 %v1163
  %v1827 = vunpack.c.h.b16 %v1163
  %v1828 = vunpack.c.l.b16 %v1164
  %v1829 = vunpack.c.h.b16 %v1164
  %v1830 = vunpack.c.l.b16 %v1165
  %v1831 = vunpack.c.h.b16 %v1165
  %v1832 = vunpack.c.l.b16 %v1166
  %v1833 = vunpack.c.h.b16 %v1166
  %v1834 = vunpack.c.l.b16 %v1167
  %v1835 = vunpack.c.h.b16 %v1167
  %v1836 = vunpack.c.l.b16 %v1168
  %v1837 = vunpack.c.h.b16 %v1168
  %v1838 = vunpack.c.l.b16 %v1169
  %v1839 = vunpack.c.h.b16 %v1169
  %v1840 = vunpack.c.l.b16 %v1170
  %v1841 = vunpack.c.h.b16 %v1170
  %v1842 = vunpack.c.l.b16 %v1171
  %v1843 = vunpack.c.h.b16 %v1171
  %v1844 = vunpack.c.l.b16 %v1172
  %v1845 = vunpack.c.h.b16 %v1172
  %v1846 = vunpack.c.l.b16 %v1173
  %v1847 = vunpack.c.h.b16 %v1173
  %v1848 = vunpack.c.l.b16 %v1174
  %v1849 = vunpack.c.h.b16 %v1174
  %v1850 = vunpack.c.l.b16 %v1175
  %v1851 = vunpack.c.h.b16 %v1175
  %v1852 = vunpack.c.l.b16 %v1176
  %v1853 = vunpack.c.h.b16 %v1176
  %v1854 = vunpack.c.l.b16 %v1177
  %v1855 = vunpack.c.h.b16 %v1177
  %v1856 = vunpack.c.l.b16 %v1178
  %v1857 = vunpack.c.h.b16 %v1178
  %v1858 = vunpack.c.l.b16 %v1179
  %v1859 = vunpack.c.h.b16 %v1179
  %v1860 = vunpack.c.l.b16 %v1180
  %v1861 = vunpack.c.h.b16 %v1180
  %v1862 = vunpack.c.l.b16 %v1181
  %v1863 = vunpack.c.h.b16 %v1181
  %v1864 = vunpack.c.l.b16 %v1182
  %v1865 = vunpack.c.h.b16 %v1182
  %v1866 = vunpack.c.l.b16 %v1183
  %v1867 = vunpack.c.h.b16 %v1183
  %v1868 = vunpack.c.l.b16 %v1184
  %v1869 = vunpack.c.h.b16 %v1184
  %v1870 = vunpack.c.l.b16 %v1185
  %v1871 = vunpack.c.h.b16 %v1185
  %v1872 = vunpack.c.l.b16 %v1186
  %v1873 = vunpack.c.h.b16 %v1186
  %v1874 = vunpack.c.l.b16 %v1187
  %v1875 = vunpack.c.h.b16 %v1187
  %v1876 = vunpack.c.l.b16 %v1188
  %v1877 = vunpack.c.h.b16 %v1188
  %v1878 = vunpack.c.l.b16 %v1189
  %v1879 = vunpack.c.h.b16 %v1189
  %v1880 = vunpack.c.l.b16 %v1190
  %v1881 = vunpack.c.h.b16 %v1190
  %v1882 = vunpack.c.l.b16 %v1191
  %v1883 = vunpack.c.h.b16 %v1191
  %v1884 = vunpack.c.l.b16 %v1192
  %v1885 = vunpack.c.h.b16 %v1192
  %v1886 = vunpack.c.l.b16 %v1193
  %v1887 = vunpack.c.h.b16 %v1193
  %v1888 = vunpack.c.l.b16 %v1194
  %v1889 = vunpack.c.h.b16 %v1194
  %v1890 = vunpack.c.l.b16 %v1195
  %v1891 = vunpack.c.h.b16 %v1195
  %v1892 = vunpack.c.l.b16 %v1196
  %v1893 = vunpack.c.h.b16 %v1196
  %v1894 = vunpack.c.l.b16 %v1197
  %v1895 = vunpack.c.h.b16 %v1197
  %v1896 = vunpack.c.l.b16 %v1198
  %v1897 = vunpack.c.h.b16 %v1198
  %v1898 = vunpack.c.l.b16 %v1199
  %v1899 = vunpack.c.h.b16 %v1199
  %v1900 = vunpack.c.l.b16 %v1200
  %v1901 = vunpack.c.h.b16 %v1200
  %v1902 = vunpack.c.l.b16 %v1201
  %v1903 = vunpack.c.h.b16 %v1201
  %v1904 = vunpack.c.l.b16 %v1202
  %v1905 = vunpack.c.h.b16 %v1202
  %v1906 = vunpack.c.l.b16 %v1203
  %v1907 = vunpack.c.h.b16 %v1203
  %v1908 = vunpack.c.l.b16 %v1204
  %v1909 = vunpack.c.h.b16 %v1204
  %v1910 = vunpack.c.l.b16 %v1205
  %v1911 = vunpack.c.h.b16 %v1205
  %v1912 = vunpack.c.l.b16 %v1206
  %v1913 = vunpack.c.h.b16 %v1206
  %v1914 = vunpack.c.l.b16 %v1207
  %v1915 = vunpack.c.h.b16 %v1207
  %v1916 = vunpack.c.l.b16 %v1208
  %v1917 = vunpack.c.h.b16 %v1208
  %v1918 = vunpack.c.l.b16 %v1209
  %v1919 = vunpack.c.h.b16 %v1209
  %v1920 = vunpack.c.l.b16 %v1210
  %v1921 = vunpack.c.h.b16 %v1210
  %v1922 = vunpack.c.l.b16 %v1211
  %v1923 = vunpack.c.h.b16 %v1211
  %v1924 = vunpack.c.l.b16 %v1212
  %v1925 = vunpack.c.h.b16 %v1212
  %v1926 = vunpack.c.l.b16 %v1213
  %v1927 = vunpack.c.h.b16 %v1213
  %v1928 = vunpack.c.l.b16 %v1214
  %v1929 = vunpack.c.h.b16 %v1214
  %v1930 = vunpack.c.l.b16 %v1215
  %v1931 = vunpack.c.h.b16 %v1215
  %v1932 = vunpack.c.l.b16 %v1216
  %v1933 = vunpack.c.h.b16 %v1216
  %v1934 = vunpack.c.l.b16 %v1217
  %v1935 = vunpack.c.h.b16 %v1217
  %v1936 = vunpack.c.l.b16 %v1218
  %v1937 = vunpack.c.h.b16 %v1218
  %v1938 = vunpack.c.l.b16 %v1219
  %v1939 = vunpack.c.h.b16 %v1219
  %v1940 = vunpack.c.l.b16 %v1220
  %v1941 = vunpack.c.h.b16 %v1220
  %v1942 = vunpack.c.l.b16 %v1221
  %v1943 = vunpack.c.h.b16 %v1221
  %v1944 = vunpack.c.l.b16 %v1222
  %v1945 = vunpack.c.h.b16 %v1222
  %v1946 = vunpack.c.l.b16 %v1223
  %v1947 = vunpack.c.h.b16 %v1223
  %v1948 = vunpack.c.l.b16 %v1224
  %v1949 = vunpack.c.h.b16 %v1224
  %v1950 = vunpack.c.l.b16 %v1225
  %v1951 = vunpack.c.h.b16 %v1225
  %v1952 = vunpack.c.l.b16 %v1226
  %v1953 = vunpack.c.h.b16 %v1226
  %v1954 = vunpack.c.l.b16 %v1227
  %v1955 = vunpack.c.h.b16 %v1227
  %v1956 = vunpack.c.l.b16 %v1228
  %v1957 = vunpack.c.h.b16 %v1228
  %v1958 = vunpack.c.l.b16 %v1229
  %v1959 = vunpack.c.h.b16 %v1229
  %v1960 = vunpack.c.l.b16 %v1230
  %v1961 = vunpack.c.h.b16 %v1230
  %v1962 = vunpack.c.l.b16 %v1231
  %v1963 = vunpack.c.h.b16 %v1231
  %v1964 = vunpack.c.l.b16 %v1232
  %v1965 = vunpack.c.h.b16 %v1232
  %v1966 = vunpack.c.l.b16 %v1233
  %v1967 = vunpack.c.h.b16 %v1233
  %v1968 = vunpack.c.l.b16 %v1234
  %v1969 = vunpack.c.h.b16 %v1234
  %v1970 = vunpack.c.l.b16 %v1235
  %v1971 = vunpack.c.h.b16 %v1235
  %v1972 = vunpack.c.l.b16 %v1236
  %v1973 = vunpack.c.h.b16 %v1236
  %v1974 = vunpack.c.l.b16 %v1237
  %v1975 = vunpack.c.h.b16 %v1237
  %v1976 = vunpack.c.l.b16 %v1238
  %v1977 = vunpack.c.h.b16 %v1238
  %v1978 = vunpack.c.l.b16 %v1239
  %v1979 = vunpack.c.h.b16 %v1239
  %v1980 = vunpack.c.l.b16 %v1240
  %v1981 = vunpack.c.h.b16 %v1240
  %v1982 = vunpack.c.l.b16 %v1241
  %v1983 = vunpack.c.h.b16 %v1241
  %v1984 = vunpack.c.l.b16 %v1242
  %v1985 = vunpack.c.h.b16 %v1242
  %v1986 = vunpack.c.l.b16 %v1243
  %v1987 = vunpack.c.h.b16 %v1243
  %v1988 = vunpack.c.l.b16 %v1244
  %v1989 = vunpack.c.h.b16 %v1244
  %v1990 = vunpack.c.l.b16 %v1245
  %v1991 = vunpack.c.h.b16 %v1245
  %v1992 = vunpack.c.l.b16 %v1246
  %v1993 = vunpack.c.h.b16 %v1246
  %v1994 = vunpack.c.l.b16 %v1247
  %v1995 = vunpack.c.h.b16 %v1247
  %v1996 = vunpack.c.l.b16 %v1248
  %v1997 = vunpack.c.h.b16 %v1248
  %v1998 = vunpack.c.l.b16 %v1249
  %v1999 = vunpack.c.h.b16 %v1249
  %v2000 = vunpack.c.l.b16 %v1250
  %v2001 = vunpack.c.h.b16 %v1250
  %v2002 = vunpack.c.l.b16 %v1251
  %v2003 = vunpack.c.h.b16 %v1251
  %v2004 = vunpack.c.l.b16 %v1252
  %v2005 = vunpack.c.h.b16 %v1252
  %v2006 = vunpack.c.l.b16 %v1253
  %v2007 = vunpack.c.h.b16 %v1253
  %v2008 = vunpack.c.l.b16 %v1254
  %v2009 = vunpack.c.h.b16 %v1254
  %v2010 = vunpack.c.l.b16 %v1255
  %v2011 = vunpack.c.h.b16 %v1255
  %v2012 = vunpack.c.l.b16 %v1256
  %v2013 = vunpack.c.h.b16 %v1256
  %v2014 = vunpack.c.l.b16 %v1257
  %v2015 = vunpack.c.h.b16 %v1257
  %v2016 = vunpack.c.l.b16 %v1258
  %v2017 = vunpack.c.h.b16 %v1258
  %v2018 = vunpack.c.l.b16 %v1259
  %v2019 = vunpack.c.h.b16 %v1259
  %v2020 = vunpack.c.l.b16 %v1260
  %v2021 = vunpack.c.h.b16 %v1260
  %v2022 = vunpack.c.l.b16 %v1261
  %v2023 = vunpack.c.h.b16 %v1261
  %v2024 = vunpack.c.l.b16 %v1262
  %v2025 = vunpack.c.h.b16 %v1262
  %v2026 = vunpack.c.l.b16 %v1263
  %v2027 = vunpack.c.h.b16 %v1263
  %v2028 = vunpack.c.l.b16 %v1264
  %v2029 = vunpack.c.h.b16 %v1264
  %v2030 = vunpack.c.l.b16 %v1265
  %v2031 = vunpack.c.h.b16 %v1265
  %v2032 = vunpack.c.l.b16 %v1266
  %v2033 = vunpack.c.h.b16 %v1266
  %v2034 = vunpack.c.l.b16 %v1267
  %v2035 = vunpack.c.h.b16 %v1267
  %v2036 = vunpack.c.l.b16 %v1268
  %v2037 = vunpack.c.h.b16 %v1268
  %v2038 = vunpack.c.l.b16 %v1269
  %v2039 = vunpack.c.h.b16 %v1269
  %v2040 = vunpack.c.l.b16 %v1270
  %v2041 = vunpack.c.h.b16 %v1270
  %v2042 = vunpack.c.l.b16 %v1271
  %v2043 = vunpack.c.h.b16 %v1271
  %v2044 = vunpack.c.l.b16 %v1272
  %v2045 = vunpack.c.h.b16 %v1272
  %v2046 = vunpack.c.l.b16 %v1273
  %v2047 = vunpack.c.h.b16 %v1273
  %v2048 = vunpack.c.l.b16 %v1274
  %v2049 = vunpack.c.h.b16 %v1274
  %v2050 = vunpack.c.l.b16 %v1275
  %v2051 = vunpack.c.h.b16 %v1275
  %v2052 = vunpack.c.l.b16 %v1276
  %v2053 = vunpack.c.h.b16 %v1276
  %v2054 = vunpack.c.l.b16 %v1277
  %v2055 = vunpack.c.h.b16 %v1277
  %v2056 = vunpack.c.l.b16 %v1278
  %v2057 = vunpack.c.h.b16 %v1278
  %v2058 = vunpack.c.l.b16 %v1279
  %v2059 = vunpack.c.h.b16 %v1279
  %v2060 = vunpack.c.l.b16 %v1280
  %v2061 = vunpack.c.h.b16 %v1280
  %v2062 = vunpack.c.l.b16 %v1281
  %v2063 = vunpack.c.h.b16 %v1281
  %v2064 = vunpack.c.l.b16 %v1282
  %v2065 = vunpack.c.h.b16 %v1282
  %v2066 = vunpack.c.l.b16 %v1283
  %v2067 = vunpack.c.h.b16 %v1283
  %v2068 = vunpack.c.l.b16 %v1284
  %v2069 = vunpack.c.h.b16 %v1284
  %v2070 = vunpack.c.l.b16 %v1285
  %v2071 = vunpack.c.h.b16 %v1285
  %v2072 = vunpack.c.l.b16 %v1286
  %v2073 = vunpack.c.h.b16 %v1286
  %v2074 = vunpack.c.l.b16 %v1287
  %v2075 = vunpack.c.h.b16 %v1287
  %v2076 = vunpack.c.l.b16 %v1288
  %v2077 = vunpack.c.h.b16 %v1288
  %v2078 = vunpack.c.l.b16 %v1289
  %v2079 = vunpack.c.h.b16 %v1289
  %v2080 = vunpack.c.l.b16 %v1290
  %v2081 = vunpack.c.h.b16 %v1290
  %v2082 = vunpack.c.l.b16 %v1291
  %v2083 = vunpack.c.h.b16 %v1291
  %v2084 = vunpack.c.l.b16 %v1292
  %v2085 = vunpack.c.h.b16 %v1292
  %v2086 = vunpack.c.l.b16 %v1293
  %v2087 = vunpack.c.h.b16 %v1293
  %v2088 = vunpack.c.l.b16 %v1294
  %v2089 = vunpack.c.h.b16 %v1294
  %v2090 = vunpack.c.l.b16 %v1295
  %v2091 = vunpack.c.h.b16 %v1295
  %v2092 = vunpack.c.l.b16 %v1296
  %v2093 = vunpack.c.h.b16 %v1296
  %v2094 = vunpack.c.l.b16 %v1297
  %v2095 = vunpack.c.h.b16 %v1297
  %v2096 = vunpack.c.l.b16 %v1298
  %v2097 = vunpack.c.h.b16 %v1298
  %v2098 = vunpack.c.l.b16 %v1299
  %v2099 = vunpack.c.h.b16 %v1299
  %v2100 = vunpack.c.l.b16 %v1300
  %v2101 = vunpack.c.h.b16 %v1300
  %v2102 = vunpack.c.l.b16 %v1301
  %v2103 = vunpack.c.h.b16 %v1301
  %v2104 = vunpack.c.l.b16 %v1302
  %v2105 = vunpack.c.h.b16 %v1302
  %v2106 = vunpack.c.l.b16 %v1303
  %v2107 = vunpack.c.h.b16 %v1303
  %v2108 = vunpack.c.l.b16 %v1304
  %v2109 = vunpack.c.h.b16 %v1304
  %v2110 = vunpack.c.l.b16 %v1305
  %v2111 = vunpack.c.h.b16 %v1305
  %v2112 = vunpack.c.l.b16 %v1306
  %v2113 = vunpack.c.h.b16 %v1306
  %v2114 = vunpack.c.l.b16 %v1307
  %v2115 = vunpack.c.h.b16 %v1307
  %v2116 = vunpack.c.l.b16 %v1308
  %v2117 = vunpack.c.h.b16 %v1308
  %v2118 = vunpack.c.l.b16 %v1309
  %v2119 = vunpack.c.h.b16 %v1309
  %v2120 = vpack.c.b16 %v1616, %v1608
  %v2121 = vpack.c.b16 %v1617, %v1609
  %v2122 = vpack.c.b16 %v1618, %v1610
  %v2123 = vpack.c.b16 %v1619, %v1611
  %v2124 = vpack.c.b16 %v1620, %v1612
  %v2125 = vpack.c.b16 %v1621, %v1613
  %v2126 = vpack.c.b16 %v1622, %v1614
  %v2127 = vpack.c.b16 %v1623, %v1615
  %v2128 = vpack.c.b16 %v1632, %v1624
  %v2129 = vpack.c.b16 %v1633, %v1625
  %v2130 = vpack.c.b16 %v1634, %v1626
  %v2131 = vpack.c.b16 %v1635, %v1627
  %v2132 = vpack.c.b16 %v1636, %v1628
  %v2133 = vpack.c.b16 %v1637, %v1629
  %v2134 = vpack.c.b16 %v1638, %v1630
  %v2135 = vpack.c.b16 %v1639, %v1631
  %v2136 = vpack.c.b16 %v1648, %v1640
  %v2137 = vpack.c.b16 %v1649, %v1641
  %v2138 = vpack.c.b16 %v1650, %v1642
  %v2139 = vpack.c.b16 %v1651, %v1643
  %v2140 = vpack.c.b16 %v1652, %v1644
  %v2141 = vpack.c.b16 %v1653, %v1645
  %v2142 = vpack.c.b16 %v1654, %v1646
  %v2143 = vpack.c.b16 %v1655, %v1647
  %v2144 = vpack.c.b16 %v1664, %v1656
  %v2145 = vpack.c.b16 %v1665, %v1657
  %v2146 = vpack.c.b16 %v1666, %v1658
  %v2147 = vpack.c.b16 %v1667, %v1659
  %v2148 = vpack.c.b16 %v1668, %v1660
  %v2149 = vpack.c.b16 %v1669, %v1661
  %v2150 = vpack.c.b16 %v1670, %v1662
  %v2151 = vpack.c.b16 %v1671, %v1663
  %v2152 = vpack.c.b16 %v1680, %v1672
  %v2153 = vpack.c.b16 %v1681, %v1673
  %v2154 = vpack.c.b16 %v1682, %v1674
  %v2155 = vpack.c.b16 %v1683, %v1675
  %v2156 = vpack.c.b16 %v1684, %v1676
  %v2157 = vpack.c.b16 %v1685, %v1677
  %v2158 = vpack.c.b16 %v1686, %v1678
  %v2159 = vpack.c.b16 %v1687, %v1679
  %v2160 = vpack.c.b16 %v1696, %v1688
  %v2161 = vpack.c.b16 %v1697, %v1689
  %v2162 = vpack.c.b16 %v1698, %v1690
  %v2163 = vpack.c.b16 %v1699, %v1691
  %v2164 = vpack.c.b16 %v1700, %v1692
  %v2165 = vpack.c.b16 %v1701, %v1693
  %v2166 = vpack.c.b16 %v1702, %v1694
  %v2167 = vpack.c.b16 %v1703, %v1695
  %v2168 = vpack.c.b16 %v1712, %v1704
  %v2169 = vpack.c.b16 %v1713, %v1705
  %v2170 = vpack.c.b16 %v1714, %v1706
  %v2171 = vpack.c.b16 %v1715, %v1707
  %v2172 = vpack.c.b16 %v1716, %v1708
  %v2173 = vpack.c.b16 %v1717, %v1709
  %v2174 = vpack.c.b16 %v1718, %v1710
  %v2175 = vpack.c.b16 %v1719, %v1711
  %v2176 = vpack.c.b16 %v1728, %v1720
  %v2177 = vpack.c.b16 %v1729, %v1721
  %v2178 = vpack.c.b16 %v1730, %v1722
  %v2179 = vpack.c.b16 %v1731, %v1723
  %v2180 = vpack.c.b16 %v1732, %v1724
  %v2181 = vpack.c.b16 %v1733, %v1725
  %v2182 = vpack.c.b16 %v1734, %v1726
  %v2183 = vpack.c.b16 %v1735, %v1727
  %v2184 = vpack.c.b16 %v1744, %v1736
  %v2185 = vpack.c.b16 %v1745, %v1737
  %v2186 = vpack.c.b16 %v1746, %v1738
  %v2187 = vpack.c.b16 %v1747, %v1739
  %v2188 = vpack.c.b16 %v1748, %v1740
  %v2189 = vpack.c.b16 %v1749, %v1741
  %v2190 = vpack.c.b16 %v1750, %v1742
  %v2191 = vpack.c.b16 %v1751, %v1743
  %v2192 = vpack.c.b16 %v1760, %v1752
  %v2193 = vpack.c.b16 %v1761, %v1753
  %v2194 = vpack.c.b16 %v1762, %v1754
  %v2195 = vpack.c.b16 %v1763, %v1755
  %v2196 = vpack.c.b16 %v1764, %v1756
  %v2197 = vpack.c.b16 %v1765, %v1757
  %v2198 = vpack.c.b16 %v1766, %v1758
  %v2199 = vpack.c.b16 %v1767, %v1759
  %v2200 = vpack.c.b16 %v1776, %v1768
  %v2201 = vpack.c.b16 %v1777, %v1769
  %v2202 = vpack.c.b16 %v1778, %v1770
  %v2203 = vpack.c.b16 %v1779, %v1771
  %v2204 = vpack.c.b16 %v1780, %v1772
  %v2205 = vpack.c.b16 %v1781, %v1773
  %v2206 = vpack.c.b16 %v1782, %v1774
  %v2207 = vpack.c.b16 %v1783, %v1775
  %v2208 = vpack.c.b16 %v1792, %v1784
  %v2209 = vpack.c.b16 %v1793, %v1785
  %v2210 = vpack.c.b16 %v1794, %v1786
  %v2211 = vpack.c.b16 %v1795, %v1787
  %v2212 = vpack.c.b16 %v1796, %v1788
  %v2213 = vpack.c.b16 %v1797, %v1789
  %v2214 = vpack.c.b16 %v1798, %v1790
  %v2215 = vpack.c.b16 %v1799, %v1791
  %v2216 = vpack.c.b16 %v1808, %v1800
  %v2217 = vpack.c.b16 %v1809, %v1801
  %v2218 = vpack.c.b16 %v1810, %v1802
  %v2219 = vpack.c.b16 %v1811, %v1803
  %v2220 = vpack.c.b16 %v1812, %v1804
  %v2221 = vpack.c.b16 %v1813, %v1805
  %v2222 = vpack.c.b16 %v1814, %v1806
  %v2223 = vpack.c.b16 %v1815, %v1807
  %v2224 = vpack.c.b16 %v1824, %v1816
  %v2225 = vpack.c.b16 %v1825, %v1817
  %v2226 = vpack.c.b16 %v1826, %v1818
  %v2227 = vpack.c.b16 %v1827, %v1819
  %v2228 = vpack.c.b16 %v1828, %v1820
  %v2229 = vpack.c.b16 %v1829, %v1821
  %v2230 = vpack.c.b16 %v1830, %v1822
  %v2231 = vpack.c.b16 %v1831, %v1823
  %v2232 = vpack.c.b16 %v1840, %v1832
  %v2233 = vpack.c.b16 %v1841, %v1833
  %v2234 = vpack.c.b16 %v1842, %v1834
  %v2235 = vpack.c.b16 %v1843, %v1835
  %v2236 = vpack.c.b16 %v1844, %v1836
  %v2237 = vpack.c.b16 %v1845, %v1837
  %v2238 = vpack.c.b16 %v1846, %v1838
  %v2239 = vpack.c.b16 %v1847, %v1839
  %v2240 = vpack.c.b16 %v1856, %v1848
  %v2241 = vpack.c.b16 %v1857, %v1849
  %v2242 = vpack.c.b16 %v1858, %v1850
  %v2243 = vpack.c.b16 %v1859, %v1851
  %v2244 = vpack.c.b16 %v1860, %v1852
  %v2245 = vpack.c.b16 %v1861, %v1853
  %v2246 = vpack.c.b16 %v1862, %v1854
  %v2247 = vpack.c.b16 %v1863, %v1855
  %v2248 = vpack.c.b16 %v1872, %v1864
  %v2249 = vpack.c.b16 %v1873, %v1865
  %v2250 = vpack.c.b16 %v1874, %v1866
  %v2251 = vpack.c.b16 %v1875, %v1867
  %v2252 = vpack.c.b16 %v1876, %v1868
  %v2253 = vpack.c.b16 %v1877, %v1869
  %v2254 = vpack.c.b16 %v1878, %v1870
  %v2255 = vpack.c.b16 %v1879, %v1871
  %v2256 = vpack.c.b16 %v1888, %v1880
  %v2257 = vpack.c.b16 %v1889, %v1881
  %v2258 = vpack.c.b16 %v1890, %v1882
  %v2259 = vpack.c.b16 %v1891, %v1883
  %v2260 = vpack.c.b16 %v1892, %v1884
  %v2261 = vpack.c.b16 %v1893, %v1885
  %v2262 = vpack.c.b16 %v1894, %v1886
  %v2263 = vpack.c.b16 %v1895, %v1887
  %v2264 = vpack.c.b16 %v1904, %v1896
  %v2265 = vpack.c.b16 %v1905, %v1897
  %v2266 = vpack.c.b16 %v1906, %v1898
  %v2267 = vpack.c.b16 %v1907, %v1899
  %v2268 = vpack.c.b16 %v1908, %v1900
  %v2269 = vpack.c.b16 %v1909, %v1901
  %v2270 = vpack.c.b16 %v1910, %v1902
  %v2271 = vpack.c.b16 %v1911, %v1903
  %v2272 = vpack.c.b16 %v1920, %v1912
  %v2273 = vpack.c.b16 %v1921, %v1913
  %v2274 = vpack.c.b16 %v1922, %v1914
  %v2275 = vpack.c.b16 %v1923, %v1915
  %v2276 = vpack.c.b16 %v1924, %v1916
  %v2277 = vpack.c.b16 %v1925, %v1917
  %v2278 = vpack.c.b16 %v1926, %v1918
  %v2279 = vpack.c.b16 %v1927, %v1919
  %v2280 = vpack.c.b16 %v1936, %v1928
  %v2281 = vpack.c.b16 %v1937, %v1929
  %v2282 = vpack.c.b16 %v1938, %v1930
  %v2283 = vpack.c.b16 %v1939, %v1931
  %v2284 = vpack.c.b16 %v1940, %v1932
  %v2285 = vpack.c.b16 %v1941, %v1933
  %v2286 = vpack.c.b16 %v1942, %v1934
  %v2287 = vpack.c.b16 %v1943, %v1935
  %v2288 = vpack.c.b16 %v1952, %v1944
  %v2289 = vpack.c.b16 %v1953, %v1945
  %v2290 = vpack.c.b16 %v1954, %v1946
  %v2291 = vpack.c.b16 %v1955, %v1947
  %v2292 = vpack.c.b16 %v1956, %v1948
  %v2293 = vpack.c.b16 %v1957, %v1949
  %v2294 = vpack.c.b16 %v1958, %v1950
  %v2295 = vpack.c.b16 %v1959, %v1951
  %v2296 = vpack.c.b16 %v1968, %v1960
  %v2297 = vpack.c.b16 %v1969, %v1961
  %v2298 = vpack.c.b16 %v1970, %v1962
  %v2299 = vpack.c.b16 %v1971, %v1963
  %v2300 = vpack.c.b16 %v1972, %v1964
  %v2301 = vpack.c.b16 %v1973, %v1965
  %v2302 = vpack.c.b16 %v1974, %v1966
  %v2303 = vpack.c.b16 %v1975, %v1967
  %v2304 = vpack.c.b16 %v1984, %v1976
  %v2305 = vpack.c.b16 %v1985, %v1977
  %v2306 = vpack.c.b16 %v1986, %v1978
  %v2307 = vpack.c.b16 %v1987, %v1979
  %v2308 = vpack.c.b16 %v1988, %v1980
  %v2309 = vpack.c.b16 %v1989, %v1981
  %v2310 = vpack.c.b16 %v1990, %v1982
  %v2311 = vpack.c.b16 %v1991, %v1983
  %v2312 = vpack.c.b16 %v2000, %v1992
  %v2313 = vpack.c.b16 %v2001, %v1993
  %v2314 = vpack.c.b16 %v2002, %v1994
  %v2315 = vpack.c.b16 %v2003, %v1995
  %v2316 = vpack.c.b16 %v2004, %v1996
  %v2317 = vpack.c.b16 %v2005, %v1997
  %v2318 = vpack.c.b16 %v2006, %v1998
  %v2319 = vpack.c.b16 %v2007, %v1999
  %v2320 = vpack.c.b16 %v2016, %v2008
  %v2321 = vpack.c.b16 %v2017, %v2009
  %v2322 = vpack.c.b16 %v2018, %v2010
  %v2323 = vpack.c.b16 %v2019, %v2011
  %v2324 = vpack.c.b16 %v2020, %v2012
  %v2325 = vpack.c.b16 %v2021, %v2013
  %v2326 = vpack.c.b16 %v2022, %v2014
  %v2327 = vpack.c.b16 %v2023, %v2015
  %v2328 = vpack.c.b16 %v2032, %v2024
  %v2329 = vpack.c.b16 %v2033, %v2025
  %v2330 = vpack.c.b16 %v2034, %v2026
  %v2331 = vpack.c.b16 %v2035, %v2027
  %v2332 = vpack.c.b16 %v2036, %v2028
  %v2333 = vpack.c.b16 %v2037, %v2029
  %v2334 = vpack.c.b16 %v2038, %v2030
  %v2335 = vpack.c.b16 %v2039, %v2031
  %v2336 = vpack.c.b16 %v2048, %v2040
  %v2337 = vpack.c.b16 %v2049, %v2041
  %v2338 = vpack.c.b16 %v2050, %v2042
  %v2339 = vpack.c.b16 %v2051, %v2043
  %v2340 = vpack.c.b16 %v2052, %v2044
  %v2341 = vpack.c.b16 %v2053, %v2045
  %v2342 = vpack.c.b16 %v2054, %v2046
  %v2343 = vpack.c.b16 %v2055, %v2047
  %v2344 = vpack.c.b16 %v2064, %v2056
  %v2345 = vpack.c.b16 %v2065, %v2057
  %v2346 = vpack.c.b16 %v2066, %v2058
  %v2347 = vpack.c.b16 %v2067, %v2059
  %v2348 = vpack.c.b16 %v2068, %v2060
  %v2349 = vpack.c.b16 %v2069, %v2061
  %v2350 = vpack.c.b16 %v2070, %v2062
  %v2351 = vpack.c.b16 %v2071, %v2063
  %v2352 = vpack.c.b16 %v2080, %v2072
  %v2353 = vpack.c.b16 %v2081, %v2073
  %v2354 = vpack.c.b16 %v2082, %v2074
  %v2355 = vpack.c.b16 %v2083, %v2075
  %v2356 = vpack.c.b16 %v2084, %v2076
  %v2357 = vpack.c.b16 %v2085, %v2077
  %v2358 = vpack.c.b16 %v2086, %v2078
  %v2359 = vpack.c.b16 %v2087, %v2079
  %v2360 = vpack.c.b16 %v2096, %v2088
  %v2361 = vpack.c.b16 %v2097, %v2089
  %v2362 = vpack.c.b16 %v2098, %v2090
  %v2363 = vpack.c.b16 %v2099, %v2091
  %v2364 = vpack.c.b16 %v2100, %v2092
  %v2365 = vpack.c.b16 %v2101, %v2093
  %v2366 = vpack.c.b16 %v2102, %v2094
  %v2367 = vpack.c.b16 %v2103, %v2095
  %v2368 = vpack.c.b16 %v2112, %v2104
  %v2369 = vpack.c.b16 %v2113, %v2105
  %v2370 = vpack.c.b16 %v2114, %v2106
  %v2371 = vpack.c.b16 %v2115, %v2107
  %v2372 = vpack.c.b16 %v2116, %v2108
  %v2373 = vpack.c.b16 %v2117, %v2109
  %v2374 = vpack.c.b16 %v2118, %v2110
  %v2375 = vpack.c.b16 %v2119, %v2111
  %2632 = vmatprep.subr.bf16.mxu0 %v2177
  %2633 = vmatpush1.bf16.msra.mxu0 %v2176
  %2634 = vmatprep.subr.bf16.mxu0 %v2169
  %2635 = vmatpush1.bf16.msra.mxu0 %v2168
  %2636 = vmatprep.subr.bf16.mxu0 %v2161
  %2637 = vmatpush1.bf16.msra.mxu0 %v2160
  %2638 = vmatprep.subr.bf16.mxu0 %v2153
  %2639 = vmatpush1.bf16.msra.mxu0 %v2152
  %2640 = vmatprep.subr.bf16.mxu0 %v2145
  %2641 = vmatpush1.bf16.msra.mxu0 %v2144
  %2642 = vmatprep.subr.bf16.mxu0 %v2137
  %2643 = vmatpush1.bf16.msra.mxu0 %v2136
  %2644 = vmatprep.subr.bf16.mxu0 %v2129
  %2645 = vmatpush1.bf16.msra.mxu0 %v2128
  %2646 = vmatprep.subr.bf16.mxu0 %v2121
  %2647 = vmatpush1.bf16.msra.mxu0 %v2120
  %2648 = vmatprep.subr.bf16.mxu0 %v2241
  %2649 = vmatpush2.bf16.msra.mxu0 %v2240
  %2650 = vmatprep.subr.bf16.mxu0 %v2233
  %2651 = vmatpush2.bf16.msra.mxu0 %v2232
  %2652 = vmatprep.subr.bf16.mxu0 %v2225
  %2653 = vmatpush2.bf16.msra.mxu0 %v2224
  %2654 = vmatprep.subr.bf16.mxu0 %v2217
  %2655 = vmatpush2.bf16.msra.mxu0 %v2216
  %2656 = vmatprep.subr.bf16.mxu0 %v2209
  %2657 = vmatpush2.bf16.msra.mxu0 %v2208
  %2658 = vmatprep.subr.bf16.mxu0 %v2201
  %2659 = vmatpush2.bf16.msra.mxu0 %v2200
  %2660 = vmatprep.subr.bf16.mxu0 %v2193
  %2661 = vmatpush2.bf16.msra.mxu0 %v2192
  %2662 = vmatprep.subr.bf16.mxu0 %v2185
  %2663 = vmatpush2.bf16.msra.mxu0 %v2184
  %2664 = vmatprep.mubr.bf16.mxu0 %v1023
  %2665 = vmatmul.mubr.bf16.gmra.mxu0 %v1022
  %v2666 = vpop.f32.mrf.mxu0
  %v2667 = vadd.f32 %v1315, %v2666
  %v2668 = vpop.f32.mrf.mxu0
  %v2669 = vadd.f32 %v1319, %v2668
  %v2670 = vpop.f32.mrf.mxu0
  %v2671 = vadd.f32 %v1315, %v2670
  %v2672 = vpop.f32.mrf.mxu0
  %v2673 = vadd.f32 %v1319, %v2672
  %2674 = vmatprep.mubr.bf16.mxu0 %v1027
  %2675 = vmatmul.mubr.bf16.gmra.mxu0 %v1026
  %v2676 = vpop.f32.mrf.mxu0
  %v2677 = vadd.f32 %v1315, %v2676
  %v2678 = vpop.f32.mrf.mxu0
  %v2679 = vadd.f32 %v1319, %v2678
  %v2680 = vpop.f32.mrf.mxu0
  %v2681 = vadd.f32 %v1315, %v2680
  %v2682 = vpop.f32.mrf.mxu0
  %v2683 = vadd.f32 %v1319, %v2682
  %2684 = vmatprep.mubr.bf16.mxu0 %v1031
  %2685 = vmatmul.mubr.bf16.gmra.mxu0 %v1030
  %v2686 = vpop.f32.mrf.mxu0
  %v2687 = vadd.f32 %v1315, %v2686
  %v2688 = vpop.f32.mrf.mxu0
  %v2689 = vadd.f32 %v1319, %v2688
  %v2690 = vpop.f32.mrf.mxu0
  %v2691 = vadd.f32 %v1315, %v2690
  %v2692 = vpop.f32.mrf.mxu0
  %v2693 = vadd.f32 %v1319, %v2692
  %2694 = vmatprep.mubr.bf16.mxu0 %v1035
  %2695 = vmatmul.mubr.bf16.gmra.mxu0 %v1034
  %v2696 = vpop.f32.mrf.mxu0
  %v2697 = vadd.f32 %v1315, %v2696
  %v2698 = vpop.f32.mrf.mxu0
  %v2699 = vadd.f32 %v1319, %v2698
  %v2700 = vpop.f32.mrf.mxu0
  %v2701 = vadd.f32 %v1315, %v2700
  %v2702 = vpop.f32.mrf.mxu0
  %v2703 = vadd.f32 %v1319, %v2702
  %2704 = vmatprep.mubr.bf16.mxu0 %v1039
  %2705 = vmatmul.mubr.bf16.gmra.mxu0 %v1038
  %v2706 = vpop.f32.mrf.mxu0
  %v2707 = vadd.f32 %v1315, %v2706
  %v2708 = vpop.f32.mrf.mxu0
  %v2709 = vadd.f32 %v1319, %v2708
  %v2710 = vpop.f32.mrf.mxu0
  %v2711 = vadd.f32 %v1315, %v2710
  %v2712 = vpop.f32.mrf.mxu0
  %v2713 = vadd.f32 %v1319, %v2712
  %2714 = vmatprep.mubr.bf16.mxu0 %v1043
  %2715 = vmatmul.mubr.bf16.gmra.mxu0 %v1042
  %v2716 = vpop.f32.mrf.mxu0
  %v2717 = vadd.f32 %v1315, %v2716
  %v2718 = vpop.f32.mrf.mxu0
  %v2719 = vadd.f32 %v1319, %v2718
  %v2720 = vpop.f32.mrf.mxu0
  %v2721 = vadd.f32 %v1315, %v2720
  %v2722 = vpop.f32.mrf.mxu0
  %v2723 = vadd.f32 %v1319, %v2722
  %2724 = vmatprep.mubr.bf16.mxu0 %v1047
  %2725 = vmatmul.mubr.bf16.gmra.mxu0 %v1046
  %v2726 = vpop.f32.mrf.mxu0
  %v2727 = vadd.f32 %v1315, %v2726
  %v2728 = vpop.f32.mrf.mxu0
  %v2729 = vadd.f32 %v1319, %v2728
  %v2730 = vpop.f32.mrf.mxu0
  %v2731 = vadd.f32 %v1315, %v2730
  %v2732 = vpop.f32.mrf.mxu0
  %v2733 = vadd.f32 %v1319, %v2732
  %2734 = vmatprep.mubr.bf16.mxu0 %v1051
  %2735 = vmatmul.mubr.bf16.gmra.mxu0 %v1050
  %v2736 = vpop.f32.mrf.mxu0
  %v2737 = vadd.f32 %v1315, %v2736
  %v2738 = vpop.f32.mrf.mxu0
  %v2739 = vadd.f32 %v1319, %v2738
  %v2740 = vpop.f32.mrf.mxu0
  %v2741 = vadd.f32 %v1315, %v2740
  %v2742 = vpop.f32.mrf.mxu0
  %v2743 = vadd.f32 %v1319, %v2742
  %2744 = vdwg.mxu0
  %2745 = vmatprep.subr.bf16.mxu0 %v2305
  %2746 = vmatpush1.bf16.msra.mxu0 %v2304
  %2747 = vmatprep.subr.bf16.mxu0 %v2297
  %2748 = vmatpush1.bf16.msra.mxu0 %v2296
  %2749 = vmatprep.subr.bf16.mxu0 %v2289
  %2750 = vmatpush1.bf16.msra.mxu0 %v2288
  %2751 = vmatprep.subr.bf16.mxu0 %v2281
  %2752 = vmatpush1.bf16.msra.mxu0 %v2280
  %2753 = vmatprep.subr.bf16.mxu0 %v2273
  %2754 = vmatpush1.bf16.msra.mxu0 %v2272
  %2755 = vmatprep.subr.bf16.mxu0 %v2265
  %2756 = vmatpush1.bf16.msra.mxu0 %v2264
  %2757 = vmatprep.subr.bf16.mxu0 %v2257
  %2758 = vmatpush1.bf16.msra.mxu0 %v2256
  %2759 = vmatprep.subr.bf16.mxu0 %v2249
  %2760 = vmatpush1.bf16.msra.mxu0 %v2248
  %2761 = vmatprep.subr.bf16.mxu0 %v2369
  %2762 = vmatpush2.bf16.msra.mxu0 %v2368
  %2763 = vmatprep.subr.bf16.mxu0 %v2361
  %2764 = vmatpush2.bf16.msra.mxu0 %v2360
  %2765 = vmatprep.subr.bf16.mxu0 %v2353
  %2766 = vmatpush2.bf16.msra.mxu0 %v2352
  %2767 = vmatprep.subr.bf16.mxu0 %v2345
  %2768 = vmatpush2.bf16.msra.mxu0 %v2344
  %2769 = vmatprep.subr.bf16.mxu0 %v2337
  %2770 = vmatpush2.bf16.msra.mxu0 %v2336
  %2771 = vmatprep.subr.bf16.mxu0 %v2329
  %2772 = vmatpush2.bf16.msra.mxu0 %v2328
  %2773 = vmatprep.subr.bf16.mxu0 %v2321
  %2774 = vmatpush2.bf16.msra.mxu0 %v2320
  %2775 = vmatprep.subr.bf16.mxu0 %v2313
  %2776 = vmatpush2.bf16.msra.mxu0 %v2312
  %2777 = vmatprep.mubr.bf16.mxu0 %v1025
  %2778 = vmatmul.mubr.bf16.gmra.mxu0 %v1024
  %v2779 = vpop.f32.mrf.mxu0
  %v2780 = vadd.f32 %v2667, %v2779
  %v2781 = vpop.f32.mrf.mxu0
  %v2782 = vadd.f32 %v2669, %v2781
  %v2783 = vpop.f32.mrf.mxu0
  %v2784 = vadd.f32 %v2671, %v2783
  %v2785 = vpop.f32.mrf.mxu0
  %v2786 = vadd.f32 %v2673, %v2785
  %2787 = vmatprep.mubr.bf16.mxu0 %v1029
  %2788 = vmatmul.mubr.bf16.gmra.mxu0 %v1028
  %v2789 = vpop.f32.mrf.mxu0
  %v2790 = vadd.f32 %v2677, %v2789
  %v2791 = vpop.f32.mrf.mxu0
  %v2792 = vadd.f32 %v2679, %v2791
  %v2793 = vpop.f32.mrf.mxu0
  %v2794 = vadd.f32 %v2681, %v2793
  %v2795 = vpop.f32.mrf.mxu0
  %v2796 = vadd.f32 %v2683, %v2795
  %2797 = vmatprep.mubr.bf16.mxu0 %v1033
  %2798 = vmatmul.mubr.bf16.gmra.mxu0 %v1032
  %v2799 = vpop.f32.mrf.mxu0
  %v2800 = vadd.f32 %v2687, %v2799
  %v2801 = vpop.f32.mrf.mxu0
  %v2802 = vadd.f32 %v2689, %v2801
  %v2803 = vpop.f32.mrf.mxu0
  %v2804 = vadd.f32 %v2691, %v2803
  %v2805 = vpop.f32.mrf.mxu0
  %v2806 = vadd.f32 %v2693, %v2805
  %2807 = vmatprep.mubr.bf16.mxu0 %v1037
  %2808 = vmatmul.mubr.bf16.gmra.mxu0 %v1036
  %v2809 = vpop.f32.mrf.mxu0
  %v2810 = vadd.f32 %v2697, %v2809
  %v2811 = vpop.f32.mrf.mxu0
  %v2812 = vadd.f32 %v2699, %v2811
  %v2813 = vpop.f32.mrf.mxu0
  %v2814 = vadd.f32 %v2701, %v2813
  %v2815 = vpop.f32.mrf.mxu0
  %v2816 = vadd.f32 %v2703, %v2815
  %2817 = vmatprep.mubr.bf16.mxu0 %v1041
  %2818 = vmatmul.mubr.bf16.gmra.mxu0 %v1040
  %v2819 = vpop.f32.mrf.mxu0
  %v2820 = vadd.f32 %v2707, %v2819
  %v2821 = vpop.f32.mrf.mxu0
  %v2822 = vadd.f32 %v2709, %v2821
  %v2823 = vpop.f32.mrf.mxu0
  %v2824 = vadd.f32 %v2711, %v2823
  %v2825 = vpop.f32.mrf.mxu0
  %v2826 = vadd.f32 %v2713, %v2825
  %2827 = vmatprep.mubr.bf16.mxu0 %v1045
  %2828 = vmatmul.mubr.bf16.gmra.mxu0 %v1044
  %v2829 = vpop.f32.mrf.mxu0
  %v2830 = vadd.f32 %v2717, %v2829
  %v2831 = vpop.f32.mrf.mxu0
  %v2832 = vadd.f32 %v2719, %v2831
  %v2833 = vpop.f32.mrf.mxu0
  %v2834 = vadd.f32 %v2721, %v2833
  %v2835 = vpop.f32.mrf.mxu0
  %v2836 = vadd.f32 %v2723, %v2835
  %2837 = vmatprep.mubr.bf16.mxu0 %v1049
  %2838 = vmatmul.mubr.bf16.gmra.mxu0 %v1048
  %v2839 = vpop.f32.mrf.mxu0
  %v2840 = vadd.f32 %v2727, %v2839
  %v2841 = vpop.f32.mrf.mxu0
  %v2842 = vadd.f32 %v2729, %v2841
  %v2843 = vpop.f32.mrf.mxu0
  %v2844 = vadd.f32 %v2731, %v2843
  %v2845 = vpop.f32.mrf.mxu0
  %v2846 = vadd.f32 %v2733, %v2845
  %2847 = vmatprep.mubr.bf16.mxu0 %v1053
  %2848 = vmatmul.mubr.bf16.gmra.mxu0 %v1052
  %v2849 = vpop.f32.mrf.mxu0
  %v2850 = vadd.f32 %v2737, %v2849
  %v2851 = vpop.f32.mrf.mxu0
  %v2852 = vadd.f32 %v2739, %v2851
  %v2853 = vpop.f32.mrf.mxu0
  %v2854 = vadd.f32 %v2741, %v2853
  %v2855 = vpop.f32.mrf.mxu0
  %v2856 = vadd.f32 %v2743, %v2855
  %2857 = vdwg.mxu0
  %2858 = vmatprep.subr.bf16.mxu0 %v2179
  %2859 = vmatpush1.bf16.msra.mxu0 %v2178
  %2860 = vmatprep.subr.bf16.mxu0 %v2171
  %2861 = vmatpush1.bf16.msra.mxu0 %v2170
  %2862 = vmatprep.subr.bf16.mxu0 %v2163
  %2863 = vmatpush1.bf16.msra.mxu0 %v2162
  %2864 = vmatprep.subr.bf16.mxu0 %v2155
  %2865 = vmatpush1.bf16.msra.mxu0 %v2154
  %2866 = vmatprep.subr.bf16.mxu0 %v2147
  %2867 = vmatpush1.bf16.msra.mxu0 %v2146
  %2868 = vmatprep.subr.bf16.mxu0 %v2139
  %2869 = vmatpush1.bf16.msra.mxu0 %v2138
  %2870 = vmatprep.subr.bf16.mxu0 %v2131
  %2871 = vmatpush1.bf16.msra.mxu0 %v2130
  %2872 = vmatprep.subr.bf16.mxu0 %v2123
  %2873 = vmatpush1.bf16.msra.mxu0 %v2122
  %2874 = vmatprep.subr.bf16.mxu0 %v2243
  %2875 = vmatpush2.bf16.msra.mxu0 %v2242
  %2876 = vmatprep.subr.bf16.mxu0 %v2235
  %2877 = vmatpush2.bf16.msra.mxu0 %v2234
  %2878 = vmatprep.subr.bf16.mxu0 %v2227
  %2879 = vmatpush2.bf16.msra.mxu0 %v2226
  %2880 = vmatprep.subr.bf16.mxu0 %v2219
  %2881 = vmatpush2.bf16.msra.mxu0 %v2218
  %2882 = vmatprep.subr.bf16.mxu0 %v2211
  %2883 = vmatpush2.bf16.msra.mxu0 %v2210
  %2884 = vmatprep.subr.bf16.mxu0 %v2203
  %2885 = vmatpush2.bf16.msra.mxu0 %v2202
  %2886 = vmatprep.subr.bf16.mxu0 %v2195
  %2887 = vmatpush2.bf16.msra.mxu0 %v2194
  %2888 = vmatprep.subr.bf16.mxu0 %v2187
  %2889 = vmatpush2.bf16.msra.mxu0 %v2186
  %2890 = vmatprep.mubr.bf16.mxu0 %v1023
  %2891 = vmatmul.mubr.bf16.gmra.mxu0 %v1022
  %v2892 = vpop.f32.mrf.mxu0
  %v2893 = vadd.f32 %v1323, %v2892
  %v2894 = vpop.f32.mrf.mxu0
  %v2895 = vadd.f32 %v1327, %v2894
  %v2896 = vpop.f32.mrf.mxu0
  %v2897 = vadd.f32 %v1323, %v2896
  %v2898 = vpop.f32.mrf.mxu0
  %v2899 = vadd.f32 %v1327, %v2898
  %2900 = vmatprep.mubr.bf16.mxu0 %v1027
  %2901 = vmatmul.mubr.bf16.gmra.mxu0 %v1026
  %v2902 = vpop.f32.mrf.mxu0
  %v2903 = vadd.f32 %v1323, %v2902
  %v2904 = vpop.f32.mrf.mxu0
  %v2905 = vadd.f32 %v1327, %v2904
  %v2906 = vpop.f32.mrf.mxu0
  %v2907 = vadd.f32 %v1323, %v2906
  %v2908 = vpop.f32.mrf.mxu0
  %v2909 = vadd.f32 %v1327, %v2908
  %2910 = vmatprep.mubr.bf16.mxu0 %v1031
  %2911 = vmatmul.mubr.bf16.gmra.mxu0 %v1030
  %v2912 = vpop.f32.mrf.mxu0
  %v2913 = vadd.f32 %v1323, %v2912
  %v2914 = vpop.f32.mrf.mxu0
  %v2915 = vadd.f32 %v1327, %v2914
  %v2916 = vpop.f32.mrf.mxu0
  %v2917 = vadd.f32 %v1323, %v2916
  %v2918 = vpop.f32.mrf.mxu0
  %v2919 = vadd.f32 %v1327, %v2918
  %2920 = vmatprep.mubr.bf16.mxu0 %v1035
  %2921 = vmatmul.mubr.bf16.gmra.mxu0 %v1034
  %v2922 = vpop.f32.mrf.mxu0
  %v2923 = vadd.f32 %v1323, %v2922
  %v2924 = vpop.f32.mrf.mxu0
  %v2925 = vadd.f32 %v1327, %v2924
  %v2926 = vpop.f32.mrf.mxu0
  %v2927 = vadd.f32 %v1323, %v2926
  %v2928 = vpop.f32.mrf.mxu0
  %v2929 = vadd.f32 %v1327, %v2928
  %2930 = vmatprep.mubr.bf16.mxu0 %v1039
  %2931 = vmatmul.mubr.bf16.gmra.mxu0 %v1038
  %v2932 = vpop.f32.mrf.mxu0
  %v2933 = vadd.f32 %v1323, %v2932
  %v2934 = vpop.f32.mrf.mxu0
  %v2935 = vadd.f32 %v1327, %v2934
  %v2936 = vpop.f32.mrf.mxu0
  %v2937 = vadd.f32 %v1323, %v2936
  %v2938 = vpop.f32.mrf.mxu0
  %v2939 = vadd.f32 %v1327, %v2938
  %2940 = vmatprep.mubr.bf16.mxu0 %v1043
  %2941 = vmatmul.mubr.bf16.gmra.mxu0 %v1042
  %v2942 = vpop.f32.mrf.mxu0
  %v2943 = vadd.f32 %v1323, %v2942
  %v2944 = vpop.f32.mrf.mxu0
  %v2945 = vadd.f32 %v1327, %v2944
  %v2946 = vpop.f32.mrf.mxu0
  %v2947 = vadd.f32 %v1323, %v2946
  %v2948 = vpop.f32.mrf.mxu0
  %v2949 = vadd.f32 %v1327, %v2948
  %2950 = vmatprep.mubr.bf16.mxu0 %v1047
  %2951 = vmatmul.mubr.bf16.gmra.mxu0 %v1046
  %v2952 = vpop.f32.mrf.mxu0
  %v2953 = vadd.f32 %v1323, %v2952
  %v2954 = vpop.f32.mrf.mxu0
  %v2955 = vadd.f32 %v1327, %v2954
  %v2956 = vpop.f32.mrf.mxu0
  %v2957 = vadd.f32 %v1323, %v2956
  %v2958 = vpop.f32.mrf.mxu0
  %v2959 = vadd.f32 %v1327, %v2958
  %2960 = vmatprep.mubr.bf16.mxu0 %v1051
  %2961 = vmatmul.mubr.bf16.gmra.mxu0 %v1050
  %v2962 = vpop.f32.mrf.mxu0
  %v2963 = vadd.f32 %v1323, %v2962
  %v2964 = vpop.f32.mrf.mxu0
  %v2965 = vadd.f32 %v1327, %v2964
  %v2966 = vpop.f32.mrf.mxu0
  %v2967 = vadd.f32 %v1323, %v2966
  %v2968 = vpop.f32.mrf.mxu0
  %v2969 = vadd.f32 %v1327, %v2968
  %2970 = vdwg.mxu0
  %2971 = vmatprep.subr.bf16.mxu0 %v2307
  %2972 = vmatpush1.bf16.msra.mxu0 %v2306
  %2973 = vmatprep.subr.bf16.mxu0 %v2299
  %2974 = vmatpush1.bf16.msra.mxu0 %v2298
  %2975 = vmatprep.subr.bf16.mxu0 %v2291
  %2976 = vmatpush1.bf16.msra.mxu0 %v2290
  %2977 = vmatprep.subr.bf16.mxu0 %v2283
  %2978 = vmatpush1.bf16.msra.mxu0 %v2282
  %2979 = vmatprep.subr.bf16.mxu0 %v2275
  %2980 = vmatpush1.bf16.msra.mxu0 %v2274
  %2981 = vmatprep.subr.bf16.mxu0 %v2267
  %2982 = vmatpush1.bf16.msra.mxu0 %v2266
  %2983 = vmatprep.subr.bf16.mxu0 %v2259
  %2984 = vmatpush1.bf16.msra.mxu0 %v2258
  %2985 = vmatprep.subr.bf16.mxu0 %v2251
  %2986 = vmatpush1.bf16.msra.mxu0 %v2250
  %2987 = vmatprep.subr.bf16.mxu0 %v2371
  %2988 = vmatpush2.bf16.msra.mxu0 %v2370
  %2989 = vmatprep.subr.bf16.mxu0 %v2363
  %2990 = vmatpush2.bf16.msra.mxu0 %v2362
  %2991 = vmatprep.subr.bf16.mxu0 %v2355
  %2992 = vmatpush2.bf16.msra.mxu0 %v2354
  %2993 = vmatprep.subr.bf16.mxu0 %v2347
  %2994 = vmatpush2.bf16.msra.mxu0 %v2346
  %2995 = vmatprep.subr.bf16.mxu0 %v2339
  %2996 = vmatpush2.bf16.msra.mxu0 %v2338
  %2997 = vmatprep.subr.bf16.mxu0 %v2331
  %2998 = vmatpush2.bf16.msra.mxu0 %v2330
  %2999 = vmatprep.subr.bf16.mxu0 %v2323
  %3000 = vmatpush2.bf16.msra.mxu0 %v2322
  %3001 = vmatprep.subr.bf16.mxu0 %v2315
  %3002 = vmatpush2.bf16.msra.mxu0 %v2314
  %3003 = vmatprep.mubr.bf16.mxu0 %v1025
  %3004 = vmatmul.mubr.bf16.gmra.mxu0 %v1024
  %v3005 = vpop.f32.mrf.mxu0
  %v3006 = vadd.f32 %v2893, %v3005
  %v3007 = vpop.f32.mrf.mxu0
  %v3008 = vadd.f32 %v2895, %v3007
  %v3009 = vpop.f32.mrf.mxu0
  %v3010 = vadd.f32 %v2897, %v3009
  %v3011 = vpop.f32.mrf.mxu0
  %v3012 = vadd.f32 %v2899, %v3011
  %3013 = vmatprep.mubr.bf16.mxu0 %v1029
  %3014 = vmatmul.mubr.bf16.gmra.mxu0 %v1028
  %v3015 = vpop.f32.mrf.mxu0
  %v3016 = vadd.f32 %v2903, %v3015
  %v3017 = vpop.f32.mrf.mxu0
  %v3018 = vadd.f32 %v2905, %v3017
  %v3019 = vpop.f32.mrf.mxu0
  %v3020 = vadd.f32 %v2907, %v3019
  %v3021 = vpop.f32.mrf.mxu0
  %v3022 = vadd.f32 %v2909, %v3021
  %3023 = vmatprep.mubr.bf16.mxu0 %v1033
  %3024 = vmatmul.mubr.bf16.gmra.mxu0 %v1032
  %v3025 = vpop.f32.mrf.mxu0
  %v3026 = vadd.f32 %v2913, %v3025
  %v3027 = vpop.f32.mrf.mxu0
  %v3028 = vadd.f32 %v2915, %v3027
  %v3029 = vpop.f32.mrf.mxu0
  %v3030 = vadd.f32 %v2917, %v3029
  %v3031 = vpop.f32.mrf.mxu0
  %v3032 = vadd.f32 %v2919, %v3031
  %3033 = vmatprep.mubr.bf16.mxu0 %v1037
  %3034 = vmatmul.mubr.bf16.gmra.mxu0 %v1036
  %v3035 = vpop.f32.mrf.mxu0
  %v3036 = vadd.f32 %v2923, %v3035
  %v3037 = vpop.f32.mrf.mxu0
  %v3038 = vadd.f32 %v2925, %v3037
  %v3039 = vpop.f32.mrf.mxu0
  %v3040 = vadd.f32 %v2927, %v3039
  %v3041 = vpop.f32.mrf.mxu0
  %v3042 = vadd.f32 %v2929, %v3041
  %3043 = vmatprep.mubr.bf16.mxu0 %v1041
  %3044 = vmatmul.mubr.bf16.gmra.mxu0 %v1040
  %v3045 = vpop.f32.mrf.mxu0
  %v3046 = vadd.f32 %v2933, %v3045
  %v3047 = vpop.f32.mrf.mxu0
  %v3048 = vadd.f32 %v2935, %v3047
  %v3049 = vpop.f32.mrf.mxu0
  %v3050 = vadd.f32 %v2937, %v3049
  %v3051 = vpop.f32.mrf.mxu0
  %v3052 = vadd.f32 %v2939, %v3051
  %3053 = vmatprep.mubr.bf16.mxu0 %v1045
  %3054 = vmatmul.mubr.bf16.gmra.mxu0 %v1044
  %v3055 = vpop.f32.mrf.mxu0
  %v3056 = vadd.f32 %v2943, %v3055
  %v3057 = vpop.f32.mrf.mxu0
  %v3058 = vadd.f32 %v2945, %v3057
  %v3059 = vpop.f32.mrf.mxu0
  %v3060 = vadd.f32 %v2947, %v3059
  %v3061 = vpop.f32.mrf.mxu0
  %v3062 = vadd.f32 %v2949, %v3061
  %3063 = vmatprep.mubr.bf16.mxu0 %v1049
  %3064 = vmatmul.mubr.bf16.gmra.mxu0 %v1048
  %v3065 = vpop.f32.mrf.mxu0
  %v3066 = vadd.f32 %v2953, %v3065
  %v3067 = vpop.f32.mrf.mxu0
  %v3068 = vadd.f32 %v2955, %v3067
  %v3069 = vpop.f32.mrf.mxu0
  %v3070 = vadd.f32 %v2957, %v3069
  %v3071 = vpop.f32.mrf.mxu0
  %v3072 = vadd.f32 %v2959, %v3071
  %3073 = vmatprep.mubr.bf16.mxu0 %v1053
  %3074 = vmatmul.mubr.bf16.gmra.mxu0 %v1052
  %v3075 = vpop.f32.mrf.mxu0
  %v3076 = vadd.f32 %v2963, %v3075
  %v3077 = vpop.f32.mrf.mxu0
  %v3078 = vadd.f32 %v2965, %v3077
  %v3079 = vpop.f32.mrf.mxu0
  %v3080 = vadd.f32 %v2967, %v3079
  %v3081 = vpop.f32.mrf.mxu0
  %v3082 = vadd.f32 %v2969, %v3081
  %3083 = vdwg.mxu0
  %3084 = vmatprep.subr.bf16.mxu0 %v2181
  %3085 = vmatpush1.bf16.msra.mxu0 %v2180
  %3086 = vmatprep.subr.bf16.mxu0 %v2173
  %3087 = vmatpush1.bf16.msra.mxu0 %v2172
  %3088 = vmatprep.subr.bf16.mxu0 %v2165
  %3089 = vmatpush1.bf16.msra.mxu0 %v2164
  %3090 = vmatprep.subr.bf16.mxu0 %v2157
  %3091 = vmatpush1.bf16.msra.mxu0 %v2156
  %3092 = vmatprep.subr.bf16.mxu0 %v2149
  %3093 = vmatpush1.bf16.msra.mxu0 %v2148
  %3094 = vmatprep.subr.bf16.mxu0 %v2141
  %3095 = vmatpush1.bf16.msra.mxu0 %v2140
  %3096 = vmatprep.subr.bf16.mxu0 %v2133
  %3097 = vmatpush1.bf16.msra.mxu0 %v2132
  %3098 = vmatprep.subr.bf16.mxu0 %v2125
  %3099 = vmatpush1.bf16.msra.mxu0 %v2124
  %3100 = vmatprep.subr.bf16.mxu0 %v2245
  %3101 = vmatpush2.bf16.msra.mxu0 %v2244
  %3102 = vmatprep.subr.bf16.mxu0 %v2237
  %3103 = vmatpush2.bf16.msra.mxu0 %v2236
  %3104 = vmatprep.subr.bf16.mxu0 %v2229
  %3105 = vmatpush2.bf16.msra.mxu0 %v2228
  %3106 = vmatprep.subr.bf16.mxu0 %v2221
  %3107 = vmatpush2.bf16.msra.mxu0 %v2220
  %3108 = vmatprep.subr.bf16.mxu0 %v2213
  %3109 = vmatpush2.bf16.msra.mxu0 %v2212
  %3110 = vmatprep.subr.bf16.mxu0 %v2205
  %3111 = vmatpush2.bf16.msra.mxu0 %v2204
  %3112 = vmatprep.subr.bf16.mxu0 %v2197
  %3113 = vmatpush2.bf16.msra.mxu0 %v2196
  %3114 = vmatprep.subr.bf16.mxu0 %v2189
  %3115 = vmatpush2.bf16.msra.mxu0 %v2188
  %3116 = vmatprep.mubr.bf16.mxu0 %v1023
  %3117 = vmatmul.mubr.bf16.gmra.mxu0 %v1022
  %v3118 = vpop.f32.mrf.mxu0
  %v3119 = vadd.f32 %v1331, %v3118
  %v3120 = vpop.f32.mrf.mxu0
  %v3121 = vadd.f32 %v1335, %v3120
  %v3122 = vpop.f32.mrf.mxu0
  %v3123 = vadd.f32 %v1331, %v3122
  %v3124 = vpop.f32.mrf.mxu0
  %v3125 = vadd.f32 %v1335, %v3124
  %3126 = vmatprep.mubr.bf16.mxu0 %v1027
  %3127 = vmatmul.mubr.bf16.gmra.mxu0 %v1026
  %v3128 = vpop.f32.mrf.mxu0
  %v3129 = vadd.f32 %v1331, %v3128
  %v3130 = vpop.f32.mrf.mxu0
  %v3131 = vadd.f32 %v1335, %v3130
  %v3132 = vpop.f32.mrf.mxu0
  %v3133 = vadd.f32 %v1331, %v3132
  %v3134 = vpop.f32.mrf.mxu0
  %v3135 = vadd.f32 %v1335, %v3134
  %3136 = vmatprep.mubr.bf16.mxu0 %v1031
  %3137 = vmatmul.mubr.bf16.gmra.mxu0 %v1030
  %v3138 = vpop.f32.mrf.mxu0
  %v3139 = vadd.f32 %v1331, %v3138
  %v3140 = vpop.f32.mrf.mxu0
  %v3141 = vadd.f32 %v1335, %v3140
  %v3142 = vpop.f32.mrf.mxu0
  %v3143 = vadd.f32 %v1331, %v3142
  %v3144 = vpop.f32.mrf.mxu0
  %v3145 = vadd.f32 %v1335, %v3144
  %3146 = vmatprep.mubr.bf16.mxu0 %v1035
  %3147 = vmatmul.mubr.bf16.gmra.mxu0 %v1034
  %v3148 = vpop.f32.mrf.mxu0
  %v3149 = vadd.f32 %v1331, %v3148
  %v3150 = vpop.f32.mrf.mxu0
  %v3151 = vadd.f32 %v1335, %v3150
  %v3152 = vpop.f32.mrf.mxu0
  %v3153 = vadd.f32 %v1331, %v3152
  %v3154 = vpop.f32.mrf.mxu0
  %v3155 = vadd.f32 %v1335, %v3154
  %3156 = vmatprep.mubr.bf16.mxu0 %v1039
  %3157 = vmatmul.mubr.bf16.gmra.mxu0 %v1038
  %v3158 = vpop.f32.mrf.mxu0
  %v3159 = vadd.f32 %v1331, %v3158
  %v3160 = vpop.f32.mrf.mxu0
  %v3161 = vadd.f32 %v1335, %v3160
  %v3162 = vpop.f32.mrf.mxu0
  %v3163 = vadd.f32 %v1331, %v3162
  %v3164 = vpop.f32.mrf.mxu0
  %v3165 = vadd.f32 %v1335, %v3164
  %3166 = vmatprep.mubr.bf16.mxu0 %v1043
  %3167 = vmatmul.mubr.bf16.gmra.mxu0 %v1042
  %v3168 = vpop.f32.mrf.mxu0
  %v3169 = vadd.f32 %v1331, %v3168
  %v3170 = vpop.f32.mrf.mxu0
  %v3171 = vadd.f32 %v1335, %v3170
  %v3172 = vpop.f32.mrf.mxu0
  %v3173 = vadd.f32 %v1331, %v3172
  %v3174 = vpop.f32.mrf.mxu0
  %v3175 = vadd.f32 %v1335, %v3174
  %3176 = vmatprep.mubr.bf16.mxu0 %v1047
  %3177 = vmatmul.mubr.bf16.gmra.mxu0 %v1046
  %v3178 = vpop.f32.mrf.mxu0
  %v3179 = vadd.f32 %v1331, %v3178
  %v3180 = vpop.f32.mrf.mxu0
  %v3181 = vadd.f32 %v1335, %v3180
  %v3182 = vpop.f32.mrf.mxu0
  %v3183 = vadd.f32 %v1331, %v3182
  %v3184 = vpop.f32.mrf.mxu0
  %v3185 = vadd.f32 %v1335, %v3184
  %3186 = vmatprep.mubr.bf16.mxu0 %v1051
  %3187 = vmatmul.mubr.bf16.gmra.mxu0 %v1050
  %v3188 = vpop.f32.mrf.mxu0
  %v3189 = vadd.f32 %v1331, %v3188
  %v3190 = vpop.f32.mrf.mxu0
  %v3191 = vadd.f32 %v1335, %v3190
  %v3192 = vpop.f32.mrf.mxu0
  %v3193 = vadd.f32 %v1331, %v3192
  %v3194 = vpop.f32.mrf.mxu0
  %v3195 = vadd.f32 %v1335, %v3194
  %3196 = vdwg.mxu0
  %3197 = vmatprep.subr.bf16.mxu0 %v2309
  %3198 = vmatpush1.bf16.msra.mxu0 %v2308
  %3199 = vmatprep.subr.bf16.mxu0 %v2301
  %3200 = vmatpush1.bf16.msra.mxu0 %v2300
  %3201 = vmatprep.subr.bf16.mxu0 %v2293
  %3202 = vmatpush1.bf16.msra.mxu0 %v2292
  %3203 = vmatprep.subr.bf16.mxu0 %v2285
  %3204 = vmatpush1.bf16.msra.mxu0 %v2284
  %3205 = vmatprep.subr.bf16.mxu0 %v2277
  %3206 = vmatpush1.bf16.msra.mxu0 %v2276
  %3207 = vmatprep.subr.bf16.mxu0 %v2269
  %3208 = vmatpush1.bf16.msra.mxu0 %v2268
  %3209 = vmatprep.subr.bf16.mxu0 %v2261
  %3210 = vmatpush1.bf16.msra.mxu0 %v2260
  %3211 = vmatprep.subr.bf16.mxu0 %v2253
  %3212 = vmatpush1.bf16.msra.mxu0 %v2252
  %3213 = vmatprep.subr.bf16.mxu0 %v2373
  %3214 = vmatpush2.bf16.msra.mxu0 %v2372
  %3215 = vmatprep.subr.bf16.mxu0 %v2365
  %3216 = vmatpush2.bf16.msra.mxu0 %v2364
  %3217 = vmatprep.subr.bf16.mxu0 %v2357
  %3218 = vmatpush2.bf16.msra.mxu0 %v2356
  %3219 = vmatprep.subr.bf16.mxu0 %v2349
  %3220 = vmatpush2.bf16.msra.mxu0 %v2348
  %3221 = vmatprep.subr.bf16.mxu0 %v2341
  %3222 = vmatpush2.bf16.msra.mxu0 %v2340
  %3223 = vmatprep.subr.bf16.mxu0 %v2333
  %3224 = vmatpush2.bf16.msra.mxu0 %v2332
  %3225 = vmatprep.subr.bf16.mxu0 %v2325
  %3226 = vmatpush2.bf16.msra.mxu0 %v2324
  %3227 = vmatprep.subr.bf16.mxu0 %v2317
  %3228 = vmatpush2.bf16.msra.mxu0 %v2316
  %3229 = vmatprep.mubr.bf16.mxu0 %v1025
  %3230 = vmatmul.mubr.bf16.gmra.mxu0 %v1024
  %v3231 = vpop.f32.mrf.mxu0
  %v3232 = vadd.f32 %v3119, %v3231
  %v3233 = vpop.f32.mrf.mxu0
  %v3234 = vadd.f32 %v3121, %v3233
  %v3235 = vpop.f32.mrf.mxu0
  %v3236 = vadd.f32 %v3123, %v3235
  %v3237 = vpop.f32.mrf.mxu0
  %v3238 = vadd.f32 %v3125, %v3237
  %3239 = vmatprep.mubr.bf16.mxu0 %v1029
  %3240 = vmatmul.mubr.bf16.gmra.mxu0 %v1028
  %v3241 = vpop.f32.mrf.mxu0
  %v3242 = vadd.f32 %v3129, %v3241
  %v3243 = vpop.f32.mrf.mxu0
  %v3244 = vadd.f32 %v3131, %v3243
  %v3245 = vpop.f32.mrf.mxu0
  %v3246 = vadd.f32 %v3133, %v3245
  %v3247 = vpop.f32.mrf.mxu0
  %v3248 = vadd.f32 %v3135, %v3247
  %3249 = vmatprep.mubr.bf16.mxu0 %v1033
  %3250 = vmatmul.mubr.bf16.gmra.mxu0 %v1032
  %v3251 = vpop.f32.mrf.mxu0
  %v3252 = vadd.f32 %v3139, %v3251
  %v3253 = vpop.f32.mrf.mxu0
  %v3254 = vadd.f32 %v3141, %v3253
  %v3255 = vpop.f32.mrf.mxu0
  %v3256 = vadd.f32 %v3143, %v3255
  %v3257 = vpop.f32.mrf.mxu0
  %v3258 = vadd.f32 %v3145, %v3257
  %3259 = vmatprep.mubr.bf16.mxu0 %v1037
  %3260 = vmatmul.mubr.bf16.gmra.mxu0 %v1036
  %v3261 = vpop.f32.mrf.mxu0
  %v3262 = vadd.f32 %v3149, %v3261
  %v3263 = vpop.f32.mrf.mxu0
  %v3264 = vadd.f32 %v3151, %v3263
  %v3265 = vpop.f32.mrf.mxu0
  %v3266 = vadd.f32 %v3153, %v3265
  %v3267 = vpop.f32.mrf.mxu0
  %v3268 = vadd.f32 %v3155, %v3267
  %3269 = vmatprep.mubr.bf16.mxu0 %v1041
  %3270 = vmatmul.mubr.bf16.gmra.mxu0 %v1040
  %v3271 = vpop.f32.mrf.mxu0
  %v3272 = vadd.f32 %v3159, %v3271
  %v3273 = vpop.f32.mrf.mxu0
  %v3274 = vadd.f32 %v3161, %v3273
  %v3275 = vpop.f32.mrf.mxu0
  %v3276 = vadd.f32 %v3163, %v3275
  %v3277 = vpop.f32.mrf.mxu0
  %v3278 = vadd.f32 %v3165, %v3277
  %3279 = vmatprep.mubr.bf16.mxu0 %v1045
  %3280 = vmatmul.mubr.bf16.gmra.mxu0 %v1044
  %v3281 = vpop.f32.mrf.mxu0
  %v3282 = vadd.f32 %v3169, %v3281
  %v3283 = vpop.f32.mrf.mxu0
  %v3284 = vadd.f32 %v3171, %v3283
  %v3285 = vpop.f32.mrf.mxu0
  %v3286 = vadd.f32 %v3173, %v3285
  %v3287 = vpop.f32.mrf.mxu0
  %v3288 = vadd.f32 %v3175, %v3287
  %3289 = vmatprep.mubr.bf16.mxu0 %v1049
  %3290 = vmatmul.mubr.bf16.gmra.mxu0 %v1048
  %v3291 = vpop.f32.mrf.mxu0
  %v3292 = vadd.f32 %v3179, %v3291
  %v3293 = vpop.f32.mrf.mxu0
  %v3294 = vadd.f32 %v3181, %v3293
  %v3295 = vpop.f32.mrf.mxu0
  %v3296 = vadd.f32 %v3183, %v3295
  %v3297 = vpop.f32.mrf.mxu0
  %v3298 = vadd.f32 %v3185, %v3297
  %3299 = vmatprep.mubr.bf16.mxu0 %v1053
  %3300 = vmatmul.mubr.bf16.gmra.mxu0 %v1052
  %v3301 = vpop.f32.mrf.mxu0
  %v3302 = vadd.f32 %v3189, %v3301
  %v3303 = vpop.f32.mrf.mxu0
  %v3304 = vadd.f32 %v3191, %v3303
  %v3305 = vpop.f32.mrf.mxu0
  %v3306 = vadd.f32 %v3193, %v3305
  %v3307 = vpop.f32.mrf.mxu0
  %v3308 = vadd.f32 %v3195, %v3307
  %3309 = vdwg.mxu0
  %3310 = vmatprep.subr.bf16.mxu0 %v2183
  %3311 = vmatpush1.bf16.msra.mxu0 %v2182
  %3312 = vmatprep.subr.bf16.mxu0 %v2175
  %3313 = vmatpush1.bf16.msra.mxu0 %v2174
  %3314 = vmatprep.subr.bf16.mxu0 %v2167
  %3315 = vmatpush1.bf16.msra.mxu0 %v2166
  %3316 = vmatprep.subr.bf16.mxu0 %v2159
  %3317 = vmatpush1.bf16.msra.mxu0 %v2158
  %3318 = vmatprep.subr.bf16.mxu0 %v2151
  %3319 = vmatpush1.bf16.msra.mxu0 %v2150
  %3320 = vmatprep.subr.bf16.mxu0 %v2143
  %3321 = vmatpush1.bf16.msra.mxu0 %v2142
  %3322 = vmatprep.subr.bf16.mxu0 %v2135
  %3323 = vmatpush1.bf16.msra.mxu0 %v2134
  %3324 = vmatprep.subr.bf16.mxu0 %v2127
  %3325 = vmatpush1.bf16.msra.mxu0 %v2126
  %3326 = vmatprep.subr.bf16.mxu0 %v2247
  %3327 = vmatpush2.bf16.msra.mxu0 %v2246
  %3328 = vmatprep.subr.bf16.mxu0 %v2239
  %3329 = vmatpush2.bf16.msra.mxu0 %v2238
  %3330 = vmatprep.subr.bf16.mxu0 %v2231
  %3331 = vmatpush2.bf16.msra.mxu0 %v2230
  %3332 = vmatprep.subr.bf16.mxu0 %v2223
  %3333 = vmatpush2.bf16.msra.mxu0 %v2222
  %3334 = vmatprep.subr.bf16.mxu0 %v2215
  %3335 = vmatpush2.bf16.msra.mxu0 %v2214
  %3336 = vmatprep.subr.bf16.mxu0 %v2207
  %3337 = vmatpush2.bf16.msra.mxu0 %v2206
  %3338 = vmatprep.subr.bf16.mxu0 %v2199
  %3339 = vmatpush2.bf16.msra.mxu0 %v2198
  %3340 = vmatprep.subr.bf16.mxu0 %v2191
  %3341 = vmatpush2.bf16.msra.mxu0 %v2190
  %3342 = vmatprep.mubr.bf16.mxu0 %v1023
  %3343 = vmatmul.mubr.bf16.gmra.mxu0 %v1022
  %v3344 = vpop.f32.mrf.mxu0
  %v3345 = vadd.f32 %v1339, %v3344
  %v3346 = vpop.f32.mrf.mxu0
  %v3347 = vadd.f32 %v1343, %v3346
  %v3348 = vpop.f32.mrf.mxu0
  %v3349 = vadd.f32 %v1339, %v3348
  %v3350 = vpop.f32.mrf.mxu0
  %v3351 = vadd.f32 %v1343, %v3350
  %3352 = vmatprep.mubr.bf16.mxu0 %v1027
  %3353 = vmatmul.mubr.bf16.gmra.mxu0 %v1026
  %v3354 = vpop.f32.mrf.mxu0
  %v3355 = vadd.f32 %v1339, %v3354
  %v3356 = vpop.f32.mrf.mxu0
  %v3357 = vadd.f32 %v1343, %v3356
  %v3358 = vpop.f32.mrf.mxu0
  %v3359 = vadd.f32 %v1339, %v3358
  %v3360 = vpop.f32.mrf.mxu0
  %v3361 = vadd.f32 %v1343, %v3360
  %3362 = vmatprep.mubr.bf16.mxu0 %v1031
  %3363 = vmatmul.mubr.bf16.gmra.mxu0 %v1030
  %v3364 = vpop.f32.mrf.mxu0
  %v3365 = vadd.f32 %v1339, %v3364
  %v3366 = vpop.f32.mrf.mxu0
  %v3367 = vadd.f32 %v1343, %v3366
  %v3368 = vpop.f32.mrf.mxu0
  %v3369 = vadd.f32 %v1339, %v3368
  %v3370 = vpop.f32.mrf.mxu0
  %v3371 = vadd.f32 %v1343, %v3370
  %3372 = vmatprep.mubr.bf16.mxu0 %v1035
  %3373 = vmatmul.mubr.bf16.gmra.mxu0 %v1034
  %v3374 = vpop.f32.mrf.mxu0
  %v3375 = vadd.f32 %v1339, %v3374
  %v3376 = vpop.f32.mrf.mxu0
  %v3377 = vadd.f32 %v1343, %v3376
  %v3378 = vpop.f32.mrf.mxu0
  %v3379 = vadd.f32 %v1339, %v3378
  %v3380 = vpop.f32.mrf.mxu0
  %v3381 = vadd.f32 %v1343, %v3380
  %3382 = vmatprep.mubr.bf16.mxu0 %v1039
  %3383 = vmatmul.mubr.bf16.gmra.mxu0 %v1038
  %v3384 = vpop.f32.mrf.mxu0
  %v3385 = vadd.f32 %v1339, %v3384
  %v3386 = vpop.f32.mrf.mxu0
  %v3387 = vadd.f32 %v1343, %v3386
  %v3388 = vpop.f32.mrf.mxu0
  %v3389 = vadd.f32 %v1339, %v3388
  %v3390 = vpop.f32.mrf.mxu0
  %v3391 = vadd.f32 %v1343, %v3390
  %3392 = vmatprep.mubr.bf16.mxu0 %v1043
  %3393 = vmatmul.mubr.bf16.gmra.mxu0 %v1042
  %v3394 = vpop.f32.mrf.mxu0
  %v3395 = vadd.f32 %v1339, %v3394
  %v3396 = vpop.f32.mrf.mxu0
  %v3397 = vadd.f32 %v1343, %v3396
  %v3398 = vpop.f32.mrf.mxu0
  %v3399 = vadd.f32 %v1339, %v3398
  %v3400 = vpop.f32.mrf.mxu0
  %v3401 = vadd.f32 %v1343, %v3400
  %3402 = vmatprep.mubr.bf16.mxu0 %v1047
  %3403 = vmatmul.mubr.bf16.gmra.mxu0 %v1046
  %v3404 = vpop.f32.mrf.mxu0
  %v3405 = vadd.f32 %v1339, %v3404
  %v3406 = vpop.f32.mrf.mxu0
  %v3407 = vadd.f32 %v1343, %v3406
  %v3408 = vpop.f32.mrf.mxu0
  %v3409 = vadd.f32 %v1339, %v3408
  %v3410 = vpop.f32.mrf.mxu0
  %v3411 = vadd.f32 %v1343, %v3410
  %3412 = vmatprep.mubr.bf16.mxu0 %v1051
  %3413 = vmatmul.mubr.bf16.gmra.mxu0 %v1050
  %v3414 = vpop.f32.mrf.mxu0
  %v3415 = vadd.f32 %v1339, %v3414
  %v3416 = vpop.f32.mrf.mxu0
  %v3417 = vadd.f32 %v1343, %v3416
  %v3418 = vpop.f32.mrf.mxu0
  %v3419 = vadd.f32 %v1339, %v3418
  %v3420 = vpop.f32.mrf.mxu0
  %v3421 = vadd.f32 %v1343, %v3420
  %3422 = vdwg.mxu0
  %3423 = vmatprep.subr.bf16.mxu0 %v2311
  %3424 = vmatpush1.bf16.msra.mxu0 %v2310
  %3425 = vmatprep.subr.bf16.mxu0 %v2303
  %3426 = vmatpush1.bf16.msra.mxu0 %v2302
  %3427 = vmatprep.subr.bf16.mxu0 %v2295
  %3428 = vmatpush1.bf16.msra.mxu0 %v2294
  %3429 = vmatprep.subr.bf16.mxu0 %v2287
  %3430 = vmatpush1.bf16.msra.mxu0 %v2286
  %3431 = vmatprep.subr.bf16.mxu0 %v2279
  %3432 = vmatpush1.bf16.msra.mxu0 %v2278
  %3433 = vmatprep.subr.bf16.mxu0 %v2271
  %3434 = vmatpush1.bf16.msra.mxu0 %v2270
  %3435 = vmatprep.subr.bf16.mxu0 %v2263
  %3436 = vmatpush1.bf16.msra.mxu0 %v2262
  %3437 = vmatprep.subr.bf16.mxu0 %v2255
  %3438 = vmatpush1.bf16.msra.mxu0 %v2254
  %3439 = vmatprep.subr.bf16.mxu0 %v2375
  %3440 = vmatpush2.bf16.msra.mxu0 %v2374
  %3441 = vmatprep.subr.bf16.mxu0 %v2367
  %3442 = vmatpush2.bf16.msra.mxu0 %v2366
  %3443 = vmatprep.subr.bf16.mxu0 %v2359
  %3444 = vmatpush2.bf16.msra.mxu0 %v2358
  %3445 = vmatprep.subr.bf16.mxu0 %v2351
  %3446 = vmatpush2.bf16.msra.mxu0 %v2350
  %3447 = vmatprep.subr.bf16.mxu0 %v2343
  %3448 = vmatpush2.bf16.msra.mxu0 %v2342
  %3449 = vmatprep.subr.bf16.mxu0 %v2335
  %3450 = vmatpush2.bf16.msra.mxu0 %v2334
  %3451 = vmatprep.subr.bf16.mxu0 %v2327
  %3452 = vmatpush2.bf16.msra.mxu0 %v2326
  %3453 = vmatprep.subr.bf16.mxu0 %v2319
  %3454 = vmatpush2.bf16.msra.mxu0 %v2318
  %3455 = vmatprep.mubr.bf16.mxu0 %v1025
  %3456 = vmatmul.mubr.bf16.gmra.mxu0 %v1024
  %v3457 = vpop.f32.mrf.mxu0
  %v3458 = vadd.f32 %v3345, %v3457
  %v3459 = vpop.f32.mrf.mxu0
  %v3460 = vadd.f32 %v3347, %v3459
  %v3461 = vpop.f32.mrf.mxu0
  %v3462 = vadd.f32 %v3349, %v3461
  %v3463 = vpop.f32.mrf.mxu0
  %v3464 = vadd.f32 %v3351, %v3463
  %3465 = vmatprep.mubr.bf16.mxu0 %v1029
  %3466 = vmatmul.mubr.bf16.gmra.mxu0 %v1028
  %v3467 = vpop.f32.mrf.mxu0
  %v3468 = vadd.f32 %v3355, %v3467
  %v3469 = vpop.f32.mrf.mxu0
  %v3470 = vadd.f32 %v3357, %v3469
  %v3471 = vpop.f32.mrf.mxu0
  %v3472 = vadd.f32 %v3359, %v3471
  %v3473 = vpop.f32.mrf.mxu0
  %v3474 = vadd.f32 %v3361, %v3473
  %3475 = vmatprep.mubr.bf16.mxu0 %v1033
  %3476 = vmatmul.mubr.bf16.gmra.mxu0 %v1032
  %v3477 = vpop.f32.mrf.mxu0
  %v3478 = vadd.f32 %v3365, %v3477
  %v3479 = vpop.f32.mrf.mxu0
  %v3480 = vadd.f32 %v3367, %v3479
  %v3481 = vpop.f32.mrf.mxu0
  %v3482 = vadd.f32 %v3369, %v3481
  %v3483 = vpop.f32.mrf.mxu0
  %v3484 = vadd.f32 %v3371, %v3483
  %3485 = vmatprep.mubr.bf16.mxu0 %v1037
  %3486 = vmatmul.mubr.bf16.gmra.mxu0 %v1036
  %v3487 = vpop.f32.mrf.mxu0
  %v3488 = vadd.f32 %v3375, %v3487
  %v3489 = vpop.f32.mrf.mxu0
  %v3490 = vadd.f32 %v3377, %v3489
  %v3491 = vpop.f32.mrf.mxu0
  %v3492 = vadd.f32 %v3379, %v3491
  %v3493 = vpop.f32.mrf.mxu0
  %v3494 = vadd.f32 %v3381, %v3493
  %3495 = vmatprep.mubr.bf16.mxu0 %v1041
  %3496 = vmatmul.mubr.bf16.gmra.mxu0 %v1040
  %v3497 = vpop.f32.mrf.mxu0
  %v3498 = vadd.f32 %v3385, %v3497
  %v3499 = vpop.f32.mrf.mxu0
  %v3500 = vadd.f32 %v3387, %v3499
  %v3501 = vpop.f32.mrf.mxu0
  %v3502 = vadd.f32 %v3389, %v3501
  %v3503 = vpop.f32.mrf.mxu0
  %v3504 = vadd.f32 %v3391, %v3503
  %3505 = vmatprep.mubr.bf16.mxu0 %v1045
  %3506 = vmatmul.mubr.bf16.gmra.mxu0 %v1044
  %v3507 = vpop.f32.mrf.mxu0
  %v3508 = vadd.f32 %v3395, %v3507
  %v3509 = vpop.f32.mrf.mxu0
  %v3510 = vadd.f32 %v3397, %v3509
  %v3511 = vpop.f32.mrf.mxu0
  %v3512 = vadd.f32 %v3399, %v3511
  %v3513 = vpop.f32.mrf.mxu0
  %v3514 = vadd.f32 %v3401, %v3513
  %3515 = vmatprep.mubr.bf16.mxu0 %v1049
  %3516 = vmatmul.mubr.bf16.gmra.mxu0 %v1048
  %v3517 = vpop.f32.mrf.mxu0
  %v3518 = vadd.f32 %v3405, %v3517
  %v3519 = vpop.f32.mrf.mxu0
  %v3520 = vadd.f32 %v3407, %v3519
  %v3521 = vpop.f32.mrf.mxu0
  %v3522 = vadd.f32 %v3409, %v3521
  %v3523 = vpop.f32.mrf.mxu0
  %v3524 = vadd.f32 %v3411, %v3523
  %3525 = vmatprep.mubr.bf16.mxu0 %v1053
  %3526 = vmatmul.mubr.bf16.gmra.mxu0 %v1052
  %v3527 = vpop.f32.mrf.mxu0
  %v3528 = vadd.f32 %v3415, %v3527
  %v3529 = vpop.f32.mrf.mxu0
  %v3530 = vadd.f32 %v3417, %v3529
  %v3531 = vpop.f32.mrf.mxu0
  %v3532 = vadd.f32 %v3419, %v3531
  %v3533 = vpop.f32.mrf.mxu0
  %v3534 = vadd.f32 %v3421, %v3533
  %3535 = vdwg.mxu0
  %v3536 = vmax.f32 %v2780, 0.0
  %v3537 = vmax.f32 %v2782, 0.0
  %v3538 = vmax.f32 %v3006, 0.0
  %v3539 = vmax.f32 %v3008, 0.0
  %v3540 = vmax.f32 %v3232, 0.0
  %v3541 = vmax.f32 %v3234, 0.0
  %v3542 = vmax.f32 %v3458, 0.0
  %v3543 = vmax.f32 %v3460, 0.0
  %v3544 = vmax.f32 %v2784, 0.0
  %v3545 = vmax.f32 %v2786, 0.0
  %v3546 = vmax.f32 %v3010, 0.0
  %v3547 = vmax.f32 %v3012, 0.0
  %v3548 = vmax.f32 %v3236, 0.0
  %v3549 = vmax.f32 %v3238, 0.0
  %v3550 = vmax.f32 %v3462, 0.0
  %v3551 = vmax.f32 %v3464, 0.0
  %v3552 = vmax.f32 %v2790, 0.0
  %v3553 = vmax.f32 %v2792, 0.0
  %v3554 = vmax.f32 %v3016, 0.0
  %v3555 = vmax.f32 %v3018, 0.0
  %v3556 = vmax.f32 %v3242, 0.0
  %v3557 = vmax.f32 %v3244, 0.0
  %v3558 = vmax.f32 %v3468, 0.0
  %v3559 = vmax.f32 %v3470, 0.0
  %v3560 = vmax.f32 %v2794, 0.0
  %v3561 = vmax.f32 %v2796, 0.0
  %v3562 = vmax.f32 %v3020, 0.0
  %v3563 = vmax.f32 %v3022, 0.0
  %v3564 = vmax.f32 %v3246, 0.0
  %v3565 = vmax.f32 %v3248, 0.0
  %v3566 = vmax.f32 %v3472, 0.0
  %v3567 = vmax.f32 %v3474, 0.0
  %v3568 = vmax.f32 %v2800, 0.0
  %v3569 = vmax.f32 %v2802, 0.0
  %v3570 = vmax.f32 %v3026, 0.0
  %v3571 = vmax.f32 %v3028, 0.0
  %v3572 = vmax.f32 %v3252, 0.0
  %v3573 = vmax.f32 %v3254, 0.0
  %v3574 = vmax.f32 %v3478, 0.0
  %v3575 = vmax.f32 %v3480, 0.0
  %v3576 = vmax.f32 %v2804, 0.0
  %v3577 = vmax.f32 %v2806, 0.0
  %v3578 = vmax.f32 %v3030, 0.0
  %v3579 = vmax.f32 %v3032, 0.0
  %v3580 = vmax.f32 %v3256, 0.0
  %v3581 = vmax.f32 %v3258, 0.0
  %v3582 = vmax.f32 %v3482, 0.0
  %v3583 = vmax.f32 %v3484, 0.0
  %v3584 = vmax.f32 %v2810, 0.0
  %v3585 = vmax.f32 %v2812, 0.0
  %v3586 = vmax.f32 %v3036, 0.0
  %v3587 = vmax.f32 %v3038, 0.0
  %v3588 = vmax.f32 %v3262, 0.0
  %v3589 = vmax.f32 %v3264, 0.0
  %v3590 = vmax.f32 %v3488, 0.0
  %v3591 = vmax.f32 %v3490, 0.0
  %v3592 = vmax.f32 %v2814, 0.0
  %v3593 = vmax.f32 %v2816, 0.0
  %v3594 = vmax.f32 %v3040, 0.0
  %v3595 = vmax.f32 %v3042, 0.0
  %v3596 = vmax.f32 %v3266, 0.0
  %v3597 = vmax.f32 %v3268, 0.0
  %v3598 = vmax.f32 %v3492, 0.0
  %v3599 = vmax.f32 %v3494, 0.0
  %v3600 = vmax.f32 %v2820, 0.0
  %v3601 = vmax.f32 %v2822, 0.0
  %v3602 = vmax.f32 %v3046, 0.0
  %v3603 = vmax.f32 %v3048, 0.0
  %v3604 = vmax.f32 %v3272, 0.0
  %v3605 = vmax.f32 %v3274, 0.0
  %v3606 = vmax.f32 %v3498, 0.0
  %v3607 = vmax.f32 %v3500, 0.0
  %v3608 = vmax.f32 %v2824, 0.0
  %v3609 = vmax.f32 %v2826, 0.0
  %v3610 = vmax.f32 %v3050, 0.0
  %v3611 = vmax.f32 %v3052, 0.0
  %v3612 = vmax.f32 %v3276, 0.0
  %v3613 = vmax.f32 %v3278, 0.0
  %v3614 = vmax.f32 %v3502, 0.0
  %v3615 = vmax.f32 %v3504, 0.0
  %v3616 = vmax.f32 %v2830, 0.0
  %v3617 = vmax.f32 %v2832, 0.0
  %v3618 = vmax.f32 %v3056, 0.0
  %v3619 = vmax.f32 %v3058, 0.0
  %v3620 = vmax.f32 %v3282, 0.0
  %v3621 = vmax.f32 %v3284, 0.0
  %v3622 = vmax.f32 %v3508, 0.0
  %v3623 = vmax.f32 %v3510, 0.0
  %v3624 = vmax.f32 %v2834, 0.0
  %v3625 = vmax.f32 %v2836, 0.0
  %v3626 = vmax.f32 %v3060, 0.0
  %v3627 = vmax.f32 %v3062, 0.0
  %v3628 = vmax.f32 %v3286, 0.0
  %v3629 = vmax.f32 %v3288, 0.0
  %v3630 = vmax.f32 %v3512, 0.0
  %v3631 = vmax.f32 %v3514, 0.0
  %v3632 = vmax.f32 %v2840, 0.0
  %v3633 = vmax.f32 %v2842, 0.0
  %v3634 = vmax.f32 %v3066, 0.0
  %v3635 = vmax.f32 %v3068, 0.0
  %v3636 = vmax.f32 %v3292, 0.0
  %v3637 = vmax.f32 %v3294, 0.0
  %v3638 = vmax.f32 %v3518, 0.0
  %v3639 = vmax.f32 %v3520, 0.0
  %v3640 = vmax.f32 %v2844, 0.0
  %v3641 = vmax.f32 %v2846, 0.0
  %v3642 = vmax.f32 %v3070, 0.0
  %v3643 = vmax.f32 %v3072, 0.0
  %v3644 = vmax.f32 %v3296, 0.0
  %v3645 = vmax.f32 %v3298, 0.0
  %v3646 = vmax.f32 %v3522, 0.0
  %v3647 = vmax.f32 %v3524, 0.0
  %v3648 = vmax.f32 %v2850, 0.0
  %v3649 = vmax.f32 %v2852, 0.0
  %v3650 = vmax.f32 %v3076, 0.0
  %v3651 = vmax.f32 %v3078, 0.0
  %v3652 = vmax.f32 %v3302, 0.0
  %v3653 = vmax.f32 %v3304, 0.0
  %v3654 = vmax.f32 %v3528, 0.0
  %v3655 = vmax.f32 %v3530, 0.0
  %v3656 = vmax.f32 %v2854, 0.0
  %v3657 = vmax.f32 %v2856, 0.0
  %v3658 = vmax.f32 %v3080, 0.0
  %v3659 = vmax.f32 %v3082, 0.0
  %v3660 = vmax.f32 %v3306, 0.0
  %v3661 = vmax.f32 %v3308, 0.0
  %v3662 = vmax.f32 %v3532, 0.0
  %v3663 = vmax.f32 %v3534, 0.0
  %v3664 = vpack.c.bf16 %v3544, %v3536
  %v3665 = vpack.c.bf16 %v3545, %v3537
  %v3666 = vpack.c.bf16 %v3546, %v3538
  %v3667 = vpack.c.bf16 %v3547, %v3539
  %v3668 = vpack.c.bf16 %v3548, %v3540
  %v3669 = vpack.c.bf16 %v3549, %v3541
  %v3670 = vpack.c.bf16 %v3550, %v3542
  %v3671 = vpack.c.bf16 %v3551, %v3543
  %v3672 = vpack.c.bf16 %v3560, %v3552
  %v3673 = vpack.c.bf16 %v3561, %v3553
  %v3674 = vpack.c.bf16 %v3562, %v3554
  %v3675 = vpack.c.bf16 %v3563, %v3555
  %v3676 = vpack.c.bf16 %v3564, %v3556
  %v3677 = vpack.c.bf16 %v3565, %v3557
  %v3678 = vpack.c.bf16 %v3566, %v3558
  %v3679 = vpack.c.bf16 %v3567, %v3559
  %v3680 = vpack.c.bf16 %v3576, %v3568
  %v3681 = vpack.c.bf16 %v3577, %v3569
  %v3682 = vpack.c.bf16 %v3578, %v3570
  %v3683 = vpack.c.bf16 %v3579, %v3571
  %v3684 = vpack.c.bf16 %v3580, %v3572
  %v3685 = vpack.c.bf16 %v3581, %v3573
  %v3686 = vpack.c.bf16 %v3582, %v3574
  %v3687 = vpack.c.bf16 %v3583, %v3575
  %v3688 = vpack.c.bf16 %v3592, %v3584
  %v3689 = vpack.c.bf16 %v3593, %v3585
  %v3690 = vpack.c.bf16 %v3594, %v3586
  %v3691 = vpack.c.bf16 %v3595, %v3587
  %v3692 = vpack.c.bf16 %v3596, %v3588
  %v3693 = vpack.c.bf16 %v3597, %v3589
  %v3694 = vpack.c.bf16 %v3598, %v3590
  %v3695 = vpack.c.bf16 %v3599, %v3591
  %v3696 = vpack.c.bf16 %v3608, %v3600
  %v3697 = vpack.c.bf16 %v3609, %v3601
  %v3698 = vpack.c.bf16 %v3610, %v3602
  %v3699 = vpack.c.bf16 %v3611, %v3603
  %v3700 = vpack.c.bf16 %v3612, %v3604
  %v3701 = vpack.c.bf16 %v3613, %v3605
  %v3702 = vpack.c.bf16 %v3614, %v3606
  %v3703 = vpack.c.bf16 %v3615, %v3607
  %v3704 = vpack.c.bf16 %v3624, %v3616
  %v3705 = vpack.c.bf16 %v3625, %v3617
  %v3706 = vpack.c.bf16 %v3626, %v3618
  %v3707 = vpack.c.bf16 %v3627, %v3619
  %v3708 = vpack.c.bf16 %v3628, %v3620
  %v3709 = vpack.c.bf16 %v3629, %v3621
  %v3710 = vpack.c.bf16 %v3630, %v3622
  %v3711 = vpack.c.bf16 %v3631, %v3623
  %v3712 = vpack.c.bf16 %v3640, %v3632
  %v3713 = vpack.c.bf16 %v3641, %v3633
  %v3714 = vpack.c.bf16 %v3642, %v3634
  %v3715 = vpack.c.bf16 %v3643, %v3635
  %v3716 = vpack.c.bf16 %v3644, %v3636
  %v3717 = vpack.c.bf16 %v3645, %v3637
  %v3718 = vpack.c.bf16 %v3646, %v3638
  %v3719 = vpack.c.bf16 %v3647, %v3639
  %v3720 = vpack.c.bf16 %v3656, %v3648
  %v3721 = vpack.c.bf16 %v3657, %v3649
  %v3722 = vpack.c.bf16 %v3658, %v3650
  %v3723 = vpack.c.bf16 %v3659, %v3651
  %v3724 = vpack.c.bf16 %v3660, %v3652
  %v3725 = vpack.c.bf16 %v3661, %v3653
  %v3726 = vpack.c.bf16 %v3662, %v3654
  %v3727 = vpack.c.bf16 %v3663, %v3655
  %v3728 = vld [vmem:[%s7] sm:$0xff]
  %v3729 = vld [vmem:[%s7 + $0x8] sm:$0xff]
  %v3730 = vld [vmem:[%s7 + $0x10] sm:$0xff]
  %v3731 = vld [vmem:[%s7 + $0x18] sm:$0xf]
  %v3732 = vld [vmem:[%s7 + $0x1c] sm:$0xff]
  %v3733 = vld [vmem:[%s7 + $0x24] sm:$0xff]
  %v3734 = vld [vmem:[%s7 + $0x2c] sm:$0xff]
  %v3735 = vld [vmem:[%s7 + $0x34] sm:$0xf]
  %v3736 = vld [vmem:[%s7 + $0x38] sm:$0xff]
  %v3737 = vld [vmem:[%s7 + $0x40] sm:$0xff]
  %v3738 = vld [vmem:[%s7 + $0x48] sm:$0xff]
  %v3739 = vld [vmem:[%s7 + $0x50] sm:$0xf]
  %v3740 = vld [vmem:[%s7 + $0x54] sm:$0xff]
  %v3741 = vld [vmem:[%s7 + $0x5c] sm:$0xff]
  %v3742 = vld [vmem:[%s7 + $0x64] sm:$0xff]
  %v3743 = vld [vmem:[%s7 + $0x6c] sm:$0xf]
  %v3744 = vld [vmem:[%s7 + $0x70] sm:$0xff]
  %v3745 = vld [vmem:[%s7 + $0x78] sm:$0xff]
  %v3746 = vld [vmem:[%s7 + $0x80] sm:$0xff]
  %v3747 = vld [vmem:[%s7 + $0x88] sm:$0xf]
  %v3748 = vld [vmem:[%s7 + $0x8c] sm:$0xff]
  %v3749 = vld [vmem:[%s7 + $0x94] sm:$0xff]
  %v3750 = vld [vmem:[%s7 + $0x9c] sm:$0xff]
  %v3751 = vld [vmem:[%s7 + $0xa4] sm:$0xf]
  %v3752 = vld [vmem:[%s7 + $0xa8] sm:$0xff]
  %v3753 = vld [vmem:[%s7 + $0xb0] sm:$0xff]
  %v3754 = vld [vmem:[%s7 + $0xb8] sm:$0xff]
  %v3755 = vld [vmem:[%s7 + $0xc0] sm:$0xf]
  %v3756 = vld [vmem:[%s7 + $0xc4] sm:$0xff]
  %v3757 = vld [vmem:[%s7 + $0xcc] sm:$0xff]
  %v3758 = vld [vmem:[%s7 + $0xd4] sm:$0xff]
  %v3759 = vld [vmem:[%s7 + $0xdc] sm:$0xf]
  %v3760 = vld [vmem:[%s7 + $0xe0] sm:$0xff]
  %v3761 = vld [vmem:[%s7 + $0xe8] sm:$0xff]
  %v3762 = vld [vmem:[%s7 + $0xf0] sm:$0xff]
  %v3763 = vld [vmem:[%s7 + $0xf8] sm:$0xf]
  %v3764 = vld [vmem:[%s7 + $0xfc] sm:$0xff]
  %v3765 = vld [vmem:[%s7 + $0x104] sm:$0xff]
  %v3766 = vld [vmem:[%s7 + $0x10c] sm:$0xff]
  %v3767 = vld [vmem:[%s7 + $0x114] sm:$0xf]
  %v3768 = vld [vmem:[%s7 + $0x118] sm:$0xff]
  %v3769 = vld [vmem:[%s7 + $0x120] sm:$0xff]
  %v3770 = vld [vmem:[%s7 + $0x128] sm:$0xff]
  %v3771 = vld [vmem:[%s7 + $0x130] sm:$0xf]
  %v3772 = vld [vmem:[%s7 + $0x134] sm:$0xff]
  %v3773 = vld [vmem:[%s7 + $0x13c] sm:$0xff]
  %v3774 = vld [vmem:[%s7 + $0x144] sm:$0xff]
  %v3775 = vld [vmem:[%s7 + $0x14c] sm:$0xf]
  %v3776 = vld [vmem:[%s7 + $0x150] sm:$0xff]
  %v3777 = vld [vmem:[%s7 + $0x158] sm:$0xff]
  %v3778 = vld [vmem:[%s7 + $0x160] sm:$0xff]
  %v3779 = vld [vmem:[%s7 + $0x168] sm:$0xf]
  %v3780 = vld [vmem:[%s7 + $0x16c] sm:$0xff]
  %v3781 = vld [vmem:[%s7 + $0x174] sm:$0xff]
  %v3782 = vld [vmem:[%s7 + $0x17c] sm:$0xff]
  %v3783 = vld [vmem:[%s7 + $0x184] sm:$0xf]
  %v3784 = vld [vmem:[%s7 + $0x188] sm:$0xff]
  %v3785 = vld [vmem:[%s7 + $0x190] sm:$0xff]
  %v3786 = vld [vmem:[%s7 + $0x198] sm:$0xff]
  %v3787 = vld [vmem:[%s7 + $0x1a0] sm:$0xf]
  %v3788 = vld [vmem:[%s7 + $0x1a4] sm:$0xff]
  %v3789 = vld [vmem:[%s7 + $0x1ac] sm:$0xff]
  %v3790 = vld [vmem:[%s7 + $0x1b4] sm:$0xff]
  %v3791 = vld [vmem:[%s7 + $0x1bc] sm:$0xf]
  %v3792 = vld [vmem:[%s7 + $0x1c0] sm:$0xff]
  %v3793 = vld [vmem:[%s7 + $0x1c8] sm:$0xff]
  %v3794 = vld [vmem:[%s7 + $0x1d0] sm:$0xff]
  %v3795 = vld [vmem:[%s7 + $0x1d8] sm:$0xf]
  %v3796 = vld [vmem:[%s7 + $0x1dc] sm:$0xff]
  %v3797 = vld [vmem:[%s7 + $0x1e4] sm:$0xff]
  %v3798 = vld [vmem:[%s7 + $0x1ec] sm:$0xff]
  %v3799 = vld [vmem:[%s7 + $0x1f4] sm:$0xf]
  %v3800 = vld [vmem:[%s7 + $0x1f8] sm:$0xff]
  %v3801 = vld [vmem:[%s7 + $0x200] sm:$0xff]
  %v3802 = vld [vmem:[%s7 + $0x208] sm:$0xff]
  %v3803 = vld [vmem:[%s7 + $0x210] sm:$0xf]
  %v3804 = vld [vmem:[%s7 + $0x214] sm:$0xff]
  %v3805 = vld [vmem:[%s7 + $0x21c] sm:$0xff]
  %v3806 = vld [vmem:[%s7 + $0x224] sm:$0xff]
  %v3807 = vld [vmem:[%s7 + $0x22c] sm:$0xf]
  %v3808 = vld [vmem:[%s7 + $0x230] sm:$0xff]
  %v3809 = vld [vmem:[%s7 + $0x238] sm:$0xff]
  %v3810 = vld [vmem:[%s7 + $0x240] sm:$0xff]
  %v3811 = vld [vmem:[%s7 + $0x248] sm:$0xf]
  %v3812 = vld [vmem:[%s7 + $0x24c] sm:$0xff]
  %v3813 = vld [vmem:[%s7 + $0x254] sm:$0xff]
  %v3814 = vld [vmem:[%s7 + $0x25c] sm:$0xff]
  %v3815 = vld [vmem:[%s7 + $0x264] sm:$0xf]
  %v3816 = vld [vmem:[%s7 + $0x268] sm:$0xff]
  %v3817 = vld [vmem:[%s7 + $0x270] sm:$0xff]
  %v3818 = vld [vmem:[%s7 + $0x278] sm:$0xff]
  %v3819 = vld [vmem:[%s7 + $0x280] sm:$0xf]
  %v3820 = vld [vmem:[%s7 + $0x284] sm:$0xff]
  %v3821 = vld [vmem:[%s7 + $0x28c] sm:$0xff]
  %v3822 = vld [vmem:[%s7 + $0x294] sm:$0xff]
  %v3823 = vld [vmem:[%s7 + $0x29c] sm:$0xf]
  %v3824 = vld [vmem:[%s7 + $0x2a0] sm:$0xff]
  %v3825 = vld [vmem:[%s7 + $0x2a8] sm:$0xff]
  %v3826 = vld [vmem:[%s7 + $0x2b0] sm:$0xff]
  %v3827 = vld [vmem:[%s7 + $0x2b8] sm:$0xf]
  %v3828 = vld [vmem:[%s7 + $0x2bc] sm:$0xff]
  %v3829 = vld [vmem:[%s7 + $0x2c4] sm:$0xff]
  %v3830 = vld [vmem:[%s7 + $0x2cc] sm:$0xff]
  %v3831 = vld [vmem:[%s7 + $0x2d4] sm:$0xf]
  %v3832 = vld [vmem:[%s7 + $0x2d8] sm:$0xff]
  %v3833 = vld [vmem:[%s7 + $0x2e0] sm:$0xff]
  %v3834 = vld [vmem:[%s7 + $0x2e8] sm:$0xff]
  %v3835 = vld [vmem:[%s7 + $0x2f0] sm:$0xf]
  %v3836 = vld [vmem:[%s7 + $0x2f4] sm:$0xff]
  %v3837 = vld [vmem:[%s7 + $0x2fc] sm:$0xff]
  %v3838 = vld [vmem:[%s7 + $0x304] sm:$0xff]
  %v3839 = vld [vmem:[%s7 + $0x30c] sm:$0xf]
  %v3840 = vld [vmem:[%s7 + $0x310] sm:$0xff]
  %v3841 = vld [vmem:[%s7 + $0x318] sm:$0xff]
  %v3842 = vld [vmem:[%s7 + $0x320] sm:$0xff]
  %v3843 = vld [vmem:[%s7 + $0x328] sm:$0xf]
  %v3844 = vld [vmem:[%s7 + $0x32c] sm:$0xff]
  %v3845 = vld [vmem:[%s7 + $0x334] sm:$0xff]
  %v3846 = vld [vmem:[%s7 + $0x33c] sm:$0xff]
  %v3847 = vld [vmem:[%s7 + $0x344] sm:$0xf]
  %v3848 = vld [vmem:[%s7 + $0x348] sm:$0xff]
  %v3849 = vld [vmem:[%s7 + $0x350] sm:$0xff]
  %v3850 = vld [vmem:[%s7 + $0x358] sm:$0xff]
  %v3851 = vld [vmem:[%s7 + $0x360] sm:$0xf]
  %v3852 = vld [vmem:[%s7 + $0x364] sm:$0xff]
  %v3853 = vld [vmem:[%s7 + $0x36c] sm:$0xff]
  %v3854 = vld [vmem:[%s7 + $0x374] sm:$0xff]
  %v3855 = vld [vmem:[%s7 + $0x37c] sm:$0xf]
  %v3856 = vld [vmem:[%s7 + $0x380] sm:$0xff]
  %v3857 = vld [vmem:[%s7 + $0x388] sm:$0xff]
  %v3858 = vld [vmem:[%s7 + $0x390] sm:$0xff]
  %v3859 = vld [vmem:[%s7 + $0x398] sm:$0xf]
  %v3860 = vld [vmem:[%s7 + $0x39c] sm:$0xff]
  %v3861 = vld [vmem:[%s7 + $0x3a4] sm:$0xff]
  %v3862 = vld [vmem:[%s7 + $0x3ac] sm:$0xff]
  %v3863 = vld [vmem:[%s7 + $0x3b4] sm:$0xf]
  %v3864 = vld [vmem:[%s7 + $0x3b8] sm:$0xff]
  %v3865 = vld [vmem:[%s7 + $0x3c0] sm:$0xff]
  %v3866 = vld [vmem:[%s7 + $0x3c8] sm:$0xff]
  %v3867 = vld [vmem:[%s7 + $0x3d0] sm:$0xf]
  %v3868 = vld [vmem:[%s7 + $0x3d4] sm:$0xff]
  %v3869 = vld [vmem:[%s7 + $0x3dc] sm:$0xff]
  %v3870 = vld [vmem:[%s7 + $0x3e4] sm:$0xff]
  %v3871 = vld [vmem:[%s7 + $0x3ec] sm:$0xf]
  %v3872 = vld [vmem:[%s7 + $0x3f0] sm:$0xff]
  %v3873 = vld [vmem:[%s7 + $0x3f8] sm:$0xff]
  %v3874 = vld [vmem:[%s7 + $0x400] sm:$0xff]
  %v3875 = vld [vmem:[%s7 + $0x408] sm:$0xf]
  %v3876 = vld [vmem:[%s7 + $0x40c] sm:$0xff]
  %v3877 = vld [vmem:[%s7 + $0x414] sm:$0xff]
  %v3878 = vld [vmem:[%s7 + $0x41c] sm:$0xff]
  %v3879 = vld [vmem:[%s7 + $0x424] sm:$0xf]
  %v3880 = vld [vmem:[%s7 + $0x428] sm:$0xff]
  %v3881 = vld [vmem:[%s7 + $0x430] sm:$0xff]
  %v3882 = vld [vmem:[%s7 + $0x438] sm:$0xff]
  %v3883 = vld [vmem:[%s7 + $0x440] sm:$0xf]
  %v3884 = vld [vmem:[%s7 + $0x444] sm:$0xff]
  %v3885 = vld [vmem:[%s7 + $0x44c] sm:$0xff]
  %v3886 = vld [vmem:[%s7 + $0x454] sm:$0xff]
  %v3887 = vld [vmem:[%s7 + $0x45c] sm:$0xf]
  %v3888 = vld [vmem:[%s7 + $0x460] sm:$0xff]
  %v3889 = vld [vmem:[%s7 + $0x468] sm:$0xff]
  %v3890 = vld [vmem:[%s7 + $0x470] sm:$0xff]
  %v3891 = vld [vmem:[%s7 + $0x478] sm:$0xf]
  %v3892 = vld [vmem:[%s7 + $0x47c] sm:$0xff]
  %v3893 = vld [vmem:[%s7 + $0x484] sm:$0xff]
  %v3894 = vld [vmem:[%s7 + $0x48c] sm:$0xff]
  %v3895 = vld [vmem:[%s7 + $0x494] sm:$0xf]
  %v3896 = vld [vmem:[%s7 + $0x498] sm:$0xff]
  %v3897 = vld [vmem:[%s7 + $0x4a0] sm:$0xff]
  %v3898 = vld [vmem:[%s7 + $0x4a8] sm:$0xff]
  %v3899 = vld [vmem:[%s7 + $0x4b0] sm:$0xf]
  %v3900 = vld [vmem:[%s7 + $0x4b4] sm:$0xff]
  %v3901 = vld [vmem:[%s7 + $0x4bc] sm:$0xff]
  %v3902 = vld [vmem:[%s7 + $0x4c4] sm:$0xff]
  %v3903 = vld [vmem:[%s7 + $0x4cc] sm:$0xf]
  %v3904 = vld [vmem:[%s7 + $0x4d0] sm:$0xff]
  %v3905 = vld [vmem:[%s7 + $0x4d8] sm:$0xff]
  %v3906 = vld [vmem:[%s7 + $0x4e0] sm:$0xff]
  %v3907 = vld [vmem:[%s7 + $0x4e8] sm:$0xf]
  %v3908 = vld [vmem:[%s7 + $0x4ec] sm:$0xff]
  %v3909 = vld [vmem:[%s7 + $0x4f4] sm:$0xff]
  %v3910 = vld [vmem:[%s7 + $0x4fc] sm:$0xff]
  %v3911 = vld [vmem:[%s7 + $0x504] sm:$0xf]
  %v3912 = vld [vmem:[%s7 + $0x508] sm:$0xff]
  %v3913 = vld [vmem:[%s7 + $0x510] sm:$0xff]
  %v3914 = vld [vmem:[%s7 + $0x518] sm:$0xff]
  %v3915 = vld [vmem:[%s7 + $0x520] sm:$0xf]
  %v3916 = vld [vmem:[%s7 + $0x524] sm:$0xff]
  %v3917 = vld [vmem:[%s7 + $0x52c] sm:$0xff]
  %v3918 = vld [vmem:[%s7 + $0x534] sm:$0xff]
  %v3919 = vld [vmem:[%s7 + $0x53c] sm:$0xf]
  %v3920 = vld [vmem:[%s7 + $0x540] sm:$0xff]
  %v3921 = vld [vmem:[%s7 + $0x548] sm:$0xff]
  %v3922 = vld [vmem:[%s7 + $0x550] sm:$0xff]
  %v3923 = vld [vmem:[%s7 + $0x558] sm:$0xf]
  %v3924 = vld [vmem:[%s7 + $0x55c] sm:$0xff]
  %v3925 = vld [vmem:[%s7 + $0x564] sm:$0xff]
  %v3926 = vld [vmem:[%s7 + $0x56c] sm:$0xff]
  %v3927 = vld [vmem:[%s7 + $0x574] sm:$0xf]
  %v3928 = vld [vmem:[%s7 + $0x578] sm:$0xff]
  %v3929 = vld [vmem:[%s7 + $0x580] sm:$0xff]
  %v3930 = vld [vmem:[%s7 + $0x588] sm:$0xff]
  %v3931 = vld [vmem:[%s7 + $0x590] sm:$0xf]
  %v3932 = vld [vmem:[%s7 + $0x594] sm:$0xff]
  %v3933 = vld [vmem:[%s7 + $0x59c] sm:$0xff]
  %v3934 = vld [vmem:[%s7 + $0x5a4] sm:$0xff]
  %v3935 = vld [vmem:[%s7 + $0x5ac] sm:$0xf]
  %v3936 = vld [vmem:[%s7 + $0x5b0] sm:$0xff]
  %v3937 = vld [vmem:[%s7 + $0x5b8] sm:$0xff]
  %v3938 = vld [vmem:[%s7 + $0x5c0] sm:$0xff]
  %v3939 = vld [vmem:[%s7 + $0x5c8] sm:$0xf]
  %v3940 = vld [vmem:[%s7 + $0x5cc] sm:$0xff]
  %v3941 = vld [vmem:[%s7 + $0x5d4] sm:$0xff]
  %v3942 = vld [vmem:[%s7 + $0x5dc] sm:$0xff]
  %v3943 = vld [vmem:[%s7 + $0x5e4] sm:$0xf]
  %v3944 = vld [vmem:[%s7 + $0x5e8] sm:$0xff]
  %v3945 = vld [vmem:[%s7 + $0x5f0] sm:$0xff]
  %v3946 = vld [vmem:[%s7 + $0x5f8] sm:$0xff]
  %v3947 = vld [vmem:[%s7 + $0x600] sm:$0xf]
  %v3948 = vld [vmem:[%s7 + $0x604] sm:$0xff]
  %v3949 = vld [vmem:[%s7 + $0x60c] sm:$0xff]
  %v3950 = vld [vmem:[%s7 + $0x614] sm:$0xff]
  %v3951 = vld [vmem:[%s7 + $0x61c] sm:$0xf]
  %v3952 = vld [vmem:[%s7 + $0x620] sm:$0xff]
  %v3953 = vld [vmem:[%s7 + $0x628] sm:$0xff]
  %v3954 = vld [vmem:[%s7 + $0x630] sm:$0xff]
  %v3955 = vld [vmem:[%s7 + $0x638] sm:$0xf]
  %v3956 = vld [vmem:[%s7 + $0x63c] sm:$0xff]
  %v3957 = vld [vmem:[%s7 + $0x644] sm:$0xff]
  %v3958 = vld [vmem:[%s7 + $0x64c] sm:$0xff]
  %v3959 = vld [vmem:[%s7 + $0x654] sm:$0xf]
  %v3960 = vld [vmem:[%s7 + $0x658] sm:$0xff]
  %v3961 = vld [vmem:[%s7 + $0x660] sm:$0xff]
  %v3962 = vld [vmem:[%s7 + $0x668] sm:$0xff]
  %v3963 = vld [vmem:[%s7 + $0x670] sm:$0xf]
  %v3964 = vld [vmem:[%s7 + $0x674] sm:$0xff]
  %v3965 = vld [vmem:[%s7 + $0x67c] sm:$0xff]
  %v3966 = vld [vmem:[%s7 + $0x684] sm:$0xff]
  %v3967 = vld [vmem:[%s7 + $0x68c] sm:$0xf]
  %v3968 = vld [vmem:[%s7 + $0x690] sm:$0xff]
  %v3969 = vld [vmem:[%s7 + $0x698] sm:$0xff]
  %v3970 = vld [vmem:[%s7 + $0x6a0] sm:$0xff]
  %v3971 = vld [vmem:[%s7 + $0x6a8] sm:$0xf]
  %v3972 = vld [vmem:[%s7 + $0x6ac] sm:$0xff]
  %v3973 = vld [vmem:[%s7 + $0x6b4] sm:$0xff]
  %v3974 = vld [vmem:[%s7 + $0x6bc] sm:$0xff]
  %v3975 = vld [vmem:[%s7 + $0x6c4] sm:$0xf]
  %v3976 = vld [vmem:[%s7 + $0x6c8] sm:$0xff]
  %v3977 = vld [vmem:[%s7 + $0x6d0] sm:$0xff]
  %v3978 = vld [vmem:[%s7 + $0x6d8] sm:$0xff]
  %v3979 = vld [vmem:[%s7 + $0x6e0] sm:$0xf]
  %v3980 = vld [vmem:[%s7 + $0x6e4] sm:$0xff]
  %v3981 = vld [vmem:[%s7 + $0x6ec] sm:$0xff]
  %v3982 = vld [vmem:[%s7 + $0x6f4] sm:$0xff]
  %v3983 = vld [vmem:[%s7 + $0x6fc] sm:$0xf]
  %v3984 = vld [vmem:[%s7 + $0x700] sm:$0xff]
  %v3985 = vld [vmem:[%s7 + $0x708] sm:$0xff]
  %v3986 = vld [vmem:[%s7 + $0x710] sm:$0xff]
  %v3987 = vld [vmem:[%s7 + $0x718] sm:$0xf]
  %v3988 = vld [vmem:[%s7 + $0x71c] sm:$0xff]
  %v3989 = vld [vmem:[%s7 + $0x724] sm:$0xff]
  %v3990 = vld [vmem:[%s7 + $0x72c] sm:$0xff]
  %v3991 = vld [vmem:[%s7 + $0x734] sm:$0xf]
  %v3992 = vld [vmem:[%s7 + $0x738] sm:$0xff]
  %v3993 = vld [vmem:[%s7 + $0x740] sm:$0xff]
  %v3994 = vld [vmem:[%s7 + $0x748] sm:$0xff]
  %v3995 = vld [vmem:[%s7 + $0x750] sm:$0xf]
  %v3996 = vld [vmem:[%s7 + $0x754] sm:$0xff]
  %v3997 = vld [vmem:[%s7 + $0x75c] sm:$0xff]
  %v3998 = vld [vmem:[%s7 + $0x764] sm:$0xff]
  %v3999 = vld [vmem:[%s7 + $0x76c] sm:$0xf]
  %v4000 = vld [vmem:[%s7 + $0x770] sm:$0xff]
  %v4001 = vld [vmem:[%s7 + $0x778] sm:$0xff]
  %v4002 = vld [vmem:[%s7 + $0x780] sm:$0xff]
  %v4003 = vld [vmem:[%s7 + $0x788] sm:$0xf]
  %v4004 = vld [vmem:[%s7 + $0x78c] sm:$0xff]
  %v4005 = vld [vmem:[%s7 + $0x794] sm:$0xff]
  %v4006 = vld [vmem:[%s7 + $0x79c] sm:$0xff]
  %v4007 = vld [vmem:[%s7 + $0x7a4] sm:$0xf]
  %v4008 = vld [vmem:[%s7 + $0x7a8] sm:$0xff]
  %v4009 = vld [vmem:[%s7 + $0x7b0] sm:$0xff]
  %v4010 = vld [vmem:[%s7 + $0x7b8] sm:$0xff]
  %v4011 = vld [vmem:[%s7 + $0x7c0] sm:$0xf]
  %v4012 = vld [vmem:[%s7 + $0x7c4] sm:$0xff]
  %v4013 = vld [vmem:[%s7 + $0x7cc] sm:$0xff]
  %v4014 = vld [vmem:[%s7 + $0x7d4] sm:$0xff]
  %v4015 = vld [vmem:[%s7 + $0x7dc] sm:$0xf]
  %v4016 = vld [vmem:[%s7 + $0x7e0] sm:$0xff]
  %v4017 = vld [vmem:[%s7 + $0x7e8] sm:$0xff]
  %v4018 = vld [vmem:[%s7 + $0x7f0] sm:$0xff]
  %v4019 = vld [vmem:[%s7 + $0x7f8] sm:$0xf]
  %v4020 = vld [vmem:[%s7 + $0x7fc] sm:$0xff]
  %v4021 = vld [vmem:[%s7 + $0x804] sm:$0xff]
  %v4022 = vld [vmem:[%s7 + $0x80c] sm:$0xff]
  %v4023 = vld [vmem:[%s7 + $0x814] sm:$0xf]
  %v4024 = vld [vmem:[%s7 + $0x818] sm:$0xff]
  %v4025 = vld [vmem:[%s7 + $0x820] sm:$0xff]
  %v4026 = vld [vmem:[%s7 + $0x828] sm:$0xff]
  %v4027 = vld [vmem:[%s7 + $0x830] sm:$0xf]
  %v4028 = vld [vmem:[%s7 + $0x834] sm:$0xff]
  %v4029 = vld [vmem:[%s7 + $0x83c] sm:$0xff]
  %v4030 = vld [vmem:[%s7 + $0x844] sm:$0xff]
  %v4031 = vld [vmem:[%s7 + $0x84c] sm:$0xf]
  %v4032 = vld [vmem:[%s7 + $0x850] sm:$0xff]
  %v4033 = vld [vmem:[%s7 + $0x858] sm:$0xff]
  %v4034 = vld [vmem:[%s7 + $0x860] sm:$0xff]
  %v4035 = vld [vmem:[%s7 + $0x868] sm:$0xf]
  %v4036 = vld [vmem:[%s7 + $0x86c] sm:$0xff]
  %v4037 = vld [vmem:[%s7 + $0x874] sm:$0xff]
  %v4038 = vld [vmem:[%s7 + $0x87c] sm:$0xff]
  %v4039 = vld [vmem:[%s7 + $0x884] sm:$0xf]
  %v4040 = vld [vmem:[%s7 + $0x888] sm:$0xff]
  %v4041 = vld [vmem:[%s7 + $0x890] sm:$0xff]
  %v4042 = vld [vmem:[%s7 + $0x898] sm:$0xff]
  %v4043 = vld [vmem:[%s7 + $0x8a0] sm:$0xf]
  %v4044 = vld [vmem:[%s7 + $0x8a4] sm:$0xff]
  %v4045 = vld [vmem:[%s7 + $0x8ac] sm:$0xff]
  %v4046 = vld [vmem:[%s7 + $0x8b4] sm:$0xff]
  %v4047 = vld [vmem:[%s7 + $0x8bc] sm:$0xf]
  %v4048 = vld [vmem:[%s7 + $0x8c0] sm:$0xff]
  %v4049 = vld [vmem:[%s7 + $0x8c8] sm:$0xff]
  %v4050 = vld [vmem:[%s7 + $0x8d0] sm:$0xff]
  %v4051 = vld [vmem:[%s7 + $0x8d8] sm:$0xf]
  %v4052 = vld [vmem:[%s7 + $0x8dc] sm:$0xff]
  %v4053 = vld [vmem:[%s7 + $0x8e4] sm:$0xff]
  %v4054 = vld [vmem:[%s7 + $0x8ec] sm:$0xff]
  %v4055 = vld [vmem:[%s7 + $0x8f4] sm:$0xf]
  %v4056 = vld [vmem:[%s7 + $0x8f8] sm:$0xff]
  %v4057 = vld [vmem:[%s7 + $0x900] sm:$0xff]
  %v4058 = vld [vmem:[%s7 + $0x908] sm:$0xff]
  %v4059 = vld [vmem:[%s7 + $0x910] sm:$0xf]
  %v4060 = vld [vmem:[%s7 + $0x914] sm:$0xff]
  %v4061 = vld [vmem:[%s7 + $0x91c] sm:$0xff]
  %v4062 = vld [vmem:[%s7 + $0x924] sm:$0xff]
  %v4063 = vld [vmem:[%s7 + $0x92c] sm:$0xf]
  %v4064 = vld [vmem:[%s7 + $0x930] sm:$0xff]
  %v4065 = vld [vmem:[%s7 + $0x938] sm:$0xff]
  %v4066 = vld [vmem:[%s7 + $0x940] sm:$0xff]
  %v4067 = vld [vmem:[%s7 + $0x948] sm:$0xf]
  %v4068 = vld [vmem:[%s7 + $0x94c] sm:$0xff]
  %v4069 = vld [vmem:[%s7 + $0x954] sm:$0xff]
  %v4070 = vld [vmem:[%s7 + $0x95c] sm:$0xff]
  %v4071 = vld [vmem:[%s7 + $0x964] sm:$0xf]
  %v4072 = vld [vmem:[%s7 + $0x968] sm:$0xff]
  %v4073 = vld [vmem:[%s7 + $0x970] sm:$0xff]
  %v4074 = vld [vmem:[%s7 + $0x978] sm:$0xff]
  %v4075 = vld [vmem:[%s7 + $0x980] sm:$0xf]
  %v4076 = vld [vmem:[%s7 + $0x984] sm:$0xff]
  %v4077 = vld [vmem:[%s7 + $0x98c] sm:$0xff]
  %v4078 = vld [vmem:[%s7 + $0x994] sm:$0xff]
  %v4079 = vld [vmem:[%s7 + $0x99c] sm:$0xf]
  %v4080 = vld [vmem:[%s7 + $0x9a0] sm:$0xff]
  %v4081 = vld [vmem:[%s7 + $0x9a8] sm:$0xff]
  %v4082 = vld [vmem:[%s7 + $0x9b0] sm:$0xff]
  %v4083 = vld [vmem:[%s7 + $0x9b8] sm:$0xf]
  %v4084 = vld [vmem:[%s7 + $0x9bc] sm:$0xff]
  %v4085 = vld [vmem:[%s7 + $0x9c4] sm:$0xff]
  %v4086 = vld [vmem:[%s7 + $0x9cc] sm:$0xff]
  %v4087 = vld [vmem:[%s7 + $0x9d4] sm:$0xf]
  %v4088 = vld [vmem:[%s7 + $0x9d8] sm:$0xff]
  %v4089 = vld [vmem:[%s7 + $0x9e0] sm:$0xff]
  %v4090 = vld [vmem:[%s7 + $0x9e8] sm:$0xff]
  %v4091 = vld [vmem:[%s7 + $0x9f0] sm:$0xf]
  %v4092 = vld [vmem:[%s7 + $0x9f4] sm:$0xff]
  %v4093 = vld [vmem:[%s7 + $0x9fc] sm:$0xff]
  %v4094 = vld [vmem:[%s7 + $0xa04] sm:$0xff]
  %v4095 = vld [vmem:[%s7 + $0xa0c] sm:$0xf]
  %v4096 = vld [vmem:[%s7 + $0xa10] sm:$0xff]
  %v4097 = vld [vmem:[%s7 + $0xa18] sm:$0xff]
  %v4098 = vld [vmem:[%s7 + $0xa20] sm:$0xff]
  %v4099 = vld [vmem:[%s7 + $0xa28] sm:$0xf]
  %v4100 = vld [vmem:[%s7 + $0xa2c] sm:$0xff]
  %v4101 = vld [vmem:[%s7 + $0xa34] sm:$0xff]
  %v4102 = vld [vmem:[%s7 + $0xa3c] sm:$0xff]
  %v4103 = vld [vmem:[%s7 + $0xa44] sm:$0xf]
  %v4104 = vld [vmem:[%s7 + $0xa48] sm:$0xff]
  %v4105 = vld [vmem:[%s7 + $0xa50] sm:$0xff]
  %v4106 = vld [vmem:[%s7 + $0xa58] sm:$0xff]
  %v4107 = vld [vmem:[%s7 + $0xa60] sm:$0xf]
  %v4108 = vld [vmem:[%s7 + $0xa64] sm:$0xff]
  %v4109 = vld [vmem:[%s7 + $0xa6c] sm:$0xff]
  %v4110 = vld [vmem:[%s7 + $0xa74] sm:$0xff]
  %v4111 = vld [vmem:[%s7 + $0xa7c] sm:$0xf]
  %v4112 = vld [vmem:[%s7 + $0xa80] sm:$0xff]
  %v4113 = vld [vmem:[%s7 + $0xa88] sm:$0xff]
  %v4114 = vld [vmem:[%s7 + $0xa90] sm:$0xff]
  %v4115 = vld [vmem:[%s7 + $0xa98] sm:$0xf]
  %v4116 = vld [vmem:[%s7 + $0xa9c] sm:$0xff]
  %v4117 = vld [vmem:[%s7 + $0xaa4] sm:$0xff]
  %v4118 = vld [vmem:[%s7 + $0xaac] sm:$0xff]
  %v4119 = vld [vmem:[%s7 + $0xab4] sm:$0xf]
  %v4120 = vld [vmem:[%s7 + $0xab8] sm:$0xff]
  %v4121 = vld [vmem:[%s7 + $0xac0] sm:$0xff]
  %v4122 = vld [vmem:[%s7 + $0xac8] sm:$0xff]
  %v4123 = vld [vmem:[%s7 + $0xad0] sm:$0xf]
  %v4124 = vld [vmem:[%s7 + $0xad4] sm:$0xff]
  %v4125 = vld [vmem:[%s7 + $0xadc] sm:$0xff]
  %v4126 = vld [vmem:[%s7 + $0xae4] sm:$0xff]
  %v4127 = vld [vmem:[%s7 + $0xaec] sm:$0xf]
  %v4128 = vld [vmem:[%s7 + $0xaf0] sm:$0xff]
  %v4129 = vld [vmem:[%s7 + $0xaf8] sm:$0xff]
  %v4130 = vld [vmem:[%s7 + $0xb00] sm:$0xff]
  %v4131 = vld [vmem:[%s7 + $0xb08] sm:$0xf]
  %v4132 = vld [vmem:[%s7 + $0xb0c] sm:$0xff]
  %v4133 = vld [vmem:[%s7 + $0xb14] sm:$0xff]
  %v4134 = vld [vmem:[%s7 + $0xb1c] sm:$0xff]
  %v4135 = vld [vmem:[%s7 + $0xb24] sm:$0xf]
  %v4136 = vld [vmem:[%s7 + $0xb28] sm:$0xff]
  %v4137 = vld [vmem:[%s7 + $0xb30] sm:$0xff]
  %v4138 = vld [vmem:[%s7 + $0xb38] sm:$0xff]
  %v4139 = vld [vmem:[%s7 + $0xb40] sm:$0xf]
  %v4140 = vld [vmem:[%s7 + $0xb44] sm:$0xff]
  %v4141 = vld [vmem:[%s7 + $0xb4c] sm:$0xff]
  %v4142 = vld [vmem:[%s7 + $0xb54] sm:$0xff]
  %v4143 = vld [vmem:[%s7 + $0xb5c] sm:$0xf]
  %v4144 = vld [vmem:[%s7 + $0xb60] sm:$0xff]
  %v4145 = vld [vmem:[%s7 + $0xb68] sm:$0xff]
  %v4146 = vld [vmem:[%s7 + $0xb70] sm:$0xff]
  %v4147 = vld [vmem:[%s7 + $0xb78] sm:$0xf]
  %v4148 = vld [vmem:[%s7 + $0xb7c] sm:$0xff]
  %v4149 = vld [vmem:[%s7 + $0xb84] sm:$0xff]
  %v4150 = vld [vmem:[%s7 + $0xb8c] sm:$0xff]
  %v4151 = vld [vmem:[%s7 + $0xb94] sm:$0xf]
  %v4152 = vld [vmem:[%s7 + $0xb98] sm:$0xff]
  %v4153 = vld [vmem:[%s7 + $0xba0] sm:$0xff]
  %v4154 = vld [vmem:[%s7 + $0xba8] sm:$0xff]
  %v4155 = vld [vmem:[%s7 + $0xbb0] sm:$0xf]
  %v4156 = vld [vmem:[%s7 + $0xbb4] sm:$0xff]
  %v4157 = vld [vmem:[%s7 + $0xbbc] sm:$0xff]
  %v4158 = vld [vmem:[%s7 + $0xbc4] sm:$0xff]
  %v4159 = vld [vmem:[%s7 + $0xbcc] sm:$0xf]
  %v4160 = vld [vmem:[%s7 + $0xbd0] sm:$0xff]
  %v4161 = vld [vmem:[%s7 + $0xbd8] sm:$0xff]
  %v4162 = vld [vmem:[%s7 + $0xbe0] sm:$0xff]
  %v4163 = vld [vmem:[%s7 + $0xbe8] sm:$0xf]
  %v4164 = vld [vmem:[%s7 + $0xbec] sm:$0xff]
  %v4165 = vld [vmem:[%s7 + $0xbf4] sm:$0xff]
  %v4166 = vld [vmem:[%s7 + $0xbfc] sm:$0xff]
  %v4167 = vld [vmem:[%s7 + $0xc04] sm:$0xf]
  %v4168 = vld [vmem:[%s7 + $0xc08] sm:$0xff]
  %v4169 = vld [vmem:[%s7 + $0xc10] sm:$0xff]
  %v4170 = vld [vmem:[%s7 + $0xc18] sm:$0xff]
  %v4171 = vld [vmem:[%s7 + $0xc20] sm:$0xf]
  %v4172 = vld [vmem:[%s7 + $0xc24] sm:$0xff]
  %v4173 = vld [vmem:[%s7 + $0xc2c] sm:$0xff]
  %v4174 = vld [vmem:[%s7 + $0xc34] sm:$0xff]
  %v4175 = vld [vmem:[%s7 + $0xc3c] sm:$0xf]
  %v4176 = vld [vmem:[%s7 + $0xc40] sm:$0xff]
  %v4177 = vld [vmem:[%s7 + $0xc48] sm:$0xff]
  %v4178 = vld [vmem:[%s7 + $0xc50] sm:$0xff]
  %v4179 = vld [vmem:[%s7 + $0xc58] sm:$0xf]
  %v4180 = vld [vmem:[%s7 + $0xc5c] sm:$0xff]
  %v4181 = vld [vmem:[%s7 + $0xc64] sm:$0xff]
  %v4182 = vld [vmem:[%s7 + $0xc6c] sm:$0xff]
  %v4183 = vld [vmem:[%s7 + $0xc74] sm:$0xf]
  %v4184 = vld [vmem:[%s7 + $0xc78] sm:$0xff]
  %v4185 = vld [vmem:[%s7 + $0xc80] sm:$0xff]
  %v4186 = vld [vmem:[%s7 + $0xc88] sm:$0xff]
  %v4187 = vld [vmem:[%s7 + $0xc90] sm:$0xf]
  %v4188 = vld [vmem:[%s7 + $0xc94] sm:$0xff]
  %v4189 = vld [vmem:[%s7 + $0xc9c] sm:$0xff]
  %v4190 = vld [vmem:[%s7 + $0xca4] sm:$0xff]
  %v4191 = vld [vmem:[%s7 + $0xcac] sm:$0xf]
  %v4192 = vld [vmem:[%s7 + $0xcb0] sm:$0xff]
  %v4193 = vld [vmem:[%s7 + $0xcb8] sm:$0xff]
  %v4194 = vld [vmem:[%s7 + $0xcc0] sm:$0xff]
  %v4195 = vld [vmem:[%s7 + $0xcc8] sm:$0xf]
  %v4196 = vld [vmem:[%s7 + $0xccc] sm:$0xff]
  %v4197 = vld [vmem:[%s7 + $0xcd4] sm:$0xff]
  %v4198 = vld [vmem:[%s7 + $0xcdc] sm:$0xff]
  %v4199 = vld [vmem:[%s7 + $0xce4] sm:$0xf]
  %v4200 = vld [vmem:[%s7 + $0xce8] sm:$0xff]
  %v4201 = vld [vmem:[%s7 + $0xcf0] sm:$0xff]
  %v4202 = vld [vmem:[%s7 + $0xcf8] sm:$0xff]
  %v4203 = vld [vmem:[%s7 + $0xd00] sm:$0xf]
  %v4204 = vld [vmem:[%s7 + $0xd04] sm:$0xff]
  %v4205 = vld [vmem:[%s7 + $0xd0c] sm:$0xff]
  %v4206 = vld [vmem:[%s7 + $0xd14] sm:$0xff]
  %v4207 = vld [vmem:[%s7 + $0xd1c] sm:$0xf]
  %v4208 = vld [vmem:[%s7 + $0xd20] sm:$0xff]
  %v4209 = vld [vmem:[%s7 + $0xd28] sm:$0xff]
  %v4210 = vld [vmem:[%s7 + $0xd30] sm:$0xff]
  %v4211 = vld [vmem:[%s7 + $0xd38] sm:$0xf]
  %v4212 = vld [vmem:[%s7 + $0xd3c] sm:$0xff]
  %v4213 = vld [vmem:[%s7 + $0xd44] sm:$0xff]
  %v4214 = vld [vmem:[%s7 + $0xd4c] sm:$0xff]
  %v4215 = vld [vmem:[%s7 + $0xd54] sm:$0xf]
  %v4216 = vld [vmem:[%s7 + $0xd58] sm:$0xff]
  %v4217 = vld [vmem:[%s7 + $0xd60] sm:$0xff]
  %v4218 = vld [vmem:[%s7 + $0xd68] sm:$0xff]
  %v4219 = vld [vmem:[%s7 + $0xd70] sm:$0xf]
  %v4220 = vld [vmem:[%s7 + $0xd74] sm:$0xff]
  %v4221 = vld [vmem:[%s7 + $0xd7c] sm:$0xff]
  %v4222 = vld [vmem:[%s7 + $0xd84] sm:$0xff]
  %v4223 = vld [vmem:[%s7 + $0xd8c] sm:$0xf]
  %v4224 = vld [vmem:[%s7 + $0xd90] sm:$0xff]
  %v4225 = vld [vmem:[%s7 + $0xd98] sm:$0xff]
  %v4226 = vld [vmem:[%s7 + $0xda0] sm:$0xff]
  %v4227 = vld [vmem:[%s7 + $0xda8] sm:$0xf]
  %v4228 = vld [vmem:[%s7 + $0xdac] sm:$0xff]
  %v4229 = vld [vmem:[%s7 + $0xdb4] sm:$0xff]
  %v4230 = vld [vmem:[%s7 + $0xdbc] sm:$0xff]
  %v4231 = vld [vmem:[%s7 + $0xdc4] sm:$0xf]
  %v4232 = vld [vmem:[%s7 + $0xdc8] sm:$0xff]
  %v4233 = vld [vmem:[%s7 + $0xdd0] sm:$0xff]
  %v4234 = vld [vmem:[%s7 + $0xdd8] sm:$0xff]
  %v4235 = vld [vmem:[%s7 + $0xde0] sm:$0xf]
  %v4236 = vld [vmem:[%s7 + $0xde4] sm:$0xff]
  %v4237 = vld [vmem:[%s7 + $0xdec] sm:$0xff]
  %v4238 = vld [vmem:[%s7 + $0xdf4] sm:$0xff]
  %v4239 = vld [vmem:[%s7 + $0xdfc] sm:$0xf]
  %v4240 = vld [vmem:[%s8] sm:$0xff]
  %v4242 = vlaneseq
  %v4243 = vshrl.u32 %v4242, 7
  %v4244 = vsub.s32 0, %v4243
  %v4245 = vrot.slane %v4240, %v4244
  %v4246 = vlaneseq
  %v4247 = vshrl.u32 %v4246, 7
  %v4248 = vsub.s32 1, %v4247
  %v4249 = vrot.slane %v4240, %v4248
  %v4250 = vlaneseq
  %v4251 = vshrl.u32 %v4250, 7
  %v4252 = vsub.s32 2, %v4251
  %v4253 = vrot.slane %v4240, %v4252
  %v4254 = vlaneseq
  %v4255 = vshrl.u32 %v4254, 7
  %v4256 = vsub.s32 3, %v4255
  %v4257 = vrot.slane %v4240, %v4256
  %v4258 = vlaneseq
  %v4259 = vshrl.u32 %v4258, 7
  %v4260 = vsub.s32 4, %v4259
  %v4261 = vrot.slane %v4240, %v4260
  %v4262 = vlaneseq
  %v4263 = vshrl.u32 %v4262, 7
  %v4264 = vsub.s32 5, %v4263
  %v4265 = vrot.slane %v4240, %v4264
  %v4266 = vlaneseq
  %v4267 = vshrl.u32 %v4266, 7
  %v4268 = vsub.s32 6, %v4267
  %v4269 = vrot.slane %v4240, %v4268
  %v4789 = vunpack.c.l.b16 %v3728
  %v4790 = vunpack.c.h.b16 %v3728
  %v4791 = vunpack.c.l.b16 %v3729
  %v4792 = vunpack.c.h.b16 %v3729
  %v4793 = vunpack.c.l.b16 %v3730
  %v4794 = vunpack.c.h.b16 %v3730
  %v4795 = vunpack.c.l.b16 %v3731
  %v4796 = vunpack.c.l.b16 %v3732
  %v4797 = vunpack.c.h.b16 %v3732
  %v4798 = vunpack.c.l.b16 %v3733
  %v4799 = vunpack.c.h.b16 %v3733
  %v4800 = vunpack.c.l.b16 %v3734
  %v4801 = vunpack.c.h.b16 %v3734
  %v4802 = vunpack.c.l.b16 %v3735
  %v4803 = vunpack.c.l.b16 %v3736
  %v4804 = vunpack.c.h.b16 %v3736
  %v4805 = vunpack.c.l.b16 %v3737
  %v4806 = vunpack.c.h.b16 %v3737
  %v4807 = vunpack.c.l.b16 %v3738
  %v4808 = vunpack.c.h.b16 %v3738
  %v4809 = vunpack.c.l.b16 %v3739
  %v4810 = vunpack.c.l.b16 %v3740
  %v4811 = vunpack.c.h.b16 %v3740
  %v4812 = vunpack.c.l.b16 %v3741
  %v4813 = vunpack.c.h.b16 %v3741
  %v4814 = vunpack.c.l.b16 %v3742
  %v4815 = vunpack.c.h.b16 %v3742
  %v4816 = vunpack.c.l.b16 %v3743
  %v4817 = vunpack.c.l.b16 %v3744
  %v4818 = vunpack.c.h.b16 %v3744
  %v4819 = vunpack.c.l.b16 %v3745
  %v4820 = vunpack.c.h.b16 %v3745
  %v4821 = vunpack.c.l.b16 %v3746
  %v4822 = vunpack.c.h.b16 %v3746
  %v4823 = vunpack.c.l.b16 %v3747
  %v4824 = vunpack.c.l.b16 %v3748
  %v4825 = vunpack.c.h.b16 %v3748
  %v4826 = vunpack.c.l.b16 %v3749
  %v4827 = vunpack.c.h.b16 %v3749
  %v4828 = vunpack.c.l.b16 %v3750
  %v4829 = vunpack.c.h.b16 %v3750
  %v4830 = vunpack.c.l.b16 %v3751
  %v4831 = vunpack.c.l.b16 %v3752
  %v4832 = vunpack.c.h.b16 %v3752
  %v4833 = vunpack.c.l.b16 %v3753
  %v4834 = vunpack.c.h.b16 %v3753
  %v4835 = vunpack.c.l.b16 %v3754
  %v4836 = vunpack.c.h.b16 %v3754
  %v4837 = vunpack.c.l.b16 %v3755
  %v4838 = vunpack.c.l.b16 %v3756
  %v4839 = vunpack.c.h.b16 %v3756
  %v4840 = vunpack.c.l.b16 %v3757
  %v4841 = vunpack.c.h.b16 %v3757
  %v4842 = vunpack.c.l.b16 %v3758
  %v4843 = vunpack.c.h.b16 %v3758
  %v4844 = vunpack.c.l.b16 %v3759
  %v4845 = vunpack.c.l.b16 %v3760
  %v4846 = vunpack.c.h.b16 %v3760
  %v4847 = vunpack.c.l.b16 %v3761
  %v4848 = vunpack.c.h.b16 %v3761
  %v4849 = vunpack.c.l.b16 %v3762
  %v4850 = vunpack.c.h.b16 %v3762
  %v4851 = vunpack.c.l.b16 %v3763
  %v4852 = vunpack.c.l.b16 %v3764
  %v4853 = vunpack.c.h.b16 %v3764
  %v4854 = vunpack.c.l.b16 %v3765
  %v4855 = vunpack.c.h.b16 %v3765
  %v4856 = vunpack.c.l.b16 %v3766
  %v4857 = vunpack.c.h.b16 %v3766
  %v4858 = vunpack.c.l.b16 %v3767
  %v4859 = vunpack.c.l.b16 %v3768
  %v4860 = vunpack.c.h.b16 %v3768
  %v4861 = vunpack.c.l.b16 %v3769
  %v4862 = vunpack.c.h.b16 %v3769
  %v4863 = vunpack.c.l.b16 %v3770
  %v4864 = vunpack.c.h.b16 %v3770
  %v4865 = vunpack.c.l.b16 %v3771
  %v4866 = vunpack.c.l.b16 %v3772
  %v4867 = vunpack.c.h.b16 %v3772
  %v4868 = vunpack.c.l.b16 %v3773
  %v4869 = vunpack.c.h.b16 %v3773
  %v4870 = vunpack.c.l.b16 %v3774
  %v4871 = vunpack.c.h.b16 %v3774
  %v4872 = vunpack.c.l.b16 %v3775
  %v4873 = vunpack.c.l.b16 %v3776
  %v4874 = vunpack.c.h.b16 %v3776
  %v4875 = vunpack.c.l.b16 %v3777
  %v4876 = vunpack.c.h.b16 %v3777
  %v4877 = vunpack.c.l.b16 %v3778
  %v4878 = vunpack.c.h.b16 %v3778
  %v4879 = vunpack.c.l.b16 %v3779
  %v4880 = vunpack.c.l.b16 %v3780
  %v4881 = vunpack.c.h.b16 %v3780
  %v4882 = vunpack.c.l.b16 %v3781
  %v4883 = vunpack.c.h.b16 %v3781
  %v4884 = vunpack.c.l.b16 %v3782
  %v4885 = vunpack.c.h.b16 %v3782
  %v4886 = vunpack.c.l.b16 %v3783
  %v4887 = vunpack.c.l.b16 %v3784
  %v4888 = vunpack.c.h.b16 %v3784
  %v4889 = vunpack.c.l.b16 %v3785
  %v4890 = vunpack.c.h.b16 %v3785
  %v4891 = vunpack.c.l.b16 %v3786
  %v4892 = vunpack.c.h.b16 %v3786
  %v4893 = vunpack.c.l.b16 %v3787
  %v4894 = vunpack.c.l.b16 %v3788
  %v4895 = vunpack.c.h.b16 %v3788
  %v4896 = vunpack.c.l.b16 %v3789
  %v4897 = vunpack.c.h.b16 %v3789
  %v4898 = vunpack.c.l.b16 %v3790
  %v4899 = vunpack.c.h.b16 %v3790
  %v4900 = vunpack.c.l.b16 %v3791
  %v4901 = vunpack.c.l.b16 %v3792
  %v4902 = vunpack.c.h.b16 %v3792
  %v4903 = vunpack.c.l.b16 %v3793
  %v4904 = vunpack.c.h.b16 %v3793
  %v4905 = vunpack.c.l.b16 %v3794
  %v4906 = vunpack.c.h.b16 %v3794
  %v4907 = vunpack.c.l.b16 %v3795
  %v4908 = vunpack.c.l.b16 %v3796
  %v4909 = vunpack.c.h.b16 %v3796
  %v4910 = vunpack.c.l.b16 %v3797
  %v4911 = vunpack.c.h.b16 %v3797
  %v4912 = vunpack.c.l.b16 %v3798
  %v4913 = vunpack.c.h.b16 %v3798
  %v4914 = vunpack.c.l.b16 %v3799
  %v4915 = vunpack.c.l.b16 %v3800
  %v4916 = vunpack.c.h.b16 %v3800
  %v4917 = vunpack.c.l.b16 %v3801
  %v4918 = vunpack.c.h.b16 %v3801
  %v4919 = vunpack.c.l.b16 %v3802
  %v4920 = vunpack.c.h.b16 %v3802
  %v4921 = vunpack.c.l.b16 %v3803
  %v4922 = vunpack.c.l.b16 %v3804
  %v4923 = vunpack.c.h.b16 %v3804
  %v4924 = vunpack.c.l.b16 %v3805
  %v4925 = vunpack.c.h.b16 %v3805
  %v4926 = vunpack.c.l.b16 %v3806
  %v4927 = vunpack.c.h.b16 %v3806
  %v4928 = vunpack.c.l.b16 %v3807
  %v4929 = vunpack.c.l.b16 %v3808
  %v4930 = vunpack.c.h.b16 %v3808
  %v4931 = vunpack.c.l.b16 %v3809
  %v4932 = vunpack.c.h.b16 %v3809
  %v4933 = vunpack.c.l.b16 %v3810
  %v4934 = vunpack.c.h.b16 %v3810
  %v4935 = vunpack.c.l.b16 %v3811
  %v4936 = vunpack.c.l.b16 %v3812
  %v4937 = vunpack.c.h.b16 %v3812
  %v4938 = vunpack.c.l.b16 %v3813
  %v4939 = vunpack.c.h.b16 %v3813
  %v4940 = vunpack.c.l.b16 %v3814
  %v4941 = vunpack.c.h.b16 %v3814
  %v4942 = vunpack.c.l.b16 %v3815
  %v4943 = vunpack.c.l.b16 %v3816
  %v4944 = vunpack.c.h.b16 %v3816
  %v4945 = vunpack.c.l.b16 %v3817
  %v4946 = vunpack.c.h.b16 %v3817
  %v4947 = vunpack.c.l.b16 %v3818
  %v4948 = vunpack.c.h.b16 %v3818
  %v4949 = vunpack.c.l.b16 %v3819
  %v4950 = vunpack.c.l.b16 %v3820
  %v4951 = vunpack.c.h.b16 %v3820
  %v4952 = vunpack.c.l.b16 %v3821
  %v4953 = vunpack.c.h.b16 %v3821
  %v4954 = vunpack.c.l.b16 %v3822
  %v4955 = vunpack.c.h.b16 %v3822
  %v4956 = vunpack.c.l.b16 %v3823
  %v4957 = vunpack.c.l.b16 %v3824
  %v4958 = vunpack.c.h.b16 %v3824
  %v4959 = vunpack.c.l.b16 %v3825
  %v4960 = vunpack.c.h.b16 %v3825
  %v4961 = vunpack.c.l.b16 %v3826
  %v4962 = vunpack.c.h.b16 %v3826
  %v4963 = vunpack.c.l.b16 %v3827
  %v4964 = vunpack.c.l.b16 %v3828
  %v4965 = vunpack.c.h.b16 %v3828
  %v4966 = vunpack.c.l.b16 %v3829
  %v4967 = vunpack.c.h.b16 %v3829
  %v4968 = vunpack.c.l.b16 %v3830
  %v4969 = vunpack.c.h.b16 %v3830
  %v4970 = vunpack.c.l.b16 %v3831
  %v4971 = vunpack.c.l.b16 %v3832
  %v4972 = vunpack.c.h.b16 %v3832
  %v4973 = vunpack.c.l.b16 %v3833
  %v4974 = vunpack.c.h.b16 %v3833
  %v4975 = vunpack.c.l.b16 %v3834
  %v4976 = vunpack.c.h.b16 %v3834
  %v4977 = vunpack.c.l.b16 %v3835
  %v4978 = vunpack.c.l.b16 %v3836
  %v4979 = vunpack.c.h.b16 %v3836
  %v4980 = vunpack.c.l.b16 %v3837
  %v4981 = vunpack.c.h.b16 %v3837
  %v4982 = vunpack.c.l.b16 %v3838
  %v4983 = vunpack.c.h.b16 %v3838
  %v4984 = vunpack.c.l.b16 %v3839
  %v4985 = vunpack.c.l.b16 %v3840
  %v4986 = vunpack.c.h.b16 %v3840
  %v4987 = vunpack.c.l.b16 %v3841
  %v4988 = vunpack.c.h.b16 %v3841
  %v4989 = vunpack.c.l.b16 %v3842
  %v4990 = vunpack.c.h.b16 %v3842
  %v4991 = vunpack.c.l.b16 %v3843
  %v4992 = vunpack.c.l.b16 %v3844
  %v4993 = vunpack.c.h.b16 %v3844
  %v4994 = vunpack.c.l.b16 %v3845
  %v4995 = vunpack.c.h.b16 %v3845
  %v4996 = vunpack.c.l.b16 %v3846
  %v4997 = vunpack.c.h.b16 %v3846
  %v4998 = vunpack.c.l.b16 %v3847
  %v4999 = vunpack.c.l.b16 %v3848
  %v5000 = vunpack.c.h.b16 %v3848
  %v5001 = vunpack.c.l.b16 %v3849
  %v5002 = vunpack.c.h.b16 %v3849
  %v5003 = vunpack.c.l.b16 %v3850
  %v5004 = vunpack.c.h.b16 %v3850
  %v5005 = vunpack.c.l.b16 %v3851
  %v5006 = vunpack.c.l.b16 %v3852
  %v5007 = vunpack.c.h.b16 %v3852
  %v5008 = vunpack.c.l.b16 %v3853
  %v5009 = vunpack.c.h.b16 %v3853
  %v5010 = vunpack.c.l.b16 %v3854
  %v5011 = vunpack.c.h.b16 %v3854
  %v5012 = vunpack.c.l.b16 %v3855
  %v5013 = vunpack.c.l.b16 %v3856
  %v5014 = vunpack.c.h.b16 %v3856
  %v5015 = vunpack.c.l.b16 %v3857
  %v5016 = vunpack.c.h.b16 %v3857
  %v5017 = vunpack.c.l.b16 %v3858
  %v5018 = vunpack.c.h.b16 %v3858
  %v5019 = vunpack.c.l.b16 %v3859
  %v5020 = vunpack.c.l.b16 %v3860
  %v5021 = vunpack.c.h.b16 %v3860
  %v5022 = vunpack.c.l.b16 %v3861
  %v5023 = vunpack.c.h.b16 %v3861
  %v5024 = vunpack.c.l.b16 %v3862
  %v5025 = vunpack.c.h.b16 %v3862
  %v5026 = vunpack.c.l.b16 %v3863
  %v5027 = vunpack.c.l.b16 %v3864
  %v5028 = vunpack.c.h.b16 %v3864
  %v5029 = vunpack.c.l.b16 %v3865
  %v5030 = vunpack.c.h.b16 %v3865
  %v5031 = vunpack.c.l.b16 %v3866
  %v5032 = vunpack.c.h.b16 %v3866
  %v5033 = vunpack.c.l.b16 %v3867
  %v5034 = vunpack.c.l.b16 %v3868
  %v5035 = vunpack.c.h.b16 %v3868
  %v5036 = vunpack.c.l.b16 %v3869
  %v5037 = vunpack.c.h.b16 %v3869
  %v5038 = vunpack.c.l.b16 %v3870
  %v5039 = vunpack.c.h.b16 %v3870
  %v5040 = vunpack.c.l.b16 %v3871
  %v5041 = vunpack.c.l.b16 %v3872
  %v5042 = vunpack.c.h.b16 %v3872
  %v5043 = vunpack.c.l.b16 %v3873
  %v5044 = vunpack.c.h.b16 %v3873
  %v5045 = vunpack.c.l.b16 %v3874
  %v5046 = vunpack.c.h.b16 %v3874
  %v5047 = vunpack.c.l.b16 %v3875
  %v5048 = vunpack.c.l.b16 %v3876
  %v5049 = vunpack.c.h.b16 %v3876
  %v5050 = vunpack.c.l.b16 %v3877
  %v5051 = vunpack.c.h.b16 %v3877
  %v5052 = vunpack.c.l.b16 %v3878
  %v5053 = vunpack.c.h.b16 %v3878
  %v5054 = vunpack.c.l.b16 %v3879
  %v5055 = vunpack.c.l.b16 %v3880
  %v5056 = vunpack.c.h.b16 %v3880
  %v5057 = vunpack.c.l.b16 %v3881
  %v5058 = vunpack.c.h.b16 %v3881
  %v5059 = vunpack.c.l.b16 %v3882
  %v5060 = vunpack.c.h.b16 %v3882
  %v5061 = vunpack.c.l.b16 %v3883
  %v5062 = vunpack.c.l.b16 %v3884
  %v5063 = vunpack.c.h.b16 %v3884
  %v5064 = vunpack.c.l.b16 %v3885
  %v5065 = vunpack.c.h.b16 %v3885
  %v5066 = vunpack.c.l.b16 %v3886
  %v5067 = vunpack.c.h.b16 %v3886
  %v5068 = vunpack.c.l.b16 %v3887
  %v5069 = vunpack.c.l.b16 %v3888
  %v5070 = vunpack.c.h.b16 %v3888
  %v5071 = vunpack.c.l.b16 %v3889
  %v5072 = vunpack.c.h.b16 %v3889
  %v5073 = vunpack.c.l.b16 %v3890
  %v5074 = vunpack.c.h.b16 %v3890
  %v5075 = vunpack.c.l.b16 %v3891
  %v5076 = vunpack.c.l.b16 %v3892
  %v5077 = vunpack.c.h.b16 %v3892
  %v5078 = vunpack.c.l.b16 %v3893
  %v5079 = vunpack.c.h.b16 %v3893
  %v5080 = vunpack.c.l.b16 %v3894
  %v5081 = vunpack.c.h.b16 %v3894
  %v5082 = vunpack.c.l.b16 %v3895
  %v5083 = vunpack.c.l.b16 %v3896
  %v5084 = vunpack.c.h.b16 %v3896
  %v5085 = vunpack.c.l.b16 %v3897
  %v5086 = vunpack.c.h.b16 %v3897
  %v5087 = vunpack.c.l.b16 %v3898
  %v5088 = vunpack.c.h.b16 %v3898
  %v5089 = vunpack.c.l.b16 %v3899
  %v5090 = vunpack.c.l.b16 %v3900
  %v5091 = vunpack.c.h.b16 %v3900
  %v5092 = vunpack.c.l.b16 %v3901
  %v5093 = vunpack.c.h.b16 %v3901
  %v5094 = vunpack.c.l.b16 %v3902
  %v5095 = vunpack.c.h.b16 %v3902
  %v5096 = vunpack.c.l.b16 %v3903
  %v5097 = vunpack.c.l.b16 %v3904
  %v5098 = vunpack.c.h.b16 %v3904
  %v5099 = vunpack.c.l.b16 %v3905
  %v5100 = vunpack.c.h.b16 %v3905
  %v5101 = vunpack.c.l.b16 %v3906
  %v5102 = vunpack.c.h.b16 %v3906
  %v5103 = vunpack.c.l.b16 %v3907
  %v5104 = vunpack.c.l.b16 %v3908
  %v5105 = vunpack.c.h.b16 %v3908
  %v5106 = vunpack.c.l.b16 %v3909
  %v5107 = vunpack.c.h.b16 %v3909
  %v5108 = vunpack.c.l.b16 %v3910
  %v5109 = vunpack.c.h.b16 %v3910
  %v5110 = vunpack.c.l.b16 %v3911
  %v5111 = vunpack.c.l.b16 %v3912
  %v5112 = vunpack.c.h.b16 %v3912
  %v5113 = vunpack.c.l.b16 %v3913
  %v5114 = vunpack.c.h.b16 %v3913
  %v5115 = vunpack.c.l.b16 %v3914
  %v5116 = vunpack.c.h.b16 %v3914
  %v5117 = vunpack.c.l.b16 %v3915
  %v5118 = vunpack.c.l.b16 %v3916
  %v5119 = vunpack.c.h.b16 %v3916
  %v5120 = vunpack.c.l.b16 %v3917
  %v5121 = vunpack.c.h.b16 %v3917
  %v5122 = vunpack.c.l.b16 %v3918
  %v5123 = vunpack.c.h.b16 %v3918
  %v5124 = vunpack.c.l.b16 %v3919
  %v5125 = vunpack.c.l.b16 %v3920
  %v5126 = vunpack.c.h.b16 %v3920
  %v5127 = vunpack.c.l.b16 %v3921
  %v5128 = vunpack.c.h.b16 %v3921
  %v5129 = vunpack.c.l.b16 %v3922
  %v5130 = vunpack.c.h.b16 %v3922
  %v5131 = vunpack.c.l.b16 %v3923
  %v5132 = vunpack.c.l.b16 %v3924
  %v5133 = vunpack.c.h.b16 %v3924
  %v5134 = vunpack.c.l.b16 %v3925
  %v5135 = vunpack.c.h.b16 %v3925
  %v5136 = vunpack.c.l.b16 %v3926
  %v5137 = vunpack.c.h.b16 %v3926
  %v5138 = vunpack.c.l.b16 %v3927
  %v5139 = vunpack.c.l.b16 %v3928
  %v5140 = vunpack.c.h.b16 %v3928
  %v5141 = vunpack.c.l.b16 %v3929
  %v5142 = vunpack.c.h.b16 %v3929
  %v5143 = vunpack.c.l.b16 %v3930
  %v5144 = vunpack.c.h.b16 %v3930
  %v5145 = vunpack.c.l.b16 %v3931
  %v5146 = vunpack.c.l.b16 %v3932
  %v5147 = vunpack.c.h.b16 %v3932
  %v5148 = vunpack.c.l.b16 %v3933
  %v5149 = vunpack.c.h.b16 %v3933
  %v5150 = vunpack.c.l.b16 %v3934
  %v5151 = vunpack.c.h.b16 %v3934
  %v5152 = vunpack.c.l.b16 %v3935
  %v5153 = vunpack.c.l.b16 %v3936
  %v5154 = vunpack.c.h.b16 %v3936
  %v5155 = vunpack.c.l.b16 %v3937
  %v5156 = vunpack.c.h.b16 %v3937
  %v5157 = vunpack.c.l.b16 %v3938
  %v5158 = vunpack.c.h.b16 %v3938
  %v5159 = vunpack.c.l.b16 %v3939
  %v5160 = vunpack.c.l.b16 %v3940
  %v5161 = vunpack.c.h.b16 %v3940
  %v5162 = vunpack.c.l.b16 %v3941
  %v5163 = vunpack.c.h.b16 %v3941
  %v5164 = vunpack.c.l.b16 %v3942
  %v5165 = vunpack.c.h.b16 %v3942
  %v5166 = vunpack.c.l.b16 %v3943
  %v5167 = vunpack.c.l.b16 %v3944
  %v5168 = vunpack.c.h.b16 %v3944
  %v5169 = vunpack.c.l.b16 %v3945
  %v5170 = vunpack.c.h.b16 %v3945
  %v5171 = vunpack.c.l.b16 %v3946
  %v5172 = vunpack.c.h.b16 %v3946
  %v5173 = vunpack.c.l.b16 %v3947
  %v5174 = vunpack.c.l.b16 %v3948
  %v5175 = vunpack.c.h.b16 %v3948
  %v5176 = vunpack.c.l.b16 %v3949
  %v5177 = vunpack.c.h.b16 %v3949
  %v5178 = vunpack.c.l.b16 %v3950
  %v5179 = vunpack.c.h.b16 %v3950
  %v5180 = vunpack.c.l.b16 %v3951
  %v5181 = vunpack.c.l.b16 %v3952
  %v5182 = vunpack.c.h.b16 %v3952
  %v5183 = vunpack.c.l.b16 %v3953
  %v5184 = vunpack.c.h.b16 %v3953
  %v5185 = vunpack.c.l.b16 %v3954
  %v5186 = vunpack.c.h.b16 %v3954
  %v5187 = vunpack.c.l.b16 %v3955
  %v5188 = vunpack.c.l.b16 %v3956
  %v5189 = vunpack.c.h.b16 %v3956
  %v5190 = vunpack.c.l.b16 %v3957
  %v5191 = vunpack.c.h.b16 %v3957
  %v5192 = vunpack.c.l.b16 %v3958
  %v5193 = vunpack.c.h.b16 %v3958
  %v5194 = vunpack.c.l.b16 %v3959
  %v5195 = vunpack.c.l.b16 %v3960
  %v5196 = vunpack.c.h.b16 %v3960
  %v5197 = vunpack.c.l.b16 %v3961
  %v5198 = vunpack.c.h.b16 %v3961
  %v5199 = vunpack.c.l.b16 %v3962
  %v5200 = vunpack.c.h.b16 %v3962
  %v5201 = vunpack.c.l.b16 %v3963
  %v5202 = vunpack.c.l.b16 %v3964
  %v5203 = vunpack.c.h.b16 %v3964
  %v5204 = vunpack.c.l.b16 %v3965
  %v5205 = vunpack.c.h.b16 %v3965
  %v5206 = vunpack.c.l.b16 %v3966
  %v5207 = vunpack.c.h.b16 %v3966
  %v5208 = vunpack.c.l.b16 %v3967
  %v5209 = vunpack.c.l.b16 %v3968
  %v5210 = vunpack.c.h.b16 %v3968
  %v5211 = vunpack.c.l.b16 %v3969
  %v5212 = vunpack.c.h.b16 %v3969
  %v5213 = vunpack.c.l.b16 %v3970
  %v5214 = vunpack.c.h.b16 %v3970
  %v5215 = vunpack.c.l.b16 %v3971
  %v5216 = vunpack.c.l.b16 %v3972
  %v5217 = vunpack.c.h.b16 %v3972
  %v5218 = vunpack.c.l.b16 %v3973
  %v5219 = vunpack.c.h.b16 %v3973
  %v5220 = vunpack.c.l.b16 %v3974
  %v5221 = vunpack.c.h.b16 %v3974
  %v5222 = vunpack.c.l.b16 %v3975
  %v5223 = vunpack.c.l.b16 %v3976
  %v5224 = vunpack.c.h.b16 %v3976
  %v5225 = vunpack.c.l.b16 %v3977
  %v5226 = vunpack.c.h.b16 %v3977
  %v5227 = vunpack.c.l.b16 %v3978
  %v5228 = vunpack.c.h.b16 %v3978
  %v5229 = vunpack.c.l.b16 %v3979
  %v5230 = vunpack.c.l.b16 %v3980
  %v5231 = vunpack.c.h.b16 %v3980
  %v5232 = vunpack.c.l.b16 %v3981
  %v5233 = vunpack.c.h.b16 %v3981
  %v5234 = vunpack.c.l.b16 %v3982
  %v5235 = vunpack.c.h.b16 %v3982
  %v5236 = vunpack.c.l.b16 %v3983
  %v5237 = vunpack.c.l.b16 %v3984
  %v5238 = vunpack.c.h.b16 %v3984
  %v5239 = vunpack.c.l.b16 %v3985
  %v5240 = vunpack.c.h.b16 %v3985
  %v5241 = vunpack.c.l.b16 %v3986
  %v5242 = vunpack.c.h.b16 %v3986
  %v5243 = vunpack.c.l.b16 %v3987
  %v5244 = vunpack.c.l.b16 %v3988
  %v5245 = vunpack.c.h.b16 %v3988
  %v5246 = vunpack.c.l.b16 %v3989
  %v5247 = vunpack.c.h.b16 %v3989
  %v5248 = vunpack.c.l.b16 %v3990
  %v5249 = vunpack.c.h.b16 %v3990
  %v5250 = vunpack.c.l.b16 %v3991
  %v5251 = vunpack.c.l.b16 %v3992
  %v5252 = vunpack.c.h.b16 %v3992
  %v5253 = vunpack.c.l.b16 %v3993
  %v5254 = vunpack.c.h.b16 %v3993
  %v5255 = vunpack.c.l.b16 %v3994
  %v5256 = vunpack.c.h.b16 %v3994
  %v5257 = vunpack.c.l.b16 %v3995
  %v5258 = vunpack.c.l.b16 %v3996
  %v5259 = vunpack.c.h.b16 %v3996
  %v5260 = vunpack.c.l.b16 %v3997
  %v5261 = vunpack.c.h.b16 %v3997
  %v5262 = vunpack.c.l.b16 %v3998
  %v5263 = vunpack.c.h.b16 %v3998
  %v5264 = vunpack.c.l.b16 %v3999
  %v5265 = vunpack.c.l.b16 %v4000
  %v5266 = vunpack.c.h.b16 %v4000
  %v5267 = vunpack.c.l.b16 %v4001
  %v5268 = vunpack.c.h.b16 %v4001
  %v5269 = vunpack.c.l.b16 %v4002
  %v5270 = vunpack.c.h.b16 %v4002
  %v5271 = vunpack.c.l.b16 %v4003
  %v5272 = vunpack.c.l.b16 %v4004
  %v5273 = vunpack.c.h.b16 %v4004
  %v5274 = vunpack.c.l.b16 %v4005
  %v5275 = vunpack.c.h.b16 %v4005
  %v5276 = vunpack.c.l.b16 %v4006
  %v5277 = vunpack.c.h.b16 %v4006
  %v5278 = vunpack.c.l.b16 %v4007
  %v5279 = vunpack.c.l.b16 %v4008
  %v5280 = vunpack.c.h.b16 %v4008
  %v5281 = vunpack.c.l.b16 %v4009
  %v5282 = vunpack.c.h.b16 %v4009
  %v5283 = vunpack.c.l.b16 %v4010
  %v5284 = vunpack.c.h.b16 %v4010
  %v5285 = vunpack.c.l.b16 %v4011
  %v5286 = vunpack.c.l.b16 %v4012
  %v5287 = vunpack.c.h.b16 %v4012
  %v5288 = vunpack.c.l.b16 %v4013
  %v5289 = vunpack.c.h.b16 %v4013
  %v5290 = vunpack.c.l.b16 %v4014
  %v5291 = vunpack.c.h.b16 %v4014
  %v5292 = vunpack.c.l.b16 %v4015
  %v5293 = vunpack.c.l.b16 %v4016
  %v5294 = vunpack.c.h.b16 %v4016
  %v5295 = vunpack.c.l.b16 %v4017
  %v5296 = vunpack.c.h.b16 %v4017
  %v5297 = vunpack.c.l.b16 %v4018
  %v5298 = vunpack.c.h.b16 %v4018
  %v5299 = vunpack.c.l.b16 %v4019
  %v5300 = vunpack.c.l.b16 %v4020
  %v5301 = vunpack.c.h.b16 %v4020
  %v5302 = vunpack.c.l.b16 %v4021
  %v5303 = vunpack.c.h.b16 %v4021
  %v5304 = vunpack.c.l.b16 %v4022
  %v5305 = vunpack.c.h.b16 %v4022
  %v5306 = vunpack.c.l.b16 %v4023
  %v5307 = vunpack.c.l.b16 %v4024
  %v5308 = vunpack.c.h.b16 %v4024
  %v5309 = vunpack.c.l.b16 %v4025
  %v5310 = vunpack.c.h.b16 %v4025
  %v5311 = vunpack.c.l.b16 %v4026
  %v5312 = vunpack.c.h.b16 %v4026
  %v5313 = vunpack.c.l.b16 %v4027
  %v5314 = vunpack.c.l.b16 %v4028
  %v5315 = vunpack.c.h.b16 %v4028
  %v5316 = vunpack.c.l.b16 %v4029
  %v5317 = vunpack.c.h.b16 %v4029
  %v5318 = vunpack.c.l.b16 %v4030
  %v5319 = vunpack.c.h.b16 %v4030
  %v5320 = vunpack.c.l.b16 %v4031
  %v5321 = vunpack.c.l.b16 %v4032
  %v5322 = vunpack.c.h.b16 %v4032
  %v5323 = vunpack.c.l.b16 %v4033
  %v5324 = vunpack.c.h.b16 %v4033
  %v5325 = vunpack.c.l.b16 %v4034
  %v5326 = vunpack.c.h.b16 %v4034
  %v5327 = vunpack.c.l.b16 %v4035
  %v5328 = vunpack.c.l.b16 %v4036
  %v5329 = vunpack.c.h.b16 %v4036
  %v5330 = vunpack.c.l.b16 %v4037
  %v5331 = vunpack.c.h.b16 %v4037
  %v5332 = vunpack.c.l.b16 %v4038
  %v5333 = vunpack.c.h.b16 %v4038
  %v5334 = vunpack.c.l.b16 %v4039
  %v5335 = vunpack.c.l.b16 %v4040
  %v5336 = vunpack.c.h.b16 %v4040
  %v5337 = vunpack.c.l.b16 %v4041
  %v5338 = vunpack.c.h.b16 %v4041
  %v5339 = vunpack.c.l.b16 %v4042
  %v5340 = vunpack.c.h.b16 %v4042
  %v5341 = vunpack.c.l.b16 %v4043
  %v5342 = vunpack.c.l.b16 %v4044
  %v5343 = vunpack.c.h.b16 %v4044
  %v5344 = vunpack.c.l.b16 %v4045
  %v5345 = vunpack.c.h.b16 %v4045
  %v5346 = vunpack.c.l.b16 %v4046
  %v5347 = vunpack.c.h.b16 %v4046
  %v5348 = vunpack.c.l.b16 %v4047
  %v5349 = vunpack.c.l.b16 %v4048
  %v5350 = vunpack.c.h.b16 %v4048
  %v5351 = vunpack.c.l.b16 %v4049
  %v5352 = vunpack.c.h.b16 %v4049
  %v5353 = vunpack.c.l.b16 %v4050
  %v5354 = vunpack.c.h.b16 %v4050
  %v5355 = vunpack.c.l.b16 %v4051
  %v5356 = vunpack.c.l.b16 %v4052
  %v5357 = vunpack.c.h.b16 %v4052
  %v5358 = vunpack.c.l.b16 %v4053
  %v5359 = vunpack.c.h.b16 %v4053
  %v5360 = vunpack.c.l.b16 %v4054
  %v5361 = vunpack.c.h.b16 %v4054
  %v5362 = vunpack.c.l.b16 %v4055
  %v5363 = vunpack.c.l.b16 %v4056
  %v5364 = vunpack.c.h.b16 %v4056
  %v5365 = vunpack.c.l.b16 %v4057
  %v5366 = vunpack.c.h.b16 %v4057
  %v5367 = vunpack.c.l.b16 %v4058
  %v5368 = vunpack.c.h.b16 %v4058
  %v5369 = vunpack.c.l.b16 %v4059
  %v5370 = vunpack.c.l.b16 %v4060
  %v5371 = vunpack.c.h.b16 %v4060
  %v5372 = vunpack.c.l.b16 %v4061
  %v5373 = vunpack.c.h.b16 %v4061
  %v5374 = vunpack.c.l.b16 %v4062
  %v5375 = vunpack.c.h.b16 %v4062
  %v5376 = vunpack.c.l.b16 %v4063
  %v5377 = vunpack.c.l.b16 %v4064
  %v5378 = vunpack.c.h.b16 %v4064
  %v5379 = vunpack.c.l.b16 %v4065
  %v5380 = vunpack.c.h.b16 %v4065
  %v5381 = vunpack.c.l.b16 %v4066
  %v5382 = vunpack.c.h.b16 %v4066
  %v5383 = vunpack.c.l.b16 %v4067
  %v5384 = vunpack.c.l.b16 %v4068
  %v5385 = vunpack.c.h.b16 %v4068
  %v5386 = vunpack.c.l.b16 %v4069
  %v5387 = vunpack.c.h.b16 %v4069
  %v5388 = vunpack.c.l.b16 %v4070
  %v5389 = vunpack.c.h.b16 %v4070
  %v5390 = vunpack.c.l.b16 %v4071
  %v5391 = vunpack.c.l.b16 %v4072
  %v5392 = vunpack.c.h.b16 %v4072
  %v5393 = vunpack.c.l.b16 %v4073
  %v5394 = vunpack.c.h.b16 %v4073
  %v5395 = vunpack.c.l.b16 %v4074
  %v5396 = vunpack.c.h.b16 %v4074
  %v5397 = vunpack.c.l.b16 %v4075
  %v5398 = vunpack.c.l.b16 %v4076
  %v5399 = vunpack.c.h.b16 %v4076
  %v5400 = vunpack.c.l.b16 %v4077
  %v5401 = vunpack.c.h.b16 %v4077
  %v5402 = vunpack.c.l.b16 %v4078
  %v5403 = vunpack.c.h.b16 %v4078
  %v5404 = vunpack.c.l.b16 %v4079
  %v5405 = vunpack.c.l.b16 %v4080
  %v5406 = vunpack.c.h.b16 %v4080
  %v5407 = vunpack.c.l.b16 %v4081
  %v5408 = vunpack.c.h.b16 %v4081
  %v5409 = vunpack.c.l.b16 %v4082
  %v5410 = vunpack.c.h.b16 %v4082
  %v5411 = vunpack.c.l.b16 %v4083
  %v5412 = vunpack.c.l.b16 %v4084
  %v5413 = vunpack.c.h.b16 %v4084
  %v5414 = vunpack.c.l.b16 %v4085
  %v5415 = vunpack.c.h.b16 %v4085
  %v5416 = vunpack.c.l.b16 %v4086
  %v5417 = vunpack.c.h.b16 %v4086
  %v5418 = vunpack.c.l.b16 %v4087
  %v5419 = vunpack.c.l.b16 %v4088
  %v5420 = vunpack.c.h.b16 %v4088
  %v5421 = vunpack.c.l.b16 %v4089
  %v5422 = vunpack.c.h.b16 %v4089
  %v5423 = vunpack.c.l.b16 %v4090
  %v5424 = vunpack.c.h.b16 %v4090
  %v5425 = vunpack.c.l.b16 %v4091
  %v5426 = vunpack.c.l.b16 %v4092
  %v5427 = vunpack.c.h.b16 %v4092
  %v5428 = vunpack.c.l.b16 %v4093
  %v5429 = vunpack.c.h.b16 %v4093
  %v5430 = vunpack.c.l.b16 %v4094
  %v5431 = vunpack.c.h.b16 %v4094
  %v5432 = vunpack.c.l.b16 %v4095
  %v5433 = vunpack.c.l.b16 %v4096
  %v5434 = vunpack.c.h.b16 %v4096
  %v5435 = vunpack.c.l.b16 %v4097
  %v5436 = vunpack.c.h.b16 %v4097
  %v5437 = vunpack.c.l.b16 %v4098
  %v5438 = vunpack.c.h.b16 %v4098
  %v5439 = vunpack.c.l.b16 %v4099
  %v5440 = vunpack.c.l.b16 %v4100
  %v5441 = vunpack.c.h.b16 %v4100
  %v5442 = vunpack.c.l.b16 %v4101
  %v5443 = vunpack.c.h.b16 %v4101
  %v5444 = vunpack.c.l.b16 %v4102
  %v5445 = vunpack.c.h.b16 %v4102
  %v5446 = vunpack.c.l.b16 %v4103
  %v5447 = vunpack.c.l.b16 %v4104
  %v5448 = vunpack.c.h.b16 %v4104
  %v5449 = vunpack.c.l.b16 %v4105
  %v5450 = vunpack.c.h.b16 %v4105
  %v5451 = vunpack.c.l.b16 %v4106
  %v5452 = vunpack.c.h.b16 %v4106
  %v5453 = vunpack.c.l.b16 %v4107
  %v5454 = vunpack.c.l.b16 %v4108
  %v5455 = vunpack.c.h.b16 %v4108
  %v5456 = vunpack.c.l.b16 %v4109
  %v5457 = vunpack.c.h.b16 %v4109
  %v5458 = vunpack.c.l.b16 %v4110
  %v5459 = vunpack.c.h.b16 %v4110
  %v5460 = vunpack.c.l.b16 %v4111
  %v5461 = vunpack.c.l.b16 %v4112
  %v5462 = vunpack.c.h.b16 %v4112
  %v5463 = vunpack.c.l.b16 %v4113
  %v5464 = vunpack.c.h.b16 %v4113
  %v5465 = vunpack.c.l.b16 %v4114
  %v5466 = vunpack.c.h.b16 %v4114
  %v5467 = vunpack.c.l.b16 %v4115
  %v5468 = vunpack.c.l.b16 %v4116
  %v5469 = vunpack.c.h.b16 %v4116
  %v5470 = vunpack.c.l.b16 %v4117
  %v5471 = vunpack.c.h.b16 %v4117
  %v5472 = vunpack.c.l.b16 %v4118
  %v5473 = vunpack.c.h.b16 %v4118
  %v5474 = vunpack.c.l.b16 %v4119
  %v5475 = vunpack.c.l.b16 %v4120
  %v5476 = vunpack.c.h.b16 %v4120
  %v5477 = vunpack.c.l.b16 %v4121
  %v5478 = vunpack.c.h.b16 %v4121
  %v5479 = vunpack.c.l.b16 %v4122
  %v5480 = vunpack.c.h.b16 %v4122
  %v5481 = vunpack.c.l.b16 %v4123
  %v5482 = vunpack.c.l.b16 %v4124
  %v5483 = vunpack.c.h.b16 %v4124
  %v5484 = vunpack.c.l.b16 %v4125
  %v5485 = vunpack.c.h.b16 %v4125
  %v5486 = vunpack.c.l.b16 %v4126
  %v5487 = vunpack.c.h.b16 %v4126
  %v5488 = vunpack.c.l.b16 %v4127
  %v5489 = vunpack.c.l.b16 %v4128
  %v5490 = vunpack.c.h.b16 %v4128
  %v5491 = vunpack.c.l.b16 %v4129
  %v5492 = vunpack.c.h.b16 %v4129
  %v5493 = vunpack.c.l.b16 %v4130
  %v5494 = vunpack.c.h.b16 %v4130
  %v5495 = vunpack.c.l.b16 %v4131
  %v5496 = vunpack.c.l.b16 %v4132
  %v5497 = vunpack.c.h.b16 %v4132
  %v5498 = vunpack.c.l.b16 %v4133
  %v5499 = vunpack.c.h.b16 %v4133
  %v5500 = vunpack.c.l.b16 %v4134
  %v5501 = vunpack.c.h.b16 %v4134
  %v5502 = vunpack.c.l.b16 %v4135
  %v5503 = vunpack.c.l.b16 %v4136
  %v5504 = vunpack.c.h.b16 %v4136
  %v5505 = vunpack.c.l.b16 %v4137
  %v5506 = vunpack.c.h.b16 %v4137
  %v5507 = vunpack.c.l.b16 %v4138
  %v5508 = vunpack.c.h.b16 %v4138
  %v5509 = vunpack.c.l.b16 %v4139
  %v5510 = vunpack.c.l.b16 %v4140
  %v5511 = vunpack.c.h.b16 %v4140
  %v5512 = vunpack.c.l.b16 %v4141
  %v5513 = vunpack.c.h.b16 %v4141
  %v5514 = vunpack.c.l.b16 %v4142
  %v5515 = vunpack.c.h.b16 %v4142
  %v5516 = vunpack.c.l.b16 %v4143
  %v5517 = vunpack.c.l.b16 %v4144
  %v5518 = vunpack.c.h.b16 %v4144
  %v5519 = vunpack.c.l.b16 %v4145
  %v5520 = vunpack.c.h.b16 %v4145
  %v5521 = vunpack.c.l.b16 %v4146
  %v5522 = vunpack.c.h.b16 %v4146
  %v5523 = vunpack.c.l.b16 %v4147
  %v5524 = vunpack.c.l.b16 %v4148
  %v5525 = vunpack.c.h.b16 %v4148
  %v5526 = vunpack.c.l.b16 %v4149
  %v5527 = vunpack.c.h.b16 %v4149
  %v5528 = vunpack.c.l.b16 %v4150
  %v5529 = vunpack.c.h.b16 %v4150
  %v5530 = vunpack.c.l.b16 %v4151
  %v5531 = vunpack.c.l.b16 %v4152
  %v5532 = vunpack.c.h.b16 %v4152
  %v5533 = vunpack.c.l.b16 %v4153
  %v5534 = vunpack.c.h.b16 %v4153
  %v5535 = vunpack.c.l.b16 %v4154
  %v5536 = vunpack.c.h.b16 %v4154
  %v5537 = vunpack.c.l.b16 %v4155
  %v5538 = vunpack.c.l.b16 %v4156
  %v5539 = vunpack.c.h.b16 %v4156
  %v5540 = vunpack.c.l.b16 %v4157
  %v5541 = vunpack.c.h.b16 %v4157
  %v5542 = vunpack.c.l.b16 %v4158
  %v5543 = vunpack.c.h.b16 %v4158
  %v5544 = vunpack.c.l.b16 %v4159
  %v5545 = vunpack.c.l.b16 %v4160
  %v5546 = vunpack.c.h.b16 %v4160
  %v5547 = vunpack.c.l.b16 %v4161
  %v5548 = vunpack.c.h.b16 %v4161
  %v5549 = vunpack.c.l.b16 %v4162
  %v5550 = vunpack.c.h.b16 %v4162
  %v5551 = vunpack.c.l.b16 %v4163
  %v5552 = vunpack.c.l.b16 %v4164
  %v5553 = vunpack.c.h.b16 %v4164
  %v5554 = vunpack.c.l.b16 %v4165
  %v5555 = vunpack.c.h.b16 %v4165
  %v5556 = vunpack.c.l.b16 %v4166
  %v5557 = vunpack.c.h.b16 %v4166
  %v5558 = vunpack.c.l.b16 %v4167
  %v5559 = vunpack.c.l.b16 %v4168
  %v5560 = vunpack.c.h.b16 %v4168
  %v5561 = vunpack.c.l.b16 %v4169
  %v5562 = vunpack.c.h.b16 %v4169
  %v5563 = vunpack.c.l.b16 %v4170
  %v5564 = vunpack.c.h.b16 %v4170
  %v5565 = vunpack.c.l.b16 %v4171
  %v5566 = vunpack.c.l.b16 %v4172
  %v5567 = vunpack.c.h.b16 %v4172
  %v5568 = vunpack.c.l.b16 %v4173
  %v5569 = vunpack.c.h.b16 %v4173
  %v5570 = vunpack.c.l.b16 %v4174
  %v5571 = vunpack.c.h.b16 %v4174
  %v5572 = vunpack.c.l.b16 %v4175
  %v5573 = vunpack.c.l.b16 %v4176
  %v5574 = vunpack.c.h.b16 %v4176
  %v5575 = vunpack.c.l.b16 %v4177
  %v5576 = vunpack.c.h.b16 %v4177
  %v5577 = vunpack.c.l.b16 %v4178
  %v5578 = vunpack.c.h.b16 %v4178
  %v5579 = vunpack.c.l.b16 %v4179
  %v5580 = vunpack.c.l.b16 %v4180
  %v5581 = vunpack.c.h.b16 %v4180
  %v5582 = vunpack.c.l.b16 %v4181
  %v5583 = vunpack.c.h.b16 %v4181
  %v5584 = vunpack.c.l.b16 %v4182
  %v5585 = vunpack.c.h.b16 %v4182
  %v5586 = vunpack.c.l.b16 %v4183
  %v5587 = vunpack.c.l.b16 %v4184
  %v5588 = vunpack.c.h.b16 %v4184
  %v5589 = vunpack.c.l.b16 %v4185
  %v5590 = vunpack.c.h.b16 %v4185
  %v5591 = vunpack.c.l.b16 %v4186
  %v5592 = vunpack.c.h.b16 %v4186
  %v5593 = vunpack.c.l.b16 %v4187
  %v5594 = vunpack.c.l.b16 %v4188
  %v5595 = vunpack.c.h.b16 %v4188
  %v5596 = vunpack.c.l.b16 %v4189
  %v5597 = vunpack.c.h.b16 %v4189
  %v5598 = vunpack.c.l.b16 %v4190
  %v5599 = vunpack.c.h.b16 %v4190
  %v5600 = vunpack.c.l.b16 %v4191
  %v5601 = vunpack.c.l.b16 %v4192
  %v5602 = vunpack.c.h.b16 %v4192
  %v5603 = vunpack.c.l.b16 %v4193
  %v5604 = vunpack.c.h.b16 %v4193
  %v5605 = vunpack.c.l.b16 %v4194
  %v5606 = vunpack.c.h.b16 %v4194
  %v5607 = vunpack.c.l.b16 %v4195
  %v5608 = vunpack.c.l.b16 %v4196
  %v5609 = vunpack.c.h.b16 %v4196
  %v5610 = vunpack.c.l.b16 %v4197
  %v5611 = vunpack.c.h.b16 %v4197
  %v5612 = vunpack.c.l.b16 %v4198
  %v5613 = vunpack.c.h.b16 %v4198
  %v5614 = vunpack.c.l.b16 %v4199
  %v5615 = vunpack.c.l.b16 %v4200
  %v5616 = vunpack.c.h.b16 %v4200
  %v5617 = vunpack.c.l.b16 %v4201
  %v5618 = vunpack.c.h.b16 %v4201
  %v5619 = vunpack.c.l.b16 %v4202
  %v5620 = vunpack.c.h.b16 %v4202
  %v5621 = vunpack.c.l.b16 %v4203
  %v5622 = vunpack.c.l.b16 %v4204
  %v5623 = vunpack.c.h.b16 %v4204
  %v5624 = vunpack.c.l.b16 %v4205
  %v5625 = vunpack.c.h.b16 %v4205
  %v5626 = vunpack.c.l.b16 %v4206
  %v5627 = vunpack.c.h.b16 %v4206
  %v5628 = vunpack.c.l.b16 %v4207
  %v5629 = vunpack.c.l.b16 %v4208
  %v5630 = vunpack.c.h.b16 %v4208
  %v5631 = vunpack.c.l.b16 %v4209
  %v5632 = vunpack.c.h.b16 %v4209
  %v5633 = vunpack.c.l.b16 %v4210
  %v5634 = vunpack.c.h.b16 %v4210
  %v5635 = vunpack.c.l.b16 %v4211
  %v5636 = vunpack.c.l.b16 %v4212
  %v5637 = vunpack.c.h.b16 %v4212
  %v5638 = vunpack.c.l.b16 %v4213
  %v5639 = vunpack.c.h.b16 %v4213
  %v5640 = vunpack.c.l.b16 %v4214
  %v5641 = vunpack.c.h.b16 %v4214
  %v5642 = vunpack.c.l.b16 %v4215
  %v5643 = vunpack.c.l.b16 %v4216
  %v5644 = vunpack.c.h.b16 %v4216
  %v5645 = vunpack.c.l.b16 %v4217
  %v5646 = vunpack.c.h.b16 %v4217
  %v5647 = vunpack.c.l.b16 %v4218
  %v5648 = vunpack.c.h.b16 %v4218
  %v5649 = vunpack.c.l.b16 %v4219
  %v5650 = vunpack.c.l.b16 %v4220
  %v5651 = vunpack.c.h.b16 %v4220
  %v5652 = vunpack.c.l.b16 %v4221
  %v5653 = vunpack.c.h.b16 %v4221
  %v5654 = vunpack.c.l.b16 %v4222
  %v5655 = vunpack.c.h.b16 %v4222
  %v5656 = vunpack.c.l.b16 %v4223
  %v5657 = vunpack.c.l.b16 %v4224
  %v5658 = vunpack.c.h.b16 %v4224
  %v5659 = vunpack.c.l.b16 %v4225
  %v5660 = vunpack.c.h.b16 %v4225
  %v5661 = vunpack.c.l.b16 %v4226
  %v5662 = vunpack.c.h.b16 %v4226
  %v5663 = vunpack.c.l.b16 %v4227
  %v5664 = vunpack.c.l.b16 %v4228
  %v5665 = vunpack.c.h.b16 %v4228
  %v5666 = vunpack.c.l.b16 %v4229
  %v5667 = vunpack.c.h.b16 %v4229
  %v5668 = vunpack.c.l.b16 %v4230
  %v5669 = vunpack.c.h.b16 %v4230
  %v5670 = vunpack.c.l.b16 %v4231
  %v5671 = vunpack.c.l.b16 %v4232
  %v5672 = vunpack.c.h.b16 %v4232
  %v5673 = vunpack.c.l.b16 %v4233
  %v5674 = vunpack.c.h.b16 %v4233
  %v5675 = vunpack.c.l.b16 %v4234
  %v5676 = vunpack.c.h.b16 %v4234
  %v5677 = vunpack.c.l.b16 %v4235
  %v5678 = vunpack.c.l.b16 %v4236
  %v5679 = vunpack.c.h.b16 %v4236
  %v5680 = vunpack.c.l.b16 %v4237
  %v5681 = vunpack.c.h.b16 %v4237
  %v5682 = vunpack.c.l.b16 %v4238
  %v5683 = vunpack.c.h.b16 %v4238
  %v5684 = vunpack.c.l.b16 %v4239
  %v5685 = vpack.c.b16 %v4796, %v4789
  %v5686 = vpack.c.b16 %v4797, %v4790
  %v5687 = vpack.c.b16 %v4798, %v4791
  %v5688 = vpack.c.b16 %v4799, %v4792
  %v5689 = vpack.c.b16 %v4800, %v4793
  %v5690 = vpack.c.b16 %v4801, %v4794
  %v5691 = vpack.c.b16 %v4802, %v4795
  %v5692 = vpack.c.b16 %v4810, %v4803
  %v5693 = vpack.c.b16 %v4811, %v4804
  %v5694 = vpack.c.b16 %v4812, %v4805
  %v5695 = vpack.c.b16 %v4813, %v4806
  %v5696 = vpack.c.b16 %v4814, %v4807
  %v5697 = vpack.c.b16 %v4815, %v4808
  %v5698 = vpack.c.b16 %v4816, %v4809
  %v5699 = vpack.c.b16 %v4824, %v4817
  %v5700 = vpack.c.b16 %v4825, %v4818
  %v5701 = vpack.c.b16 %v4826, %v4819
  %v5702 = vpack.c.b16 %v4827, %v4820
  %v5703 = vpack.c.b16 %v4828, %v4821
  %v5704 = vpack.c.b16 %v4829, %v4822
  %v5705 = vpack.c.b16 %v4830, %v4823
  %v5706 = vpack.c.b16 %v4838, %v4831
  %v5707 = vpack.c.b16 %v4839, %v4832
  %v5708 = vpack.c.b16 %v4840, %v4833
  %v5709 = vpack.c.b16 %v4841, %v4834
  %v5710 = vpack.c.b16 %v4842, %v4835
  %v5711 = vpack.c.b16 %v4843, %v4836
  %v5712 = vpack.c.b16 %v4844, %v4837
  %v5713 = vpack.c.b16 %v4852, %v4845
  %v5714 = vpack.c.b16 %v4853, %v4846
  %v5715 = vpack.c.b16 %v4854, %v4847
  %v5716 = vpack.c.b16 %v4855, %v4848
  %v5717 = vpack.c.b16 %v4856, %v4849
  %v5718 = vpack.c.b16 %v4857, %v4850
  %v5719 = vpack.c.b16 %v4858, %v4851
  %v5720 = vpack.c.b16 %v4866, %v4859
  %v5721 = vpack.c.b16 %v4867, %v4860
  %v5722 = vpack.c.b16 %v4868, %v4861
  %v5723 = vpack.c.b16 %v4869, %v4862
  %v5724 = vpack.c.b16 %v4870, %v4863
  %v5725 = vpack.c.b16 %v4871, %v4864
  %v5726 = vpack.c.b16 %v4872, %v4865
  %v5727 = vpack.c.b16 %v4880, %v4873
  %v5728 = vpack.c.b16 %v4881, %v4874
  %v5729 = vpack.c.b16 %v4882, %v4875
  %v5730 = vpack.c.b16 %v4883, %v4876
  %v5731 = vpack.c.b16 %v4884, %v4877
  %v5732 = vpack.c.b16 %v4885, %v4878
  %v5733 = vpack.c.b16 %v4886, %v4879
  %v5734 = vpack.c.b16 %v4894, %v4887
  %v5735 = vpack.c.b16 %v4895, %v4888
  %v5736 = vpack.c.b16 %v4896, %v4889
  %v5737 = vpack.c.b16 %v4897, %v4890
  %v5738 = vpack.c.b16 %v4898, %v4891
  %v5739 = vpack.c.b16 %v4899, %v4892
  %v5740 = vpack.c.b16 %v4900, %v4893
  %v5741 = vpack.c.b16 %v4908, %v4901
  %v5742 = vpack.c.b16 %v4909, %v4902
  %v5743 = vpack.c.b16 %v4910, %v4903
  %v5744 = vpack.c.b16 %v4911, %v4904
  %v5745 = vpack.c.b16 %v4912, %v4905
  %v5746 = vpack.c.b16 %v4913, %v4906
  %v5747 = vpack.c.b16 %v4914, %v4907
  %v5748 = vpack.c.b16 %v4922, %v4915
  %v5749 = vpack.c.b16 %v4923, %v4916
  %v5750 = vpack.c.b16 %v4924, %v4917
  %v5751 = vpack.c.b16 %v4925, %v4918
  %v5752 = vpack.c.b16 %v4926, %v4919
  %v5753 = vpack.c.b16 %v4927, %v4920
  %v5754 = vpack.c.b16 %v4928, %v4921
  %v5755 = vpack.c.b16 %v4936, %v4929
  %v5756 = vpack.c.b16 %v4937, %v4930
  %v5757 = vpack.c.b16 %v4938, %v4931
  %v5758 = vpack.c.b16 %v4939, %v4932
  %v5759 = vpack.c.b16 %v4940, %v4933
  %v5760 = vpack.c.b16 %v4941, %v4934
  %v5761 = vpack.c.b16 %v4942, %v4935
  %v5762 = vpack.c.b16 %v4950, %v4943
  %v5763 = vpack.c.b16 %v4951, %v4944
  %v5764 = vpack.c.b16 %v4952, %v4945
  %v5765 = vpack.c.b16 %v4953, %v4946
  %v5766 = vpack.c.b16 %v4954, %v4947
  %v5767 = vpack.c.b16 %v4955, %v4948
  %v5768 = vpack.c.b16 %v4956, %v4949
  %v5769 = vpack.c.b16 %v4964, %v4957
  %v5770 = vpack.c.b16 %v4965, %v4958
  %v5771 = vpack.c.b16 %v4966, %v4959
  %v5772 = vpack.c.b16 %v4967, %v4960
  %v5773 = vpack.c.b16 %v4968, %v4961
  %v5774 = vpack.c.b16 %v4969, %v4962
  %v5775 = vpack.c.b16 %v4970, %v4963
  %v5776 = vpack.c.b16 %v4978, %v4971
  %v5777 = vpack.c.b16 %v4979, %v4972
  %v5778 = vpack.c.b16 %v4980, %v4973
  %v5779 = vpack.c.b16 %v4981, %v4974
  %v5780 = vpack.c.b16 %v4982, %v4975
  %v5781 = vpack.c.b16 %v4983, %v4976
  %v5782 = vpack.c.b16 %v4984, %v4977
  %v5783 = vpack.c.b16 %v4992, %v4985
  %v5784 = vpack.c.b16 %v4993, %v4986
  %v5785 = vpack.c.b16 %v4994, %v4987
  %v5786 = vpack.c.b16 %v4995, %v4988
  %v5787 = vpack.c.b16 %v4996, %v4989
  %v5788 = vpack.c.b16 %v4997, %v4990
  %v5789 = vpack.c.b16 %v4998, %v4991
  %v5790 = vpack.c.b16 %v5006, %v4999
  %v5791 = vpack.c.b16 %v5007, %v5000
  %v5792 = vpack.c.b16 %v5008, %v5001
  %v5793 = vpack.c.b16 %v5009, %v5002
  %v5794 = vpack.c.b16 %v5010, %v5003
  %v5795 = vpack.c.b16 %v5011, %v5004
  %v5796 = vpack.c.b16 %v5012, %v5005
  %v5797 = vpack.c.b16 %v5020, %v5013
  %v5798 = vpack.c.b16 %v5021, %v5014
  %v5799 = vpack.c.b16 %v5022, %v5015
  %v5800 = vpack.c.b16 %v5023, %v5016
  %v5801 = vpack.c.b16 %v5024, %v5017
  %v5802 = vpack.c.b16 %v5025, %v5018
  %v5803 = vpack.c.b16 %v5026, %v5019
  %v5804 = vpack.c.b16 %v5034, %v5027
  %v5805 = vpack.c.b16 %v5035, %v5028
  %v5806 = vpack.c.b16 %v5036, %v5029
  %v5807 = vpack.c.b16 %v5037, %v5030
  %v5808 = vpack.c.b16 %v5038, %v5031
  %v5809 = vpack.c.b16 %v5039, %v5032
  %v5810 = vpack.c.b16 %v5040, %v5033
  %v5811 = vpack.c.b16 %v5048, %v5041
  %v5812 = vpack.c.b16 %v5049, %v5042
  %v5813 = vpack.c.b16 %v5050, %v5043
  %v5814 = vpack.c.b16 %v5051, %v5044
  %v5815 = vpack.c.b16 %v5052, %v5045
  %v5816 = vpack.c.b16 %v5053, %v5046
  %v5817 = vpack.c.b16 %v5054, %v5047
  %v5818 = vpack.c.b16 %v5062, %v5055
  %v5819 = vpack.c.b16 %v5063, %v5056
  %v5820 = vpack.c.b16 %v5064, %v5057
  %v5821 = vpack.c.b16 %v5065, %v5058
  %v5822 = vpack.c.b16 %v5066, %v5059
  %v5823 = vpack.c.b16 %v5067, %v5060
  %v5824 = vpack.c.b16 %v5068, %v5061
  %v5825 = vpack.c.b16 %v5076, %v5069
  %v5826 = vpack.c.b16 %v5077, %v5070
  %v5827 = vpack.c.b16 %v5078, %v5071
  %v5828 = vpack.c.b16 %v5079, %v5072
  %v5829 = vpack.c.b16 %v5080, %v5073
  %v5830 = vpack.c.b16 %v5081, %v5074
  %v5831 = vpack.c.b16 %v5082, %v5075
  %v5832 = vpack.c.b16 %v5090, %v5083
  %v5833 = vpack.c.b16 %v5091, %v5084
  %v5834 = vpack.c.b16 %v5092, %v5085
  %v5835 = vpack.c.b16 %v5093, %v5086
  %v5836 = vpack.c.b16 %v5094, %v5087
  %v5837 = vpack.c.b16 %v5095, %v5088
  %v5838 = vpack.c.b16 %v5096, %v5089
  %v5839 = vpack.c.b16 %v5104, %v5097
  %v5840 = vpack.c.b16 %v5105, %v5098
  %v5841 = vpack.c.b16 %v5106, %v5099
  %v5842 = vpack.c.b16 %v5107, %v5100
  %v5843 = vpack.c.b16 %v5108, %v5101
  %v5844 = vpack.c.b16 %v5109, %v5102
  %v5845 = vpack.c.b16 %v5110, %v5103
  %v5846 = vpack.c.b16 %v5118, %v5111
  %v5847 = vpack.c.b16 %v5119, %v5112
  %v5848 = vpack.c.b16 %v5120, %v5113
  %v5849 = vpack.c.b16 %v5121, %v5114
  %v5850 = vpack.c.b16 %v5122, %v5115
  %v5851 = vpack.c.b16 %v5123, %v5116
  %v5852 = vpack.c.b16 %v5124, %v5117
  %v5853 = vpack.c.b16 %v5132, %v5125
  %v5854 = vpack.c.b16 %v5133, %v5126
  %v5855 = vpack.c.b16 %v5134, %v5127
  %v5856 = vpack.c.b16 %v5135, %v5128
  %v5857 = vpack.c.b16 %v5136, %v5129
  %v5858 = vpack.c.b16 %v5137, %v5130
  %v5859 = vpack.c.b16 %v5138, %v5131
  %v5860 = vpack.c.b16 %v5146, %v5139
  %v5861 = vpack.c.b16 %v5147, %v5140
  %v5862 = vpack.c.b16 %v5148, %v5141
  %v5863 = vpack.c.b16 %v5149, %v5142
  %v5864 = vpack.c.b16 %v5150, %v5143
  %v5865 = vpack.c.b16 %v5151, %v5144
  %v5866 = vpack.c.b16 %v5152, %v5145
  %v5867 = vpack.c.b16 %v5160, %v5153
  %v5868 = vpack.c.b16 %v5161, %v5154
  %v5869 = vpack.c.b16 %v5162, %v5155
  %v5870 = vpack.c.b16 %v5163, %v5156
  %v5871 = vpack.c.b16 %v5164, %v5157
  %v5872 = vpack.c.b16 %v5165, %v5158
  %v5873 = vpack.c.b16 %v5166, %v5159
  %v5874 = vpack.c.b16 %v5174, %v5167
  %v5875 = vpack.c.b16 %v5175, %v5168
  %v5876 = vpack.c.b16 %v5176, %v5169
  %v5877 = vpack.c.b16 %v5177, %v5170
  %v5878 = vpack.c.b16 %v5178, %v5171
  %v5879 = vpack.c.b16 %v5179, %v5172
  %v5880 = vpack.c.b16 %v5180, %v5173
  %v5881 = vpack.c.b16 %v5188, %v5181
  %v5882 = vpack.c.b16 %v5189, %v5182
  %v5883 = vpack.c.b16 %v5190, %v5183
  %v5884 = vpack.c.b16 %v5191, %v5184
  %v5885 = vpack.c.b16 %v5192, %v5185
  %v5886 = vpack.c.b16 %v5193, %v5186
  %v5887 = vpack.c.b16 %v5194, %v5187
  %v5888 = vpack.c.b16 %v5202, %v5195
  %v5889 = vpack.c.b16 %v5203, %v5196
  %v5890 = vpack.c.b16 %v5204, %v5197
  %v5891 = vpack.c.b16 %v5205, %v5198
  %v5892 = vpack.c.b16 %v5206, %v5199
  %v5893 = vpack.c.b16 %v5207, %v5200
  %v5894 = vpack.c.b16 %v5208, %v5201
  %v5895 = vpack.c.b16 %v5216, %v5209
  %v5896 = vpack.c.b16 %v5217, %v5210
  %v5897 = vpack.c.b16 %v5218, %v5211
  %v5898 = vpack.c.b16 %v5219, %v5212
  %v5899 = vpack.c.b16 %v5220, %v5213
  %v5900 = vpack.c.b16 %v5221, %v5214
  %v5901 = vpack.c.b16 %v5222, %v5215
  %v5902 = vpack.c.b16 %v5230, %v5223
  %v5903 = vpack.c.b16 %v5231, %v5224
  %v5904 = vpack.c.b16 %v5232, %v5225
  %v5905 = vpack.c.b16 %v5233, %v5226
  %v5906 = vpack.c.b16 %v5234, %v5227
  %v5907 = vpack.c.b16 %v5235, %v5228
  %v5908 = vpack.c.b16 %v5236, %v5229
  %v5909 = vpack.c.b16 %v5244, %v5237
  %v5910 = vpack.c.b16 %v5245, %v5238
  %v5911 = vpack.c.b16 %v5246, %v5239
  %v5912 = vpack.c.b16 %v5247, %v5240
  %v5913 = vpack.c.b16 %v5248, %v5241
  %v5914 = vpack.c.b16 %v5249, %v5242
  %v5915 = vpack.c.b16 %v5250, %v5243
  %v5916 = vpack.c.b16 %v5258, %v5251
  %v5917 = vpack.c.b16 %v5259, %v5252
  %v5918 = vpack.c.b16 %v5260, %v5253
  %v5919 = vpack.c.b16 %v5261, %v5254
  %v5920 = vpack.c.b16 %v5262, %v5255
  %v5921 = vpack.c.b16 %v5263, %v5256
  %v5922 = vpack.c.b16 %v5264, %v5257
  %v5923 = vpack.c.b16 %v5272, %v5265
  %v5924 = vpack.c.b16 %v5273, %v5266
  %v5925 = vpack.c.b16 %v5274, %v5267
  %v5926 = vpack.c.b16 %v5275, %v5268
  %v5927 = vpack.c.b16 %v5276, %v5269
  %v5928 = vpack.c.b16 %v5277, %v5270
  %v5929 = vpack.c.b16 %v5278, %v5271
  %v5930 = vpack.c.b16 %v5286, %v5279
  %v5931 = vpack.c.b16 %v5287, %v5280
  %v5932 = vpack.c.b16 %v5288, %v5281
  %v5933 = vpack.c.b16 %v5289, %v5282
  %v5934 = vpack.c.b16 %v5290, %v5283
  %v5935 = vpack.c.b16 %v5291, %v5284
  %v5936 = vpack.c.b16 %v5292, %v5285
  %v5937 = vpack.c.b16 %v5300, %v5293
  %v5938 = vpack.c.b16 %v5301, %v5294
  %v5939 = vpack.c.b16 %v5302, %v5295
  %v5940 = vpack.c.b16 %v5303, %v5296
  %v5941 = vpack.c.b16 %v5304, %v5297
  %v5942 = vpack.c.b16 %v5305, %v5298
  %v5943 = vpack.c.b16 %v5306, %v5299
  %v5944 = vpack.c.b16 %v5314, %v5307
  %v5945 = vpack.c.b16 %v5315, %v5308
  %v5946 = vpack.c.b16 %v5316, %v5309
  %v5947 = vpack.c.b16 %v5317, %v5310
  %v5948 = vpack.c.b16 %v5318, %v5311
  %v5949 = vpack.c.b16 %v5319, %v5312
  %v5950 = vpack.c.b16 %v5320, %v5313
  %v5951 = vpack.c.b16 %v5328, %v5321
  %v5952 = vpack.c.b16 %v5329, %v5322
  %v5953 = vpack.c.b16 %v5330, %v5323
  %v5954 = vpack.c.b16 %v5331, %v5324
  %v5955 = vpack.c.b16 %v5332, %v5325
  %v5956 = vpack.c.b16 %v5333, %v5326
  %v5957 = vpack.c.b16 %v5334, %v5327
  %v5958 = vpack.c.b16 %v5342, %v5335
  %v5959 = vpack.c.b16 %v5343, %v5336
  %v5960 = vpack.c.b16 %v5344, %v5337
  %v5961 = vpack.c.b16 %v5345, %v5338
  %v5962 = vpack.c.b16 %v5346, %v5339
  %v5963 = vpack.c.b16 %v5347, %v5340
  %v5964 = vpack.c.b16 %v5348, %v5341
  %v5965 = vpack.c.b16 %v5356, %v5349
  %v5966 = vpack.c.b16 %v5357, %v5350
  %v5967 = vpack.c.b16 %v5358, %v5351
  %v5968 = vpack.c.b16 %v5359, %v5352
  %v5969 = vpack.c.b16 %v5360, %v5353
  %v5970 = vpack.c.b16 %v5361, %v5354
  %v5971 = vpack.c.b16 %v5362, %v5355
  %v5972 = vpack.c.b16 %v5370, %v5363
  %v5973 = vpack.c.b16 %v5371, %v5364
  %v5974 = vpack.c.b16 %v5372, %v5365
  %v5975 = vpack.c.b16 %v5373, %v5366
  %v5976 = vpack.c.b16 %v5374, %v5367
  %v5977 = vpack.c.b16 %v5375, %v5368
  %v5978 = vpack.c.b16 %v5376, %v5369
  %v5979 = vpack.c.b16 %v5384, %v5377
  %v5980 = vpack.c.b16 %v5385, %v5378
  %v5981 = vpack.c.b16 %v5386, %v5379
  %v5982 = vpack.c.b16 %v5387, %v5380
  %v5983 = vpack.c.b16 %v5388, %v5381
  %v5984 = vpack.c.b16 %v5389, %v5382
  %v5985 = vpack.c.b16 %v5390, %v5383
  %v5986 = vpack.c.b16 %v5398, %v5391
  %v5987 = vpack.c.b16 %v5399, %v5392
  %v5988 = vpack.c.b16 %v5400, %v5393
  %v5989 = vpack.c.b16 %v5401, %v5394
  %v5990 = vpack.c.b16 %v5402, %v5395
  %v5991 = vpack.c.b16 %v5403, %v5396
  %v5992 = vpack.c.b16 %v5404, %v5397
  %v5993 = vpack.c.b16 %v5412, %v5405
  %v5994 = vpack.c.b16 %v5413, %v5406
  %v5995 = vpack.c.b16 %v5414, %v5407
  %v5996 = vpack.c.b16 %v5415, %v5408
  %v5997 = vpack.c.b16 %v5416, %v5409
  %v5998 = vpack.c.b16 %v5417, %v5410
  %v5999 = vpack.c.b16 %v5418, %v5411
  %v6000 = vpack.c.b16 %v5426, %v5419
  %v6001 = vpack.c.b16 %v5427, %v5420
  %v6002 = vpack.c.b16 %v5428, %v5421
  %v6003 = vpack.c.b16 %v5429, %v5422
  %v6004 = vpack.c.b16 %v5430, %v5423
  %v6005 = vpack.c.b16 %v5431, %v5424
  %v6006 = vpack.c.b16 %v5432, %v5425
  %v6007 = vpack.c.b16 %v5440, %v5433
  %v6008 = vpack.c.b16 %v5441, %v5434
  %v6009 = vpack.c.b16 %v5442, %v5435
  %v6010 = vpack.c.b16 %v5443, %v5436
  %v6011 = vpack.c.b16 %v5444, %v5437
  %v6012 = vpack.c.b16 %v5445, %v5438
  %v6013 = vpack.c.b16 %v5446, %v5439
  %v6014 = vpack.c.b16 %v5454, %v5447
  %v6015 = vpack.c.b16 %v5455, %v5448
  %v6016 = vpack.c.b16 %v5456, %v5449
  %v6017 = vpack.c.b16 %v5457, %v5450
  %v6018 = vpack.c.b16 %v5458, %v5451
  %v6019 = vpack.c.b16 %v5459, %v5452
  %v6020 = vpack.c.b16 %v5460, %v5453
  %v6021 = vpack.c.b16 %v5468, %v5461
  %v6022 = vpack.c.b16 %v5469, %v5462
  %v6023 = vpack.c.b16 %v5470, %v5463
  %v6024 = vpack.c.b16 %v5471, %v5464
  %v6025 = vpack.c.b16 %v5472, %v5465
  %v6026 = vpack.c.b16 %v5473, %v5466
  %v6027 = vpack.c.b16 %v5474, %v5467
  %v6028 = vpack.c.b16 %v5482, %v5475
  %v6029 = vpack.c.b16 %v5483, %v5476
  %v6030 = vpack.c.b16 %v5484, %v5477
  %v6031 = vpack.c.b16 %v5485, %v5478
  %v6032 = vpack.c.b16 %v5486, %v5479
  %v6033 = vpack.c.b16 %v5487, %v5480
  %v6034 = vpack.c.b16 %v5488, %v5481
  %v6035 = vpack.c.b16 %v5496, %v5489
  %v6036 = vpack.c.b16 %v5497, %v5490
  %v6037 = vpack.c.b16 %v5498, %v5491
  %v6038 = vpack.c.b16 %v5499, %v5492
  %v6039 = vpack.c.b16 %v5500, %v5493
  %v6040 = vpack.c.b16 %v5501, %v5494
  %v6041 = vpack.c.b16 %v5502, %v5495
  %v6042 = vpack.c.b16 %v5510, %v5503
  %v6043 = vpack.c.b16 %v5511, %v5504
  %v6044 = vpack.c.b16 %v5512, %v5505
  %v6045 = vpack.c.b16 %v5513, %v5506
  %v6046 = vpack.c.b16 %v5514, %v5507
  %v6047 = vpack.c.b16 %v5515, %v5508
  %v6048 = vpack.c.b16 %v5516, %v5509
  %v6049 = vpack.c.b16 %v5524, %v5517
  %v6050 = vpack.c.b16 %v5525, %v5518
  %v6051 = vpack.c.b16 %v5526, %v5519
  %v6052 = vpack.c.b16 %v5527, %v5520
  %v6053 = vpack.c.b16 %v5528, %v5521
  %v6054 = vpack.c.b16 %v5529, %v5522
  %v6055 = vpack.c.b16 %v5530, %v5523
  %v6056 = vpack.c.b16 %v5538, %v5531
  %v6057 = vpack.c.b16 %v5539, %v5532
  %v6058 = vpack.c.b16 %v5540, %v5533
  %v6059 = vpack.c.b16 %v5541, %v5534
  %v6060 = vpack.c.b16 %v5542, %v5535
  %v6061 = vpack.c.b16 %v5543, %v5536
  %v6062 = vpack.c.b16 %v5544, %v5537
  %v6063 = vpack.c.b16 %v5552, %v5545
  %v6064 = vpack.c.b16 %v5553, %v5546
  %v6065 = vpack.c.b16 %v5554, %v5547
  %v6066 = vpack.c.b16 %v5555, %v5548
  %v6067 = vpack.c.b16 %v5556, %v5549
  %v6068 = vpack.c.b16 %v5557, %v5550
  %v6069 = vpack.c.b16 %v5558, %v5551
  %v6070 = vpack.c.b16 %v5566, %v5559
  %v6071 = vpack.c.b16 %v5567, %v5560
  %v6072 = vpack.c.b16 %v5568, %v5561
  %v6073 = vpack.c.b16 %v5569, %v5562
  %v6074 = vpack.c.b16 %v5570, %v5563
  %v6075 = vpack.c.b16 %v5571, %v5564
  %v6076 = vpack.c.b16 %v5572, %v5565
  %v6077 = vpack.c.b16 %v5580, %v5573
  %v6078 = vpack.c.b16 %v5581, %v5574
  %v6079 = vpack.c.b16 %v5582, %v5575
  %v6080 = vpack.c.b16 %v5583, %v5576
  %v6081 = vpack.c.b16 %v5584, %v5577
  %v6082 = vpack.c.b16 %v5585, %v5578
  %v6083 = vpack.c.b16 %v5586, %v5579
  %v6084 = vpack.c.b16 %v5594, %v5587
  %v6085 = vpack.c.b16 %v5595, %v5588
  %v6086 = vpack.c.b16 %v5596, %v5589
  %v6087 = vpack.c.b16 %v5597, %v5590
  %v6088 = vpack.c.b16 %v5598, %v5591
  %v6089 = vpack.c.b16 %v5599, %v5592
  %v6090 = vpack.c.b16 %v5600, %v5593
  %v6091 = vpack.c.b16 %v5608, %v5601
  %v6092 = vpack.c.b16 %v5609, %v5602
  %v6093 = vpack.c.b16 %v5610, %v5603
  %v6094 = vpack.c.b16 %v5611, %v5604
  %v6095 = vpack.c.b16 %v5612, %v5605
  %v6096 = vpack.c.b16 %v5613, %v5606
  %v6097 = vpack.c.b16 %v5614, %v5607
  %v6098 = vpack.c.b16 %v5622, %v5615
  %v6099 = vpack.c.b16 %v5623, %v5616
  %v6100 = vpack.c.b16 %v5624, %v5617
  %v6101 = vpack.c.b16 %v5625, %v5618
  %v6102 = vpack.c.b16 %v5626, %v5619
  %v6103 = vpack.c.b16 %v5627, %v5620
  %v6104 = vpack.c.b16 %v5628, %v5621
  %v6105 = vpack.c.b16 %v5636, %v5629
  %v6106 = vpack.c.b16 %v5637, %v5630
  %v6107 = vpack.c.b16 %v5638, %v5631
  %v6108 = vpack.c.b16 %v5639, %v5632
  %v6109 = vpack.c.b16 %v5640, %v5633
  %v6110 = vpack.c.b16 %v5641, %v5634
  %v6111 = vpack.c.b16 %v5642, %v5635
  %v6112 = vpack.c.b16 %v5650, %v5643
  %v6113 = vpack.c.b16 %v5651, %v5644
  %v6114 = vpack.c.b16 %v5652, %v5645
  %v6115 = vpack.c.b16 %v5653, %v5646
  %v6116 = vpack.c.b16 %v5654, %v5647
  %v6117 = vpack.c.b16 %v5655, %v5648
  %v6118 = vpack.c.b16 %v5656, %v5649
  %v6119 = vpack.c.b16 %v5664, %v5657
  %v6120 = vpack.c.b16 %v5665, %v5658
  %v6121 = vpack.c.b16 %v5666, %v5659
  %v6122 = vpack.c.b16 %v5667, %v5660
  %v6123 = vpack.c.b16 %v5668, %v5661
  %v6124 = vpack.c.b16 %v5669, %v5662
  %v6125 = vpack.c.b16 %v5670, %v5663
  %v6126 = vpack.c.b16 %v5678, %v5671
  %v6127 = vpack.c.b16 %v5679, %v5672
  %v6128 = vpack.c.b16 %v5680, %v5673
  %v6129 = vpack.c.b16 %v5681, %v5674
  %v6130 = vpack.c.b16 %v5682, %v5675
  %v6131 = vpack.c.b16 %v5683, %v5676
  %v6132 = vpack.c.b16 %v5684, %v5677
  %6581 = vmatprep.subr.bf16.mxu0 %v5735
  %6582 = vmatpush1.bf16.msra.mxu0 %v5734
  %6583 = vmatprep.subr.bf16.mxu0 %v5728
  %6584 = vmatpush1.bf16.msra.mxu0 %v5727
  %6585 = vmatprep.subr.bf16.mxu0 %v5721
  %6586 = vmatpush1.bf16.msra.mxu0 %v5720
  %6587 = vmatprep.subr.bf16.mxu0 %v5714
  %6588 = vmatpush1.bf16.msra.mxu0 %v5713
  %6589 = vmatprep.subr.bf16.mxu0 %v5707
  %6590 = vmatpush1.bf16.msra.mxu0 %v5706
  %6591 = vmatprep.subr.bf16.mxu0 %v5700
  %6592 = vmatpush1.bf16.msra.mxu0 %v5699
  %6593 = vmatprep.subr.bf16.mxu0 %v5693
  %6594 = vmatpush1.bf16.msra.mxu0 %v5692
  %6595 = vmatprep.subr.bf16.mxu0 %v5686
  %6596 = vmatpush1.bf16.msra.mxu0 %v5685
  %6597 = vmatprep.subr.bf16.mxu0 %v5791
  %6598 = vmatpush2.bf16.msra.mxu0 %v5790
  %6599 = vmatprep.subr.bf16.mxu0 %v5784
  %6600 = vmatpush2.bf16.msra.mxu0 %v5783
  %6601 = vmatprep.subr.bf16.mxu0 %v5777
  %6602 = vmatpush2.bf16.msra.mxu0 %v5776
  %6603 = vmatprep.subr.bf16.mxu0 %v5770
  %6604 = vmatpush2.bf16.msra.mxu0 %v5769
  %6605 = vmatprep.subr.bf16.mxu0 %v5763
  %6606 = vmatpush2.bf16.msra.mxu0 %v5762
  %6607 = vmatprep.subr.bf16.mxu0 %v5756
  %6608 = vmatpush2.bf16.msra.mxu0 %v5755
  %6609 = vmatprep.subr.bf16.mxu0 %v5749
  %6610 = vmatpush2.bf16.msra.mxu0 %v5748
  %6611 = vmatprep.subr.bf16.mxu0 %v5742
  %6612 = vmatpush2.bf16.msra.mxu0 %v5741
  %6613 = vmatprep.mubr.bf16.mxu0 %v3665
  %6614 = vmatmul.mubr.bf16.gmra.mxu0 %v3664
  %v6615 = vpop.f32.mrf.mxu0
  %v6616 = vadd.f32 %v4245, %v6615
  %v6617 = vpop.f32.mrf.mxu0
  %v6618 = vadd.f32 %v4249, %v6617
  %v6619 = vpop.f32.mrf.mxu0
  %v6620 = vadd.f32 %v4245, %v6619
  %v6621 = vpop.f32.mrf.mxu0
  %v6622 = vadd.f32 %v4249, %v6621
  %6623 = vmatprep.mubr.bf16.mxu0 %v3673
  %6624 = vmatmul.mubr.bf16.gmra.mxu0 %v3672
  %v6625 = vpop.f32.mrf.mxu0
  %v6626 = vadd.f32 %v4245, %v6625
  %v6627 = vpop.f32.mrf.mxu0
  %v6628 = vadd.f32 %v4249, %v6627
  %v6629 = vpop.f32.mrf.mxu0
  %v6630 = vadd.f32 %v4245, %v6629
  %v6631 = vpop.f32.mrf.mxu0
  %v6632 = vadd.f32 %v4249, %v6631
  %6633 = vmatprep.mubr.bf16.mxu0 %v3681
  %6634 = vmatmul.mubr.bf16.gmra.mxu0 %v3680
  %v6635 = vpop.f32.mrf.mxu0
  %v6636 = vadd.f32 %v4245, %v6635
  %v6637 = vpop.f32.mrf.mxu0
  %v6638 = vadd.f32 %v4249, %v6637
  %v6639 = vpop.f32.mrf.mxu0
  %v6640 = vadd.f32 %v4245, %v6639
  %v6641 = vpop.f32.mrf.mxu0
  %v6642 = vadd.f32 %v4249, %v6641
  %6643 = vmatprep.mubr.bf16.mxu0 %v3689
  %6644 = vmatmul.mubr.bf16.gmra.mxu0 %v3688
  %v6645 = vpop.f32.mrf.mxu0
  %v6646 = vadd.f32 %v4245, %v6645
  %v6647 = vpop.f32.mrf.mxu0
  %v6648 = vadd.f32 %v4249, %v6647
  %v6649 = vpop.f32.mrf.mxu0
  %v6650 = vadd.f32 %v4245, %v6649
  %v6651 = vpop.f32.mrf.mxu0
  %v6652 = vadd.f32 %v4249, %v6651
  %6653 = vmatprep.mubr.bf16.mxu0 %v3697
  %6654 = vmatmul.mubr.bf16.gmra.mxu0 %v3696
  %v6655 = vpop.f32.mrf.mxu0
  %v6656 = vadd.f32 %v4245, %v6655
  %v6657 = vpop.f32.mrf.mxu0
  %v6658 = vadd.f32 %v4249, %v6657
  %v6659 = vpop.f32.mrf.mxu0
  %v6660 = vadd.f32 %v4245, %v6659
  %v6661 = vpop.f32.mrf.mxu0
  %v6662 = vadd.f32 %v4249, %v6661
  %6663 = vmatprep.mubr.bf16.mxu0 %v3705
  %6664 = vmatmul.mubr.bf16.gmra.mxu0 %v3704
  %v6665 = vpop.f32.mrf.mxu0
  %v6666 = vadd.f32 %v4245, %v6665
  %v6667 = vpop.f32.mrf.mxu0
  %v6668 = vadd.f32 %v4249, %v6667
  %v6669 = vpop.f32.mrf.mxu0
  %v6670 = vadd.f32 %v4245, %v6669
  %v6671 = vpop.f32.mrf.mxu0
  %v6672 = vadd.f32 %v4249, %v6671
  %6673 = vmatprep.mubr.bf16.mxu0 %v3713
  %6674 = vmatmul.mubr.bf16.gmra.mxu0 %v3712
  %v6675 = vpop.f32.mrf.mxu0
  %v6676 = vadd.f32 %v4245, %v6675
  %v6677 = vpop.f32.mrf.mxu0
  %v6678 = vadd.f32 %v4249, %v6677
  %v6679 = vpop.f32.mrf.mxu0
  %v6680 = vadd.f32 %v4245, %v6679
  %v6681 = vpop.f32.mrf.mxu0
  %v6682 = vadd.f32 %v4249, %v6681
  %6683 = vmatprep.mubr.bf16.mxu0 %v3721
  %6684 = vmatmul.mubr.bf16.gmra.mxu0 %v3720
  %v6685 = vpop.f32.mrf.mxu0
  %v6686 = vadd.f32 %v4245, %v6685
  %v6687 = vpop.f32.mrf.mxu0
  %v6688 = vadd.f32 %v4249, %v6687
  %v6689 = vpop.f32.mrf.mxu0
  %v6690 = vadd.f32 %v4245, %v6689
  %v6691 = vpop.f32.mrf.mxu0
  %v6692 = vadd.f32 %v4249, %v6691
  %6693 = vdwg.mxu0
  %6694 = vmatprep.subr.bf16.mxu0 %v5847
  %6695 = vmatpush1.bf16.msra.mxu0 %v5846
  %6696 = vmatprep.subr.bf16.mxu0 %v5840
  %6697 = vmatpush1.bf16.msra.mxu0 %v5839
  %6698 = vmatprep.subr.bf16.mxu0 %v5833
  %6699 = vmatpush1.bf16.msra.mxu0 %v5832
  %6700 = vmatprep.subr.bf16.mxu0 %v5826
  %6701 = vmatpush1.bf16.msra.mxu0 %v5825
  %6702 = vmatprep.subr.bf16.mxu0 %v5819
  %6703 = vmatpush1.bf16.msra.mxu0 %v5818
  %6704 = vmatprep.subr.bf16.mxu0 %v5812
  %6705 = vmatpush1.bf16.msra.mxu0 %v5811
  %6706 = vmatprep.subr.bf16.mxu0 %v5805
  %6707 = vmatpush1.bf16.msra.mxu0 %v5804
  %6708 = vmatprep.subr.bf16.mxu0 %v5798
  %6709 = vmatpush1.bf16.msra.mxu0 %v5797
  %6710 = vmatprep.subr.bf16.mxu0 %v5903
  %6711 = vmatpush2.bf16.msra.mxu0 %v5902
  %6712 = vmatprep.subr.bf16.mxu0 %v5896
  %6713 = vmatpush2.bf16.msra.mxu0 %v5895
  %6714 = vmatprep.subr.bf16.mxu0 %v5889
  %6715 = vmatpush2.bf16.msra.mxu0 %v5888
  %6716 = vmatprep.subr.bf16.mxu0 %v5882
  %6717 = vmatpush2.bf16.msra.mxu0 %v5881
  %6718 = vmatprep.subr.bf16.mxu0 %v5875
  %6719 = vmatpush2.bf16.msra.mxu0 %v5874
  %6720 = vmatprep.subr.bf16.mxu0 %v5868
  %6721 = vmatpush2.bf16.msra.mxu0 %v5867
  %6722 = vmatprep.subr.bf16.mxu0 %v5861
  %6723 = vmatpush2.bf16.msra.mxu0 %v5860
  %6724 = vmatprep.subr.bf16.mxu0 %v5854
  %6725 = vmatpush2.bf16.msra.mxu0 %v5853
  %6726 = vmatprep.mubr.bf16.mxu0 %v3667
  %6727 = vmatmul.mubr.bf16.gmra.mxu0 %v3666
  %v6728 = vpop.f32.mrf.mxu0
  %v6729 = vadd.f32 %v6616, %v6728
  %v6730 = vpop.f32.mrf.mxu0
  %v6731 = vadd.f32 %v6618, %v6730
  %v6732 = vpop.f32.mrf.mxu0
  %v6733 = vadd.f32 %v6620, %v6732
  %v6734 = vpop.f32.mrf.mxu0
  %v6735 = vadd.f32 %v6622, %v6734
  %6736 = vmatprep.mubr.bf16.mxu0 %v3675
  %6737 = vmatmul.mubr.bf16.gmra.mxu0 %v3674
  %v6738 = vpop.f32.mrf.mxu0
  %v6739 = vadd.f32 %v6626, %v6738
  %v6740 = vpop.f32.mrf.mxu0
  %v6741 = vadd.f32 %v6628, %v6740
  %v6742 = vpop.f32.mrf.mxu0
  %v6743 = vadd.f32 %v6630, %v6742
  %v6744 = vpop.f32.mrf.mxu0
  %v6745 = vadd.f32 %v6632, %v6744
  %6746 = vmatprep.mubr.bf16.mxu0 %v3683
  %6747 = vmatmul.mubr.bf16.gmra.mxu0 %v3682
  %v6748 = vpop.f32.mrf.mxu0
  %v6749 = vadd.f32 %v6636, %v6748
  %v6750 = vpop.f32.mrf.mxu0
  %v6751 = vadd.f32 %v6638, %v6750
  %v6752 = vpop.f32.mrf.mxu0
  %v6753 = vadd.f32 %v6640, %v6752
  %v6754 = vpop.f32.mrf.mxu0
  %v6755 = vadd.f32 %v6642, %v6754
  %6756 = vmatprep.mubr.bf16.mxu0 %v3691
  %6757 = vmatmul.mubr.bf16.gmra.mxu0 %v3690
  %v6758 = vpop.f32.mrf.mxu0
  %v6759 = vadd.f32 %v6646, %v6758
  %v6760 = vpop.f32.mrf.mxu0
  %v6761 = vadd.f32 %v6648, %v6760
  %v6762 = vpop.f32.mrf.mxu0
  %v6763 = vadd.f32 %v6650, %v6762
  %v6764 = vpop.f32.mrf.mxu0
  %v6765 = vadd.f32 %v6652, %v6764
  %6766 = vmatprep.mubr.bf16.mxu0 %v3699
  %6767 = vmatmul.mubr.bf16.gmra.mxu0 %v3698
  %v6768 = vpop.f32.mrf.mxu0
  %v6769 = vadd.f32 %v6656, %v6768
  %v6770 = vpop.f32.mrf.mxu0
  %v6771 = vadd.f32 %v6658, %v6770
  %v6772 = vpop.f32.mrf.mxu0
  %v6773 = vadd.f32 %v6660, %v6772
  %v6774 = vpop.f32.mrf.mxu0
  %v6775 = vadd.f32 %v6662, %v6774
  %6776 = vmatprep.mubr.bf16.mxu0 %v3707
  %6777 = vmatmul.mubr.bf16.gmra.mxu0 %v3706
  %v6778 = vpop.f32.mrf.mxu0
  %v6779 = vadd.f32 %v6666, %v6778
  %v6780 = vpop.f32.mrf.mxu0
  %v6781 = vadd.f32 %v6668, %v6780
  %v6782 = vpop.f32.mrf.mxu0
  %v6783 = vadd.f32 %v6670, %v6782
  %v6784 = vpop.f32.mrf.mxu0
  %v6785 = vadd.f32 %v6672, %v6784
  %6786 = vmatprep.mubr.bf16.mxu0 %v3715
  %6787 = vmatmul.mubr.bf16.gmra.mxu0 %v3714
  %v6788 = vpop.f32.mrf.mxu0
  %v6789 = vadd.f32 %v6676, %v6788
  %v6790 = vpop.f32.mrf.mxu0
  %v6791 = vadd.f32 %v6678, %v6790
  %v6792 = vpop.f32.mrf.mxu0
  %v6793 = vadd.f32 %v6680, %v6792
  %v6794 = vpop.f32.mrf.mxu0
  %v6795 = vadd.f32 %v6682, %v6794
  %6796 = vmatprep.mubr.bf16.mxu0 %v3723
  %6797 = vmatmul.mubr.bf16.gmra.mxu0 %v3722
  %v6798 = vpop.f32.mrf.mxu0
  %v6799 = vadd.f32 %v6686, %v6798
  %v6800 = vpop.f32.mrf.mxu0
  %v6801 = vadd.f32 %v6688, %v6800
  %v6802 = vpop.f32.mrf.mxu0
  %v6803 = vadd.f32 %v6690, %v6802
  %v6804 = vpop.f32.mrf.mxu0
  %v6805 = vadd.f32 %v6692, %v6804
  %6806 = vdwg.mxu0
  %6807 = vmatprep.subr.bf16.mxu0 %v5959
  %6808 = vmatpush1.bf16.msra.mxu0 %v5958
  %6809 = vmatprep.subr.bf16.mxu0 %v5952
  %6810 = vmatpush1.bf16.msra.mxu0 %v5951
  %6811 = vmatprep.subr.bf16.mxu0 %v5945
  %6812 = vmatpush1.bf16.msra.mxu0 %v5944
  %6813 = vmatprep.subr.bf16.mxu0 %v5938
  %6814 = vmatpush1.bf16.msra.mxu0 %v5937
  %6815 = vmatprep.subr.bf16.mxu0 %v5931
  %6816 = vmatpush1.bf16.msra.mxu0 %v5930
  %6817 = vmatprep.subr.bf16.mxu0 %v5924
  %6818 = vmatpush1.bf16.msra.mxu0 %v5923
  %6819 = vmatprep.subr.bf16.mxu0 %v5917
  %6820 = vmatpush1.bf16.msra.mxu0 %v5916
  %6821 = vmatprep.subr.bf16.mxu0 %v5910
  %6822 = vmatpush1.bf16.msra.mxu0 %v5909
  %6823 = vmatprep.subr.bf16.mxu0 %v6015
  %6824 = vmatpush2.bf16.msra.mxu0 %v6014
  %6825 = vmatprep.subr.bf16.mxu0 %v6008
  %6826 = vmatpush2.bf16.msra.mxu0 %v6007
  %6827 = vmatprep.subr.bf16.mxu0 %v6001
  %6828 = vmatpush2.bf16.msra.mxu0 %v6000
  %6829 = vmatprep.subr.bf16.mxu0 %v5994
  %6830 = vmatpush2.bf16.msra.mxu0 %v5993
  %6831 = vmatprep.subr.bf16.mxu0 %v5987
  %6832 = vmatpush2.bf16.msra.mxu0 %v5986
  %6833 = vmatprep.subr.bf16.mxu0 %v5980
  %6834 = vmatpush2.bf16.msra.mxu0 %v5979
  %6835 = vmatprep.subr.bf16.mxu0 %v5973
  %6836 = vmatpush2.bf16.msra.mxu0 %v5972
  %6837 = vmatprep.subr.bf16.mxu0 %v5966
  %6838 = vmatpush2.bf16.msra.mxu0 %v5965
  %6839 = vmatprep.mubr.bf16.mxu0 %v3669
  %6840 = vmatmul.mubr.bf16.gmra.mxu0 %v3668
  %v6841 = vpop.f32.mrf.mxu0
  %v6842 = vadd.f32 %v6729, %v6841
  %v6843 = vpop.f32.mrf.mxu0
  %v6844 = vadd.f32 %v6731, %v6843
  %v6845 = vpop.f32.mrf.mxu0
  %v6846 = vadd.f32 %v6733, %v6845
  %v6847 = vpop.f32.mrf.mxu0
  %v6848 = vadd.f32 %v6735, %v6847
  %6849 = vmatprep.mubr.bf16.mxu0 %v3677
  %6850 = vmatmul.mubr.bf16.gmra.mxu0 %v3676
  %v6851 = vpop.f32.mrf.mxu0
  %v6852 = vadd.f32 %v6739, %v6851
  %v6853 = vpop.f32.mrf.mxu0
  %v6854 = vadd.f32 %v6741, %v6853
  %v6855 = vpop.f32.mrf.mxu0
  %v6856 = vadd.f32 %v6743, %v6855
  %v6857 = vpop.f32.mrf.mxu0
  %v6858 = vadd.f32 %v6745, %v6857
  %6859 = vmatprep.mubr.bf16.mxu0 %v3685
  %6860 = vmatmul.mubr.bf16.gmra.mxu0 %v3684
  %v6861 = vpop.f32.mrf.mxu0
  %v6862 = vadd.f32 %v6749, %v6861
  %v6863 = vpop.f32.mrf.mxu0
  %v6864 = vadd.f32 %v6751, %v6863
  %v6865 = vpop.f32.mrf.mxu0
  %v6866 = vadd.f32 %v6753, %v6865
  %v6867 = vpop.f32.mrf.mxu0
  %v6868 = vadd.f32 %v6755, %v6867
  %6869 = vmatprep.mubr.bf16.mxu0 %v3693
  %6870 = vmatmul.mubr.bf16.gmra.mxu0 %v3692
  %v6871 = vpop.f32.mrf.mxu0
  %v6872 = vadd.f32 %v6759, %v6871
  %v6873 = vpop.f32.mrf.mxu0
  %v6874 = vadd.f32 %v6761, %v6873
  %v6875 = vpop.f32.mrf.mxu0
  %v6876 = vadd.f32 %v6763, %v6875
  %v6877 = vpop.f32.mrf.mxu0
  %v6878 = vadd.f32 %v6765, %v6877
  %6879 = vmatprep.mubr.bf16.mxu0 %v3701
  %6880 = vmatmul.mubr.bf16.gmra.mxu0 %v3700
  %v6881 = vpop.f32.mrf.mxu0
  %v6882 = vadd.f32 %v6769, %v6881
  %v6883 = vpop.f32.mrf.mxu0
  %v6884 = vadd.f32 %v6771, %v6883
  %v6885 = vpop.f32.mrf.mxu0
  %v6886 = vadd.f32 %v6773, %v6885
  %v6887 = vpop.f32.mrf.mxu0
  %v6888 = vadd.f32 %v6775, %v6887
  %6889 = vmatprep.mubr.bf16.mxu0 %v3709
  %6890 = vmatmul.mubr.bf16.gmra.mxu0 %v3708
  %v6891 = vpop.f32.mrf.mxu0
  %v6892 = vadd.f32 %v6779, %v6891
  %v6893 = vpop.f32.mrf.mxu0
  %v6894 = vadd.f32 %v6781, %v6893
  %v6895 = vpop.f32.mrf.mxu0
  %v6896 = vadd.f32 %v6783, %v6895
  %v6897 = vpop.f32.mrf.mxu0
  %v6898 = vadd.f32 %v6785, %v6897
  %6899 = vmatprep.mubr.bf16.mxu0 %v3717
  %6900 = vmatmul.mubr.bf16.gmra.mxu0 %v3716
  %v6901 = vpop.f32.mrf.mxu0
  %v6902 = vadd.f32 %v6789, %v6901
  %v6903 = vpop.f32.mrf.mxu0
  %v6904 = vadd.f32 %v6791, %v6903
  %v6905 = vpop.f32.mrf.mxu0
  %v6906 = vadd.f32 %v6793, %v6905
  %v6907 = vpop.f32.mrf.mxu0
  %v6908 = vadd.f32 %v6795, %v6907
  %6909 = vmatprep.mubr.bf16.mxu0 %v3725
  %6910 = vmatmul.mubr.bf16.gmra.mxu0 %v3724
  %v6911 = vpop.f32.mrf.mxu0
  %v6912 = vadd.f32 %v6799, %v6911
  %v6913 = vpop.f32.mrf.mxu0
  %v6914 = vadd.f32 %v6801, %v6913
  %v6915 = vpop.f32.mrf.mxu0
  %v6916 = vadd.f32 %v6803, %v6915
  %v6917 = vpop.f32.mrf.mxu0
  %v6918 = vadd.f32 %v6805, %v6917
  %6919 = vdwg.mxu0
  %6920 = vmatprep.subr.bf16.mxu0 %v6071
  %6921 = vmatpush1.bf16.msra.mxu0 %v6070
  %6922 = vmatprep.subr.bf16.mxu0 %v6064
  %6923 = vmatpush1.bf16.msra.mxu0 %v6063
  %6924 = vmatprep.subr.bf16.mxu0 %v6057
  %6925 = vmatpush1.bf16.msra.mxu0 %v6056
  %6926 = vmatprep.subr.bf16.mxu0 %v6050
  %6927 = vmatpush1.bf16.msra.mxu0 %v6049
  %6928 = vmatprep.subr.bf16.mxu0 %v6043
  %6929 = vmatpush1.bf16.msra.mxu0 %v6042
  %6930 = vmatprep.subr.bf16.mxu0 %v6036
  %6931 = vmatpush1.bf16.msra.mxu0 %v6035
  %6932 = vmatprep.subr.bf16.mxu0 %v6029
  %6933 = vmatpush1.bf16.msra.mxu0 %v6028
  %6934 = vmatprep.subr.bf16.mxu0 %v6022
  %6935 = vmatpush1.bf16.msra.mxu0 %v6021
  %6936 = vmatprep.subr.bf16.mxu0 %v6127
  %6937 = vmatpush2.bf16.msra.mxu0 %v6126
  %6938 = vmatprep.subr.bf16.mxu0 %v6120
  %6939 = vmatpush2.bf16.msra.mxu0 %v6119
  %6940 = vmatprep.subr.bf16.mxu0 %v6113
  %6941 = vmatpush2.bf16.msra.mxu0 %v6112
  %6942 = vmatprep.subr.bf16.mxu0 %v6106
  %6943 = vmatpush2.bf16.msra.mxu0 %v6105
  %6944 = vmatprep.subr.bf16.mxu0 %v6099
  %6945 = vmatpush2.bf16.msra.mxu0 %v6098
  %6946 = vmatprep.subr.bf16.mxu0 %v6092
  %6947 = vmatpush2.bf16.msra.mxu0 %v6091
  %6948 = vmatprep.subr.bf16.mxu0 %v6085
  %6949 = vmatpush2.bf16.msra.mxu0 %v6084
  %6950 = vmatprep.subr.bf16.mxu0 %v6078
  %6951 = vmatpush2.bf16.msra.mxu0 %v6077
  %6952 = vmatprep.mubr.bf16.mxu0 %v3671
  %6953 = vmatmul.mubr.bf16.gmra.mxu0 %v3670
  %v6954 = vpop.f32.mrf.mxu0
  %v6955 = vadd.f32 %v6842, %v6954
  %v6956 = vpop.f32.mrf.mxu0
  %v6957 = vadd.f32 %v6844, %v6956
  %v6958 = vpop.f32.mrf.mxu0
  %v6959 = vadd.f32 %v6846, %v6958
  %v6960 = vpop.f32.mrf.mxu0
  %v6961 = vadd.f32 %v6848, %v6960
  %6962 = vmatprep.mubr.bf16.mxu0 %v3679
  %6963 = vmatmul.mubr.bf16.gmra.mxu0 %v3678
  %v6964 = vpop.f32.mrf.mxu0
  %v6965 = vadd.f32 %v6852, %v6964
  %v6966 = vpop.f32.mrf.mxu0
  %v6967 = vadd.f32 %v6854, %v6966
  %v6968 = vpop.f32.mrf.mxu0
  %v6969 = vadd.f32 %v6856, %v6968
  %v6970 = vpop.f32.mrf.mxu0
  %v6971 = vadd.f32 %v6858, %v6970
  %6972 = vmatprep.mubr.bf16.mxu0 %v3687
  %6973 = vmatmul.mubr.bf16.gmra.mxu0 %v3686
  %v6974 = vpop.f32.mrf.mxu0
  %v6975 = vadd.f32 %v6862, %v6974
  %v6976 = vpop.f32.mrf.mxu0
  %v6977 = vadd.f32 %v6864, %v6976
  %v6978 = vpop.f32.mrf.mxu0
  %v6979 = vadd.f32 %v6866, %v6978
  %v6980 = vpop.f32.mrf.mxu0
  %v6981 = vadd.f32 %v6868, %v6980
  %6982 = vmatprep.mubr.bf16.mxu0 %v3695
  %6983 = vmatmul.mubr.bf16.gmra.mxu0 %v3694
  %v6984 = vpop.f32.mrf.mxu0
  %v6985 = vadd.f32 %v6872, %v6984
  %v6986 = vpop.f32.mrf.mxu0
  %v6987 = vadd.f32 %v6874, %v6986
  %v6988 = vpop.f32.mrf.mxu0
  %v6989 = vadd.f32 %v6876, %v6988
  %v6990 = vpop.f32.mrf.mxu0
  %v6991 = vadd.f32 %v6878, %v6990
  %6992 = vmatprep.mubr.bf16.mxu0 %v3703
  %6993 = vmatmul.mubr.bf16.gmra.mxu0 %v3702
  %v6994 = vpop.f32.mrf.mxu0
  %v6995 = vadd.f32 %v6882, %v6994
  %v6996 = vpop.f32.mrf.mxu0
  %v6997 = vadd.f32 %v6884, %v6996
  %v6998 = vpop.f32.mrf.mxu0
  %v6999 = vadd.f32 %v6886, %v6998
  %v7000 = vpop.f32.mrf.mxu0
  %v7001 = vadd.f32 %v6888, %v7000
  %7002 = vmatprep.mubr.bf16.mxu0 %v3711
  %7003 = vmatmul.mubr.bf16.gmra.mxu0 %v3710
  %v7004 = vpop.f32.mrf.mxu0
  %v7005 = vadd.f32 %v6892, %v7004
  %v7006 = vpop.f32.mrf.mxu0
  %v7007 = vadd.f32 %v6894, %v7006
  %v7008 = vpop.f32.mrf.mxu0
  %v7009 = vadd.f32 %v6896, %v7008
  %v7010 = vpop.f32.mrf.mxu0
  %v7011 = vadd.f32 %v6898, %v7010
  %7012 = vmatprep.mubr.bf16.mxu0 %v3719
  %7013 = vmatmul.mubr.bf16.gmra.mxu0 %v3718
  %v7014 = vpop.f32.mrf.mxu0
  %v7015 = vadd.f32 %v6902, %v7014
  %v7016 = vpop.f32.mrf.mxu0
  %v7017 = vadd.f32 %v6904, %v7016
  %v7018 = vpop.f32.mrf.mxu0
  %v7019 = vadd.f32 %v6906, %v7018
  %v7020 = vpop.f32.mrf.mxu0
  %v7021 = vadd.f32 %v6908, %v7020
  %7022 = vmatprep.mubr.bf16.mxu0 %v3727
  %7023 = vmatmul.mubr.bf16.gmra.mxu0 %v3726
  %v7024 = vpop.f32.mrf.mxu0
  %v7025 = vadd.f32 %v6912, %v7024
  %v7026 = vpop.f32.mrf.mxu0
  %v7027 = vadd.f32 %v6914, %v7026
  %v7028 = vpop.f32.mrf.mxu0
  %v7029 = vadd.f32 %v6916, %v7028
  %v7030 = vpop.f32.mrf.mxu0
  %v7031 = vadd.f32 %v6918, %v7030
  %7032 = vdwg.mxu0
  %7033 = vmatprep.subr.bf16.mxu0 %v5737
  %7034 = vmatpush1.bf16.msra.mxu0 %v5736
  %7035 = vmatprep.subr.bf16.mxu0 %v5730
  %7036 = vmatpush1.bf16.msra.mxu0 %v5729
  %7037 = vmatprep.subr.bf16.mxu0 %v5723
  %7038 = vmatpush1.bf16.msra.mxu0 %v5722
  %7039 = vmatprep.subr.bf16.mxu0 %v5716
  %7040 = vmatpush1.bf16.msra.mxu0 %v5715
  %7041 = vmatprep.subr.bf16.mxu0 %v5709
  %7042 = vmatpush1.bf16.msra.mxu0 %v5708
  %7043 = vmatprep.subr.bf16.mxu0 %v5702
  %7044 = vmatpush1.bf16.msra.mxu0 %v5701
  %7045 = vmatprep.subr.bf16.mxu0 %v5695
  %7046 = vmatpush1.bf16.msra.mxu0 %v5694
  %7047 = vmatprep.subr.bf16.mxu0 %v5688
  %7048 = vmatpush1.bf16.msra.mxu0 %v5687
  %7049 = vmatprep.subr.bf16.mxu0 %v5793
  %7050 = vmatpush2.bf16.msra.mxu0 %v5792
  %7051 = vmatprep.subr.bf16.mxu0 %v5786
  %7052 = vmatpush2.bf16.msra.mxu0 %v5785
  %7053 = vmatprep.subr.bf16.mxu0 %v5779
  %7054 = vmatpush2.bf16.msra.mxu0 %v5778
  %7055 = vmatprep.subr.bf16.mxu0 %v5772
  %7056 = vmatpush2.bf16.msra.mxu0 %v5771
  %7057 = vmatprep.subr.bf16.mxu0 %v5765
  %7058 = vmatpush2.bf16.msra.mxu0 %v5764
  %7059 = vmatprep.subr.bf16.mxu0 %v5758
  %7060 = vmatpush2.bf16.msra.mxu0 %v5757
  %7061 = vmatprep.subr.bf16.mxu0 %v5751
  %7062 = vmatpush2.bf16.msra.mxu0 %v5750
  %7063 = vmatprep.subr.bf16.mxu0 %v5744
  %7064 = vmatpush2.bf16.msra.mxu0 %v5743
  %7065 = vmatprep.mubr.bf16.mxu0 %v3665
  %7066 = vmatmul.mubr.bf16.gmra.mxu0 %v3664
  %v7067 = vpop.f32.mrf.mxu0
  %v7068 = vadd.f32 %v4253, %v7067
  %v7069 = vpop.f32.mrf.mxu0
  %v7070 = vadd.f32 %v4257, %v7069
  %v7071 = vpop.f32.mrf.mxu0
  %v7072 = vadd.f32 %v4253, %v7071
  %v7073 = vpop.f32.mrf.mxu0
  %v7074 = vadd.f32 %v4257, %v7073
  %7075 = vmatprep.mubr.bf16.mxu0 %v3673
  %7076 = vmatmul.mubr.bf16.gmra.mxu0 %v3672
  %v7077 = vpop.f32.mrf.mxu0
  %v7078 = vadd.f32 %v4253, %v7077
  %v7079 = vpop.f32.mrf.mxu0
  %v7080 = vadd.f32 %v4257, %v7079
  %v7081 = vpop.f32.mrf.mxu0
  %v7082 = vadd.f32 %v4253, %v7081
  %v7083 = vpop.f32.mrf.mxu0
  %v7084 = vadd.f32 %v4257, %v7083
  %7085 = vmatprep.mubr.bf16.mxu0 %v3681
  %7086 = vmatmul.mubr.bf16.gmra.mxu0 %v3680
  %v7087 = vpop.f32.mrf.mxu0
  %v7088 = vadd.f32 %v4253, %v7087
  %v7089 = vpop.f32.mrf.mxu0
  %v7090 = vadd.f32 %v4257, %v7089
  %v7091 = vpop.f32.mrf.mxu0
  %v7092 = vadd.f32 %v4253, %v7091
  %v7093 = vpop.f32.mrf.mxu0
  %v7094 = vadd.f32 %v4257, %v7093
  %7095 = vmatprep.mubr.bf16.mxu0 %v3689
  %7096 = vmatmul.mubr.bf16.gmra.mxu0 %v3688
  %v7097 = vpop.f32.mrf.mxu0
  %v7098 = vadd.f32 %v4253, %v7097
  %v7099 = vpop.f32.mrf.mxu0
  %v7100 = vadd.f32 %v4257, %v7099
  %v7101 = vpop.f32.mrf.mxu0
  %v7102 = vadd.f32 %v4253, %v7101
  %v7103 = vpop.f32.mrf.mxu0
  %v7104 = vadd.f32 %v4257, %v7103
  %7105 = vmatprep.mubr.bf16.mxu0 %v3697
  %7106 = vmatmul.mubr.bf16.gmra.mxu0 %v3696
  %v7107 = vpop.f32.mrf.mxu0
  %v7108 = vadd.f32 %v4253, %v7107
  %v7109 = vpop.f32.mrf.mxu0
  %v7110 = vadd.f32 %v4257, %v7109
  %v7111 = vpop.f32.mrf.mxu0
  %v7112 = vadd.f32 %v4253, %v7111
  %v7113 = vpop.f32.mrf.mxu0
  %v7114 = vadd.f32 %v4257, %v7113
  %7115 = vmatprep.mubr.bf16.mxu0 %v3705
  %7116 = vmatmul.mubr.bf16.gmra.mxu0 %v3704
  %v7117 = vpop.f32.mrf.mxu0
  %v7118 = vadd.f32 %v4253, %v7117
  %v7119 = vpop.f32.mrf.mxu0
  %v7120 = vadd.f32 %v4257, %v7119
  %v7121 = vpop.f32.mrf.mxu0
  %v7122 = vadd.f32 %v4253, %v7121
  %v7123 = vpop.f32.mrf.mxu0
  %v7124 = vadd.f32 %v4257, %v7123
  %7125 = vmatprep.mubr.bf16.mxu0 %v3713
  %7126 = vmatmul.mubr.bf16.gmra.mxu0 %v3712
  %v7127 = vpop.f32.mrf.mxu0
  %v7128 = vadd.f32 %v4253, %v7127
  %v7129 = vpop.f32.mrf.mxu0
  %v7130 = vadd.f32 %v4257, %v7129
  %v7131 = vpop.f32.mrf.mxu0
  %v7132 = vadd.f32 %v4253, %v7131
  %v7133 = vpop.f32.mrf.mxu0
  %v7134 = vadd.f32 %v4257, %v7133
  %7135 = vmatprep.mubr.bf16.mxu0 %v3721
  %7136 = vmatmul.mubr.bf16.gmra.mxu0 %v3720
  %v7137 = vpop.f32.mrf.mxu0
  %v7138 = vadd.f32 %v4253, %v7137
  %v7139 = vpop.f32.mrf.mxu0
  %v7140 = vadd.f32 %v4257, %v7139
  %v7141 = vpop.f32.mrf.mxu0
  %v7142 = vadd.f32 %v4253, %v7141
  %v7143 = vpop.f32.mrf.mxu0
  %v7144 = vadd.f32 %v4257, %v7143
  %7145 = vdwg.mxu0
  %7146 = vmatprep.subr.bf16.mxu0 %v5849
  %7147 = vmatpush1.bf16.msra.mxu0 %v5848
  %7148 = vmatprep.subr.bf16.mxu0 %v5842
  %7149 = vmatpush1.bf16.msra.mxu0 %v5841
  %7150 = vmatprep.subr.bf16.mxu0 %v5835
  %7151 = vmatpush1.bf16.msra.mxu0 %v5834
  %7152 = vmatprep.subr.bf16.mxu0 %v5828
  %7153 = vmatpush1.bf16.msra.mxu0 %v5827
  %7154 = vmatprep.subr.bf16.mxu0 %v5821
  %7155 = vmatpush1.bf16.msra.mxu0 %v5820
  %7156 = vmatprep.subr.bf16.mxu0 %v5814
  %7157 = vmatpush1.bf16.msra.mxu0 %v5813
  %7158 = vmatprep.subr.bf16.mxu0 %v5807
  %7159 = vmatpush1.bf16.msra.mxu0 %v5806
  %7160 = vmatprep.subr.bf16.mxu0 %v5800
  %7161 = vmatpush1.bf16.msra.mxu0 %v5799
  %7162 = vmatprep.subr.bf16.mxu0 %v5905
  %7163 = vmatpush2.bf16.msra.mxu0 %v5904
  %7164 = vmatprep.subr.bf16.mxu0 %v5898
  %7165 = vmatpush2.bf16.msra.mxu0 %v5897
  %7166 = vmatprep.subr.bf16.mxu0 %v5891
  %7167 = vmatpush2.bf16.msra.mxu0 %v5890
  %7168 = vmatprep.subr.bf16.mxu0 %v5884
  %7169 = vmatpush2.bf16.msra.mxu0 %v5883
  %7170 = vmatprep.subr.bf16.mxu0 %v5877
  %7171 = vmatpush2.bf16.msra.mxu0 %v5876
  %7172 = vmatprep.subr.bf16.mxu0 %v5870
  %7173 = vmatpush2.bf16.msra.mxu0 %v5869
  %7174 = vmatprep.subr.bf16.mxu0 %v5863
  %7175 = vmatpush2.bf16.msra.mxu0 %v5862
  %7176 = vmatprep.subr.bf16.mxu0 %v5856
  %7177 = vmatpush2.bf16.msra.mxu0 %v5855
  %7178 = vmatprep.mubr.bf16.mxu0 %v3667
  %7179 = vmatmul.mubr.bf16.gmra.mxu0 %v3666
  %v7180 = vpop.f32.mrf.mxu0
  %v7181 = vadd.f32 %v7068, %v7180
  %v7182 = vpop.f32.mrf.mxu0
  %v7183 = vadd.f32 %v7070, %v7182
  %v7184 = vpop.f32.mrf.mxu0
  %v7185 = vadd.f32 %v7072, %v7184
  %v7186 = vpop.f32.mrf.mxu0
  %v7187 = vadd.f32 %v7074, %v7186
  %7188 = vmatprep.mubr.bf16.mxu0 %v3675
  %7189 = vmatmul.mubr.bf16.gmra.mxu0 %v3674
  %v7190 = vpop.f32.mrf.mxu0
  %v7191 = vadd.f32 %v7078, %v7190
  %v7192 = vpop.f32.mrf.mxu0
  %v7193 = vadd.f32 %v7080, %v7192
  %v7194 = vpop.f32.mrf.mxu0
  %v7195 = vadd.f32 %v7082, %v7194
  %v7196 = vpop.f32.mrf.mxu0
  %v7197 = vadd.f32 %v7084, %v7196
  %7198 = vmatprep.mubr.bf16.mxu0 %v3683
  %7199 = vmatmul.mubr.bf16.gmra.mxu0 %v3682
  %v7200 = vpop.f32.mrf.mxu0
  %v7201 = vadd.f32 %v7088, %v7200
  %v7202 = vpop.f32.mrf.mxu0
  %v7203 = vadd.f32 %v7090, %v7202
  %v7204 = vpop.f32.mrf.mxu0
  %v7205 = vadd.f32 %v7092, %v7204
  %v7206 = vpop.f32.mrf.mxu0
  %v7207 = vadd.f32 %v7094, %v7206
  %7208 = vmatprep.mubr.bf16.mxu0 %v3691
  %7209 = vmatmul.mubr.bf16.gmra.mxu0 %v3690
  %v7210 = vpop.f32.mrf.mxu0
  %v7211 = vadd.f32 %v7098, %v7210
  %v7212 = vpop.f32.mrf.mxu0
  %v7213 = vadd.f32 %v7100, %v7212
  %v7214 = vpop.f32.mrf.mxu0
  %v7215 = vadd.f32 %v7102, %v7214
  %v7216 = vpop.f32.mrf.mxu0
  %v7217 = vadd.f32 %v7104, %v7216
  %7218 = vmatprep.mubr.bf16.mxu0 %v3699
  %7219 = vmatmul.mubr.bf16.gmra.mxu0 %v3698
  %v7220 = vpop.f32.mrf.mxu0
  %v7221 = vadd.f32 %v7108, %v7220
  %v7222 = vpop.f32.mrf.mxu0
  %v7223 = vadd.f32 %v7110, %v7222
  %v7224 = vpop.f32.mrf.mxu0
  %v7225 = vadd.f32 %v7112, %v7224
  %v7226 = vpop.f32.mrf.mxu0
  %v7227 = vadd.f32 %v7114, %v7226
  %7228 = vmatprep.mubr.bf16.mxu0 %v3707
  %7229 = vmatmul.mubr.bf16.gmra.mxu0 %v3706
  %v7230 = vpop.f32.mrf.mxu0
  %v7231 = vadd.f32 %v7118, %v7230
  %v7232 = vpop.f32.mrf.mxu0
  %v7233 = vadd.f32 %v7120, %v7232
  %v7234 = vpop.f32.mrf.mxu0
  %v7235 = vadd.f32 %v7122, %v7234
  %v7236 = vpop.f32.mrf.mxu0
  %v7237 = vadd.f32 %v7124, %v7236
  %7238 = vmatprep.mubr.bf16.mxu0 %v3715
  %7239 = vmatmul.mubr.bf16.gmra.mxu0 %v3714
  %v7240 = vpop.f32.mrf.mxu0
  %v7241 = vadd.f32 %v7128, %v7240
  %v7242 = vpop.f32.mrf.mxu0
  %v7243 = vadd.f32 %v7130, %v7242
  %v7244 = vpop.f32.mrf.mxu0
  %v7245 = vadd.f32 %v7132, %v7244
  %v7246 = vpop.f32.mrf.mxu0
  %v7247 = vadd.f32 %v7134, %v7246
  %7248 = vmatprep.mubr.bf16.mxu0 %v3723
  %7249 = vmatmul.mubr.bf16.gmra.mxu0 %v3722
  %v7250 = vpop.f32.mrf.mxu0
  %v7251 = vadd.f32 %v7138, %v7250
  %v7252 = vpop.f32.mrf.mxu0
  %v7253 = vadd.f32 %v7140, %v7252
  %v7254 = vpop.f32.mrf.mxu0
  %v7255 = vadd.f32 %v7142, %v7254
  %v7256 = vpop.f32.mrf.mxu0
  %v7257 = vadd.f32 %v7144, %v7256
  %7258 = vdwg.mxu0
  %7259 = vmatprep.subr.bf16.mxu0 %v5961
  %7260 = vmatpush1.bf16.msra.mxu0 %v5960
  %7261 = vmatprep.subr.bf16.mxu0 %v5954
  %7262 = vmatpush1.bf16.msra.mxu0 %v5953
  %7263 = vmatprep.subr.bf16.mxu0 %v5947
  %7264 = vmatpush1.bf16.msra.mxu0 %v5946
  %7265 = vmatprep.subr.bf16.mxu0 %v5940
  %7266 = vmatpush1.bf16.msra.mxu0 %v5939
  %7267 = vmatprep.subr.bf16.mxu0 %v5933
  %7268 = vmatpush1.bf16.msra.mxu0 %v5932
  %7269 = vmatprep.subr.bf16.mxu0 %v5926
  %7270 = vmatpush1.bf16.msra.mxu0 %v5925
  %7271 = vmatprep.subr.bf16.mxu0 %v5919
  %7272 = vmatpush1.bf16.msra.mxu0 %v5918
  %7273 = vmatprep.subr.bf16.mxu0 %v5912
  %7274 = vmatpush1.bf16.msra.mxu0 %v5911
  %7275 = vmatprep.subr.bf16.mxu0 %v6017
  %7276 = vmatpush2.bf16.msra.mxu0 %v6016
  %7277 = vmatprep.subr.bf16.mxu0 %v6010
  %7278 = vmatpush2.bf16.msra.mxu0 %v6009
  %7279 = vmatprep.subr.bf16.mxu0 %v6003
  %7280 = vmatpush2.bf16.msra.mxu0 %v6002
  %7281 = vmatprep.subr.bf16.mxu0 %v5996
  %7282 = vmatpush2.bf16.msra.mxu0 %v5995
  %7283 = vmatprep.subr.bf16.mxu0 %v5989
  %7284 = vmatpush2.bf16.msra.mxu0 %v5988
  %7285 = vmatprep.subr.bf16.mxu0 %v5982
  %7286 = vmatpush2.bf16.msra.mxu0 %v5981
  %7287 = vmatprep.subr.bf16.mxu0 %v5975
  %7288 = vmatpush2.bf16.msra.mxu0 %v5974
  %7289 = vmatprep.subr.bf16.mxu0 %v5968
  %7290 = vmatpush2.bf16.msra.mxu0 %v5967
  %7291 = vmatprep.mubr.bf16.mxu0 %v3669
  %7292 = vmatmul.mubr.bf16.gmra.mxu0 %v3668
  %v7293 = vpop.f32.mrf.mxu0
  %v7294 = vadd.f32 %v7181, %v7293
  %v7295 = vpop.f32.mrf.mxu0
  %v7296 = vadd.f32 %v7183, %v7295
  %v7297 = vpop.f32.mrf.mxu0
  %v7298 = vadd.f32 %v7185, %v7297
  %v7299 = vpop.f32.mrf.mxu0
  %v7300 = vadd.f32 %v7187, %v7299
  %7301 = vmatprep.mubr.bf16.mxu0 %v3677
  %7302 = vmatmul.mubr.bf16.gmra.mxu0 %v3676
  %v7303 = vpop.f32.mrf.mxu0
  %v7304 = vadd.f32 %v7191, %v7303
  %v7305 = vpop.f32.mrf.mxu0
  %v7306 = vadd.f32 %v7193, %v7305
  %v7307 = vpop.f32.mrf.mxu0
  %v7308 = vadd.f32 %v7195, %v7307
  %v7309 = vpop.f32.mrf.mxu0
  %v7310 = vadd.f32 %v7197, %v7309
  %7311 = vmatprep.mubr.bf16.mxu0 %v3685
  %7312 = vmatmul.mubr.bf16.gmra.mxu0 %v3684
  %v7313 = vpop.f32.mrf.mxu0
  %v7314 = vadd.f32 %v7201, %v7313
  %v7315 = vpop.f32.mrf.mxu0
  %v7316 = vadd.f32 %v7203, %v7315
  %v7317 = vpop.f32.mrf.mxu0
  %v7318 = vadd.f32 %v7205, %v7317
  %v7319 = vpop.f32.mrf.mxu0
  %v7320 = vadd.f32 %v7207, %v7319
  %7321 = vmatprep.mubr.bf16.mxu0 %v3693
  %7322 = vmatmul.mubr.bf16.gmra.mxu0 %v3692
  %v7323 = vpop.f32.mrf.mxu0
  %v7324 = vadd.f32 %v7211, %v7323
  %v7325 = vpop.f32.mrf.mxu0
  %v7326 = vadd.f32 %v7213, %v7325
  %v7327 = vpop.f32.mrf.mxu0
  %v7328 = vadd.f32 %v7215, %v7327
  %v7329 = vpop.f32.mrf.mxu0
  %v7330 = vadd.f32 %v7217, %v7329
  %7331 = vmatprep.mubr.bf16.mxu0 %v3701
  %7332 = vmatmul.mubr.bf16.gmra.mxu0 %v3700
  %v7333 = vpop.f32.mrf.mxu0
  %v7334 = vadd.f32 %v7221, %v7333
  %v7335 = vpop.f32.mrf.mxu0
  %v7336 = vadd.f32 %v7223, %v7335
  %v7337 = vpop.f32.mrf.mxu0
  %v7338 = vadd.f32 %v7225, %v7337
  %v7339 = vpop.f32.mrf.mxu0
  %v7340 = vadd.f32 %v7227, %v7339
  %7341 = vmatprep.mubr.bf16.mxu0 %v3709
  %7342 = vmatmul.mubr.bf16.gmra.mxu0 %v3708
  %v7343 = vpop.f32.mrf.mxu0
  %v7344 = vadd.f32 %v7231, %v7343
  %v7345 = vpop.f32.mrf.mxu0
  %v7346 = vadd.f32 %v7233, %v7345
  %v7347 = vpop.f32.mrf.mxu0
  %v7348 = vadd.f32 %v7235, %v7347
  %v7349 = vpop.f32.mrf.mxu0
  %v7350 = vadd.f32 %v7237, %v7349
  %7351 = vmatprep.mubr.bf16.mxu0 %v3717
  %7352 = vmatmul.mubr.bf16.gmra.mxu0 %v3716
  %v7353 = vpop.f32.mrf.mxu0
  %v7354 = vadd.f32 %v7241, %v7353
  %v7355 = vpop.f32.mrf.mxu0
  %v7356 = vadd.f32 %v7243, %v7355
  %v7357 = vpop.f32.mrf.mxu0
  %v7358 = vadd.f32 %v7245, %v7357
  %v7359 = vpop.f32.mrf.mxu0
  %v7360 = vadd.f32 %v7247, %v7359
  %7361 = vmatprep.mubr.bf16.mxu0 %v3725
  %7362 = vmatmul.mubr.bf16.gmra.mxu0 %v3724
  %v7363 = vpop.f32.mrf.mxu0
  %v7364 = vadd.f32 %v7251, %v7363
  %v7365 = vpop.f32.mrf.mxu0
  %v7366 = vadd.f32 %v7253, %v7365
  %v7367 = vpop.f32.mrf.mxu0
  %v7368 = vadd.f32 %v7255, %v7367
  %v7369 = vpop.f32.mrf.mxu0
  %v7370 = vadd.f32 %v7257, %v7369
  %7371 = vdwg.mxu0
  %7372 = vmatprep.subr.bf16.mxu0 %v6073
  %7373 = vmatpush1.bf16.msra.mxu0 %v6072
  %7374 = vmatprep.subr.bf16.mxu0 %v6066
  %7375 = vmatpush1.bf16.msra.mxu0 %v6065
  %7376 = vmatprep.subr.bf16.mxu0 %v6059
  %7377 = vmatpush1.bf16.msra.mxu0 %v6058
  %7378 = vmatprep.subr.bf16.mxu0 %v6052
  %7379 = vmatpush1.bf16.msra.mxu0 %v6051
  %7380 = vmatprep.subr.bf16.mxu0 %v6045
  %7381 = vmatpush1.bf16.msra.mxu0 %v6044
  %7382 = vmatprep.subr.bf16.mxu0 %v6038
  %7383 = vmatpush1.bf16.msra.mxu0 %v6037
  %7384 = vmatprep.subr.bf16.mxu0 %v6031
  %7385 = vmatpush1.bf16.msra.mxu0 %v6030
  %7386 = vmatprep.subr.bf16.mxu0 %v6024
  %7387 = vmatpush1.bf16.msra.mxu0 %v6023
  %7388 = vmatprep.subr.bf16.mxu0 %v6129
  %7389 = vmatpush2.bf16.msra.mxu0 %v6128
  %7390 = vmatprep.subr.bf16.mxu0 %v6122
  %7391 = vmatpush2.bf16.msra.mxu0 %v6121
  %7392 = vmatprep.subr.bf16.mxu0 %v6115
  %7393 = vmatpush2.bf16.msra.mxu0 %v6114
  %7394 = vmatprep.subr.bf16.mxu0 %v6108
  %7395 = vmatpush2.bf16.msra.mxu0 %v6107
  %7396 = vmatprep.subr.bf16.mxu0 %v6101
  %7397 = vmatpush2.bf16.msra.mxu0 %v6100
  %7398 = vmatprep.subr.bf16.mxu0 %v6094
  %7399 = vmatpush2.bf16.msra.mxu0 %v6093
  %7400 = vmatprep.subr.bf16.mxu0 %v6087
  %7401 = vmatpush2.bf16.msra.mxu0 %v6086
  %7402 = vmatprep.subr.bf16.mxu0 %v6080
  %7403 = vmatpush2.bf16.msra.mxu0 %v6079
  %7404 = vmatprep.mubr.bf16.mxu0 %v3671
  %7405 = vmatmul.mubr.bf16.gmra.mxu0 %v3670
  %v7406 = vpop.f32.mrf.mxu0
  %v7407 = vadd.f32 %v7294, %v7406
  %v7408 = vpop.f32.mrf.mxu0
  %v7409 = vadd.f32 %v7296, %v7408
  %v7410 = vpop.f32.mrf.mxu0
  %v7411 = vadd.f32 %v7298, %v7410
  %v7412 = vpop.f32.mrf.mxu0
  %v7413 = vadd.f32 %v7300, %v7412
  %7414 = vmatprep.mubr.bf16.mxu0 %v3679
  %7415 = vmatmul.mubr.bf16.gmra.mxu0 %v3678
  %v7416 = vpop.f32.mrf.mxu0
  %v7417 = vadd.f32 %v7304, %v7416
  %v7418 = vpop.f32.mrf.mxu0
  %v7419 = vadd.f32 %v7306, %v7418
  %v7420 = vpop.f32.mrf.mxu0
  %v7421 = vadd.f32 %v7308, %v7420
  %v7422 = vpop.f32.mrf.mxu0
  %v7423 = vadd.f32 %v7310, %v7422
  %7424 = vmatprep.mubr.bf16.mxu0 %v3687
  %7425 = vmatmul.mubr.bf16.gmra.mxu0 %v3686
  %v7426 = vpop.f32.mrf.mxu0
  %v7427 = vadd.f32 %v7314, %v7426
  %v7428 = vpop.f32.mrf.mxu0
  %v7429 = vadd.f32 %v7316, %v7428
  %v7430 = vpop.f32.mrf.mxu0
  %v7431 = vadd.f32 %v7318, %v7430
  %v7432 = vpop.f32.mrf.mxu0
  %v7433 = vadd.f32 %v7320, %v7432
  %7434 = vmatprep.mubr.bf16.mxu0 %v3695
  %7435 = vmatmul.mubr.bf16.gmra.mxu0 %v3694
  %v7436 = vpop.f32.mrf.mxu0
  %v7437 = vadd.f32 %v7324, %v7436
  %v7438 = vpop.f32.mrf.mxu0
  %v7439 = vadd.f32 %v7326, %v7438
  %v7440 = vpop.f32.mrf.mxu0
  %v7441 = vadd.f32 %v7328, %v7440
  %v7442 = vpop.f32.mrf.mxu0
  %v7443 = vadd.f32 %v7330, %v7442
  %7444 = vmatprep.mubr.bf16.mxu0 %v3703
  %7445 = vmatmul.mubr.bf16.gmra.mxu0 %v3702
  %v7446 = vpop.f32.mrf.mxu0
  %v7447 = vadd.f32 %v7334, %v7446
  %v7448 = vpop.f32.mrf.mxu0
  %v7449 = vadd.f32 %v7336, %v7448
  %v7450 = vpop.f32.mrf.mxu0
  %v7451 = vadd.f32 %v7338, %v7450
  %v7452 = vpop.f32.mrf.mxu0
  %v7453 = vadd.f32 %v7340, %v7452
  %7454 = vmatprep.mubr.bf16.mxu0 %v3711
  %7455 = vmatmul.mubr.bf16.gmra.mxu0 %v3710
  %v7456 = vpop.f32.mrf.mxu0
  %v7457 = vadd.f32 %v7344, %v7456
  %v7458 = vpop.f32.mrf.mxu0
  %v7459 = vadd.f32 %v7346, %v7458
  %v7460 = vpop.f32.mrf.mxu0
  %v7461 = vadd.f32 %v7348, %v7460
  %v7462 = vpop.f32.mrf.mxu0
  %v7463 = vadd.f32 %v7350, %v7462
  %7464 = vmatprep.mubr.bf16.mxu0 %v3719
  %7465 = vmatmul.mubr.bf16.gmra.mxu0 %v3718
  %v7466 = vpop.f32.mrf.mxu0
  %v7467 = vadd.f32 %v7354, %v7466
  %v7468 = vpop.f32.mrf.mxu0
  %v7469 = vadd.f32 %v7356, %v7468
  %v7470 = vpop.f32.mrf.mxu0
  %v7471 = vadd.f32 %v7358, %v7470
  %v7472 = vpop.f32.mrf.mxu0
  %v7473 = vadd.f32 %v7360, %v7472
  %7474 = vmatprep.mubr.bf16.mxu0 %v3727
  %7475 = vmatmul.mubr.bf16.gmra.mxu0 %v3726
  %v7476 = vpop.f32.mrf.mxu0
  %v7477 = vadd.f32 %v7364, %v7476
  %v7478 = vpop.f32.mrf.mxu0
  %v7479 = vadd.f32 %v7366, %v7478
  %v7480 = vpop.f32.mrf.mxu0
  %v7481 = vadd.f32 %v7368, %v7480
  %v7482 = vpop.f32.mrf.mxu0
  %v7483 = vadd.f32 %v7370, %v7482
  %7484 = vdwg.mxu0
  %7485 = vmatprep.subr.bf16.mxu0 %v5739
  %7486 = vmatpush1.bf16.msra.mxu0 %v5738
  %7487 = vmatprep.subr.bf16.mxu0 %v5732
  %7488 = vmatpush1.bf16.msra.mxu0 %v5731
  %7489 = vmatprep.subr.bf16.mxu0 %v5725
  %7490 = vmatpush1.bf16.msra.mxu0 %v5724
  %7491 = vmatprep.subr.bf16.mxu0 %v5718
  %7492 = vmatpush1.bf16.msra.mxu0 %v5717
  %7493 = vmatprep.subr.bf16.mxu0 %v5711
  %7494 = vmatpush1.bf16.msra.mxu0 %v5710
  %7495 = vmatprep.subr.bf16.mxu0 %v5704
  %7496 = vmatpush1.bf16.msra.mxu0 %v5703
  %7497 = vmatprep.subr.bf16.mxu0 %v5697
  %7498 = vmatpush1.bf16.msra.mxu0 %v5696
  %7499 = vmatprep.subr.bf16.mxu0 %v5690
  %7500 = vmatpush1.bf16.msra.mxu0 %v5689
  %7501 = vmatprep.subr.bf16.mxu0 %v5795
  %7502 = vmatpush2.bf16.msra.mxu0 %v5794
  %7503 = vmatprep.subr.bf16.mxu0 %v5788
  %7504 = vmatpush2.bf16.msra.mxu0 %v5787
  %7505 = vmatprep.subr.bf16.mxu0 %v5781
  %7506 = vmatpush2.bf16.msra.mxu0 %v5780
  %7507 = vmatprep.subr.bf16.mxu0 %v5774
  %7508 = vmatpush2.bf16.msra.mxu0 %v5773
  %7509 = vmatprep.subr.bf16.mxu0 %v5767
  %7510 = vmatpush2.bf16.msra.mxu0 %v5766
  %7511 = vmatprep.subr.bf16.mxu0 %v5760
  %7512 = vmatpush2.bf16.msra.mxu0 %v5759
  %7513 = vmatprep.subr.bf16.mxu0 %v5753
  %7514 = vmatpush2.bf16.msra.mxu0 %v5752
  %7515 = vmatprep.subr.bf16.mxu0 %v5746
  %7516 = vmatpush2.bf16.msra.mxu0 %v5745
  %7517 = vmatprep.mubr.bf16.mxu0 %v3665
  %7518 = vmatmul.mubr.bf16.gmra.mxu0 %v3664
  %v7519 = vpop.f32.mrf.mxu0
  %v7520 = vadd.f32 %v4261, %v7519
  %v7521 = vpop.f32.mrf.mxu0
  %v7522 = vadd.f32 %v4265, %v7521
  %v7523 = vpop.f32.mrf.mxu0
  %v7524 = vadd.f32 %v4261, %v7523
  %v7525 = vpop.f32.mrf.mxu0
  %v7526 = vadd.f32 %v4265, %v7525
  %7527 = vmatprep.mubr.bf16.mxu0 %v3673
  %7528 = vmatmul.mubr.bf16.gmra.mxu0 %v3672
  %v7529 = vpop.f32.mrf.mxu0
  %v7530 = vadd.f32 %v4261, %v7529
  %v7531 = vpop.f32.mrf.mxu0
  %v7532 = vadd.f32 %v4265, %v7531
  %v7533 = vpop.f32.mrf.mxu0
  %v7534 = vadd.f32 %v4261, %v7533
  %v7535 = vpop.f32.mrf.mxu0
  %v7536 = vadd.f32 %v4265, %v7535
  %7537 = vmatprep.mubr.bf16.mxu0 %v3681
  %7538 = vmatmul.mubr.bf16.gmra.mxu0 %v3680
  %v7539 = vpop.f32.mrf.mxu0
  %v7540 = vadd.f32 %v4261, %v7539
  %v7541 = vpop.f32.mrf.mxu0
  %v7542 = vadd.f32 %v4265, %v7541
  %v7543 = vpop.f32.mrf.mxu0
  %v7544 = vadd.f32 %v4261, %v7543
  %v7545 = vpop.f32.mrf.mxu0
  %v7546 = vadd.f32 %v4265, %v7545
  %7547 = vmatprep.mubr.bf16.mxu0 %v3689
  %7548 = vmatmul.mubr.bf16.gmra.mxu0 %v3688
  %v7549 = vpop.f32.mrf.mxu0
  %v7550 = vadd.f32 %v4261, %v7549
  %v7551 = vpop.f32.mrf.mxu0
  %v7552 = vadd.f32 %v4265, %v7551
  %v7553 = vpop.f32.mrf.mxu0
  %v7554 = vadd.f32 %v4261, %v7553
  %v7555 = vpop.f32.mrf.mxu0
  %v7556 = vadd.f32 %v4265, %v7555
  %7557 = vmatprep.mubr.bf16.mxu0 %v3697
  %7558 = vmatmul.mubr.bf16.gmra.mxu0 %v3696
  %v7559 = vpop.f32.mrf.mxu0
  %v7560 = vadd.f32 %v4261, %v7559
  %v7561 = vpop.f32.mrf.mxu0
  %v7562 = vadd.f32 %v4265, %v7561
  %v7563 = vpop.f32.mrf.mxu0
  %v7564 = vadd.f32 %v4261, %v7563
  %v7565 = vpop.f32.mrf.mxu0
  %v7566 = vadd.f32 %v4265, %v7565
  %7567 = vmatprep.mubr.bf16.mxu0 %v3705
  %7568 = vmatmul.mubr.bf16.gmra.mxu0 %v3704
  %v7569 = vpop.f32.mrf.mxu0
  %v7570 = vadd.f32 %v4261, %v7569
  %v7571 = vpop.f32.mrf.mxu0
  %v7572 = vadd.f32 %v4265, %v7571
  %v7573 = vpop.f32.mrf.mxu0
  %v7574 = vadd.f32 %v4261, %v7573
  %v7575 = vpop.f32.mrf.mxu0
  %v7576 = vadd.f32 %v4265, %v7575
  %7577 = vmatprep.mubr.bf16.mxu0 %v3713
  %7578 = vmatmul.mubr.bf16.gmra.mxu0 %v3712
  %v7579 = vpop.f32.mrf.mxu0
  %v7580 = vadd.f32 %v4261, %v7579
  %v7581 = vpop.f32.mrf.mxu0
  %v7582 = vadd.f32 %v4265, %v7581
  %v7583 = vpop.f32.mrf.mxu0
  %v7584 = vadd.f32 %v4261, %v7583
  %v7585 = vpop.f32.mrf.mxu0
  %v7586 = vadd.f32 %v4265, %v7585
  %7587 = vmatprep.mubr.bf16.mxu0 %v3721
  %7588 = vmatmul.mubr.bf16.gmra.mxu0 %v3720
  %v7589 = vpop.f32.mrf.mxu0
  %v7590 = vadd.f32 %v4261, %v7589
  %v7591 = vpop.f32.mrf.mxu0
  %v7592 = vadd.f32 %v4265, %v7591
  %v7593 = vpop.f32.mrf.mxu0
  %v7594 = vadd.f32 %v4261, %v7593
  %v7595 = vpop.f32.mrf.mxu0
  %v7596 = vadd.f32 %v4265, %v7595
  %7597 = vdwg.mxu0
  %7598 = vmatprep.subr.bf16.mxu0 %v5851
  %7599 = vmatpush1.bf16.msra.mxu0 %v5850
  %7600 = vmatprep.subr.bf16.mxu0 %v5844
  %7601 = vmatpush1.bf16.msra.mxu0 %v5843
  %7602 = vmatprep.subr.bf16.mxu0 %v5837
  %7603 = vmatpush1.bf16.msra.mxu0 %v5836
  %7604 = vmatprep.subr.bf16.mxu0 %v5830
  %7605 = vmatpush1.bf16.msra.mxu0 %v5829
  %7606 = vmatprep.subr.bf16.mxu0 %v5823
  %7607 = vmatpush1.bf16.msra.mxu0 %v5822
  %7608 = vmatprep.subr.bf16.mxu0 %v5816
  %7609 = vmatpush1.bf16.msra.mxu0 %v5815
  %7610 = vmatprep.subr.bf16.mxu0 %v5809
  %7611 = vmatpush1.bf16.msra.mxu0 %v5808
  %7612 = vmatprep.subr.bf16.mxu0 %v5802
  %7613 = vmatpush1.bf16.msra.mxu0 %v5801
  %7614 = vmatprep.subr.bf16.mxu0 %v5907
  %7615 = vmatpush2.bf16.msra.mxu0 %v5906
  %7616 = vmatprep.subr.bf16.mxu0 %v5900
  %7617 = vmatpush2.bf16.msra.mxu0 %v5899
  %7618 = vmatprep.subr.bf16.mxu0 %v5893
  %7619 = vmatpush2.bf16.msra.mxu0 %v5892
  %7620 = vmatprep.subr.bf16.mxu0 %v5886
  %7621 = vmatpush2.bf16.msra.mxu0 %v5885
  %7622 = vmatprep.subr.bf16.mxu0 %v5879
  %7623 = vmatpush2.bf16.msra.mxu0 %v5878
  %7624 = vmatprep.subr.bf16.mxu0 %v5872
  %7625 = vmatpush2.bf16.msra.mxu0 %v5871
  %7626 = vmatprep.subr.bf16.mxu0 %v5865
  %7627 = vmatpush2.bf16.msra.mxu0 %v5864
  %7628 = vmatprep.subr.bf16.mxu0 %v5858
  %7629 = vmatpush2.bf16.msra.mxu0 %v5857
  %7630 = vmatprep.mubr.bf16.mxu0 %v3667
  %7631 = vmatmul.mubr.bf16.gmra.mxu0 %v3666
  %v7632 = vpop.f32.mrf.mxu0
  %v7633 = vadd.f32 %v7520, %v7632
  %v7634 = vpop.f32.mrf.mxu0
  %v7635 = vadd.f32 %v7522, %v7634
  %v7636 = vpop.f32.mrf.mxu0
  %v7637 = vadd.f32 %v7524, %v7636
  %v7638 = vpop.f32.mrf.mxu0
  %v7639 = vadd.f32 %v7526, %v7638
  %7640 = vmatprep.mubr.bf16.mxu0 %v3675
  %7641 = vmatmul.mubr.bf16.gmra.mxu0 %v3674
  %v7642 = vpop.f32.mrf.mxu0
  %v7643 = vadd.f32 %v7530, %v7642
  %v7644 = vpop.f32.mrf.mxu0
  %v7645 = vadd.f32 %v7532, %v7644
  %v7646 = vpop.f32.mrf.mxu0
  %v7647 = vadd.f32 %v7534, %v7646
  %v7648 = vpop.f32.mrf.mxu0
  %v7649 = vadd.f32 %v7536, %v7648
  %7650 = vmatprep.mubr.bf16.mxu0 %v3683
  %7651 = vmatmul.mubr.bf16.gmra.mxu0 %v3682
  %v7652 = vpop.f32.mrf.mxu0
  %v7653 = vadd.f32 %v7540, %v7652
  %v7654 = vpop.f32.mrf.mxu0
  %v7655 = vadd.f32 %v7542, %v7654
  %v7656 = vpop.f32.mrf.mxu0
  %v7657 = vadd.f32 %v7544, %v7656
  %v7658 = vpop.f32.mrf.mxu0
  %v7659 = vadd.f32 %v7546, %v7658
  %7660 = vmatprep.mubr.bf16.mxu0 %v3691
  %7661 = vmatmul.mubr.bf16.gmra.mxu0 %v3690
  %v7662 = vpop.f32.mrf.mxu0
  %v7663 = vadd.f32 %v7550, %v7662
  %v7664 = vpop.f32.mrf.mxu0
  %v7665 = vadd.f32 %v7552, %v7664
  %v7666 = vpop.f32.mrf.mxu0
  %v7667 = vadd.f32 %v7554, %v7666
  %v7668 = vpop.f32.mrf.mxu0
  %v7669 = vadd.f32 %v7556, %v7668
  %7670 = vmatprep.mubr.bf16.mxu0 %v3699
  %7671 = vmatmul.mubr.bf16.gmra.mxu0 %v3698
  %v7672 = vpop.f32.mrf.mxu0
  %v7673 = vadd.f32 %v7560, %v7672
  %v7674 = vpop.f32.mrf.mxu0
  %v7675 = vadd.f32 %v7562, %v7674
  %v7676 = vpop.f32.mrf.mxu0
  %v7677 = vadd.f32 %v7564, %v7676
  %v7678 = vpop.f32.mrf.mxu0
  %v7679 = vadd.f32 %v7566, %v7678
  %7680 = vmatprep.mubr.bf16.mxu0 %v3707
  %7681 = vmatmul.mubr.bf16.gmra.mxu0 %v3706
  %v7682 = vpop.f32.mrf.mxu0
  %v7683 = vadd.f32 %v7570, %v7682
  %v7684 = vpop.f32.mrf.mxu0
  %v7685 = vadd.f32 %v7572, %v7684
  %v7686 = vpop.f32.mrf.mxu0
  %v7687 = vadd.f32 %v7574, %v7686
  %v7688 = vpop.f32.mrf.mxu0
  %v7689 = vadd.f32 %v7576, %v7688
  %7690 = vmatprep.mubr.bf16.mxu0 %v3715
  %7691 = vmatmul.mubr.bf16.gmra.mxu0 %v3714
  %v7692 = vpop.f32.mrf.mxu0
  %v7693 = vadd.f32 %v7580, %v7692
  %v7694 = vpop.f32.mrf.mxu0
  %v7695 = vadd.f32 %v7582, %v7694
  %v7696 = vpop.f32.mrf.mxu0
  %v7697 = vadd.f32 %v7584, %v7696
  %v7698 = vpop.f32.mrf.mxu0
  %v7699 = vadd.f32 %v7586, %v7698
  %7700 = vmatprep.mubr.bf16.mxu0 %v3723
  %7701 = vmatmul.mubr.bf16.gmra.mxu0 %v3722
  %v7702 = vpop.f32.mrf.mxu0
  %v7703 = vadd.f32 %v7590, %v7702
  %v7704 = vpop.f32.mrf.mxu0
  %v7705 = vadd.f32 %v7592, %v7704
  %v7706 = vpop.f32.mrf.mxu0
  %v7707 = vadd.f32 %v7594, %v7706
  %v7708 = vpop.f32.mrf.mxu0
  %v7709 = vadd.f32 %v7596, %v7708
  %7710 = vdwg.mxu0
  %7711 = vmatprep.subr.bf16.mxu0 %v5963
  %7712 = vmatpush1.bf16.msra.mxu0 %v5962
  %7713 = vmatprep.subr.bf16.mxu0 %v5956
  %7714 = vmatpush1.bf16.msra.mxu0 %v5955
  %7715 = vmatprep.subr.bf16.mxu0 %v5949
  %7716 = vmatpush1.bf16.msra.mxu0 %v5948
  %7717 = vmatprep.subr.bf16.mxu0 %v5942
  %7718 = vmatpush1.bf16.msra.mxu0 %v5941
  %7719 = vmatprep.subr.bf16.mxu0 %v5935
  %7720 = vmatpush1.bf16.msra.mxu0 %v5934
  %7721 = vmatprep.subr.bf16.mxu0 %v5928
  %7722 = vmatpush1.bf16.msra.mxu0 %v5927
  %7723 = vmatprep.subr.bf16.mxu0 %v5921
  %7724 = vmatpush1.bf16.msra.mxu0 %v5920
  %7725 = vmatprep.subr.bf16.mxu0 %v5914
  %7726 = vmatpush1.bf16.msra.mxu0 %v5913
  %7727 = vmatprep.subr.bf16.mxu0 %v6019
  %7728 = vmatpush2.bf16.msra.mxu0 %v6018
  %7729 = vmatprep.subr.bf16.mxu0 %v6012
  %7730 = vmatpush2.bf16.msra.mxu0 %v6011
  %7731 = vmatprep.subr.bf16.mxu0 %v6005
  %7732 = vmatpush2.bf16.msra.mxu0 %v6004
  %7733 = vmatprep.subr.bf16.mxu0 %v5998
  %7734 = vmatpush2.bf16.msra.mxu0 %v5997
  %7735 = vmatprep.subr.bf16.mxu0 %v5991
  %7736 = vmatpush2.bf16.msra.mxu0 %v5990
  %7737 = vmatprep.subr.bf16.mxu0 %v5984
  %7738 = vmatpush2.bf16.msra.mxu0 %v5983
  %7739 = vmatprep.subr.bf16.mxu0 %v5977
  %7740 = vmatpush2.bf16.msra.mxu0 %v5976
  %7741 = vmatprep.subr.bf16.mxu0 %v5970
  %7742 = vmatpush2.bf16.msra.mxu0 %v5969
  %7743 = vmatprep.mubr.bf16.mxu0 %v3669
  %7744 = vmatmul.mubr.bf16.gmra.mxu0 %v3668
  %v7745 = vpop.f32.mrf.mxu0
  %v7746 = vadd.f32 %v7633, %v7745
  %v7747 = vpop.f32.mrf.mxu0
  %v7748 = vadd.f32 %v7635, %v7747
  %v7749 = vpop.f32.mrf.mxu0
  %v7750 = vadd.f32 %v7637, %v7749
  %v7751 = vpop.f32.mrf.mxu0
  %v7752 = vadd.f32 %v7639, %v7751
  %7753 = vmatprep.mubr.bf16.mxu0 %v3677
  %7754 = vmatmul.mubr.bf16.gmra.mxu0 %v3676
  %v7755 = vpop.f32.mrf.mxu0
  %v7756 = vadd.f32 %v7643, %v7755
  %v7757 = vpop.f32.mrf.mxu0
  %v7758 = vadd.f32 %v7645, %v7757
  %v7759 = vpop.f32.mrf.mxu0
  %v7760 = vadd.f32 %v7647, %v7759
  %v7761 = vpop.f32.mrf.mxu0
  %v7762 = vadd.f32 %v7649, %v7761
  %7763 = vmatprep.mubr.bf16.mxu0 %v3685
  %7764 = vmatmul.mubr.bf16.gmra.mxu0 %v3684
  %v7765 = vpop.f32.mrf.mxu0
  %v7766 = vadd.f32 %v7653, %v7765
  %v7767 = vpop.f32.mrf.mxu0
  %v7768 = vadd.f32 %v7655, %v7767
  %v7769 = vpop.f32.mrf.mxu0
  %v7770 = vadd.f32 %v7657, %v7769
  %v7771 = vpop.f32.mrf.mxu0
  %v7772 = vadd.f32 %v7659, %v7771
  %7773 = vmatprep.mubr.bf16.mxu0 %v3693
  %7774 = vmatmul.mubr.bf16.gmra.mxu0 %v3692
  %v7775 = vpop.f32.mrf.mxu0
  %v7776 = vadd.f32 %v7663, %v7775
  %v7777 = vpop.f32.mrf.mxu0
  %v7778 = vadd.f32 %v7665, %v7777
  %v7779 = vpop.f32.mrf.mxu0
  %v7780 = vadd.f32 %v7667, %v7779
  %v7781 = vpop.f32.mrf.mxu0
  %v7782 = vadd.f32 %v7669, %v7781
  %7783 = vmatprep.mubr.bf16.mxu0 %v3701
  %7784 = vmatmul.mubr.bf16.gmra.mxu0 %v3700
  %v7785 = vpop.f32.mrf.mxu0
  %v7786 = vadd.f32 %v7673, %v7785
  %v7787 = vpop.f32.mrf.mxu0
  %v7788 = vadd.f32 %v7675, %v7787
  %v7789 = vpop.f32.mrf.mxu0
  %v7790 = vadd.f32 %v7677, %v7789
  %v7791 = vpop.f32.mrf.mxu0
  %v7792 = vadd.f32 %v7679, %v7791
  %7793 = vmatprep.mubr.bf16.mxu0 %v3709
  %7794 = vmatmul.mubr.bf16.gmra.mxu0 %v3708
  %v7795 = vpop.f32.mrf.mxu0
  %v7796 = vadd.f32 %v7683, %v7795
  %v7797 = vpop.f32.mrf.mxu0
  %v7798 = vadd.f32 %v7685, %v7797
  %v7799 = vpop.f32.mrf.mxu0
  %v7800 = vadd.f32 %v7687, %v7799
  %v7801 = vpop.f32.mrf.mxu0
  %v7802 = vadd.f32 %v7689, %v7801
  %7803 = vmatprep.mubr.bf16.mxu0 %v3717
  %7804 = vmatmul.mubr.bf16.gmra.mxu0 %v3716
  %v7805 = vpop.f32.mrf.mxu0
  %v7806 = vadd.f32 %v7693, %v7805
  %v7807 = vpop.f32.mrf.mxu0
  %v7808 = vadd.f32 %v7695, %v7807
  %v7809 = vpop.f32.mrf.mxu0
  %v7810 = vadd.f32 %v7697, %v7809
  %v7811 = vpop.f32.mrf.mxu0
  %v7812 = vadd.f32 %v7699, %v7811
  %7813 = vmatprep.mubr.bf16.mxu0 %v3725
  %7814 = vmatmul.mubr.bf16.gmra.mxu0 %v3724
  %v7815 = vpop.f32.mrf.mxu0
  %v7816 = vadd.f32 %v7703, %v7815
  %v7817 = vpop.f32.mrf.mxu0
  %v7818 = vadd.f32 %v7705, %v7817
  %v7819 = vpop.f32.mrf.mxu0
  %v7820 = vadd.f32 %v7707, %v7819
  %v7821 = vpop.f32.mrf.mxu0
  %v7822 = vadd.f32 %v7709, %v7821
  %7823 = vdwg.mxu0
  %7824 = vmatprep.subr.bf16.mxu0 %v6075
  %7825 = vmatpush1.bf16.msra.mxu0 %v6074
  %7826 = vmatprep.subr.bf16.mxu0 %v6068
  %7827 = vmatpush1.bf16.msra.mxu0 %v6067
  %7828 = vmatprep.subr.bf16.mxu0 %v6061
  %7829 = vmatpush1.bf16.msra.mxu0 %v6060
  %7830 = vmatprep.subr.bf16.mxu0 %v6054
  %7831 = vmatpush1.bf16.msra.mxu0 %v6053
  %7832 = vmatprep.subr.bf16.mxu0 %v6047
  %7833 = vmatpush1.bf16.msra.mxu0 %v6046
  %7834 = vmatprep.subr.bf16.mxu0 %v6040
  %7835 = vmatpush1.bf16.msra.mxu0 %v6039
  %7836 = vmatprep.subr.bf16.mxu0 %v6033
  %7837 = vmatpush1.bf16.msra.mxu0 %v6032
  %7838 = vmatprep.subr.bf16.mxu0 %v6026
  %7839 = vmatpush1.bf16.msra.mxu0 %v6025
  %7840 = vmatprep.subr.bf16.mxu0 %v6131
  %7841 = vmatpush2.bf16.msra.mxu0 %v6130
  %7842 = vmatprep.subr.bf16.mxu0 %v6124
  %7843 = vmatpush2.bf16.msra.mxu0 %v6123
  %7844 = vmatprep.subr.bf16.mxu0 %v6117
  %7845 = vmatpush2.bf16.msra.mxu0 %v6116
  %7846 = vmatprep.subr.bf16.mxu0 %v6110
  %7847 = vmatpush2.bf16.msra.mxu0 %v6109
  %7848 = vmatprep.subr.bf16.mxu0 %v6103
  %7849 = vmatpush2.bf16.msra.mxu0 %v6102
  %7850 = vmatprep.subr.bf16.mxu0 %v6096
  %7851 = vmatpush2.bf16.msra.mxu0 %v6095
  %7852 = vmatprep.subr.bf16.mxu0 %v6089
  %7853 = vmatpush2.bf16.msra.mxu0 %v6088
  %7854 = vmatprep.subr.bf16.mxu0 %v6082
  %7855 = vmatpush2.bf16.msra.mxu0 %v6081
  %7856 = vmatprep.mubr.bf16.mxu0 %v3671
  %7857 = vmatmul.mubr.bf16.gmra.mxu0 %v3670
  %v7858 = vpop.f32.mrf.mxu0
  %v7859 = vadd.f32 %v7746, %v7858
  %v7860 = vpop.f32.mrf.mxu0
  %v7861 = vadd.f32 %v7748, %v7860
  %v7862 = vpop.f32.mrf.mxu0
  %v7863 = vadd.f32 %v7750, %v7862
  %v7864 = vpop.f32.mrf.mxu0
  %v7865 = vadd.f32 %v7752, %v7864
  %7866 = vmatprep.mubr.bf16.mxu0 %v3679
  %7867 = vmatmul.mubr.bf16.gmra.mxu0 %v3678
  %v7868 = vpop.f32.mrf.mxu0
  %v7869 = vadd.f32 %v7756, %v7868
  %v7870 = vpop.f32.mrf.mxu0
  %v7871 = vadd.f32 %v7758, %v7870
  %v7872 = vpop.f32.mrf.mxu0
  %v7873 = vadd.f32 %v7760, %v7872
  %v7874 = vpop.f32.mrf.mxu0
  %v7875 = vadd.f32 %v7762, %v7874
  %7876 = vmatprep.mubr.bf16.mxu0 %v3687
  %7877 = vmatmul.mubr.bf16.gmra.mxu0 %v3686
  %v7878 = vpop.f32.mrf.mxu0
  %v7879 = vadd.f32 %v7766, %v7878
  %v7880 = vpop.f32.mrf.mxu0
  %v7881 = vadd.f32 %v7768, %v7880
  %v7882 = vpop.f32.mrf.mxu0
  %v7883 = vadd.f32 %v7770, %v7882
  %v7884 = vpop.f32.mrf.mxu0
  %v7885 = vadd.f32 %v7772, %v7884
  %7886 = vmatprep.mubr.bf16.mxu0 %v3695
  %7887 = vmatmul.mubr.bf16.gmra.mxu0 %v3694
  %v7888 = vpop.f32.mrf.mxu0
  %v7889 = vadd.f32 %v7776, %v7888
  %v7890 = vpop.f32.mrf.mxu0
  %v7891 = vadd.f32 %v7778, %v7890
  %v7892 = vpop.f32.mrf.mxu0
  %v7893 = vadd.f32 %v7780, %v7892
  %v7894 = vpop.f32.mrf.mxu0
  %v7895 = vadd.f32 %v7782, %v7894
  %7896 = vmatprep.mubr.bf16.mxu0 %v3703
  %7897 = vmatmul.mubr.bf16.gmra.mxu0 %v3702
  %v7898 = vpop.f32.mrf.mxu0
  %v7899 = vadd.f32 %v7786, %v7898
  %v7900 = vpop.f32.mrf.mxu0
  %v7901 = vadd.f32 %v7788, %v7900
  %v7902 = vpop.f32.mrf.mxu0
  %v7903 = vadd.f32 %v7790, %v7902
  %v7904 = vpop.f32.mrf.mxu0
  %v7905 = vadd.f32 %v7792, %v7904
  %7906 = vmatprep.mubr.bf16.mxu0 %v3711
  %7907 = vmatmul.mubr.bf16.gmra.mxu0 %v3710
  %v7908 = vpop.f32.mrf.mxu0
  %v7909 = vadd.f32 %v7796, %v7908
  %v7910 = vpop.f32.mrf.mxu0
  %v7911 = vadd.f32 %v7798, %v7910
  %v7912 = vpop.f32.mrf.mxu0
  %v7913 = vadd.f32 %v7800, %v7912
  %v7914 = vpop.f32.mrf.mxu0
  %v7915 = vadd.f32 %v7802, %v7914
  %7916 = vmatprep.mubr.bf16.mxu0 %v3719
  %7917 = vmatmul.mubr.bf16.gmra.mxu0 %v3718
  %v7918 = vpop.f32.mrf.mxu0
  %v7919 = vadd.f32 %v7806, %v7918
  %v7920 = vpop.f32.mrf.mxu0
  %v7921 = vadd.f32 %v7808, %v7920
  %v7922 = vpop.f32.mrf.mxu0
  %v7923 = vadd.f32 %v7810, %v7922
  %v7924 = vpop.f32.mrf.mxu0
  %v7925 = vadd.f32 %v7812, %v7924
  %7926 = vmatprep.mubr.bf16.mxu0 %v3727
  %7927 = vmatmul.mubr.bf16.gmra.mxu0 %v3726
  %v7928 = vpop.f32.mrf.mxu0
  %v7929 = vadd.f32 %v7816, %v7928
  %v7930 = vpop.f32.mrf.mxu0
  %v7931 = vadd.f32 %v7818, %v7930
  %v7932 = vpop.f32.mrf.mxu0
  %v7933 = vadd.f32 %v7820, %v7932
  %v7934 = vpop.f32.mrf.mxu0
  %v7935 = vadd.f32 %v7822, %v7934
  %7936 = vdwg.mxu0
  %7937 = vmatprep.subr.bf16.mxu0 0
  %7938 = vmatpush1.bf16.msra.mxu0 %v5740
  %7939 = vmatprep.subr.bf16.mxu0 0
  %7940 = vmatpush1.bf16.msra.mxu0 %v5733
  %7941 = vmatprep.subr.bf16.mxu0 0
  %7942 = vmatpush1.bf16.msra.mxu0 %v5726
  %7943 = vmatprep.subr.bf16.mxu0 0
  %7944 = vmatpush1.bf16.msra.mxu0 %v5719
  %7945 = vmatprep.subr.bf16.mxu0 0
  %7946 = vmatpush1.bf16.msra.mxu0 %v5712
  %7947 = vmatprep.subr.bf16.mxu0 0
  %7948 = vmatpush1.bf16.msra.mxu0 %v5705
  %7949 = vmatprep.subr.bf16.mxu0 0
  %7950 = vmatpush1.bf16.msra.mxu0 %v5698
  %7951 = vmatprep.subr.bf16.mxu0 0
  %7952 = vmatpush1.bf16.msra.mxu0 %v5691
  %7953 = vmatprep.subr.bf16.mxu0 0
  %7954 = vmatpush2.bf16.msra.mxu0 %v5796
  %7955 = vmatprep.subr.bf16.mxu0 0
  %7956 = vmatpush2.bf16.msra.mxu0 %v5789
  %7957 = vmatprep.subr.bf16.mxu0 0
  %7958 = vmatpush2.bf16.msra.mxu0 %v5782
  %7959 = vmatprep.subr.bf16.mxu0 0
  %7960 = vmatpush2.bf16.msra.mxu0 %v5775
  %7961 = vmatprep.subr.bf16.mxu0 0
  %7962 = vmatpush2.bf16.msra.mxu0 %v5768
  %7963 = vmatprep.subr.bf16.mxu0 0
  %7964 = vmatpush2.bf16.msra.mxu0 %v5761
  %7965 = vmatprep.subr.bf16.mxu0 0
  %7966 = vmatpush2.bf16.msra.mxu0 %v5754
  %7967 = vmatprep.subr.bf16.mxu0 0
  %7968 = vmatpush2.bf16.msra.mxu0 %v5747
  %7969 = vmatprep.mubr.bf16.mxu0 %v3665
  %7970 = vmatmul.mubr.bf16.gmra.mxu0 %v3664
  %v7971 = vpop.f32.mrf.mxu0
  %v7972 = vadd.f32 %v4269, %v7971
  %v7973 = vpop.f32.mrf.mxu0
  %v7974 = vpop.f32.mrf.mxu0
  %v7975 = vadd.f32 %v4269, %v7974
  %v7976 = vpop.f32.mrf.mxu0
  %7977 = vmatprep.mubr.bf16.mxu0 %v3673
  %7978 = vmatmul.mubr.bf16.gmra.mxu0 %v3672
  %v7979 = vpop.f32.mrf.mxu0
  %v7980 = vadd.f32 %v4269, %v7979
  %v7981 = vpop.f32.mrf.mxu0
  %v7982 = vpop.f32.mrf.mxu0
  %v7983 = vadd.f32 %v4269, %v7982
  %v7984 = vpop.f32.mrf.mxu0
  %7985 = vmatprep.mubr.bf16.mxu0 %v3681
  %7986 = vmatmul.mubr.bf16.gmra.mxu0 %v3680
  %v7987 = vpop.f32.mrf.mxu0
  %v7988 = vadd.f32 %v4269, %v7987
  %v7989 = vpop.f32.mrf.mxu0
  %v7990 = vpop.f32.mrf.mxu0
  %v7991 = vadd.f32 %v4269, %v7990
  %v7992 = vpop.f32.mrf.mxu0
  %7993 = vmatprep.mubr.bf16.mxu0 %v3689
  %7994 = vmatmul.mubr.bf16.gmra.mxu0 %v3688
  %v7995 = vpop.f32.mrf.mxu0
  %v7996 = vadd.f32 %v4269, %v7995
  %v7997 = vpop.f32.mrf.mxu0
  %v7998 = vpop.f32.mrf.mxu0
  %v7999 = vadd.f32 %v4269, %v7998
  %v8000 = vpop.f32.mrf.mxu0
  %8001 = vmatprep.mubr.bf16.mxu0 %v3697
  %8002 = vmatmul.mubr.bf16.gmra.mxu0 %v3696
  %v8003 = vpop.f32.mrf.mxu0
  %v8004 = vadd.f32 %v4269, %v8003
  %v8005 = vpop.f32.mrf.mxu0
  %v8006 = vpop.f32.mrf.mxu0
  %v8007 = vadd.f32 %v4269, %v8006
  %v8008 = vpop.f32.mrf.mxu0
  %8009 = vmatprep.mubr.bf16.mxu0 %v3705
  %8010 = vmatmul.mubr.bf16.gmra.mxu0 %v3704
  %v8011 = vpop.f32.mrf.mxu0
  %v8012 = vadd.f32 %v4269, %v8011
  %v8013 = vpop.f32.mrf.mxu0
  %v8014 = vpop.f32.mrf.mxu0
  %v8015 = vadd.f32 %v4269, %v8014
  %v8016 = vpop.f32.mrf.mxu0
  %8017 = vmatprep.mubr.bf16.mxu0 %v3713
  %8018 = vmatmul.mubr.bf16.gmra.mxu0 %v3712
  %v8019 = vpop.f32.mrf.mxu0
  %v8020 = vadd.f32 %v4269, %v8019
  %v8021 = vpop.f32.mrf.mxu0
  %v8022 = vpop.f32.mrf.mxu0
  %v8023 = vadd.f32 %v4269, %v8022
  %v8024 = vpop.f32.mrf.mxu0
  %8025 = vmatprep.mubr.bf16.mxu0 %v3721
  %8026 = vmatmul.mubr.bf16.gmra.mxu0 %v3720
  %v8027 = vpop.f32.mrf.mxu0
  %v8028 = vadd.f32 %v4269, %v8027
  %v8029 = vpop.f32.mrf.mxu0
  %v8030 = vpop.f32.mrf.mxu0
  %v8031 = vadd.f32 %v4269, %v8030
  %v8032 = vpop.f32.mrf.mxu0
  %8033 = vdwg.mxu0
  %8034 = vmatprep.subr.bf16.mxu0 0
  %8035 = vmatpush1.bf16.msra.mxu0 %v5852
  %8036 = vmatprep.subr.bf16.mxu0 0
  %8037 = vmatpush1.bf16.msra.mxu0 %v5845
  %8038 = vmatprep.subr.bf16.mxu0 0
  %8039 = vmatpush1.bf16.msra.mxu0 %v5838
  %8040 = vmatprep.subr.bf16.mxu0 0
  %8041 = vmatpush1.bf16.msra.mxu0 %v5831
  %8042 = vmatprep.subr.bf16.mxu0 0
  %8043 = vmatpush1.bf16.msra.mxu0 %v5824
  %8044 = vmatprep.subr.bf16.mxu0 0
  %8045 = vmatpush1.bf16.msra.mxu0 %v5817
  %8046 = vmatprep.subr.bf16.mxu0 0
  %8047 = vmatpush1.bf16.msra.mxu0 %v5810
  %8048 = vmatprep.subr.bf16.mxu0 0
  %8049 = vmatpush1.bf16.msra.mxu0 %v5803
  %8050 = vmatprep.subr.bf16.mxu0 0
  %8051 = vmatpush2.bf16.msra.mxu0 %v5908
  %8052 = vmatprep.subr.bf16.mxu0 0
  %8053 = vmatpush2.bf16.msra.mxu0 %v5901
  %8054 = vmatprep.subr.bf16.mxu0 0
  %8055 = vmatpush2.bf16.msra.mxu0 %v5894
  %8056 = vmatprep.subr.bf16.mxu0 0
  %8057 = vmatpush2.bf16.msra.mxu0 %v5887
  %8058 = vmatprep.subr.bf16.mxu0 0
  %8059 = vmatpush2.bf16.msra.mxu0 %v5880
  %8060 = vmatprep.subr.bf16.mxu0 0
  %8061 = vmatpush2.bf16.msra.mxu0 %v5873
  %8062 = vmatprep.subr.bf16.mxu0 0
  %8063 = vmatpush2.bf16.msra.mxu0 %v5866
  %8064 = vmatprep.subr.bf16.mxu0 0
  %8065 = vmatpush2.bf16.msra.mxu0 %v5859
  %8066 = vmatprep.mubr.bf16.mxu0 %v3667
  %8067 = vmatmul.mubr.bf16.gmra.mxu0 %v3666
  %v8068 = vpop.f32.mrf.mxu0
  %v8069 = vadd.f32 %v7972, %v8068
  %v8070 = vpop.f32.mrf.mxu0
  %v8071 = vpop.f32.mrf.mxu0
  %v8072 = vadd.f32 %v7975, %v8071
  %v8073 = vpop.f32.mrf.mxu0
  %8074 = vmatprep.mubr.bf16.mxu0 %v3675
  %8075 = vmatmul.mubr.bf16.gmra.mxu0 %v3674
  %v8076 = vpop.f32.mrf.mxu0
  %v8077 = vadd.f32 %v7980, %v8076
  %v8078 = vpop.f32.mrf.mxu0
  %v8079 = vpop.f32.mrf.mxu0
  %v8080 = vadd.f32 %v7983, %v8079
  %v8081 = vpop.f32.mrf.mxu0
  %8082 = vmatprep.mubr.bf16.mxu0 %v3683
  %8083 = vmatmul.mubr.bf16.gmra.mxu0 %v3682
  %v8084 = vpop.f32.mrf.mxu0
  %v8085 = vadd.f32 %v7988, %v8084
  %v8086 = vpop.f32.mrf.mxu0
  %v8087 = vpop.f32.mrf.mxu0
  %v8088 = vadd.f32 %v7991, %v8087
  %v8089 = vpop.f32.mrf.mxu0
  %8090 = vmatprep.mubr.bf16.mxu0 %v3691
  %8091 = vmatmul.mubr.bf16.gmra.mxu0 %v3690
  %v8092 = vpop.f32.mrf.mxu0
  %v8093 = vadd.f32 %v7996, %v8092
  %v8094 = vpop.f32.mrf.mxu0
  %v8095 = vpop.f32.mrf.mxu0
  %v8096 = vadd.f32 %v7999, %v8095
  %v8097 = vpop.f32.mrf.mxu0
  %8098 = vmatprep.mubr.bf16.mxu0 %v3699
  %8099 = vmatmul.mubr.bf16.gmra.mxu0 %v3698
  %v8100 = vpop.f32.mrf.mxu0
  %v8101 = vadd.f32 %v8004, %v8100
  %v8102 = vpop.f32.mrf.mxu0
  %v8103 = vpop.f32.mrf.mxu0
  %v8104 = vadd.f32 %v8007, %v8103
  %v8105 = vpop.f32.mrf.mxu0
  %8106 = vmatprep.mubr.bf16.mxu0 %v3707
  %8107 = vmatmul.mubr.bf16.gmra.mxu0 %v3706
  %v8108 = vpop.f32.mrf.mxu0
  %v8109 = vadd.f32 %v8012, %v8108
  %v8110 = vpop.f32.mrf.mxu0
  %v8111 = vpop.f32.mrf.mxu0
  %v8112 = vadd.f32 %v8015, %v8111
  %v8113 = vpop.f32.mrf.mxu0
  %8114 = vmatprep.mubr.bf16.mxu0 %v3715
  %8115 = vmatmul.mubr.bf16.gmra.mxu0 %v3714
  %v8116 = vpop.f32.mrf.mxu0
  %v8117 = vadd.f32 %v8020, %v8116
  %v8118 = vpop.f32.mrf.mxu0
  %v8119 = vpop.f32.mrf.mxu0
  %v8120 = vadd.f32 %v8023, %v8119
  %v8121 = vpop.f32.mrf.mxu0
  %8122 = vmatprep.mubr.bf16.mxu0 %v3723
  %8123 = vmatmul.mubr.bf16.gmra.mxu0 %v3722
  %v8124 = vpop.f32.mrf.mxu0
  %v8125 = vadd.f32 %v8028, %v8124
  %v8126 = vpop.f32.mrf.mxu0
  %v8127 = vpop.f32.mrf.mxu0
  %v8128 = vadd.f32 %v8031, %v8127
  %v8129 = vpop.f32.mrf.mxu0
  %8130 = vdwg.mxu0
  %8131 = vmatprep.subr.bf16.mxu0 0
  %8132 = vmatpush1.bf16.msra.mxu0 %v5964
  %8133 = vmatprep.subr.bf16.mxu0 0
  %8134 = vmatpush1.bf16.msra.mxu0 %v5957
  %8135 = vmatprep.subr.bf16.mxu0 0
  %8136 = vmatpush1.bf16.msra.mxu0 %v5950
  %8137 = vmatprep.subr.bf16.mxu0 0
  %8138 = vmatpush1.bf16.msra.mxu0 %v5943
  %8139 = vmatprep.subr.bf16.mxu0 0
  %8140 = vmatpush1.bf16.msra.mxu0 %v5936
  %8141 = vmatprep.subr.bf16.mxu0 0
  %8142 = vmatpush1.bf16.msra.mxu0 %v5929
  %8143 = vmatprep.subr.bf16.mxu0 0
  %8144 = vmatpush1.bf16.msra.mxu0 %v5922
  %8145 = vmatprep.subr.bf16.mxu0 0
  %8146 = vmatpush1.bf16.msra.mxu0 %v5915
  %8147 = vmatprep.subr.bf16.mxu0 0
  %8148 = vmatpush2.bf16.msra.mxu0 %v6020
  %8149 = vmatprep.subr.bf16.mxu0 0
  %8150 = vmatpush2.bf16.msra.mxu0 %v6013
  %8151 = vmatprep.subr.bf16.mxu0 0
  %8152 = vmatpush2.bf16.msra.mxu0 %v6006
  %8153 = vmatprep.subr.bf16.mxu0 0
  %8154 = vmatpush2.bf16.msra.mxu0 %v5999
  %8155 = vmatprep.subr.bf16.mxu0 0
  %8156 = vmatpush2.bf16.msra.mxu0 %v5992
  %8157 = vmatprep.subr.bf16.mxu0 0
  %8158 = vmatpush2.bf16.msra.mxu0 %v5985
  %8159 = vmatprep.subr.bf16.mxu0 0
  %8160 = vmatpush2.bf16.msra.mxu0 %v5978
  %8161 = vmatprep.subr.bf16.mxu0 0
  %8162 = vmatpush2.bf16.msra.mxu0 %v5971
  %8163 = vmatprep.mubr.bf16.mxu0 %v3669
  %8164 = vmatmul.mubr.bf16.gmra.mxu0 %v3668
  %v8165 = vpop.f32.mrf.mxu0
  %v8166 = vadd.f32 %v8069, %v8165
  %v8167 = vpop.f32.mrf.mxu0
  %v8168 = vpop.f32.mrf.mxu0
  %v8169 = vadd.f32 %v8072, %v8168
  %v8170 = vpop.f32.mrf.mxu0
  %8171 = vmatprep.mubr.bf16.mxu0 %v3677
  %8172 = vmatmul.mubr.bf16.gmra.mxu0 %v3676
  %v8173 = vpop.f32.mrf.mxu0
  %v8174 = vadd.f32 %v8077, %v8173
  %v8175 = vpop.f32.mrf.mxu0
  %v8176 = vpop.f32.mrf.mxu0
  %v8177 = vadd.f32 %v8080, %v8176
  %v8178 = vpop.f32.mrf.mxu0
  %8179 = vmatprep.mubr.bf16.mxu0 %v3685
  %8180 = vmatmul.mubr.bf16.gmra.mxu0 %v3684
  %v8181 = vpop.f32.mrf.mxu0
  %v8182 = vadd.f32 %v8085, %v8181
  %v8183 = vpop.f32.mrf.mxu0
  %v8184 = vpop.f32.mrf.mxu0
  %v8185 = vadd.f32 %v8088, %v8184
  %v8186 = vpop.f32.mrf.mxu0
  %8187 = vmatprep.mubr.bf16.mxu0 %v3693
  %8188 = vmatmul.mubr.bf16.gmra.mxu0 %v3692
  %v8189 = vpop.f32.mrf.mxu0
  %v8190 = vadd.f32 %v8093, %v8189
  %v8191 = vpop.f32.mrf.mxu0
  %v8192 = vpop.f32.mrf.mxu0
  %v8193 = vadd.f32 %v8096, %v8192
  %v8194 = vpop.f32.mrf.mxu0
  %8195 = vmatprep.mubr.bf16.mxu0 %v3701
  %8196 = vmatmul.mubr.bf16.gmra.mxu0 %v3700
  %v8197 = vpop.f32.mrf.mxu0
  %v8198 = vadd.f32 %v8101, %v8197
  %v8199 = vpop.f32.mrf.mxu0
  %v8200 = vpop.f32.mrf.mxu0
  %v8201 = vadd.f32 %v8104, %v8200
  %v8202 = vpop.f32.mrf.mxu0
  %8203 = vmatprep.mubr.bf16.mxu0 %v3709
  %8204 = vmatmul.mubr.bf16.gmra.mxu0 %v3708
  %v8205 = vpop.f32.mrf.mxu0
  %v8206 = vadd.f32 %v8109, %v8205
  %v8207 = vpop.f32.mrf.mxu0
  %v8208 = vpop.f32.mrf.mxu0
  %v8209 = vadd.f32 %v8112, %v8208
  %v8210 = vpop.f32.mrf.mxu0
  %8211 = vmatprep.mubr.bf16.mxu0 %v3717
  %8212 = vmatmul.mubr.bf16.gmra.mxu0 %v3716
  %v8213 = vpop.f32.mrf.mxu0
  %v8214 = vadd.f32 %v8117, %v8213
  %v8215 = vpop.f32.mrf.mxu0
  %v8216 = vpop.f32.mrf.mxu0
  %v8217 = vadd.f32 %v8120, %v8216
  %v8218 = vpop.f32.mrf.mxu0
  %8219 = vmatprep.mubr.bf16.mxu0 %v3725
  %8220 = vmatmul.mubr.bf16.gmra.mxu0 %v3724
  %v8221 = vpop.f32.mrf.mxu0
  %v8222 = vadd.f32 %v8125, %v8221
  %v8223 = vpop.f32.mrf.mxu0
  %v8224 = vpop.f32.mrf.mxu0
  %v8225 = vadd.f32 %v8128, %v8224
  %v8226 = vpop.f32.mrf.mxu0
  %8227 = vdwg.mxu0
  %8228 = vmatprep.subr.bf16.mxu0 0
  %8229 = vmatpush1.bf16.msra.mxu0 %v6076
  %8230 = vmatprep.subr.bf16.mxu0 0
  %8231 = vmatpush1.bf16.msra.mxu0 %v6069
  %8232 = vmatprep.subr.bf16.mxu0 0
  %8233 = vmatpush1.bf16.msra.mxu0 %v6062
  %8234 = vmatprep.subr.bf16.mxu0 0
  %8235 = vmatpush1.bf16.msra.mxu0 %v6055
  %8236 = vmatprep.subr.bf16.mxu0 0
  %8237 = vmatpush1.bf16.msra.mxu0 %v6048
  %8238 = vmatprep.subr.bf16.mxu0 0
  %8239 = vmatpush1.bf16.msra.mxu0 %v6041
  %8240 = vmatprep.subr.bf16.mxu0 0
  %8241 = vmatpush1.bf16.msra.mxu0 %v6034
  %8242 = vmatprep.subr.bf16.mxu0 0
  %8243 = vmatpush1.bf16.msra.mxu0 %v6027
  %8244 = vmatprep.subr.bf16.mxu0 0
  %8245 = vmatpush2.bf16.msra.mxu0 %v6132
  %8246 = vmatprep.subr.bf16.mxu0 0
  %8247 = vmatpush2.bf16.msra.mxu0 %v6125
  %8248 = vmatprep.subr.bf16.mxu0 0
  %8249 = vmatpush2.bf16.msra.mxu0 %v6118
  %8250 = vmatprep.subr.bf16.mxu0 0
  %8251 = vmatpush2.bf16.msra.mxu0 %v6111
  %8252 = vmatprep.subr.bf16.mxu0 0
  %8253 = vmatpush2.bf16.msra.mxu0 %v6104
  %8254 = vmatprep.subr.bf16.mxu0 0
  %8255 = vmatpush2.bf16.msra.mxu0 %v6097
  %8256 = vmatprep.subr.bf16.mxu0 0
  %8257 = vmatpush2.bf16.msra.mxu0 %v6090
  %8258 = vmatprep.subr.bf16.mxu0 0
  %8259 = vmatpush2.bf16.msra.mxu0 %v6083
  %8260 = vmatprep.mubr.bf16.mxu0 %v3671
  %8261 = vmatmul.mubr.bf16.gmra.mxu0 %v3670
  %v8262 = vpop.f32.mrf.mxu0
  %v8263 = vadd.f32 %v8166, %v8262
  %v8264 = vpop.f32.mrf.mxu0
  %v8265 = vpop.f32.mrf.mxu0
  %v8266 = vadd.f32 %v8169, %v8265
  %v8267 = vpop.f32.mrf.mxu0
  %8268 = vmatprep.mubr.bf16.mxu0 %v3679
  %8269 = vmatmul.mubr.bf16.gmra.mxu0 %v3678
  %v8270 = vpop.f32.mrf.mxu0
  %v8271 = vadd.f32 %v8174, %v8270
  %v8272 = vpop.f32.mrf.mxu0
  %v8273 = vpop.f32.mrf.mxu0
  %v8274 = vadd.f32 %v8177, %v8273
  %v8275 = vpop.f32.mrf.mxu0
  %8276 = vmatprep.mubr.bf16.mxu0 %v3687
  %8277 = vmatmul.mubr.bf16.gmra.mxu0 %v3686
  %v8278 = vpop.f32.mrf.mxu0
  %v8279 = vadd.f32 %v8182, %v8278
  %v8280 = vpop.f32.mrf.mxu0
  %v8281 = vpop.f32.mrf.mxu0
  %v8282 = vadd.f32 %v8185, %v8281
  %v8283 = vpop.f32.mrf.mxu0
  %8284 = vmatprep.mubr.bf16.mxu0 %v3695
  %8285 = vmatmul.mubr.bf16.gmra.mxu0 %v3694
  %v8286 = vpop.f32.mrf.mxu0
  %v8287 = vadd.f32 %v8190, %v8286
  %v8288 = vpop.f32.mrf.mxu0
  %v8289 = vpop.f32.mrf.mxu0
  %v8290 = vadd.f32 %v8193, %v8289
  %v8291 = vpop.f32.mrf.mxu0
  %8292 = vmatprep.mubr.bf16.mxu0 %v3703
  %8293 = vmatmul.mubr.bf16.gmra.mxu0 %v3702
  %v8294 = vpop.f32.mrf.mxu0
  %v8295 = vadd.f32 %v8198, %v8294
  %v8296 = vpop.f32.mrf.mxu0
  %v8297 = vpop.f32.mrf.mxu0
  %v8298 = vadd.f32 %v8201, %v8297
  %v8299 = vpop.f32.mrf.mxu0
  %8300 = vmatprep.mubr.bf16.mxu0 %v3711
  %8301 = vmatmul.mubr.bf16.gmra.mxu0 %v3710
  %v8302 = vpop.f32.mrf.mxu0
  %v8303 = vadd.f32 %v8206, %v8302
  %v8304 = vpop.f32.mrf.mxu0
  %v8305 = vpop.f32.mrf.mxu0
  %v8306 = vadd.f32 %v8209, %v8305
  %v8307 = vpop.f32.mrf.mxu0
  %8308 = vmatprep.mubr.bf16.mxu0 %v3719
  %8309 = vmatmul.mubr.bf16.gmra.mxu0 %v3718
  %v8310 = vpop.f32.mrf.mxu0
  %v8311 = vadd.f32 %v8214, %v8310
  %v8312 = vpop.f32.mrf.mxu0
  %v8313 = vpop.f32.mrf.mxu0
  %v8314 = vadd.f32 %v8217, %v8313
  %v8315 = vpop.f32.mrf.mxu0
  %8316 = vmatprep.mubr.bf16.mxu0 %v3727
  %8317 = vmatmul.mubr.bf16.gmra.mxu0 %v3726
  %v8318 = vpop.f32.mrf.mxu0
  %v8319 = vadd.f32 %v8222, %v8318
  %v8320 = vpop.f32.mrf.mxu0
  %v8321 = vpop.f32.mrf.mxu0
  %v8322 = vadd.f32 %v8225, %v8321
  %v8323 = vpop.f32.mrf.mxu0
  %8324 = vdwg.mxu0
  %v8325 = vtanh.pop %v6955
  %v8326 = vtanh.pop %v6957
  %v8327 = vtanh.pop %v7407
  %v8328 = vtanh.pop %v7409
  %v8329 = vtanh.pop %v7859
  %v8330 = vtanh.pop %v7861
  %v8331 = vtanh.pop %v8263
  %v8332 = vtanh.pop %v6959
  %v8333 = vtanh.pop %v6961
  %v8334 = vtanh.pop %v7411
  %v8335 = vtanh.pop %v7413
  %v8336 = vtanh.pop %v7863
  %v8337 = vtanh.pop %v7865
  %v8338 = vtanh.pop %v8266
  %v8339 = vtanh.pop %v6965
  %v8340 = vtanh.pop %v6967
  %v8341 = vtanh.pop %v7417
  %v8342 = vtanh.pop %v7419
  %v8343 = vtanh.pop %v7869
  %v8344 = vtanh.pop %v7871
  %v8345 = vtanh.pop %v8271
  %v8346 = vtanh.pop %v6969
  %v8347 = vtanh.pop %v6971
  %v8348 = vtanh.pop %v7421
  %v8349 = vtanh.pop %v7423
  %v8350 = vtanh.pop %v7873
  %v8351 = vtanh.pop %v7875
  %v8352 = vtanh.pop %v8274
  %v8353 = vtanh.pop %v6975
  %v8354 = vtanh.pop %v6977
  %v8355 = vtanh.pop %v7427
  %v8356 = vtanh.pop %v7429
  %v8357 = vtanh.pop %v7879
  %v8358 = vtanh.pop %v7881
  %v8359 = vtanh.pop %v8279
  %v8360 = vtanh.pop %v6979
  %v8361 = vtanh.pop %v6981
  %v8362 = vtanh.pop %v7431
  %v8363 = vtanh.pop %v7433
  %v8364 = vtanh.pop %v7883
  %v8365 = vtanh.pop %v7885
  %v8366 = vtanh.pop %v8282
  %v8367 = vtanh.pop %v6985
  %v8368 = vtanh.pop %v6987
  %v8369 = vtanh.pop %v7437
  %v8370 = vtanh.pop %v7439
  %v8371 = vtanh.pop %v7889
  %v8372 = vtanh.pop %v7891
  %v8373 = vtanh.pop %v8287
  %v8374 = vtanh.pop %v6989
  %v8375 = vtanh.pop %v6991
  %v8376 = vtanh.pop %v7441
  %v8377 = vtanh.pop %v7443
  %v8378 = vtanh.pop %v7893
  %v8379 = vtanh.pop %v7895
  %v8380 = vtanh.pop %v8290
  %v8381 = vtanh.pop %v6995
  %v8382 = vtanh.pop %v6997
  %v8383 = vtanh.pop %v7447
  %v8384 = vtanh.pop %v7449
  %v8385 = vtanh.pop %v7899
  %v8386 = vtanh.pop %v7901
  %v8387 = vtanh.pop %v8295
  %v8388 = vtanh.pop %v6999
  %v8389 = vtanh.pop %v7001
  %v8390 = vtanh.pop %v7451
  %v8391 = vtanh.pop %v7453
  %v8392 = vtanh.pop %v7903
  %v8393 = vtanh.pop %v7905
  %v8394 = vtanh.pop %v8298
  %v8395 = vtanh.pop %v7005
  %v8396 = vtanh.pop %v7007
  %v8397 = vtanh.pop %v7457
  %v8398 = vtanh.pop %v7459
  %v8399 = vtanh.pop %v7909
  %v8400 = vtanh.pop %v7911
  %v8401 = vtanh.pop %v8303
  %v8402 = vtanh.pop %v7009
  %v8403 = vtanh.pop %v7011
  %v8404 = vtanh.pop %v7461
  %v8405 = vtanh.pop %v7463
  %v8406 = vtanh.pop %v7913
  %v8407 = vtanh.pop %v7915
  %v8408 = vtanh.pop %v8306
  %v8409 = vtanh.pop %v7015
  %v8410 = vtanh.pop %v7017
  %v8411 = vtanh.pop %v7467
  %v8412 = vtanh.pop %v7469
  %v8413 = vtanh.pop %v7919
  %v8414 = vtanh.pop %v7921
  %v8415 = vtanh.pop %v8311
  %v8416 = vtanh.pop %v7019
  %v8417 = vtanh.pop %v7021
  %v8418 = vtanh.pop %v7471
  %v8419 = vtanh.pop %v7473
  %v8420 = vtanh.pop %v7923
  %v8421 = vtanh.pop %v7925
  %v8422 = vtanh.pop %v8314
  %v8423 = vtanh.pop %v7025
  %v8424 = vtanh.pop %v7027
  %v8425 = vtanh.pop %v7477
  %v8426 = vtanh.pop %v7479
  %v8427 = vtanh.pop %v7929
  %v8428 = vtanh.pop %v7931
  %v8429 = vtanh.pop %v8319
  %v8430 = vtanh.pop %v7029
  %v8431 = vtanh.pop %v7031
  %v8432 = vtanh.pop %v7481
  %v8433 = vtanh.pop %v7483
  %v8434 = vtanh.pop %v7933
  %v8435 = vtanh.pop %v7935
  %v8436 = vtanh.pop %v8322
  %8437 = vst [vmem:[%s9] sm:$0xff] %v8325
  %8438 = vst [vmem:[%s9 + $0x8] sm:$0xff] %v8326
  %8439 = vst [vmem:[%s9 + $0x10] sm:$0xff] %v8327
  %8440 = vst [vmem:[%s9 + $0x18] sm:$0xff] %v8328
  %8441 = vst [vmem:[%s9 + $0x20] sm:$0xff] %v8329
  %8442 = vst [vmem:[%s9 + $0x28] sm:$0xff] %v8330
  %8443 = vst [vmem:[%s9 + $0x30] sm:$0xff] %v8331
  %8444 = vst [vmem:[%s9 + $0x38] sm:$0xff] %v8332
  %8445 = vst [vmem:[%s9 + $0x40] sm:$0xff] %v8333
  %8446 = vst [vmem:[%s9 + $0x48] sm:$0xff] %v8334
  %8447 = vst [vmem:[%s9 + $0x50] sm:$0xff] %v8335
  %8448 = vst [vmem:[%s9 + $0x58] sm:$0xff] %v8336
  %8449 = vst [vmem:[%s9 + $0x60] sm:$0xff] %v8337
  %8450 = vst [vmem:[%s9 + $0x68] sm:$0xff] %v8338
  %8451 = vst [vmem:[%s9 + $0x70] sm:$0xff] %v8339
  %8452 = vst [vmem:[%s9 + $0x78] sm:$0xff] %v8340
  %8453 = vst [vmem:[%s9 + $0x80] sm:$0xff] %v8341
  %8454 = vst [vmem:[%s9 + $0x88] sm:$0xff] %v8342
  %8455 = vst [vmem:[%s9 + $0x90] sm:$0xff] %v8343
  %8456 = vst [vmem:[%s9 + $0x98] sm:$0xff] %v8344
  %8457 = vst [vmem:[%s9 + $0xa0] sm:$0xff] %v8345
  %8458 = vst [vmem:[%s9 + $0xa8] sm:$0xff] %v8346
  %8459 = vst [vmem:[%s9 + $0xb0] sm:$0xff] %v8347
  %8460 = vst [vmem:[%s9 + $0xb8] sm:$0xff] %v8348
  %8461 = vst [vmem:[%s9 + $0xc0] sm:$0xff] %v8349
  %8462 = vst [vmem:[%s9 + $0xc8] sm:$0xff] %v8350
  %8463 = vst [vmem:[%s9 + $0xd0] sm:$0xff] %v8351
  %8464 = vst [vmem:[%s9 + $0xd8] sm:$0xff] %v8352
  %8465 = vst [vmem:[%s9 + $0xe0] sm:$0xff] %v8353
  %8466 = vst [vmem:[%s9 + $0xe8] sm:$0xff] %v8354
  %8467 = vst [vmem:[%s9 + $0xf0] sm:$0xff] %v8355
  %8468 = vst [vmem:[%s9 + $0xf8] sm:$0xff] %v8356
  %8469 = vst [vmem:[%s9 + $0x100] sm:$0xff] %v8357
  %8470 = vst [vmem:[%s9 + $0x108] sm:$0xff] %v8358
  %8471 = vst [vmem:[%s9 + $0x110] sm:$0xff] %v8359
  %8472 = vst [vmem:[%s9 + $0x118] sm:$0xff] %v8360
  %8473 = vst [vmem:[%s9 + $0x120] sm:$0xff] %v8361
  %8474 = vst [vmem:[%s9 + $0x128] sm:$0xff] %v8362
  %8475 = vst [vmem:[%s9 + $0x130] sm:$0xff] %v8363
  %8476 = vst [vmem:[%s9 + $0x138] sm:$0xff] %v8364
  %8477 = vst [vmem:[%s9 + $0x140] sm:$0xff] %v8365
  %8478 = vst [vmem:[%s9 + $0x148] sm:$0xff] %v8366
  %8479 = vst [vmem:[%s9 + $0x150] sm:$0xff] %v8367
  %8480 = vst [vmem:[%s9 + $0x158] sm:$0xff] %v8368
  %8481 = vst [vmem:[%s9 + $0x160] sm:$0xff] %v8369
  %8482 = vst [vmem:[%s9 + $0x168] sm:$0xff] %v8370
  %8483 = vst [vmem:[%s9 + $0x170] sm:$0xff] %v8371
  %8484 = vst [vmem:[%s9 + $0x178] sm:$0xff] %v8372
  %8485 = vst [vmem:[%s9 + $0x180] sm:$0xff] %v8373
  %8486 = vst [vmem:[%s9 + $0x188] sm:$0xff] %v8374
  %8487 = vst [vmem:[%s9 + $0x190] sm:$0xff] %v8375
  %8488 = vst [vmem:[%s9 + $0x198] sm:$0xff] %v8376
  %8489 = vst [vmem:[%s9 + $0x1a0] sm:$0xff] %v8377
  %8490 = vst [vmem:[%s9 + $0x1a8] sm:$0xff] %v8378
  %8491 = vst [vmem:[%s9 + $0x1b0] sm:$0xff] %v8379
  %8492 = vst [vmem:[%s9 + $0x1b8] sm:$0xff] %v8380
  %8493 = vst [vmem:[%s9 + $0x1c0] sm:$0xff] %v8381
  %8494 = vst [vmem:[%s9 + $0x1c8] sm:$0xff] %v8382
  %8495 = vst [vmem:[%s9 + $0x1d0] sm:$0xff] %v8383
  %8496 = vst [vmem:[%s9 + $0x1d8] sm:$0xff] %v8384
  %8497 = vst [vmem:[%s9 + $0x1e0] sm:$0xff] %v8385
  %8498 = vst [vmem:[%s9 + $0x1e8] sm:$0xff] %v8386
  %8499 = vst [vmem:[%s9 + $0x1f0] sm:$0xff] %v8387
  %8500 = vst [vmem:[%s9 + $0x1f8] sm:$0xff] %v8388
  %8501 = vst [vmem:[%s9 + $0x200] sm:$0xff] %v8389
  %8502 = vst [vmem:[%s9 + $0x208] sm:$0xff] %v8390
  %8503 = vst [vmem:[%s9 + $0x210] sm:$0xff] %v8391
  %8504 = vst [vmem:[%s9 + $0x218] sm:$0xff] %v8392
  %8505 = vst [vmem:[%s9 + $0x220] sm:$0xff] %v8393
  %8506 = vst [vmem:[%s9 + $0x228] sm:$0xff] %v8394
  %8507 = vst [vmem:[%s9 + $0x230] sm:$0xff] %v8395
  %8508 = vst [vmem:[%s9 + $0x238] sm:$0xff] %v8396
  %8509 = vst [vmem:[%s9 + $0x240] sm:$0xff] %v8397
  %8510 = vst [vmem:[%s9 + $0x248] sm:$0xff] %v8398
  %8511 = vst [vmem:[%s9 + $0x250] sm:$0xff] %v8399
  %8512 = vst [vmem:[%s9 + $0x258] sm:$0xff] %v8400
  %8513 = vst [vmem:[%s9 + $0x260] sm:$0xff] %v8401
  %8514 = vst [vmem:[%s9 + $0x268] sm:$0xff] %v8402
  %8515 = vst [vmem:[%s9 + $0x270] sm:$0xff] %v8403
  %8516 = vst [vmem:[%s9 + $0x278] sm:$0xff] %v8404
  %8517 = vst [vmem:[%s9 + $0x280] sm:$0xff] %v8405
  %8518 = vst [vmem:[%s9 + $0x288] sm:$0xff] %v8406
  %8519 = vst [vmem:[%s9 + $0x290] sm:$0xff] %v8407
  %8520 = vst [vmem:[%s9 + $0x298] sm:$0xff] %v8408
  %8521 = vst [vmem:[%s9 + $0x2a0] sm:$0xff] %v8409
  %8522 = vst [vmem:[%s9 + $0x2a8] sm:$0xff] %v8410
  %8523 = vst [vmem:[%s9 + $0x2b0] sm:$0xff] %v8411
  %8524 = vst [vmem:[%s9 + $0x2b8] sm:$0xff] %v8412
  %8525 = vst [vmem:[%s9 + $0x2c0] sm:$0xff] %v8413
  %8526 = vst [vmem:[%s9 + $0x2c8] sm:$0xff] %v8414
  %8527 = vst [vmem:[%s9 + $0x2d0] sm:$0xff] %v8415
  %8528 = vst [vmem:[%s9 + $0x2d8] sm:$0xff] %v8416
  %8529 = vst [vmem:[%s9 + $0x2e0] sm:$0xff] %v8417
  %8530 = vst [vmem:[%s9 + $0x2e8] sm:$0xff] %v8418
  %8531 = vst [vmem:[%s9 + $0x2f0] sm:$0xff] %v8419
  %8532 = vst [vmem:[%s9 + $0x2f8] sm:$0xff] %v8420
  %8533 = vst [vmem:[%s9 + $0x300] sm:$0xff] %v8421
  %8534 = vst [vmem:[%s9 + $0x308] sm:$0xff] %v8422
  %8535 = vst [vmem:[%s9 + $0x310] sm:$0xff] %v8423
  %8536 = vst [vmem:[%s9 + $0x318] sm:$0xff] %v8424
  %8537 = vst [vmem:[%s9 + $0x320] sm:$0xff] %v8425
  %8538 = vst [vmem:[%s9 + $0x328] sm:$0xff] %v8426
  %8539 = vst [vmem:[%s9 + $0x330] sm:$0xff] %v8427
  %8540 = vst [vmem:[%s9 + $0x338] sm:$0xff] %v8428
  %8541 = vst [vmem:[%s9 + $0x340] sm:$0xff] %v8429
  %8542 = vst [vmem:[%s9 + $0x348] sm:$0xff] %v8430
  %8543 = vst [vmem:[%s9 + $0x350] sm:$0xff] %v8431
  %8544 = vst [vmem:[%s9 + $0x358] sm:$0xff] %v8432
  %8545 = vst [vmem:[%s9 + $0x360] sm:$0xff] %v8433
  %8546 = vst [vmem:[%s9 + $0x368] sm:$0xff] %v8434
  %8547 = vst [vmem:[%s9 + $0x370] sm:$0xff] %v8435
  %8548 = vst [vmem:[%s9 + $0x378] sm:$0xff] %v8436
  // Predicated region
  $region38: #{generator_forward.1} parent=0 // pred_check
    _
  $region39: #{generator_forward.1} parent=0 // pred_check_branch
    %8550 = sbr.rel (0) target = $region41
  $region40: #{generator_forward.1} parent=0 // pred_region
    _
  $region41: #{generator_forward.1} parent=0 // pred_fallthru
    _
  // Predicated region
  $region42: #{generator_forward.1} parent=0 // pred_check
    _
  $region43: #{generator_forward.1} parent=0 // pred_check_branch
    %8552 = sbr.rel (0) target = $region45
  $region44: #{generator_forward.1} parent=0 // pred_region
    _
  $region45: #{generator_forward.1} parent=0 // pred_fallthru
    _

</llo_original>
